<compile_context>
chip_gen: v5e
topology: v5e:2x2
jax: 0.10.0
libtpu: 0.0.40
codegen_flags: <defaults>
</compile_context>

<pallas_src>
import jax
import jax.numpy as jnp
from jax.experimental import pallas as pl
from jax.experimental.pallas import tpu as pltpu


def _softplus(x):
    # numerically stable softplus == log(1 + exp(x))  (BCEWithLogits formula)
    return jnp.maximum(x, 0.0) + jnp.log1p(jnp.exp(-jnp.abs(x)))


def _loss_tile_kernel(ue_ref, pe_ref, ne_ref, nbe_ref, sim_ref, negw_ref, out_ref):
    """One batch tile: emit per-row loss pieces (4 lane-dense rows of length TB)."""
    f32 = jnp.float32
    ue = ue_ref[...]        # (TB, D)    bf16  user embeds
    pe = pe_ref[...]        # (TB, D)    bf16  pos-item embeds
    ne = ne_ref[...]        # (TB, N, D) bf16  neg-item embeds
    nbe = nbe_ref[...]      # (TB, K, D) bf16  ii-neighbor item embeds
    sim = sim_ref[...]      # (TB, K)    f32   ii constraint scores
    neg_w = negw_ref[...]   # (TB, N)    f32   omega weights for negatives

    # Row-wise u·p (tiny) — upcast to f32 so no elementwise math runs in bf16
    # (v5e has no bf16 VPU/EUP path).
    pos_scores = jnp.sum(ue.astype(f32) * pe.astype(f32), axis=-1)          # (TB,)

    # D-contractions routed to the MXU (batched matmul, f32 accumulate) instead
    # of broadcast-multiply + XLU cross-lane reduce (feedback #5).
    ue3 = ue[:, None, :]                                                    # (TB, 1, D)
    neg_scores = jnp.einsum("bqd,bnd->bqn", ue3, ne,
                            preferred_element_type=f32)[:, 0, :]            # (TB, N)
    s = jnp.einsum("bqd,bkd->bqk", ue3, nbe,
                   preferred_element_type=f32)[:, 0, :]                     # (TB, K)

    # BCE-with-logits pieces: label 0 -> softplus(x), label 1 -> softplus(-x).
    # NOTE(v5e): softplus = exp + log1p on the EUP; keep D per tile >= 64 for
    # real workloads so loads-per-transcendental stays high (feedback #10).
    out_ref[0, :] = _softplus(-pos_scores)                                  # pos BCE (unweighted)
    out_ref[1, :] = jnp.mean(neg_w * _softplus(neg_scores), axis=-1)        # weighted neg BCE mean
    out_ref[2, :] = jnp.sum(sim * _softplus(-s), axis=-1)                   # loss_I per row
    out_ref[3, :] = neg_scores[:, 0] - pos_scores                           # x for g_loss (global beta)


def multi_aspect_graph_loss(user_tab, item_tab, beta_uD, beta_iD,
                            ii_neighbor_mat, ii_constraint_mat,
                            users, pos_items, neg_items, epoch, hyper,
                            tb=128):
    """Forward pass of MultiAspectGraph -> scalar loss (matches the PyTorch module)."""
    B = users.shape[0]
    N = neg_items.shape[1]
    K = ii_neighbor_mat.shape[1]
    D = user_tab.shape[1]

    # bf16 streaming copies of the tables (halves HBM bytes of the dominant
    # (B,N,D)/(B,K,D) streams); f32 master params are kept for the L2 norm.
    utab_bf = user_tab.astype(jnp.bfloat16)
    itab_bf = item_tab.astype(jnp.bfloat16)

    # ---- plain-JAX glue: embedding / constraint gathers (data-dependent) ----
    ue = utab_bf[users]                          # (B, D)
    pe = itab_bf[pos_items]                      # (B, D)
    ne = itab_bf[neg_items]                      # (B, N, D)
    nbe = itab_bf[ii_neighbor_mat[pos_items]]    # (B, K, D)
    sim = ii_constraint_mat[pos_items].astype(jnp.float32)    # (B, K)

    # ---- get_omegas (tiny elementwise -> wrapper) ----
    if hyper["w2"] > 0:
        pos_w = hyper["w1"] + hyper["w2"] * (beta_uD[users] * beta_iD[pos_items])
    else:
        pos_w = hyper["w1"] * jnp.ones((B,), jnp.float32)
    if hyper["w4"] > 0:
        neg_w = hyper["w3"] + hyper["w4"] * (beta_uD[users][:, None] * beta_iD[neg_items])
    else:
        neg_w = hyper["w3"] * jnp.ones((B, N), jnp.float32)
    pos_w = pos_w.astype(jnp.float32)
    neg_w = neg_w.astype(jnp.float32)

    # ---- pad batch to a multiple of the tile size (padded rows sliced away) ----
    b_pad = ((B + tb - 1) // tb) * tb
    pad = b_pad - B

    def _padb(a):
        return jnp.pad(a, [(0, pad)] + [(0, 0)] * (a.ndim - 1))

    ue_p, pe_p, ne_p, nbe_p, sim_p, negw_p = map(_padb, (ue, pe, ne, nbe, sim, neg_w))

    grid = (b_pad // tb,)
    out = pl.pallas_call(
        _loss_tile_kernel,
        out_shape=jax.ShapeDtypeStruct((4, b_pad), jnp.float32),
        grid_spec=pltpu.PrefetchScalarGridSpec(
            num_scalar_prefetch=0,
            grid=grid,
            in_specs=[
                pl.BlockSpec((tb, D), lambda i: (i, 0)),        # ue
                pl.BlockSpec((tb, D), lambda i: (i, 0)),        # pe
                pl.BlockSpec((tb, N, D), lambda i: (i, 0, 0)),  # ne
                pl.BlockSpec((tb, K, D), lambda i: (i, 0, 0)),  # nbe
                pl.BlockSpec((tb, K), lambda i: (i, 0)),        # sim
                pl.BlockSpec((tb, N), lambda i: (i, 0)),        # neg_w
            ],
            out_specs=pl.BlockSpec((4, tb), lambda i: (0, i)),  # lane-dense per-row outputs
        ),
        compiler_params=pltpu.CompilerParams(
            dimension_semantics=("parallel",),    # v7x: split batch tiles across the 2 TCs
            vmem_limit_bytes=32 * 1024 * 1024,    # explicit sizing; keep tiles 2-deep on v7x
        ),
    )(ue_p, pe_p, ne_p, nbe_p, sim_p, negw_p)

    pos_sp = out[0, :B]      # softplus(-pos_scores)
    neg_row = out[1, :B]     # mean_n(neg_w * softplus(neg_scores))
    lossI_row = out[2, :B]   # sum_k(sim * softplus(-s))
    x = out[3, :B]           # neg_scores[:,0] - pos_scores

    # ---- cal_loss_L final combination (wrapper scalars; nothing baked in kernel) ----
    loss_L = jnp.sum(pos_w * pos_sp + hyper["negative_weight"] * neg_row)

    # g_loss: torch softplus(x, beta=mean(exp(4*(pos - neg0))), threshold=20)
    beta_sp = jnp.mean(jnp.exp(-4.0 * x))
    bx = beta_sp * x
    # clamp inside exp only affects the discarded branch (forward value unchanged,
    # avoids inf in the unused lane)
    g_loss = jnp.sum(jnp.where(bx > 20.0, x,
                               jnp.log1p(jnp.exp(jnp.minimum(bx, 20.0))) / beta_sp))

    w = jnp.minimum(1.0, epoch / 30.0)            # clac_loss_w
    total = w * loss_L + (1.0 - w) * g_loss

    # ---- gamma * norm_loss: weight1..3 (== 1.0 each) + both full embedding tables,
    # computed on the f32 master parameters in the wrapper (never enters VMEM).
    norm = (3.0 + jnp.sum(user_tab * user_tab) + jnp.sum(item_tab * item_tab)) * 0.5
    total = total + hyper["gamma"] * norm

    # ---- lambda * cal_loss_I ----
    total = total + hyper["lambda"] * jnp.sum(lossI_row)
    return total


def _reference_loss(user_tab, item_tab, beta_uD, beta_iD,
                    ii_neighbor_mat, ii_constraint_mat,
                    users, pos_items, neg_items, epoch, hyper):
    """Pure-JAX (f32) reference mirroring the PyTorch forward."""
    B, N = neg_items.shape
    sp = lambda x: jnp.maximum(x, 0.0) + jnp.log1p(jnp.exp(-jnp.abs(x)))
    ue = user_tab[users]
    pe = item_tab[pos_items]
    ne = item_tab[neg_items]
    pos_scores = jnp.sum(ue * pe, -1)
    neg_scores = jnp.sum(ue[:, None, :] * ne, -1)
    pos_w = hyper["w1"] + hyper["w2"] * (beta_uD[users] * beta_iD[pos_items])
    neg_w = (hyper["w3"] + hyper["w4"] *
             (jnp.repeat(beta_uD[users], N) * beta_iD[neg_items.reshape(-1)])).reshape(B, N)
    neg_loss = jnp.mean(neg_w * sp(neg_scores), -1)
    pos_loss = pos_w * sp(-pos_scores)
    loss_L = jnp.sum(pos_loss + neg_loss * hyper["negative_weight"])
    beta_sp = jnp.mean(jnp.exp(4.0 * (pos_scores - neg_scores[:, 0])))
    x = neg_scores[:, 0] - pos_scores
    bx = beta_sp * x
    g_loss = jnp.sum(jnp.where(bx > 20.0, x, jnp.log1p(jnp.exp(bx)) / beta_sp))
    w = min(1.0, epoch / 30.0)
    total = w * loss_L + (1.0 - w) * g_loss
    total += hyper["gamma"] * (3.0 + jnp.sum(user_tab ** 2) + jnp.sum(item_tab ** 2)) / 2.0
    nbe = item_tab[ii_neighbor_mat[pos_items]]
    sim = ii_constraint_mat[pos_items]
    s = jnp.sum(ue[:, None, :] * nbe, -1)
    total += hyper["lambda"] * jnp.sum(sim * sp(-s))
    return total


if __name__ == "__main__":
    # small, deterministic shapes (multi-tile grid: B=200 -> 2 tiles of 128 with padding)
    USER_NUM, ITEM_NUM, D = 300, 400, 32
    B, NEG, K = 200, 4, 8
    EPOCH = 5

    hyper = {
        "w1": 1e-6, "w2": 1.0, "w3": 1e-6, "w4": 1.0,
        "negative_weight": 10.0, "gamma": 1e-4, "lambda": 1e-3,
        "initial_weight": 0.1,
    }

    key = jax.random.PRNGKey(0)
    k = jax.random.split(key, 8)
    # nn.init.normal_(..., std=initial_weight)
    user_tab = (jax.random.normal(k[0], (USER_NUM, D)) * hyper["initial_weight"]).astype(jnp.float32)
    item_tab = (jax.random.normal(k[1], (ITEM_NUM, D)) * hyper["initial_weight"]).astype(jnp.float32)
    beta_uD = jax.random.uniform(k[2], (USER_NUM,), minval=0.1, maxval=1.0).astype(jnp.float32)
    beta_iD = jax.random.uniform(k[3], (ITEM_NUM,), minval=0.1, maxval=1.0).astype(jnp.float32)
    ii_neighbor_mat = jax.random.randint(k[4], (ITEM_NUM, K), 0, ITEM_NUM, dtype=jnp.int32)
    ii_constraint_mat = jax.random.uniform(k[5], (ITEM_NUM, K), minval=0.0, maxval=1.0).astype(jnp.float32)

    users = jax.random.randint(k[6], (B,), 0, USER_NUM, dtype=jnp.int32)
    pos_items = jax.random.randint(k[7], (B,), 0, ITEM_NUM, dtype=jnp.int32)
    neg_items = jax.random.randint(jax.random.fold_in(key, 99), (B, NEG), 0, ITEM_NUM, dtype=jnp.int32)

    loss = multi_aspect_graph_loss(user_tab, item_tab, beta_uD, beta_iD,
                                   ii_neighbor_mat, ii_constraint_mat,
                                   users, pos_items, neg_items, EPOCH, hyper)
    loss = jax.block_until_ready(loss)

    ref = _reference_loss(user_tab, item_tab, beta_uD, beta_iD,
                          ii_neighbor_mat, ii_constraint_mat,
                          users, pos_items, neg_items, EPOCH, hyper)
    ref = jax.block_until_ready(ref)

    # kernel streams embeddings in bf16 (perf feedback), so compare with a
    # quantization-sized tolerance against the exact f32 reference.
    assert jnp.allclose(loss, ref, rtol=5e-3, atol=5e-3), (loss, ref)
    print("KERNEL_OK")
</pallas_src>

<mosaic_0001>
module attributes {stable_mosaic.version = 11 : i64} {
  func.func @_loss_tile_kernel(%arg0: i32, %arg1: memref<128x32xbf16, #tpu.memory_space<vmem>>, %arg2: memref<128x32xbf16, #tpu.memory_space<vmem>>, %arg3: memref<128x4x32xbf16, #tpu.memory_space<vmem>>, %arg4: memref<128x8x32xbf16, #tpu.memory_space<vmem>>, %arg5: memref<128x8xf32, #tpu.memory_space<vmem>>, %arg6: memref<128x4xf32, #tpu.memory_space<vmem>>, %arg7: memref<4x128xf32, #tpu.memory_space<vmem>>) attributes {dimension_semantics = [#tpu.dimension_semantics<parallel>], iteration_bounds = array<i64: 2>, scalar_prefetch = 0 : i64, scratch_operands = 0 : i64, tpu.core_type = #tpu.core_type<tc>, window_params = [{transform_indices = @transform_0, window_bounds = array<i64: 128, 32>}, {transform_indices = @transform_1, window_bounds = array<i64: 128, 32>}, {transform_indices = @transform_2, window_bounds = array<i64: 128, 4, 32>}, {transform_indices = @transform_3, window_bounds = array<i64: 128, 8, 32>}, {transform_indices = @transform_4, window_bounds = array<i64: 128, 8>}, {transform_indices = @transform_5, window_bounds = array<i64: 128, 4>}, {transform_indices = @transform_6, window_bounds = array<i64: 4, 128>}]} {
    %c0 = arith.constant 0 : index
    %c0_0 = arith.constant 0 : index
    %0 = vector.load %arg1[%c0, %c0_0] : memref<128x32xbf16, #tpu.memory_space<vmem>>, vector<128x32xbf16>
    %c0_1 = arith.constant 0 : index
    %c0_2 = arith.constant 0 : index
    %1 = vector.load %arg2[%c0_1, %c0_2] : memref<128x32xbf16, #tpu.memory_space<vmem>>, vector<128x32xbf16>
    %c0_3 = arith.constant 0 : index
    %c0_4 = arith.constant 0 : index
    %c0_5 = arith.constant 0 : index
    %2 = vector.load %arg3[%c0_3, %c0_4, %c0_5] : memref<128x4x32xbf16, #tpu.memory_space<vmem>>, vector<128x4x32xbf16>
    %c0_6 = arith.constant 0 : index
    %c0_7 = arith.constant 0 : index
    %c0_8 = arith.constant 0 : index
    %3 = vector.load %arg4[%c0_6, %c0_7, %c0_8] : memref<128x8x32xbf16, #tpu.memory_space<vmem>>, vector<128x8x32xbf16>
    %c0_9 = arith.constant 0 : index
    %c0_10 = arith.constant 0 : index
    %4 = vector.load %arg5[%c0_9, %c0_10] : memref<128x8xf32, #tpu.memory_space<vmem>>, vector<128x8xf32>
    %c0_11 = arith.constant 0 : index
    %c0_12 = arith.constant 0 : index
    %5 = vector.load %arg6[%c0_11, %c0_12] : memref<128x4xf32, #tpu.memory_space<vmem>>, vector<128x4xf32>
    %6 = arith.extf %0 : vector<128x32xbf16> to vector<128x32xf32>
    %7 = arith.extf %1 : vector<128x32xbf16> to vector<128x32xf32>
    %8 = arith.mulf %6, %7 : vector<128x32xf32>
    %cst = arith.constant dense<0.000000e+00> : vector<128xf32>
    %9 = vector.multi_reduction <add>, %8, %cst [1] : vector<128x32xf32> to vector<128xf32>
    %10 = vector.shape_cast %0 : vector<128x32xbf16> to vector<128x1x32xbf16>
    "tpu.trace_start"() <{level = 10 : i32, message = "bqd,bnd->bqn"}> : () -> ()
    %cst_13 = arith.constant dense<0.000000e+00> : vector<128x1x4xf32>
    %11 = tpu.matmul %10, %2, %cst_13 {dimension_numbers = #tpu.dot_dimension_numbers<[2], [2], [1], [1], [0, 0, 0, 1, 1, 1], [0], [0]>} : vector<128x1x32xbf16>, vector<128x4x32xbf16>, vector<128x1x4xf32> -> vector<128x1x4xf32>
    "tpu.trace_stop"() : () -> ()
    %12 = vector.shape_cast %11 : vector<128x1x4xf32> to vector<128x4xf32>
    "tpu.trace_start"() <{level = 10 : i32, message = "bqd,bkd->bqk"}> : () -> ()
    %cst_14 = arith.constant dense<0.000000e+00> : vector<128x1x8xf32>
    %13 = tpu.matmul %10, %3, %cst_14 {dimension_numbers = #tpu.dot_dimension_numbers<[2], [2], [1], [1], [0, 0, 0, 1, 1, 1], [0], [0]>} : vector<128x1x32xbf16>, vector<128x8x32xbf16>, vector<128x1x8xf32> -> vector<128x1x8xf32>
    "tpu.trace_stop"() : () -> ()
    %14 = vector.shape_cast %13 : vector<128x1x8xf32> to vector<128x8xf32>
    %cst_15 = arith.constant 0.000000e+00 : f32
    %15 = vector.broadcast %cst_15 : f32 to vector<128xf32>
    %16 = arith.subf %15, %9 : vector<128xf32>
    %cst_16 = arith.constant 0.000000e+00 : f32
    %17 = vector.broadcast %cst_16 : f32 to vector<128xf32>
    %18 = arith.maximumf %16, %17 : vector<128xf32>
    %19 = math.absf %16 : vector<128xf32>
    %cst_17 = arith.constant 0.000000e+00 : f32
    %20 = vector.broadcast %cst_17 : f32 to vector<128xf32>
    %21 = arith.subf %20, %19 : vector<128xf32>
    %22 = math.exp %21 : vector<128xf32>
    %23 = math.log1p %22 : vector<128xf32>
    %24 = arith.addf %18, %23 : vector<128xf32>
    %c0_18 = arith.constant 0 : index
    %c0_19 = arith.constant 0 : index
    %25 = vector.load %arg7[%c0_18, %c0_19] : memref<4x128xf32, #tpu.memory_space<vmem>>, vector<1x128xf32>
    %26 = vector.shape_cast %25 : vector<1x128xf32> to vector<128xf32>
    %27 = vector.shape_cast %24 : vector<128xf32> to vector<1x128xf32>
    tpu.vector_store %arg7[%c0_18, %c0_19], %27 {strides = array<i32>} : memref<4x128xf32, #tpu.memory_space<vmem>>, vector<1x128xf32>,
    %cst_20 = arith.constant 0.000000e+00 : f32
    %28 = vector.broadcast %cst_20 : f32 to vector<128x4xf32>
    %29 = arith.maximumf %12, %28 : vector<128x4xf32>
    %30 = math.absf %12 : vector<128x4xf32>
    %cst_21 = arith.constant 0.000000e+00 : f32
    %31 = vector.broadcast %cst_21 : f32 to vector<128x4xf32>
    %32 = arith.subf %31, %30 : vector<128x4xf32>
    %33 = math.exp %32 : vector<128x4xf32>
    %34 = math.log1p %33 : vector<128x4xf32>
    %35 = arith.addf %29, %34 : vector<128x4xf32>
    %36 = arith.mulf %5, %35 : vector<128x4xf32>
    %cst_22 = arith.constant dense<0.000000e+00> : vector<128xf32>
    %37 = vector.multi_reduction <add>, %36, %cst_22 [1] : vector<128x4xf32> to vector<128xf32>
    %cst_23 = arith.constant 4.000000e+00 : f32
    %38 = vector.broadcast %cst_23 : f32 to vector<128xf32>
    %39 = arith.divf %37, %38 : vector<128xf32>
    %c1 = arith.constant 1 : index
    %c0_24 = arith.constant 0 : index
    %40 = vector.load %arg7[%c1, %c0_24] : memref<4x128xf32, #tpu.memory_space<vmem>>, vector<1x128xf32>
    %41 = vector.shape_cast %40 : vector<1x128xf32> to vector<128xf32>
    %42 = vector.shape_cast %39 : vector<128xf32> to vector<1x128xf32>
    tpu.vector_store %arg7[%c1, %c0_24], %42 {strides = array<i32>} : memref<4x128xf32, #tpu.memory_space<vmem>>, vector<1x128xf32>,
    %cst_25 = arith.constant 0.000000e+00 : f32
    %43 = vector.broadcast %cst_25 : f32 to vector<128x8xf32>
    %44 = arith.subf %43, %14 : vector<128x8xf32>
    %cst_26 = arith.constant 0.000000e+00 : f32
    %45 = vector.broadcast %cst_26 : f32 to vector<128x8xf32>
    %46 = arith.maximumf %44, %45 : vector<128x8xf32>
    %47 = math.absf %44 : vector<128x8xf32>
    %cst_27 = arith.constant 0.000000e+00 : f32
    %48 = vector.broadcast %cst_27 : f32 to vector<128x8xf32>
    %49 = arith.subf %48, %47 : vector<128x8xf32>
    %50 = math.exp %49 : vector<128x8xf32>
    %51 = math.log1p %50 : vector<128x8xf32>
    %52 = arith.addf %46, %51 : vector<128x8xf32>
    %53 = arith.mulf %4, %52 : vector<128x8xf32>
    %cst_28 = arith.constant dense<0.000000e+00> : vector<128xf32>
    %54 = vector.multi_reduction <add>, %53, %cst_28 [1] : vector<128x8xf32> to vector<128xf32>
    %c2 = arith.constant 2 : index
    %c0_29 = arith.constant 0 : index
    %55 = vector.load %arg7[%c2, %c0_29] : memref<4x128xf32, #tpu.memory_space<vmem>>, vector<1x128xf32>
    %56 = vector.shape_cast %55 : vector<1x128xf32> to vector<128xf32>
    %57 = vector.shape_cast %54 : vector<128xf32> to vector<1x128xf32>
    tpu.vector_store %arg7[%c2, %c0_29], %57 {strides = array<i32>} : memref<4x128xf32, #tpu.memory_space<vmem>>, vector<1x128xf32>,
    %58 = vector.extract_strided_slice %12 {offsets = [0, 0], sizes = [128, 1], strides = [1, 1]} : vector<128x4xf32> to vector<128x1xf32>
    %59 = vector.shape_cast %58 : vector<128x1xf32> to vector<128xf32>
    %60 = arith.subf %59, %9 : vector<128xf32>
    %c3 = arith.constant 3 : index
    %c0_30 = arith.constant 0 : index
    %61 = vector.load %arg7[%c3, %c0_30] : memref<4x128xf32, #tpu.memory_space<vmem>>, vector<1x128xf32>
    %62 = vector.shape_cast %61 : vector<1x128xf32> to vector<128xf32>
    %63 = vector.shape_cast %60 : vector<128xf32> to vector<1x128xf32>
    tpu.vector_store %arg7[%c3, %c0_30], %63 {strides = array<i32>} : memref<4x128xf32, #tpu.memory_space<vmem>>, vector<1x128xf32>,
    return
  }
  func.func @transform_0(%arg0: i32) -> (i32, i32) {
    %c0_i32 = arith.constant 0 : i32
    %c0_i32_0 = arith.constant 0 : i32
    return %arg0, %c0_i32 : i32, i32
  }
  func.func @transform_1(%arg0: i32) -> (i32, i32) {
    %c0_i32 = arith.constant 0 : i32
    %c0_i32_0 = arith.constant 0 : i32
    return %arg0, %c0_i32 : i32, i32
  }
  func.func @transform_2(%arg0: i32) -> (i32, i32, i32) {
    %c0_i32 = arith.constant 0 : i32
    %c0_i32_0 = arith.constant 0 : i32
    %c0_i32_1 = arith.constant 0 : i32
    return %arg0, %c0_i32, %c0_i32_0 : i32, i32, i32
  }
  func.func @transform_3(%arg0: i32) -> (i32, i32, i32) {
    %c0_i32 = arith.constant 0 : i32
    %c0_i32_0 = arith.constant 0 : i32
    %c0_i32_1 = arith.constant 0 : i32
    return %arg0, %c0_i32, %c0_i32_0 : i32, i32, i32
  }
  func.func @transform_4(%arg0: i32) -> (i32, i32) {
    %c0_i32 = arith.constant 0 : i32
    %c0_i32_0 = arith.constant 0 : i32
    return %arg0, %c0_i32 : i32, i32
  }
  func.func @transform_5(%arg0: i32) -> (i32, i32) {
    %c0_i32 = arith.constant 0 : i32
    %c0_i32_0 = arith.constant 0 : i32
    return %arg0, %c0_i32 : i32, i32
  }
  func.func @transform_6(%arg0: i32) -> (i32, i32) {
    %c0_i32 = arith.constant 0 : i32
    %c0_i32_0 = arith.constant 0 : i32
    return %c0_i32, %arg0 : i32, i32
  }
}

</mosaic_0001>

<llo_original>
// kernel: tpu_custom_call.1
$region0: #{tpu_custom_call.1}
  #allocation0 [shape = 'u32[]', space=smem, size = 0x4, offset = 0x4, fixed_abs, tag = 'smem constant byte address 0x4 - core index']
  #allocation1 [shape = 'u32[72,128]{1,0:T(1,128)}', space=vmem, size = 0x9000, scoped, tag = 'internal scratch']
  %s0 = inlined_call_operand.vmem [shape: bf16[256,32], index: 0, kind: input, shape index: {}]
  %s1 = inlined_call_operand.vmem [shape: bf16[256,32], index: 1, kind: input, shape index: {}]
  %s2 = inlined_call_operand.vmem [shape: bf16[256,4,32], index: 2, kind: input, shape index: {}]
  %s3 = inlined_call_operand.vmem [shape: bf16[256,8,32], index: 3, kind: input, shape index: {}]
  %s4 = inlined_call_operand.vmem [shape: f32[256,8], index: 4, kind: input, shape index: {}]
  %s5 = inlined_call_operand.vmem [shape: f32[256,4], index: 5, kind: input, shape index: {}]
  %s6 = inlined_call_operand.hbm [shape: f32[4,256], index: 6, kind: output, shape index: {}]
  %s7 = sld [smem:[#allocation0]]
  $region57: #{tpu_custom_call.1} parent=0
    _
  %s9 = ssub.s32 1, %s7
  %s10 = scalar_select 0, %s9, %s7
  $region1: #{tpu_custom_call.1} parent=0
    #allocation2 [shape = 'u8[4096]{0}', space=vmem, size = 0x1000, scoped, tag = 'output window, operand 0']
    #allocation3 [shape = 's32[2]{0}', space=sflag, size = 0x8, scoped, tag = 'scoped memory for tpu_custom_call.1']
    %11 = vsyncpa [#allocation3], 0
    %s12 = scalar_lea.sflag [#allocation3], 1
    %13 = vsyncpa %s12, 0
    loop: start=0, step=1, limit=4
    $region2: #{tpu_custom_call.1} parent=1 // loop_pre_header
      _
    $region3: #{tpu_custom_call.1} parent=1 // loop_header
      %s15 = sphi 0, %s19
      %p16 = scmp.ge.s32.totalorder %s15, 4
      %s25 = sphi 0, %s27
      %s28 = sphi 0, %s25
      %s29 = sphi 0, %s28
      %s45 = sphi 0, %s29
      %s51 = sphi 0, %s53
      %s54 = sphi 0, %s51
      %s55 = sphi 0, %s54
      %s71 = sphi 0, %s55
      %s77 = sphi 0, %s79
      %s80 = sphi 0, %s77
      %s81 = sphi 0, %s80
      %s97 = sphi 0, %s81
      %s103 = sphi 0, %s105
      %s106 = sphi 0, %s103
      %s107 = sphi 0, %s106
      %s123 = sphi 0, %s107
      %s129 = sphi 0, %s131
      %s132 = sphi 0, %s129
      %s133 = sphi 0, %s132
      %s149 = sphi 0, %s133
      %s155 = sphi 0, %s157
      %s158 = sphi 0, %s155
      %s159 = sphi 0, %s158
      %s175 = sphi 0, %s159
      %s181 = sphi 0, %s183
      %s184 = sphi 0, %s181
      %s185 = sphi 0, %s184
      %s201 = sphi 0, %s185
    $region4: #{tpu_custom_call.1} parent=1 // loop_header_branch
      %18 = sbr.rel (%p16) target = $region8
    $region5: #{tpu_custom_call.1} parent=1 // loop_body
      %s20 = ssub.s32 %s15, 1
      %s21 = ssub.s32 %s15, 2
      %s22 = sadd.s32 %s15, 1
      %s23 = ssub.s32 %s15, %s22
      %p24 = scmp.eq.s32.totalorder %s23, 0
      %s26 = sadd.s32 %s25, 1
      %s27 = scalar_select %p24, %s25, %s26
      %p30 = pneg %p24
      %p31 = scmp.eq.s32.totalorder %s15, 1
      %p32 = por %p30, %p31
      %p33 = scmp.ne.s32.totalorder %s25, %s28
      %p34 = scmp.eq.s32.totalorder %s15, 0
      %p35 = por %p33, %p34
      %p36 = scmp.ne.s32.totalorder %s25, %s28
      %p37 = scmp.eq.s32.totalorder %s20, 1
      %p38 = por %p36, %p37
      %p39 = scmp.ne.s32.totalorder %s28, %s29
      %p40 = scmp.eq.s32.totalorder %s20, 0
      %p41 = por %p39, %p40
      %p42 = scmp.ne.s32.totalorder %s28, %s29
      %p43 = scmp.eq.s32.totalorder %s21, 1
      %p44 = por %p42, %p43
      %p46 = scmp.ne.s32.totalorder %s29, %s45
      %p47 = scmp.eq.s32.totalorder %s21, 0
      %p48 = por %p46, %p47
      %s49 = ssub.s32 %s15, %s22
      %p50 = scmp.eq.s32.totalorder %s49, 0
      %s52 = sadd.s32 %s51, 1
      %s53 = scalar_select %p50, %s51, %s52
      %p56 = pneg %p50
      %p57 = scmp.eq.s32.totalorder %s15, 1
      %p58 = por %p56, %p57
      %p59 = scmp.ne.s32.totalorder %s51, %s54
      %p60 = scmp.eq.s32.totalorder %s15, 0
      %p61 = por %p59, %p60
      %p62 = scmp.ne.s32.totalorder %s51, %s54
      %p63 = scmp.eq.s32.totalorder %s20, 1
      %p64 = por %p62, %p63
      %p65 = scmp.ne.s32.totalorder %s54, %s55
      %p66 = scmp.eq.s32.totalorder %s20, 0
      %p67 = por %p65, %p66
      %p68 = scmp.ne.s32.totalorder %s54, %s55
      %p69 = scmp.eq.s32.totalorder %s21, 1
      %p70 = por %p68, %p69
      %p72 = scmp.ne.s32.totalorder %s55, %s71
      %p73 = scmp.eq.s32.totalorder %s21, 0
      %p74 = por %p72, %p73
      %s75 = ssub.s32 %s15, %s22
      %p76 = scmp.eq.s32.totalorder %s75, 0
      %s78 = sadd.s32 %s77, 1
      %s79 = scalar_select %p76, %s77, %s78
      %p82 = pneg %p76
      %p83 = scmp.eq.s32.totalorder %s15, 1
      %p84 = por %p82, %p83
      %p85 = scmp.ne.s32.totalorder %s77, %s80
      %p86 = scmp.eq.s32.totalorder %s15, 0
      %p87 = por %p85, %p86
      %p88 = scmp.ne.s32.totalorder %s77, %s80
      %p89 = scmp.eq.s32.totalorder %s20, 1
      %p90 = por %p88, %p89
      %p91 = scmp.ne.s32.totalorder %s80, %s81
      %p92 = scmp.eq.s32.totalorder %s20, 0
      %p93 = por %p91, %p92
      %p94 = scmp.ne.s32.totalorder %s80, %s81
      %p95 = scmp.eq.s32.totalorder %s21, 1
      %p96 = por %p94, %p95
      %p98 = scmp.ne.s32.totalorder %s81, %s97
      %p99 = scmp.eq.s32.totalorder %s21, 0
      %p100 = por %p98, %p99
      %s101 = ssub.s32 %s15, %s22
      %p102 = scmp.eq.s32.totalorder %s101, 0
      %s104 = sadd.s32 %s103, 1
      %s105 = scalar_select %p102, %s103, %s104
      %p108 = pneg %p102
      %p109 = scmp.eq.s32.totalorder %s15, 1
      %p110 = por %p108, %p109
      %p111 = scmp.ne.s32.totalorder %s103, %s106
      %p112 = scmp.eq.s32.totalorder %s15, 0
      %p113 = por %p111, %p112
      %p114 = scmp.ne.s32.totalorder %s103, %s106
      %p115 = scmp.eq.s32.totalorder %s20, 1
      %p116 = por %p114, %p115
      %p117 = scmp.ne.s32.totalorder %s106, %s107
      %p118 = scmp.eq.s32.totalorder %s20, 0
      %p119 = por %p117, %p118
      %p120 = scmp.ne.s32.totalorder %s106, %s107
      %p121 = scmp.eq.s32.totalorder %s21, 1
      %p122 = por %p120, %p121
      %p124 = scmp.ne.s32.totalorder %s107, %s123
      %p125 = scmp.eq.s32.totalorder %s21, 0
      %p126 = por %p124, %p125
      %s127 = ssub.s32 %s15, %s22
      %p128 = scmp.eq.s32.totalorder %s127, 0
      %s130 = sadd.s32 %s129, 1
      %s131 = scalar_select %p128, %s129, %s130
      %p134 = pneg %p128
      %p135 = scmp.eq.s32.totalorder %s15, 1
      %p136 = por %p134, %p135
      %p137 = scmp.ne.s32.totalorder %s129, %s132
      %p138 = scmp.eq.s32.totalorder %s15, 0
      %p139 = por %p137, %p138
      %p140 = scmp.ne.s32.totalorder %s129, %s132
      %p141 = scmp.eq.s32.totalorder %s20, 1
      %p142 = por %p140, %p141
      %p143 = scmp.ne.s32.totalorder %s132, %s133
      %p144 = scmp.eq.s32.totalorder %s20, 0
      %p145 = por %p143, %p144
      %p146 = scmp.ne.s32.totalorder %s132, %s133
      %p147 = scmp.eq.s32.totalorder %s21, 1
      %p148 = por %p146, %p147
      %p150 = scmp.ne.s32.totalorder %s133, %s149
      %p151 = scmp.eq.s32.totalorder %s21, 0
      %p152 = por %p150, %p151
      %s153 = ssub.s32 %s15, %s22
      %p154 = scmp.eq.s32.totalorder %s153, 0
      %s156 = sadd.s32 %s155, 1
      %s157 = scalar_select %p154, %s155, %s156
      %p160 = pneg %p154
      %p161 = scmp.eq.s32.totalorder %s15, 1
      %p162 = por %p160, %p161
      %p163 = scmp.ne.s32.totalorder %s155, %s158
      %p164 = scmp.eq.s32.totalorder %s15, 0
      %p165 = por %p163, %p164
      %p166 = scmp.ne.s32.totalorder %s155, %s158
      %p167 = scmp.eq.s32.totalorder %s20, 1
      %p168 = por %p166, %p167
      %p169 = scmp.ne.s32.totalorder %s158, %s159
      %p170 = scmp.eq.s32.totalorder %s20, 0
      %p171 = por %p169, %p170
      %p172 = scmp.ne.s32.totalorder %s158, %s159
      %p173 = scmp.eq.s32.totalorder %s21, 1
      %p174 = por %p172, %p173
      %p176 = scmp.ne.s32.totalorder %s159, %s175
      %p177 = scmp.eq.s32.totalorder %s21, 0
      %p178 = por %p176, %p177
      %s179 = ssub.s32 %s15, %s22
      %p180 = scmp.eq.s32.totalorder %s179, 0
      %s182 = sadd.s32 %s181, 1
      %s183 = scalar_select %p180, %s181, %s182
      %p186 = pneg %p180
      %p187 = scmp.eq.s32.totalorder %s15, 1
      %p188 = por %p186, %p187
      %p189 = scmp.ne.s32.totalorder %s181, %s184
      %p190 = scmp.eq.s32.totalorder %s15, 0
      %p191 = por %p189, %p190
      %p192 = scmp.ne.s32.totalorder %s181, %s184
      %p193 = scmp.eq.s32.totalorder %s20, 1
      %p194 = por %p192, %p193
      %p195 = scmp.ne.s32.totalorder %s184, %s185
      %p196 = scmp.eq.s32.totalorder %s20, 0
      %p197 = por %p195, %p196
      %p198 = scmp.ne.s32.totalorder %s184, %s185
      %p199 = scmp.eq.s32.totalorder %s21, 1
      %p200 = por %p198, %p199
      %p202 = scmp.ne.s32.totalorder %s185, %s201
      %p203 = scmp.eq.s32.totalorder %s21, 0
      %p204 = por %p202, %p203
      %p205 = scmp.le.s32.totalorder 1, %s15
      %p206 = scmp.lt.s32.totalorder %s15, 3
      %p207 = pnand %p205, %p206
      %p208 = pneg %p207
      // Predicated region
      $region9: #{tpu_custom_call.1} parent=5 // pred_check
        _
      $region10: #{tpu_custom_call.1} parent=5 // pred_check_branch
        %210 = sbr.rel (%p207) target = $region12
      $region11: #{tpu_custom_call.1} parent=5 // pred_region
        %s211 = ssub.s32 %s15, 1
      $region12: #{tpu_custom_call.1} parent=5 // pred_fallthru
        _
      %p212 = scmp.lt.s32.totalorder %s15, 2
      // Predicated region
      $region13: #{tpu_custom_call.1} parent=5 // pred_check
        %p213 = pneg %p212
      $region14: #{tpu_custom_call.1} parent=5 // pred_check_branch
        %215 = sbr.rel (%p213) target = $region16
      $region15: #{tpu_custom_call.1} parent=5 // pred_region
        // Predicated region
        $region17: #{tpu_custom_call.1} parent=15 // pred_check
          %p216 = pneg %p35
        $region18: #{tpu_custom_call.1} parent=15 // pred_check_branch
          %218 = sbr.rel (%p216) target = $region20
        $region19: #{tpu_custom_call.1} parent=15 // pred_region
          %s219 = smul.u32 16, %s15
          %p220 = scmp.lt.s32.totalorder %s219, 31
          %s221 = scalar_select %p220, %s219, 31
          %s222 = smul.addr %s221, 4
          %s223 = scalar_lea.vmem %s0, %s222
          %s224 = smul.u32 16, %s15
        $region20: #{tpu_custom_call.1} parent=15 // pred_fallthru
          _
        // Predicated region
        $region21: #{tpu_custom_call.1} parent=15 // pred_check
          %p225 = pneg %p61
        $region22: #{tpu_custom_call.1} parent=15 // pred_check_branch
          %227 = sbr.rel (%p225) target = $region24
        $region23: #{tpu_custom_call.1} parent=15 // pred_region
          %s228 = smul.u32 16, %s15
          %p229 = scmp.lt.s32.totalorder %s228, 31
          %s230 = scalar_select %p229, %s228, 31
          %s231 = smul.addr %s230, 4
          %s232 = scalar_lea.vmem %s1, %s231
          %s233 = smul.u32 16, %s15
        $region24: #{tpu_custom_call.1} parent=15 // pred_fallthru
          _
        // Predicated region
        $region25: #{tpu_custom_call.1} parent=15 // pred_check
          %p234 = pneg %p87
        $region26: #{tpu_custom_call.1} parent=15 // pred_check_branch
          %236 = sbr.rel (%p234) target = $region28
        $region27: #{tpu_custom_call.1} parent=15 // pred_region
          %s237 = smul.u32 128, %s15
          %p238 = scmp.lt.s32.totalorder %s237, 255
          %s239 = scalar_select %p238, %s237, 255
          %s240 = smul.addr %s239, 2
          %s241 = scalar_lea.vmem %s2, %s240
          %s242 = smul.u32 128, %s15
        $region28: #{tpu_custom_call.1} parent=15 // pred_fallthru
          _
        // Predicated region
        $region29: #{tpu_custom_call.1} parent=15 // pred_check
          %p243 = pneg %p113
        $region30: #{tpu_custom_call.1} parent=15 // pred_check_branch
          %245 = sbr.rel (%p243) target = $region32
        $region31: #{tpu_custom_call.1} parent=15 // pred_region
          %s246 = smul.u32 128, %s15
          %p247 = scmp.lt.s32.totalorder %s246, 255
          %s248 = scalar_select %p247, %s246, 255
          %s249 = smul.addr %s248, 4
          %s250 = scalar_lea.vmem %s3, %s249
          %s251 = smul.u32 128, %s15
        $region32: #{tpu_custom_call.1} parent=15 // pred_fallthru
          _
        // Predicated region
        $region33: #{tpu_custom_call.1} parent=15 // pred_check
          %p252 = pneg %p139
        $region34: #{tpu_custom_call.1} parent=15 // pred_check_branch
          %254 = sbr.rel (%p252) target = $region36
        $region35: #{tpu_custom_call.1} parent=15 // pred_region
          %s255 = smul.u32 16, %s15
          %p256 = scmp.lt.s32.totalorder %s255, 31
          %s257 = scalar_select %p256, %s255, 31
          %s258 = smul.addr %s257, 8
          %s259 = scalar_lea.vmem %s4, %s258
          %s260 = smul.u32 16, %s15
        $region36: #{tpu_custom_call.1} parent=15 // pred_fallthru
          _
        // Predicated region
        $region37: #{tpu_custom_call.1} parent=15 // pred_check
          %p261 = pneg %p165
        $region38: #{tpu_custom_call.1} parent=15 // pred_check_branch
          %263 = sbr.rel (%p261) target = $region40
        $region39: #{tpu_custom_call.1} parent=15 // pred_region
          %s264 = smul.u32 16, %s15
          %p265 = scmp.lt.s32.totalorder %s264, 31
          %s266 = scalar_select %p265, %s264, 31
          %s267 = smul.addr %s266, 8
          %s268 = scalar_lea.vmem %s5, %s267
          %s269 = smul.u32 16, %s15
        $region40: #{tpu_custom_call.1} parent=15 // pred_fallthru
          _
      $region16: #{tpu_custom_call.1} parent=5 // pred_fallthru
        _
      %p270 = scmp.le.s32.totalorder 1, %s15
      %p271 = scmp.lt.s32.totalorder %s15, 3
      %p272 = pnand %p270, %p271
      %p273 = pneg %p272
      // Predicated region
      $region41: #{tpu_custom_call.1} parent=5 // pred_check
        _
      $region42: #{tpu_custom_call.1} parent=5 // pred_check_branch
        %275 = sbr.rel (%p272) target = $region44
      $region43: #{tpu_custom_call.1} parent=5 // pred_region
        %s276 = ssub.s32 %s15, 1
        %s277 = smul.u32 16, %s20
        %p278 = scmp.lt.s32.totalorder %s277, 31
        %s279 = scalar_select %p278, %s277, 31
        %s280 = smul.addr %s279, 4
        %s281 = scalar_lea.vmem %s0, %s280
        %p282 = pneg %p41
        %p283 = pneg %p38
        %s284 = smul.u32 16, %s20
        %p285 = scmp.lt.s32.totalorder %s284, 31
        %s286 = scalar_select %p285, %s284, 31
        %s287 = smul.addr %s286, 4
        %s288 = scalar_lea.vmem %s1, %s287
        %p289 = pneg %p67
        %p290 = pneg %p64
        %s291 = smul.u32 128, %s20
        %p292 = scmp.lt.s32.totalorder %s291, 255
        %s293 = scalar_select %p292, %s291, 255
        %s294 = smul.addr %s293, 2
        %s295 = scalar_lea.vmem %s2, %s294
        %p296 = pneg %p93
        %p297 = pneg %p90
        %s298 = smul.u32 128, %s20
        %p299 = scmp.lt.s32.totalorder %s298, 255
        %s300 = scalar_select %p299, %s298, 255
        %s301 = smul.addr %s300, 4
        %s302 = scalar_lea.vmem %s3, %s301
        %p303 = pneg %p119
        %p304 = pneg %p116
        %s305 = smul.u32 16, %s20
        %p306 = scmp.lt.s32.totalorder %s305, 31
        %s307 = scalar_select %p306, %s305, 31
        %s308 = smul.addr %s307, 8
        %s309 = scalar_lea.vmem %s4, %s308
        %p310 = pneg %p145
        %p311 = pneg %p142
        %s312 = smul.u32 16, %s20
        %p313 = scmp.lt.s32.totalorder %s312, 31
        %s314 = scalar_select %p313, %s312, 31
        %s315 = smul.addr %s314, 8
        %s316 = scalar_lea.vmem %s5, %s315
        %p317 = pneg %p171
        %p318 = pneg %p168
        %p319 = pneg %p197
        %p320 = pneg %p194
        %s321 = sand.u32 %s184, 1
        %s322 = scalar_lea.sflag [#allocation3], %s321
        %s323 = sand.u32 %s184, 1
        %s324 = smul.addr %s323, 4
        %s325 = scalar_lea.vmem [#allocation2], %s324
        %s326 = smul.u32 16, %s20
        %p327 = scmp.lt.s32.totalorder %s326, 31
        %s328 = scalar_select %p327, %s326, 31
        %s329 = smul.addr %s328, 4
        %s330 = scalar_lea.vmem %s0, %s329
        %s331 = smul.u32 16, %s20
        %s332 = smul.u32 16, %s20
        %p333 = scmp.lt.s32.totalorder %s332, 31
        %s334 = scalar_select %p333, %s332, 31
        %s335 = smul.addr %s334, 4
        %s336 = scalar_lea.vmem %s1, %s335
        %s337 = smul.u32 16, %s20
        %s338 = smul.u32 128, %s20
        %p339 = scmp.lt.s32.totalorder %s338, 255
        %s340 = scalar_select %p339, %s338, 255
        %s341 = smul.addr %s340, 2
        %s342 = scalar_lea.vmem %s2, %s341
        %s343 = smul.u32 128, %s20
        %s344 = smul.u32 128, %s20
        %p345 = scmp.lt.s32.totalorder %s344, 255
        %s346 = scalar_select %p345, %s344, 255
        %s347 = smul.addr %s346, 4
        %s348 = scalar_lea.vmem %s3, %s347
        %s349 = smul.u32 128, %s20
        %s350 = smul.u32 16, %s20
        %p351 = scmp.lt.s32.totalorder %s350, 31
        %s352 = scalar_select %p351, %s350, 31
        %s353 = smul.addr %s352, 8
        %s354 = scalar_lea.vmem %s4, %s353
        %s355 = smul.u32 16, %s20
        %s356 = smul.u32 16, %s20
        %p357 = scmp.lt.s32.totalorder %s356, 31
        %s358 = scalar_select %p357, %s356, 31
        %s359 = smul.addr %s358, 8
        %s360 = scalar_lea.vmem %s5, %s359
        %s361 = smul.u32 16, %s20
        %v363 = vld [vmem:[%s330] sm:$0xf]
        %v364 = vld [vmem:[%s330 + $0x4] sm:$0xf]
        %v365 = vld [vmem:[%s330 + $0x8] sm:$0xf]
        %v366 = vld [vmem:[%s330 + $0xc] sm:$0xf]
        %v367 = vld [vmem:[%s330 + $0x10] sm:$0xf]
        %v368 = vld [vmem:[%s330 + $0x14] sm:$0xf]
        %v369 = vld [vmem:[%s330 + $0x18] sm:$0xf]
        %v370 = vld [vmem:[%s330 + $0x1c] sm:$0xf]
        %v371 = vld [vmem:[%s330 + $0x20] sm:$0xf]
        %v372 = vld [vmem:[%s330 + $0x24] sm:$0xf]
        %v373 = vld [vmem:[%s330 + $0x28] sm:$0xf]
        %v374 = vld [vmem:[%s330 + $0x2c] sm:$0xf]
        %v375 = vld [vmem:[%s330 + $0x30] sm:$0xf]
        %v376 = vld [vmem:[%s330 + $0x34] sm:$0xf]
        %v377 = vld [vmem:[%s330 + $0x38] sm:$0xf]
        %v378 = vld [vmem:[%s330 + $0x3c] sm:$0xf]
        %v379 = vld [vmem:[%s336] sm:$0xf]
        %v380 = vld [vmem:[%s336 + $0x4] sm:$0xf]
        %v381 = vld [vmem:[%s336 + $0x8] sm:$0xf]
        %v382 = vld [vmem:[%s336 + $0xc] sm:$0xf]
        %v383 = vld [vmem:[%s336 + $0x10] sm:$0xf]
        %v384 = vld [vmem:[%s336 + $0x14] sm:$0xf]
        %v385 = vld [vmem:[%s336 + $0x18] sm:$0xf]
        %v386 = vld [vmem:[%s336 + $0x1c] sm:$0xf]
        %v387 = vld [vmem:[%s336 + $0x20] sm:$0xf]
        %v388 = vld [vmem:[%s336 + $0x24] sm:$0xf]
        %v389 = vld [vmem:[%s336 + $0x28] sm:$0xf]
        %v390 = vld [vmem:[%s336 + $0x2c] sm:$0xf]
        %v391 = vld [vmem:[%s336 + $0x30] sm:$0xf]
        %v392 = vld [vmem:[%s336 + $0x34] sm:$0xf]
        %v393 = vld [vmem:[%s336 + $0x38] sm:$0xf]
        %v394 = vld [vmem:[%s336 + $0x3c] sm:$0xf]
        %v395 = vld [vmem:[%s342] sm:$0x3]
        %v396 = vld [vmem:[%s342 + $0x2] sm:$0x3]
        %v397 = vld [vmem:[%s342 + $0x4] sm:$0x3]
        %v398 = vld [vmem:[%s342 + $0x6] sm:$0x3]
        %v399 = vld [vmem:[%s342 + $0x8] sm:$0x3]
        %v400 = vld [vmem:[%s342 + $0xa] sm:$0x3]
        %v401 = vld [vmem:[%s342 + $0xc] sm:$0x3]
        %v402 = vld [vmem:[%s342 + $0xe] sm:$0x3]
        %v403 = vld [vmem:[%s342 + $0x10] sm:$0x3]
        %v404 = vld [vmem:[%s342 + $0x12] sm:$0x3]
        %v405 = vld [vmem:[%s342 + $0x14] sm:$0x3]
        %v406 = vld [vmem:[%s342 + $0x16] sm:$0x3]
        %v407 = vld [vmem:[%s342 + $0x18] sm:$0x3]
        %v408 = vld [vmem:[%s342 + $0x1a] sm:$0x3]
        %v409 = vld [vmem:[%s342 + $0x1c] sm:$0x3]
        %v410 = vld [vmem:[%s342 + $0x1e] sm:$0x3]
        %v411 = vld [vmem:[%s342 + $0x20] sm:$0x3]
        %v412 = vld [vmem:[%s342 + $0x22] sm:$0x3]
        %v413 = vld [vmem:[%s342 + $0x24] sm:$0x3]
        %v414 = vld [vmem:[%s342 + $0x26] sm:$0x3]
        %v415 = vld [vmem:[%s342 + $0x28] sm:$0x3]
        %v416 = vld [vmem:[%s342 + $0x2a] sm:$0x3]
        %v417 = vld [vmem:[%s342 + $0x2c] sm:$0x3]
        %v418 = vld [vmem:[%s342 + $0x2e] sm:$0x3]
        %v419 = vld [vmem:[%s342 + $0x30] sm:$0x3]
        %v420 = vld [vmem:[%s342 + $0x32] sm:$0x3]
        %v421 = vld [vmem:[%s342 + $0x34] sm:$0x3]
        %v422 = vld [vmem:[%s342 + $0x36] sm:$0x3]
        %v423 = vld [vmem:[%s342 + $0x38] sm:$0x3]
        %v424 = vld [vmem:[%s342 + $0x3a] sm:$0x3]
        %v425 = vld [vmem:[%s342 + $0x3c] sm:$0x3]
        %v426 = vld [vmem:[%s342 + $0x3e] sm:$0x3]
        %v427 = vld [vmem:[%s342 + $0x40] sm:$0x3]
        %v428 = vld [vmem:[%s342 + $0x42] sm:$0x3]
        %v429 = vld [vmem:[%s342 + $0x44] sm:$0x3]
        %v430 = vld [vmem:[%s342 + $0x46] sm:$0x3]
        %v431 = vld [vmem:[%s342 + $0x48] sm:$0x3]
        %v432 = vld [vmem:[%s342 + $0x4a] sm:$0x3]
        %v433 = vld [vmem:[%s342 + $0x4c] sm:$0x3]
        %v434 = vld [vmem:[%s342 + $0x4e] sm:$0x3]
        %v435 = vld [vmem:[%s342 + $0x50] sm:$0x3]
        %v436 = vld [vmem:[%s342 + $0x52] sm:$0x3]
        %v437 = vld [vmem:[%s342 + $0x54] sm:$0x3]
        %v438 = vld [vmem:[%s342 + $0x56] sm:$0x3]
        %v439 = vld [vmem:[%s342 + $0x58] sm:$0x3]
        %v440 = vld [vmem:[%s342 + $0x5a] sm:$0x3]
        %v441 = vld [vmem:[%s342 + $0x5c] sm:$0x3]
        %v442 = vld [vmem:[%s342 + $0x5e] sm:$0x3]
        %v443 = vld [vmem:[%s342 + $0x60] sm:$0x3]
        %v444 = vld [vmem:[%s342 + $0x62] sm:$0x3]
        %v445 = vld [vmem:[%s342 + $0x64] sm:$0x3]
        %v446 = vld [vmem:[%s342 + $0x66] sm:$0x3]
        %v447 = vld [vmem:[%s342 + $0x68] sm:$0x3]
        %v448 = vld [vmem:[%s342 + $0x6a] sm:$0x3]
        %v449 = vld [vmem:[%s342 + $0x6c] sm:$0x3]
        %v450 = vld [vmem:[%s342 + $0x6e] sm:$0x3]
        %v451 = vld [vmem:[%s342 + $0x70] sm:$0x3]
        %v452 = vld [vmem:[%s342 + $0x72] sm:$0x3]
        %v453 = vld [vmem:[%s342 + $0x74] sm:$0x3]
        %v454 = vld [vmem:[%s342 + $0x76] sm:$0x3]
        %v455 = vld [vmem:[%s342 + $0x78] sm:$0x3]
        %v456 = vld [vmem:[%s342 + $0x7a] sm:$0x3]
        %v457 = vld [vmem:[%s342 + $0x7c] sm:$0x3]
        %v458 = vld [vmem:[%s342 + $0x7e] sm:$0x3]
        %v459 = vld [vmem:[%s342 + $0x80] sm:$0x3]
        %v460 = vld [vmem:[%s342 + $0x82] sm:$0x3]
        %v461 = vld [vmem:[%s342 + $0x84] sm:$0x3]
        %v462 = vld [vmem:[%s342 + $0x86] sm:$0x3]
        %v463 = vld [vmem:[%s342 + $0x88] sm:$0x3]
        %v464 = vld [vmem:[%s342 + $0x8a] sm:$0x3]
        %v465 = vld [vmem:[%s342 + $0x8c] sm:$0x3]
        %v466 = vld [vmem:[%s342 + $0x8e] sm:$0x3]
        %v467 = vld [vmem:[%s342 + $0x90] sm:$0x3]
        %v468 = vld [vmem:[%s342 + $0x92] sm:$0x3]
        %v469 = vld [vmem:[%s342 + $0x94] sm:$0x3]
        %v470 = vld [vmem:[%s342 + $0x96] sm:$0x3]
        %v471 = vld [vmem:[%s342 + $0x98] sm:$0x3]
        %v472 = vld [vmem:[%s342 + $0x9a] sm:$0x3]
        %v473 = vld [vmem:[%s342 + $0x9c] sm:$0x3]
        %v474 = vld [vmem:[%s342 + $0x9e] sm:$0x3]
        %v475 = vld [vmem:[%s342 + $0xa0] sm:$0x3]
        %v476 = vld [vmem:[%s342 + $0xa2] sm:$0x3]
        %v477 = vld [vmem:[%s342 + $0xa4] sm:$0x3]
        %v478 = vld [vmem:[%s342 + $0xa6] sm:$0x3]
        %v479 = vld [vmem:[%s342 + $0xa8] sm:$0x3]
        %v480 = vld [vmem:[%s342 + $0xaa] sm:$0x3]
        %v481 = vld [vmem:[%s342 + $0xac] sm:$0x3]
        %v482 = vld [vmem:[%s342 + $0xae] sm:$0x3]
        %v483 = vld [vmem:[%s342 + $0xb0] sm:$0x3]
        %v484 = vld [vmem:[%s342 + $0xb2] sm:$0x3]
        %v485 = vld [vmem:[%s342 + $0xb4] sm:$0x3]
        %v486 = vld [vmem:[%s342 + $0xb6] sm:$0x3]
        %v487 = vld [vmem:[%s342 + $0xb8] sm:$0x3]
        %v488 = vld [vmem:[%s342 + $0xba] sm:$0x3]
        %v489 = vld [vmem:[%s342 + $0xbc] sm:$0x3]
        %v490 = vld [vmem:[%s342 + $0xbe] sm:$0x3]
        %v491 = vld [vmem:[%s342 + $0xc0] sm:$0x3]
        %v492 = vld [vmem:[%s342 + $0xc2] sm:$0x3]
        %v493 = vld [vmem:[%s342 + $0xc4] sm:$0x3]
        %v494 = vld [vmem:[%s342 + $0xc6] sm:$0x3]
        %v495 = vld [vmem:[%s342 + $0xc8] sm:$0x3]
        %v496 = vld [vmem:[%s342 + $0xca] sm:$0x3]
        %v497 = vld [vmem:[%s342 + $0xcc] sm:$0x3]
        %v498 = vld [vmem:[%s342 + $0xce] sm:$0x3]
        %v499 = vld [vmem:[%s342 + $0xd0] sm:$0x3]
        %v500 = vld [vmem:[%s342 + $0xd2] sm:$0x3]
        %v501 = vld [vmem:[%s342 + $0xd4] sm:$0x3]
        %v502 = vld [vmem:[%s342 + $0xd6] sm:$0x3]
        %v503 = vld [vmem:[%s342 + $0xd8] sm:$0x3]
        %v504 = vld [vmem:[%s342 + $0xda] sm:$0x3]
        %v505 = vld [vmem:[%s342 + $0xdc] sm:$0x3]
        %v506 = vld [vmem:[%s342 + $0xde] sm:$0x3]
        %v507 = vld [vmem:[%s342 + $0xe0] sm:$0x3]
        %v508 = vld [vmem:[%s342 + $0xe2] sm:$0x3]
        %v509 = vld [vmem:[%s342 + $0xe4] sm:$0x3]
        %v510 = vld [vmem:[%s342 + $0xe6] sm:$0x3]
        %v511 = vld [vmem:[%s342 + $0xe8] sm:$0x3]
        %v512 = vld [vmem:[%s342 + $0xea] sm:$0x3]
        %v513 = vld [vmem:[%s342 + $0xec] sm:$0x3]
        %v514 = vld [vmem:[%s342 + $0xee] sm:$0x3]
        %v515 = vld [vmem:[%s342 + $0xf0] sm:$0x3]
        %v516 = vld [vmem:[%s342 + $0xf2] sm:$0x3]
        %v517 = vld [vmem:[%s342 + $0xf4] sm:$0x3]
        %v518 = vld [vmem:[%s342 + $0xf6] sm:$0x3]
        %v519 = vld [vmem:[%s342 + $0xf8] sm:$0x3]
        %v520 = vld [vmem:[%s342 + $0xfa] sm:$0x3]
        %v521 = vld [vmem:[%s342 + $0xfc] sm:$0x3]
        %v522 = vld [vmem:[%s342 + $0xfe] sm:$0x3]
        %v523 = vld [vmem:[%s348] sm:$0xf]
        %v524 = vld [vmem:[%s348 + $0x4] sm:$0xf]
        %v525 = vld [vmem:[%s348 + $0x8] sm:$0xf]
        %v526 = vld [vmem:[%s348 + $0xc] sm:$0xf]
        %v527 = vld [vmem:[%s348 + $0x10] sm:$0xf]
        %v528 = vld [vmem:[%s348 + $0x14] sm:$0xf]
        %v529 = vld [vmem:[%s348 + $0x18] sm:$0xf]
        %v530 = vld [vmem:[%s348 + $0x1c] sm:$0xf]
        %v531 = vld [vmem:[%s348 + $0x20] sm:$0xf]
        %v532 = vld [vmem:[%s348 + $0x24] sm:$0xf]
        %v533 = vld [vmem:[%s348 + $0x28] sm:$0xf]
        %v534 = vld [vmem:[%s348 + $0x2c] sm:$0xf]
        %v535 = vld [vmem:[%s348 + $0x30] sm:$0xf]
        %v536 = vld [vmem:[%s348 + $0x34] sm:$0xf]
        %v537 = vld [vmem:[%s348 + $0x38] sm:$0xf]
        %v538 = vld [vmem:[%s348 + $0x3c] sm:$0xf]
        %v539 = vld [vmem:[%s348 + $0x40] sm:$0xf]
        %v540 = vld [vmem:[%s348 + $0x44] sm:$0xf]
        %v541 = vld [vmem:[%s348 + $0x48] sm:$0xf]
        %v542 = vld [vmem:[%s348 + $0x4c] sm:$0xf]
        %v543 = vld [vmem:[%s348 + $0x50] sm:$0xf]
        %v544 = vld [vmem:[%s348 + $0x54] sm:$0xf]
        %v545 = vld [vmem:[%s348 + $0x58] sm:$0xf]
        %v546 = vld [vmem:[%s348 + $0x5c] sm:$0xf]
        %v547 = vld [vmem:[%s348 + $0x60] sm:$0xf]
        %v548 = vld [vmem:[%s348 + $0x64] sm:$0xf]
        %v549 = vld [vmem:[%s348 + $0x68] sm:$0xf]
        %v550 = vld [vmem:[%s348 + $0x6c] sm:$0xf]
        %v551 = vld [vmem:[%s348 + $0x70] sm:$0xf]
        %v552 = vld [vmem:[%s348 + $0x74] sm:$0xf]
        %v553 = vld [vmem:[%s348 + $0x78] sm:$0xf]
        %v554 = vld [vmem:[%s348 + $0x7c] sm:$0xf]
        %v555 = vld [vmem:[%s348 + $0x80] sm:$0xf]
        %v556 = vld [vmem:[%s348 + $0x84] sm:$0xf]
        %v557 = vld [vmem:[%s348 + $0x88] sm:$0xf]
        %v558 = vld [vmem:[%s348 + $0x8c] sm:$0xf]
        %v559 = vld [vmem:[%s348 + $0x90] sm:$0xf]
        %v560 = vld [vmem:[%s348 + $0x94] sm:$0xf]
        %v561 = vld [vmem:[%s348 + $0x98] sm:$0xf]
        %v562 = vld [vmem:[%s348 + $0x9c] sm:$0xf]
        %v563 = vld [vmem:[%s348 + $0xa0] sm:$0xf]
        %v564 = vld [vmem:[%s348 + $0xa4] sm:$0xf]
        %v565 = vld [vmem:[%s348 + $0xa8] sm:$0xf]
        %v566 = vld [vmem:[%s348 + $0xac] sm:$0xf]
        %v567 = vld [vmem:[%s348 + $0xb0] sm:$0xf]
        %v568 = vld [vmem:[%s348 + $0xb4] sm:$0xf]
        %v569 = vld [vmem:[%s348 + $0xb8] sm:$0xf]
        %v570 = vld [vmem:[%s348 + $0xbc] sm:$0xf]
        %v571 = vld [vmem:[%s348 + $0xc0] sm:$0xf]
        %v572 = vld [vmem:[%s348 + $0xc4] sm:$0xf]
        %v573 = vld [vmem:[%s348 + $0xc8] sm:$0xf]
        %v574 = vld [vmem:[%s348 + $0xcc] sm:$0xf]
        %v575 = vld [vmem:[%s348 + $0xd0] sm:$0xf]
        %v576 = vld [vmem:[%s348 + $0xd4] sm:$0xf]
        %v577 = vld [vmem:[%s348 + $0xd8] sm:$0xf]
        %v578 = vld [vmem:[%s348 + $0xdc] sm:$0xf]
        %v579 = vld [vmem:[%s348 + $0xe0] sm:$0xf]
        %v580 = vld [vmem:[%s348 + $0xe4] sm:$0xf]
        %v581 = vld [vmem:[%s348 + $0xe8] sm:$0xf]
        %v582 = vld [vmem:[%s348 + $0xec] sm:$0xf]
        %v583 = vld [vmem:[%s348 + $0xf0] sm:$0xf]
        %v584 = vld [vmem:[%s348 + $0xf4] sm:$0xf]
        %v585 = vld [vmem:[%s348 + $0xf8] sm:$0xf]
        %v586 = vld [vmem:[%s348 + $0xfc] sm:$0xf]
        %v587 = vld [vmem:[%s348 + $0x100] sm:$0xf]
        %v588 = vld [vmem:[%s348 + $0x104] sm:$0xf]
        %v589 = vld [vmem:[%s348 + $0x108] sm:$0xf]
        %v590 = vld [vmem:[%s348 + $0x10c] sm:$0xf]
        %v591 = vld [vmem:[%s348 + $0x110] sm:$0xf]
        %v592 = vld [vmem:[%s348 + $0x114] sm:$0xf]
        %v593 = vld [vmem:[%s348 + $0x118] sm:$0xf]
        %v594 = vld [vmem:[%s348 + $0x11c] sm:$0xf]
        %v595 = vld [vmem:[%s348 + $0x120] sm:$0xf]
        %v596 = vld [vmem:[%s348 + $0x124] sm:$0xf]
        %v597 = vld [vmem:[%s348 + $0x128] sm:$0xf]
        %v598 = vld [vmem:[%s348 + $0x12c] sm:$0xf]
        %v599 = vld [vmem:[%s348 + $0x130] sm:$0xf]
        %v600 = vld [vmem:[%s348 + $0x134] sm:$0xf]
        %v601 = vld [vmem:[%s348 + $0x138] sm:$0xf]
        %v602 = vld [vmem:[%s348 + $0x13c] sm:$0xf]
        %v603 = vld [vmem:[%s348 + $0x140] sm:$0xf]
        %v604 = vld [vmem:[%s348 + $0x144] sm:$0xf]
        %v605 = vld [vmem:[%s348 + $0x148] sm:$0xf]
        %v606 = vld [vmem:[%s348 + $0x14c] sm:$0xf]
        %v607 = vld [vmem:[%s348 + $0x150] sm:$0xf]
        %v608 = vld [vmem:[%s348 + $0x154] sm:$0xf]
        %v609 = vld [vmem:[%s348 + $0x158] sm:$0xf]
        %v610 = vld [vmem:[%s348 + $0x15c] sm:$0xf]
        %v611 = vld [vmem:[%s348 + $0x160] sm:$0xf]
        %v612 = vld [vmem:[%s348 + $0x164] sm:$0xf]
        %v613 = vld [vmem:[%s348 + $0x168] sm:$0xf]
        %v614 = vld [vmem:[%s348 + $0x16c] sm:$0xf]
        %v615 = vld [vmem:[%s348 + $0x170] sm:$0xf]
        %v616 = vld [vmem:[%s348 + $0x174] sm:$0xf]
        %v617 = vld [vmem:[%s348 + $0x178] sm:$0xf]
        %v618 = vld [vmem:[%s348 + $0x17c] sm:$0xf]
        %v619 = vld [vmem:[%s348 + $0x180] sm:$0xf]
        %v620 = vld [vmem:[%s348 + $0x184] sm:$0xf]
        %v621 = vld [vmem:[%s348 + $0x188] sm:$0xf]
        %v622 = vld [vmem:[%s348 + $0x18c] sm:$0xf]
        %v623 = vld [vmem:[%s348 + $0x190] sm:$0xf]
        %v624 = vld [vmem:[%s348 + $0x194] sm:$0xf]
        %v625 = vld [vmem:[%s348 + $0x198] sm:$0xf]
        %v626 = vld [vmem:[%s348 + $0x19c] sm:$0xf]
        %v627 = vld [vmem:[%s348 + $0x1a0] sm:$0xf]
        %v628 = vld [vmem:[%s348 + $0x1a4] sm:$0xf]
        %v629 = vld [vmem:[%s348 + $0x1a8] sm:$0xf]
        %v630 = vld [vmem:[%s348 + $0x1ac] sm:$0xf]
        %v631 = vld [vmem:[%s348 + $0x1b0] sm:$0xf]
        %v632 = vld [vmem:[%s348 + $0x1b4] sm:$0xf]
        %v633 = vld [vmem:[%s348 + $0x1b8] sm:$0xf]
        %v634 = vld [vmem:[%s348 + $0x1bc] sm:$0xf]
        %v635 = vld [vmem:[%s348 + $0x1c0] sm:$0xf]
        %v636 = vld [vmem:[%s348 + $0x1c4] sm:$0xf]
        %v637 = vld [vmem:[%s348 + $0x1c8] sm:$0xf]
        %v638 = vld [vmem:[%s348 + $0x1cc] sm:$0xf]
        %v639 = vld [vmem:[%s348 + $0x1d0] sm:$0xf]
        %v640 = vld [vmem:[%s348 + $0x1d4] sm:$0xf]
        %v641 = vld [vmem:[%s348 + $0x1d8] sm:$0xf]
        %v642 = vld [vmem:[%s348 + $0x1dc] sm:$0xf]
        %v643 = vld [vmem:[%s348 + $0x1e0] sm:$0xf]
        %v644 = vld [vmem:[%s348 + $0x1e4] sm:$0xf]
        %v645 = vld [vmem:[%s348 + $0x1e8] sm:$0xf]
        %v646 = vld [vmem:[%s348 + $0x1ec] sm:$0xf]
        %v647 = vld [vmem:[%s348 + $0x1f0] sm:$0xf]
        %v648 = vld [vmem:[%s348 + $0x1f4] sm:$0xf]
        %v649 = vld [vmem:[%s348 + $0x1f8] sm:$0xf]
        %v650 = vld [vmem:[%s348 + $0x1fc] sm:$0xf]
        %v651 = vld [vmem:[%s354] sm:$0xff]
        %v652 = vld [vmem:[%s354 + $0x8] sm:$0xff]
        %v653 = vld [vmem:[%s354 + $0x10] sm:$0xff]
        %v654 = vld [vmem:[%s354 + $0x18] sm:$0xff]
        %v655 = vld [vmem:[%s354 + $0x20] sm:$0xff]
        %v656 = vld [vmem:[%s354 + $0x28] sm:$0xff]
        %v657 = vld [vmem:[%s354 + $0x30] sm:$0xff]
        %v658 = vld [vmem:[%s354 + $0x38] sm:$0xff]
        %v659 = vld [vmem:[%s354 + $0x40] sm:$0xff]
        %v660 = vld [vmem:[%s354 + $0x48] sm:$0xff]
        %v661 = vld [vmem:[%s354 + $0x50] sm:$0xff]
        %v662 = vld [vmem:[%s354 + $0x58] sm:$0xff]
        %v663 = vld [vmem:[%s354 + $0x60] sm:$0xff]
        %v664 = vld [vmem:[%s354 + $0x68] sm:$0xff]
        %v665 = vld [vmem:[%s354 + $0x70] sm:$0xff]
        %v666 = vld [vmem:[%s354 + $0x78] sm:$0xff]
        %v667 = vld [vmem:[%s360] sm:$0xff]
        %v668 = vld [vmem:[%s360 + $0x8] sm:$0xff]
        %v669 = vld [vmem:[%s360 + $0x10] sm:$0xff]
        %v670 = vld [vmem:[%s360 + $0x18] sm:$0xff]
        %v671 = vld [vmem:[%s360 + $0x20] sm:$0xff]
        %v672 = vld [vmem:[%s360 + $0x28] sm:$0xff]
        %v673 = vld [vmem:[%s360 + $0x30] sm:$0xff]
        %v674 = vld [vmem:[%s360 + $0x38] sm:$0xff]
        %v675 = vld [vmem:[%s360 + $0x40] sm:$0xff]
        %v676 = vld [vmem:[%s360 + $0x48] sm:$0xff]
        %v677 = vld [vmem:[%s360 + $0x50] sm:$0xff]
        %v678 = vld [vmem:[%s360 + $0x58] sm:$0xff]
        %v679 = vld [vmem:[%s360 + $0x60] sm:$0xff]
        %v680 = vld [vmem:[%s360 + $0x68] sm:$0xff]
        %v681 = vld [vmem:[%s360 + $0x70] sm:$0xff]
        %v682 = vld [vmem:[%s360 + $0x78] sm:$0xff]
        %v683 = vunpack.c.l.bf16 %v363
        %v684 = vunpack.c.l.bf16 %v364
        %v685 = vunpack.c.l.bf16 %v365
        %v686 = vunpack.c.l.bf16 %v366
        %v687 = vunpack.c.l.bf16 %v367
        %v688 = vunpack.c.l.bf16 %v368
        %v689 = vunpack.c.l.bf16 %v369
        %v690 = vunpack.c.l.bf16 %v370
        %v691 = vunpack.c.l.bf16 %v371
        %v692 = vunpack.c.l.bf16 %v372
        %v693 = vunpack.c.l.bf16 %v373
        %v694 = vunpack.c.l.bf16 %v374
        %v695 = vunpack.c.l.bf16 %v375
        %v696 = vunpack.c.l.bf16 %v376
        %v697 = vunpack.c.l.bf16 %v377
        %v698 = vunpack.c.l.bf16 %v378
        %v699 = vunpack.c.l.bf16 %v379
        %v700 = vunpack.c.l.bf16 %v380
        %v701 = vunpack.c.l.bf16 %v381
        %v702 = vunpack.c.l.bf16 %v382
        %v703 = vunpack.c.l.bf16 %v383
        %v704 = vunpack.c.l.bf16 %v384
        %v705 = vunpack.c.l.bf16 %v385
        %v706 = vunpack.c.l.bf16 %v386
        %v707 = vunpack.c.l.bf16 %v387
        %v708 = vunpack.c.l.bf16 %v388
        %v709 = vunpack.c.l.bf16 %v389
        %v710 = vunpack.c.l.bf16 %v390
        %v711 = vunpack.c.l.bf16 %v391
        %v712 = vunpack.c.l.bf16 %v392
        %v713 = vunpack.c.l.bf16 %v393
        %v714 = vunpack.c.l.bf16 %v394
        %v715 = vmul.f32 %v683, %v699
        %v716 = vmul.f32 %v684, %v700
        %v717 = vmul.f32 %v685, %v701
        %v718 = vmul.f32 %v686, %v702
        %v719 = vmul.f32 %v687, %v703
        %v720 = vmul.f32 %v688, %v704
        %v721 = vmul.f32 %v689, %v705
        %v722 = vmul.f32 %v690, %v706
        %v723 = vmul.f32 %v691, %v707
        %v724 = vmul.f32 %v692, %v708
        %v725 = vmul.f32 %v693, %v709
        %v726 = vmul.f32 %v694, %v710
        %v727 = vmul.f32 %v695, %v711
        %v728 = vmul.f32 %v696, %v712
        %v729 = vmul.f32 %v697, %v713
        %v730 = vmul.f32 %v698, %v714
        %vm731 = vcmask 261120
        %v732 = vsel %vm731, %v715, 0.0
        %733 = vadd.xlane.f32.xlu0 %v732
        %v734 = vpop.xlane.xlu0 %733
        %v735 = vsel %vm731, %v716, 0.0
        %736 = vadd.xlane.f32.xlu0 %v735
        %v737 = vpop.xlane.xlu0 %736
        %v738 = vsel %vm731, %v717, 0.0
        %739 = vadd.xlane.f32.xlu0 %v738
        %v740 = vpop.xlane.xlu0 %739
        %v741 = vsel %vm731, %v718, 0.0
        %742 = vadd.xlane.f32.xlu0 %v741
        %v743 = vpop.xlane.xlu0 %742
        %v744 = vsel %vm731, %v719, 0.0
        %745 = vadd.xlane.f32.xlu0 %v744
        %v746 = vpop.xlane.xlu0 %745
        %v747 = vsel %vm731, %v720, 0.0
        %748 = vadd.xlane.f32.xlu0 %v747
        %v749 = vpop.xlane.xlu0 %748
        %v750 = vsel %vm731, %v721, 0.0
        %751 = vadd.xlane.f32.xlu0 %v750
        %v752 = vpop.xlane.xlu0 %751
        %v753 = vsel %vm731, %v722, 0.0
        %754 = vadd.xlane.f32.xlu0 %v753
        %v755 = vpop.xlane.xlu0 %754
        %v756 = vsel %vm731, %v723, 0.0
        %757 = vadd.xlane.f32.xlu0 %v756
        %v758 = vpop.xlane.xlu0 %757
        %v759 = vsel %vm731, %v724, 0.0
        %760 = vadd.xlane.f32.xlu0 %v759
        %v761 = vpop.xlane.xlu0 %760
        %v762 = vsel %vm731, %v725, 0.0
        %763 = vadd.xlane.f32.xlu0 %v762
        %v764 = vpop.xlane.xlu0 %763
        %v765 = vsel %vm731, %v726, 0.0
        %766 = vadd.xlane.f32.xlu0 %v765
        %v767 = vpop.xlane.xlu0 %766
        %v768 = vsel %vm731, %v727, 0.0
        %769 = vadd.xlane.f32.xlu0 %v768
        %v770 = vpop.xlane.xlu0 %769
        %v771 = vsel %vm731, %v728, 0.0
        %772 = vadd.xlane.f32.xlu0 %v771
        %v773 = vpop.xlane.xlu0 %772
        %v774 = vsel %vm731, %v729, 0.0
        %775 = vadd.xlane.f32.xlu0 %v774
        %v776 = vpop.xlane.xlu0 %775
        %v777 = vsel %vm731, %v730, 0.0
        %778 = vadd.xlane.f32.xlu0 %v777
        %v779 = vpop.xlane.xlu0 %778
        %v796 = vrot.slane %v363, 3
        %v797 = vrot.slane %v364, 3
        %v798 = vrot.slane %v365, 3
        %v799 = vrot.slane %v366, 3
        %v800 = vrot.slane %v367, 3
        %v801 = vrot.slane %v368, 3
        %v802 = vrot.slane %v369, 3
        %v803 = vrot.slane %v370, 3
        %v804 = vrot.slane %v371, 3
        %v805 = vrot.slane %v372, 3
        %v806 = vrot.slane %v373, 3
        %v807 = vrot.slane %v374, 3
        %v808 = vrot.slane %v375, 3
        %v809 = vrot.slane %v376, 3
        %v810 = vrot.slane %v377, 3
        %v811 = vrot.slane %v378, 3
        %vm812 = vcmask 1040384
        %v815 = vsel %vm812, %v363, %v796
        %vm817 = vcmask 1041409
        %v818 = vsel %vm817, %v363, %v796
        %v820 = vrot.slane %v818, 1
        %vm821 = vcmask 1042434
        %v822 = vsel %vm821, %v363, %v796
        %v824 = vrot.slane %v822, 2
        %vm825 = vcmask 1043459
        %v826 = vsel %vm825, %v363, %v796
        %v828 = vrot.slane %v826, 3
        %v831 = vsel %vm812, %v364, %v797
        %v833 = vsel %vm817, %v364, %v797
        %v835 = vrot.slane %v833, 1
        %v836 = vsel %vm821, %v364, %v797
        %v838 = vrot.slane %v836, 2
        %v839 = vsel %vm825, %v364, %v797
        %v841 = vrot.slane %v839, 3
        %v844 = vsel %vm812, %v365, %v798
        %v846 = vsel %vm817, %v365, %v798
        %v848 = vrot.slane %v846, 1
        %v849 = vsel %vm821, %v365, %v798
        %v851 = vrot.slane %v849, 2
        %v852 = vsel %vm825, %v365, %v798
        %v854 = vrot.slane %v852, 3
        %v857 = vsel %vm812, %v366, %v799
        %v859 = vsel %vm817, %v366, %v799
        %v861 = vrot.slane %v859, 1
        %v862 = vsel %vm821, %v366, %v799
        %v864 = vrot.slane %v862, 2
        %v865 = vsel %vm825, %v366, %v799
        %v867 = vrot.slane %v865, 3
        %v870 = vsel %vm812, %v367, %v800
        %v872 = vsel %vm817, %v367, %v800
        %v874 = vrot.slane %v872, 1
        %v875 = vsel %vm821, %v367, %v800
        %v877 = vrot.slane %v875, 2
        %v878 = vsel %vm825, %v367, %v800
        %v880 = vrot.slane %v878, 3
        %v883 = vsel %vm812, %v368, %v801
        %v885 = vsel %vm817, %v368, %v801
        %v887 = vrot.slane %v885, 1
        %v888 = vsel %vm821, %v368, %v801
        %v890 = vrot.slane %v888, 2
        %v891 = vsel %vm825, %v368, %v801
        %v893 = vrot.slane %v891, 3
        %v896 = vsel %vm812, %v369, %v802
        %v898 = vsel %vm817, %v369, %v802
        %v900 = vrot.slane %v898, 1
        %v901 = vsel %vm821, %v369, %v802
        %v903 = vrot.slane %v901, 2
        %v904 = vsel %vm825, %v369, %v802
        %v906 = vrot.slane %v904, 3
        %v909 = vsel %vm812, %v370, %v803
        %v911 = vsel %vm817, %v370, %v803
        %v913 = vrot.slane %v911, 1
        %v914 = vsel %vm821, %v370, %v803
        %v916 = vrot.slane %v914, 2
        %v917 = vsel %vm825, %v370, %v803
        %v919 = vrot.slane %v917, 3
        %v922 = vsel %vm812, %v371, %v804
        %v924 = vsel %vm817, %v371, %v804
        %v926 = vrot.slane %v924, 1
        %v927 = vsel %vm821, %v371, %v804
        %v929 = vrot.slane %v927, 2
        %v930 = vsel %vm825, %v371, %v804
        %v932 = vrot.slane %v930, 3
        %v935 = vsel %vm812, %v372, %v805
        %v937 = vsel %vm817, %v372, %v805
        %v939 = vrot.slane %v937, 1
        %v940 = vsel %vm821, %v372, %v805
        %v942 = vrot.slane %v940, 2
        %v943 = vsel %vm825, %v372, %v805
        %v945 = vrot.slane %v943, 3
        %v948 = vsel %vm812, %v373, %v806
        %v950 = vsel %vm817, %v373, %v806
        %v952 = vrot.slane %v950, 1
        %v953 = vsel %vm821, %v373, %v806
        %v955 = vrot.slane %v953, 2
        %v956 = vsel %vm825, %v373, %v806
        %v958 = vrot.slane %v956, 3
        %v961 = vsel %vm812, %v374, %v807
        %v963 = vsel %vm817, %v374, %v807
        %v965 = vrot.slane %v963, 1
        %v966 = vsel %vm821, %v374, %v807
        %v968 = vrot.slane %v966, 2
        %v969 = vsel %vm825, %v374, %v807
        %v971 = vrot.slane %v969, 3
        %v974 = vsel %vm812, %v375, %v808
        %v976 = vsel %vm817, %v375, %v808
        %v978 = vrot.slane %v976, 1
        %v979 = vsel %vm821, %v375, %v808
        %v981 = vrot.slane %v979, 2
        %v982 = vsel %vm825, %v375, %v808
        %v984 = vrot.slane %v982, 3
        %v987 = vsel %vm812, %v376, %v809
        %v989 = vsel %vm817, %v376, %v809
        %v991 = vrot.slane %v989, 1
        %v992 = vsel %vm821, %v376, %v809
        %v994 = vrot.slane %v992, 2
        %v995 = vsel %vm825, %v376, %v809
        %v997 = vrot.slane %v995, 3
        %v1000 = vsel %vm812, %v377, %v810
        %v1002 = vsel %vm817, %v377, %v810
        %v1004 = vrot.slane %v1002, 1
        %v1005 = vsel %vm821, %v377, %v810
        %v1007 = vrot.slane %v1005, 2
        %v1008 = vsel %vm825, %v377, %v810
        %v1010 = vrot.slane %v1008, 3
        %v1013 = vsel %vm812, %v378, %v811
        %v1015 = vsel %vm817, %v378, %v811
        %v1017 = vrot.slane %v1015, 1
        %v1018 = vsel %vm821, %v378, %v811
        %v1020 = vrot.slane %v1018, 2
        %v1021 = vsel %vm825, %v378, %v811
        %v1023 = vrot.slane %v1021, 3
        %v1024 = vunpack.i.l.s16 %v815
        %v1025 = vunpack.i.h.s16 %v815
        %v1026 = vunpack.i.l.s16 %v820
        %v1027 = vunpack.i.h.s16 %v820
        %v1028 = vunpack.i.l.s16 %v824
        %v1029 = vunpack.i.h.s16 %v824
        %v1030 = vunpack.i.l.s16 %v828
        %v1031 = vunpack.i.h.s16 %v828
        %v1032 = vunpack.i.l.s16 %v831
        %v1033 = vunpack.i.h.s16 %v831
        %v1034 = vunpack.i.l.s16 %v835
        %v1035 = vunpack.i.h.s16 %v835
        %v1036 = vunpack.i.l.s16 %v838
        %v1037 = vunpack.i.h.s16 %v838
        %v1038 = vunpack.i.l.s16 %v841
        %v1039 = vunpack.i.h.s16 %v841
        %v1040 = vunpack.i.l.s16 %v844
        %v1041 = vunpack.i.h.s16 %v844
        %v1042 = vunpack.i.l.s16 %v848
        %v1043 = vunpack.i.h.s16 %v848
        %v1044 = vunpack.i.l.s16 %v851
        %v1045 = vunpack.i.h.s16 %v851
        %v1046 = vunpack.i.l.s16 %v854
        %v1047 = vunpack.i.h.s16 %v854
        %v1048 = vunpack.i.l.s16 %v857
        %v1049 = vunpack.i.h.s16 %v857
        %v1050 = vunpack.i.l.s16 %v861
        %v1051 = vunpack.i.h.s16 %v861
        %v1052 = vunpack.i.l.s16 %v864
        %v1053 = vunpack.i.h.s16 %v864
        %v1054 = vunpack.i.l.s16 %v867
        %v1055 = vunpack.i.h.s16 %v867
        %v1056 = vunpack.i.l.s16 %v870
        %v1057 = vunpack.i.h.s16 %v870
        %v1058 = vunpack.i.l.s16 %v874
        %v1059 = vunpack.i.h.s16 %v874
        %v1060 = vunpack.i.l.s16 %v877
        %v1061 = vunpack.i.h.s16 %v877
        %v1062 = vunpack.i.l.s16 %v880
        %v1063 = vunpack.i.h.s16 %v880
        %v1064 = vunpack.i.l.s16 %v883
        %v1065 = vunpack.i.h.s16 %v883
        %v1066 = vunpack.i.l.s16 %v887
        %v1067 = vunpack.i.h.s16 %v887
        %v1068 = vunpack.i.l.s16 %v890
        %v1069 = vunpack.i.h.s16 %v890
        %v1070 = vunpack.i.l.s16 %v893
        %v1071 = vunpack.i.h.s16 %v893
        %v1072 = vunpack.i.l.s16 %v896
        %v1073 = vunpack.i.h.s16 %v896
        %v1074 = vunpack.i.l.s16 %v900
        %v1075 = vunpack.i.h.s16 %v900
        %v1076 = vunpack.i.l.s16 %v903
        %v1077 = vunpack.i.h.s16 %v903
        %v1078 = vunpack.i.l.s16 %v906
        %v1079 = vunpack.i.h.s16 %v906
        %v1080 = vunpack.i.l.s16 %v909
        %v1081 = vunpack.i.h.s16 %v909
        %v1082 = vunpack.i.l.s16 %v913
        %v1083 = vunpack.i.h.s16 %v913
        %v1084 = vunpack.i.l.s16 %v916
        %v1085 = vunpack.i.h.s16 %v916
        %v1086 = vunpack.i.l.s16 %v919
        %v1087 = vunpack.i.h.s16 %v919
        %v1088 = vunpack.i.l.s16 %v922
        %v1089 = vunpack.i.h.s16 %v922
        %v1090 = vunpack.i.l.s16 %v926
        %v1091 = vunpack.i.h.s16 %v926
        %v1092 = vunpack.i.l.s16 %v929
        %v1093 = vunpack.i.h.s16 %v929
        %v1094 = vunpack.i.l.s16 %v932
        %v1095 = vunpack.i.h.s16 %v932
        %v1096 = vunpack.i.l.s16 %v935
        %v1097 = vunpack.i.h.s16 %v935
        %v1098 = vunpack.i.l.s16 %v939
        %v1099 = vunpack.i.h.s16 %v939
        %v1100 = vunpack.i.l.s16 %v942
        %v1101 = vunpack.i.h.s16 %v942
        %v1102 = vunpack.i.l.s16 %v945
        %v1103 = vunpack.i.h.s16 %v945
        %v1104 = vunpack.i.l.s16 %v948
        %v1105 = vunpack.i.h.s16 %v948
        %v1106 = vunpack.i.l.s16 %v952
        %v1107 = vunpack.i.h.s16 %v952
        %v1108 = vunpack.i.l.s16 %v955
        %v1109 = vunpack.i.h.s16 %v955
        %v1110 = vunpack.i.l.s16 %v958
        %v1111 = vunpack.i.h.s16 %v958
        %v1112 = vunpack.i.l.s16 %v961
        %v1113 = vunpack.i.h.s16 %v961
        %v1114 = vunpack.i.l.s16 %v965
        %v1115 = vunpack.i.h.s16 %v965
        %v1116 = vunpack.i.l.s16 %v968
        %v1117 = vunpack.i.h.s16 %v968
        %v1118 = vunpack.i.l.s16 %v971
        %v1119 = vunpack.i.h.s16 %v971
        %v1120 = vunpack.i.l.s16 %v974
        %v1121 = vunpack.i.h.s16 %v974
        %v1122 = vunpack.i.l.s16 %v978
        %v1123 = vunpack.i.h.s16 %v978
        %v1124 = vunpack.i.l.s16 %v981
        %v1125 = vunpack.i.h.s16 %v981
        %v1126 = vunpack.i.l.s16 %v984
        %v1127 = vunpack.i.h.s16 %v984
        %v1128 = vunpack.i.l.s16 %v987
        %v1129 = vunpack.i.h.s16 %v987
        %v1130 = vunpack.i.l.s16 %v991
        %v1131 = vunpack.i.h.s16 %v991
        %v1132 = vunpack.i.l.s16 %v994
        %v1133 = vunpack.i.h.s16 %v994
        %v1134 = vunpack.i.l.s16 %v997
        %v1135 = vunpack.i.h.s16 %v997
        %v1136 = vunpack.i.l.s16 %v1000
        %v1137 = vunpack.i.h.s16 %v1000
        %v1138 = vunpack.i.l.s16 %v1004
        %v1139 = vunpack.i.h.s16 %v1004
        %v1140 = vunpack.i.l.s16 %v1007
        %v1141 = vunpack.i.h.s16 %v1007
        %v1142 = vunpack.i.l.s16 %v1010
        %v1143 = vunpack.i.h.s16 %v1010
        %v1144 = vunpack.i.l.s16 %v1013
        %v1145 = vunpack.i.h.s16 %v1013
        %v1146 = vunpack.i.l.s16 %v1017
        %v1147 = vunpack.i.h.s16 %v1017
        %v1148 = vunpack.i.l.s16 %v1020
        %v1149 = vunpack.i.h.s16 %v1020
        %v1150 = vunpack.i.l.s16 %v1023
        %v1151 = vunpack.i.h.s16 %v1023
        %v1152 = vpack.i.b16 %v1024, %v1024
        %v1153 = vperm.slane %v1152, 0
        %v1155 = vsel %vm731, %v1153, 0
        %v1158 = vsel %vm731, %v395, 0
        %1160 = vmatpush.bf16.xpose.msra.mxu0 0
        %1161 = vmatpush.bf16.xpose.msra.mxu0 0
        %1162 = vmatpush.bf16.xpose.msra.mxu0 0
        %1163 = vmatpush.bf16.xpose.msra.mxu0 0
        %1164 = vmatpush.bf16.xpose.msra.mxu0 0
        %1165 = vmatpush.bf16.xpose.msra.mxu0 0
        %1166 = vmatpush.bf16.xpose.msra.mxu0 0
        %1167 = vmatpush.bf16.xpose.msra.mxu0 %v1158
        %1168 = vmatmul.bf16.gmra.mxu0 %v1155
        %v1169 = vpop.f32.mrf.mxu0
        %v1170 = vadd.f32 0.0, %v1169
        %v1171 = vpop.f32.mrf.mxu0
        %1172 = vdwg.mxu0
        %v1173 = vpack.i.b16 %v1025, %v1025
        %v1174 = vperm.slane %v1173, 0
        %v1176 = vsel %vm731, %v1174, 0
        %v1179 = vsel %vm731, %v396, 0
        %1181 = vmatpush.bf16.xpose.msra.mxu0 0
        %1182 = vmatpush.bf16.xpose.msra.mxu0 0
        %1183 = vmatpush.bf16.xpose.msra.mxu0 0
        %1184 = vmatpush.bf16.xpose.msra.mxu0 0
        %1185 = vmatpush.bf16.xpose.msra.mxu0 0
        %1186 = vmatpush.bf16.xpose.msra.mxu0 0
        %1187 = vmatpush.bf16.xpose.msra.mxu0 0
        %1188 = vmatpush.bf16.xpose.msra.mxu0 %v1179
        %1189 = vmatmul.bf16.gmra.mxu0 %v1176
        %v1190 = vpop.f32.mrf.mxu0
        %v1191 = vadd.f32 0.0, %v1190
        %v1192 = vpop.f32.mrf.mxu0
        %1193 = vdwg.mxu0
        %v1194 = vpack.i.b16 %v1026, %v1026
        %v1195 = vperm.slane %v1194, 0
        %v1197 = vsel %vm731, %v1195, 0
        %v1200 = vsel %vm731, %v397, 0
        %1202 = vmatpush.bf16.xpose.msra.mxu0 0
        %1203 = vmatpush.bf16.xpose.msra.mxu0 0
        %1204 = vmatpush.bf16.xpose.msra.mxu0 0
        %1205 = vmatpush.bf16.xpose.msra.mxu0 0
        %1206 = vmatpush.bf16.xpose.msra.mxu0 0
        %1207 = vmatpush.bf16.xpose.msra.mxu0 0
        %1208 = vmatpush.bf16.xpose.msra.mxu0 0
        %1209 = vmatpush.bf16.xpose.msra.mxu0 %v1200
        %1210 = vmatmul.bf16.gmra.mxu0 %v1197
        %v1211 = vpop.f32.mrf.mxu0
        %v1212 = vadd.f32 0.0, %v1211
        %v1213 = vpop.f32.mrf.mxu0
        %1214 = vdwg.mxu0
        %v1215 = vpack.i.b16 %v1027, %v1027
        %v1216 = vperm.slane %v1215, 0
        %v1218 = vsel %vm731, %v1216, 0
        %v1221 = vsel %vm731, %v398, 0
        %1223 = vmatpush.bf16.xpose.msra.mxu0 0
        %1224 = vmatpush.bf16.xpose.msra.mxu0 0
        %1225 = vmatpush.bf16.xpose.msra.mxu0 0
        %1226 = vmatpush.bf16.xpose.msra.mxu0 0
        %1227 = vmatpush.bf16.xpose.msra.mxu0 0
        %1228 = vmatpush.bf16.xpose.msra.mxu0 0
        %1229 = vmatpush.bf16.xpose.msra.mxu0 0
        %1230 = vmatpush.bf16.xpose.msra.mxu0 %v1221
        %1231 = vmatmul.bf16.gmra.mxu0 %v1218
        %v1232 = vpop.f32.mrf.mxu0
        %v1233 = vadd.f32 0.0, %v1232
        %v1234 = vpop.f32.mrf.mxu0
        %1235 = vdwg.mxu0
        %v1236 = vpack.i.b16 %v1028, %v1028
        %v1237 = vperm.slane %v1236, 0
        %v1239 = vsel %vm731, %v1237, 0
        %v1242 = vsel %vm731, %v399, 0
        %1244 = vmatpush.bf16.xpose.msra.mxu0 0
        %1245 = vmatpush.bf16.xpose.msra.mxu0 0
        %1246 = vmatpush.bf16.xpose.msra.mxu0 0
        %1247 = vmatpush.bf16.xpose.msra.mxu0 0
        %1248 = vmatpush.bf16.xpose.msra.mxu0 0
        %1249 = vmatpush.bf16.xpose.msra.mxu0 0
        %1250 = vmatpush.bf16.xpose.msra.mxu0 0
        %1251 = vmatpush.bf16.xpose.msra.mxu0 %v1242
        %1252 = vmatmul.bf16.gmra.mxu0 %v1239
        %v1253 = vpop.f32.mrf.mxu0
        %v1254 = vadd.f32 0.0, %v1253
        %v1255 = vpop.f32.mrf.mxu0
        %1256 = vdwg.mxu0
        %v1257 = vpack.i.b16 %v1029, %v1029
        %v1258 = vperm.slane %v1257, 0
        %v1260 = vsel %vm731, %v1258, 0
        %v1263 = vsel %vm731, %v400, 0
        %1265 = vmatpush.bf16.xpose.msra.mxu0 0
        %1266 = vmatpush.bf16.xpose.msra.mxu0 0
        %1267 = vmatpush.bf16.xpose.msra.mxu0 0
        %1268 = vmatpush.bf16.xpose.msra.mxu0 0
        %1269 = vmatpush.bf16.xpose.msra.mxu0 0
        %1270 = vmatpush.bf16.xpose.msra.mxu0 0
        %1271 = vmatpush.bf16.xpose.msra.mxu0 0
        %1272 = vmatpush.bf16.xpose.msra.mxu0 %v1263
        %1273 = vmatmul.bf16.gmra.mxu0 %v1260
        %v1274 = vpop.f32.mrf.mxu0
        %v1275 = vadd.f32 0.0, %v1274
        %v1276 = vpop.f32.mrf.mxu0
        %1277 = vdwg.mxu0
        %v1278 = vpack.i.b16 %v1030, %v1030
        %v1279 = vperm.slane %v1278, 0
        %v1281 = vsel %vm731, %v1279, 0
        %v1284 = vsel %vm731, %v401, 0
        %1286 = vmatpush.bf16.xpose.msra.mxu0 0
        %1287 = vmatpush.bf16.xpose.msra.mxu0 0
        %1288 = vmatpush.bf16.xpose.msra.mxu0 0
        %1289 = vmatpush.bf16.xpose.msra.mxu0 0
        %1290 = vmatpush.bf16.xpose.msra.mxu0 0
        %1291 = vmatpush.bf16.xpose.msra.mxu0 0
        %1292 = vmatpush.bf16.xpose.msra.mxu0 0
        %1293 = vmatpush.bf16.xpose.msra.mxu0 %v1284
        %1294 = vmatmul.bf16.gmra.mxu0 %v1281
        %v1295 = vpop.f32.mrf.mxu0
        %v1296 = vadd.f32 0.0, %v1295
        %v1297 = vpop.f32.mrf.mxu0
        %1298 = vdwg.mxu0
        %v1299 = vpack.i.b16 %v1031, %v1031
        %v1300 = vperm.slane %v1299, 0
        %v1302 = vsel %vm731, %v1300, 0
        %v1305 = vsel %vm731, %v402, 0
        %1307 = vmatpush.bf16.xpose.msra.mxu0 0
        %1308 = vmatpush.bf16.xpose.msra.mxu0 0
        %1309 = vmatpush.bf16.xpose.msra.mxu0 0
        %1310 = vmatpush.bf16.xpose.msra.mxu0 0
        %1311 = vmatpush.bf16.xpose.msra.mxu0 0
        %1312 = vmatpush.bf16.xpose.msra.mxu0 0
        %1313 = vmatpush.bf16.xpose.msra.mxu0 0
        %1314 = vmatpush.bf16.xpose.msra.mxu0 %v1305
        %1315 = vmatmul.bf16.gmra.mxu0 %v1302
        %v1316 = vpop.f32.mrf.mxu0
        %v1317 = vadd.f32 0.0, %v1316
        %v1318 = vpop.f32.mrf.mxu0
        %1319 = vdwg.mxu0
        %v1320 = vpack.i.b16 %v1032, %v1032
        %v1321 = vperm.slane %v1320, 0
        %v1323 = vsel %vm731, %v1321, 0
        %v1326 = vsel %vm731, %v403, 0
        %1328 = vmatpush.bf16.xpose.msra.mxu0 0
        %1329 = vmatpush.bf16.xpose.msra.mxu0 0
        %1330 = vmatpush.bf16.xpose.msra.mxu0 0
        %1331 = vmatpush.bf16.xpose.msra.mxu0 0
        %1332 = vmatpush.bf16.xpose.msra.mxu0 0
        %1333 = vmatpush.bf16.xpose.msra.mxu0 0
        %1334 = vmatpush.bf16.xpose.msra.mxu0 0
        %1335 = vmatpush.bf16.xpose.msra.mxu0 %v1326
        %1336 = vmatmul.bf16.gmra.mxu0 %v1323
        %v1337 = vpop.f32.mrf.mxu0
        %v1338 = vadd.f32 0.0, %v1337
        %v1339 = vpop.f32.mrf.mxu0
        %1340 = vdwg.mxu0
        %v1341 = vpack.i.b16 %v1033, %v1033
        %v1342 = vperm.slane %v1341, 0
        %v1344 = vsel %vm731, %v1342, 0
        %v1347 = vsel %vm731, %v404, 0
        %1349 = vmatpush.bf16.xpose.msra.mxu0 0
        %1350 = vmatpush.bf16.xpose.msra.mxu0 0
        %1351 = vmatpush.bf16.xpose.msra.mxu0 0
        %1352 = vmatpush.bf16.xpose.msra.mxu0 0
        %1353 = vmatpush.bf16.xpose.msra.mxu0 0
        %1354 = vmatpush.bf16.xpose.msra.mxu0 0
        %1355 = vmatpush.bf16.xpose.msra.mxu0 0
        %1356 = vmatpush.bf16.xpose.msra.mxu0 %v1347
        %1357 = vmatmul.bf16.gmra.mxu0 %v1344
        %v1358 = vpop.f32.mrf.mxu0
        %v1359 = vadd.f32 0.0, %v1358
        %v1360 = vpop.f32.mrf.mxu0
        %1361 = vdwg.mxu0
        %v1362 = vpack.i.b16 %v1034, %v1034
        %v1363 = vperm.slane %v1362, 0
        %v1365 = vsel %vm731, %v1363, 0
        %v1368 = vsel %vm731, %v405, 0
        %1370 = vmatpush.bf16.xpose.msra.mxu0 0
        %1371 = vmatpush.bf16.xpose.msra.mxu0 0
        %1372 = vmatpush.bf16.xpose.msra.mxu0 0
        %1373 = vmatpush.bf16.xpose.msra.mxu0 0
        %1374 = vmatpush.bf16.xpose.msra.mxu0 0
        %1375 = vmatpush.bf16.xpose.msra.mxu0 0
        %1376 = vmatpush.bf16.xpose.msra.mxu0 0
        %1377 = vmatpush.bf16.xpose.msra.mxu0 %v1368
        %1378 = vmatmul.bf16.gmra.mxu0 %v1365
        %v1379 = vpop.f32.mrf.mxu0
        %v1380 = vadd.f32 0.0, %v1379
        %v1381 = vpop.f32.mrf.mxu0
        %1382 = vdwg.mxu0
        %v1383 = vpack.i.b16 %v1035, %v1035
        %v1384 = vperm.slane %v1383, 0
        %v1386 = vsel %vm731, %v1384, 0
        %v1389 = vsel %vm731, %v406, 0
        %1391 = vmatpush.bf16.xpose.msra.mxu0 0
        %1392 = vmatpush.bf16.xpose.msra.mxu0 0
        %1393 = vmatpush.bf16.xpose.msra.mxu0 0
        %1394 = vmatpush.bf16.xpose.msra.mxu0 0
        %1395 = vmatpush.bf16.xpose.msra.mxu0 0
        %1396 = vmatpush.bf16.xpose.msra.mxu0 0
        %1397 = vmatpush.bf16.xpose.msra.mxu0 0
        %1398 = vmatpush.bf16.xpose.msra.mxu0 %v1389
        %1399 = vmatmul.bf16.gmra.mxu0 %v1386
        %v1400 = vpop.f32.mrf.mxu0
        %v1401 = vadd.f32 0.0, %v1400
        %v1402 = vpop.f32.mrf.mxu0
        %1403 = vdwg.mxu0
        %v1404 = vpack.i.b16 %v1036, %v1036
        %v1405 = vperm.slane %v1404, 0
        %v1407 = vsel %vm731, %v1405, 0
        %v1410 = vsel %vm731, %v407, 0
        %1412 = vmatpush.bf16.xpose.msra.mxu0 0
        %1413 = vmatpush.bf16.xpose.msra.mxu0 0
        %1414 = vmatpush.bf16.xpose.msra.mxu0 0
        %1415 = vmatpush.bf16.xpose.msra.mxu0 0
        %1416 = vmatpush.bf16.xpose.msra.mxu0 0
        %1417 = vmatpush.bf16.xpose.msra.mxu0 0
        %1418 = vmatpush.bf16.xpose.msra.mxu0 0
        %1419 = vmatpush.bf16.xpose.msra.mxu0 %v1410
        %1420 = vmatmul.bf16.gmra.mxu0 %v1407
        %v1421 = vpop.f32.mrf.mxu0
        %v1422 = vadd.f32 0.0, %v1421
        %v1423 = vpop.f32.mrf.mxu0
        %1424 = vdwg.mxu0
        %v1425 = vpack.i.b16 %v1037, %v1037
        %v1426 = vperm.slane %v1425, 0
        %v1428 = vsel %vm731, %v1426, 0
        %v1431 = vsel %vm731, %v408, 0
        %1433 = vmatpush.bf16.xpose.msra.mxu0 0
        %1434 = vmatpush.bf16.xpose.msra.mxu0 0
        %1435 = vmatpush.bf16.xpose.msra.mxu0 0
        %1436 = vmatpush.bf16.xpose.msra.mxu0 0
        %1437 = vmatpush.bf16.xpose.msra.mxu0 0
        %1438 = vmatpush.bf16.xpose.msra.mxu0 0
        %1439 = vmatpush.bf16.xpose.msra.mxu0 0
        %1440 = vmatpush.bf16.xpose.msra.mxu0 %v1431
        %1441 = vmatmul.bf16.gmra.mxu0 %v1428
        %v1442 = vpop.f32.mrf.mxu0
        %v1443 = vadd.f32 0.0, %v1442
        %v1444 = vpop.f32.mrf.mxu0
        %1445 = vdwg.mxu0
        %v1446 = vpack.i.b16 %v1038, %v1038
        %v1447 = vperm.slane %v1446, 0
        %v1449 = vsel %vm731, %v1447, 0
        %v1452 = vsel %vm731, %v409, 0
        %1454 = vmatpush.bf16.xpose.msra.mxu0 0
        %1455 = vmatpush.bf16.xpose.msra.mxu0 0
        %1456 = vmatpush.bf16.xpose.msra.mxu0 0
        %1457 = vmatpush.bf16.xpose.msra.mxu0 0
        %1458 = vmatpush.bf16.xpose.msra.mxu0 0
        %1459 = vmatpush.bf16.xpose.msra.mxu0 0
        %1460 = vmatpush.bf16.xpose.msra.mxu0 0
        %1461 = vmatpush.bf16.xpose.msra.mxu0 %v1452
        %1462 = vmatmul.bf16.gmra.mxu0 %v1449
        %v1463 = vpop.f32.mrf.mxu0
        %v1464 = vadd.f32 0.0, %v1463
        %v1465 = vpop.f32.mrf.mxu0
        %1466 = vdwg.mxu0
        %v1467 = vpack.i.b16 %v1039, %v1039
        %v1468 = vperm.slane %v1467, 0
        %v1470 = vsel %vm731, %v1468, 0
        %v1473 = vsel %vm731, %v410, 0
        %1475 = vmatpush.bf16.xpose.msra.mxu0 0
        %1476 = vmatpush.bf16.xpose.msra.mxu0 0
        %1477 = vmatpush.bf16.xpose.msra.mxu0 0
        %1478 = vmatpush.bf16.xpose.msra.mxu0 0
        %1479 = vmatpush.bf16.xpose.msra.mxu0 0
        %1480 = vmatpush.bf16.xpose.msra.mxu0 0
        %1481 = vmatpush.bf16.xpose.msra.mxu0 0
        %1482 = vmatpush.bf16.xpose.msra.mxu0 %v1473
        %1483 = vmatmul.bf16.gmra.mxu0 %v1470
        %v1484 = vpop.f32.mrf.mxu0
        %v1485 = vadd.f32 0.0, %v1484
        %v1486 = vpop.f32.mrf.mxu0
        %1487 = vdwg.mxu0
        %v1488 = vpack.i.b16 %v1040, %v1040
        %v1489 = vperm.slane %v1488, 0
        %v1491 = vsel %vm731, %v1489, 0
        %v1494 = vsel %vm731, %v411, 0
        %1496 = vmatpush.bf16.xpose.msra.mxu0 0
        %1497 = vmatpush.bf16.xpose.msra.mxu0 0
        %1498 = vmatpush.bf16.xpose.msra.mxu0 0
        %1499 = vmatpush.bf16.xpose.msra.mxu0 0
        %1500 = vmatpush.bf16.xpose.msra.mxu0 0
        %1501 = vmatpush.bf16.xpose.msra.mxu0 0
        %1502 = vmatpush.bf16.xpose.msra.mxu0 0
        %1503 = vmatpush.bf16.xpose.msra.mxu0 %v1494
        %1504 = vmatmul.bf16.gmra.mxu0 %v1491
        %v1505 = vpop.f32.mrf.mxu0
        %v1506 = vadd.f32 0.0, %v1505
        %v1507 = vpop.f32.mrf.mxu0
        %1508 = vdwg.mxu0
        %v1509 = vpack.i.b16 %v1041, %v1041
        %v1510 = vperm.slane %v1509, 0
        %v1512 = vsel %vm731, %v1510, 0
        %v1515 = vsel %vm731, %v412, 0
        %1517 = vmatpush.bf16.xpose.msra.mxu0 0
        %1518 = vmatpush.bf16.xpose.msra.mxu0 0
        %1519 = vmatpush.bf16.xpose.msra.mxu0 0
        %1520 = vmatpush.bf16.xpose.msra.mxu0 0
        %1521 = vmatpush.bf16.xpose.msra.mxu0 0
        %1522 = vmatpush.bf16.xpose.msra.mxu0 0
        %1523 = vmatpush.bf16.xpose.msra.mxu0 0
        %1524 = vmatpush.bf16.xpose.msra.mxu0 %v1515
        %1525 = vmatmul.bf16.gmra.mxu0 %v1512
        %v1526 = vpop.f32.mrf.mxu0
        %v1527 = vadd.f32 0.0, %v1526
        %v1528 = vpop.f32.mrf.mxu0
        %1529 = vdwg.mxu0
        %v1530 = vpack.i.b16 %v1042, %v1042
        %v1531 = vperm.slane %v1530, 0
        %v1533 = vsel %vm731, %v1531, 0
        %v1536 = vsel %vm731, %v413, 0
        %1538 = vmatpush.bf16.xpose.msra.mxu0 0
        %1539 = vmatpush.bf16.xpose.msra.mxu0 0
        %1540 = vmatpush.bf16.xpose.msra.mxu0 0
        %1541 = vmatpush.bf16.xpose.msra.mxu0 0
        %1542 = vmatpush.bf16.xpose.msra.mxu0 0
        %1543 = vmatpush.bf16.xpose.msra.mxu0 0
        %1544 = vmatpush.bf16.xpose.msra.mxu0 0
        %1545 = vmatpush.bf16.xpose.msra.mxu0 %v1536
        %1546 = vmatmul.bf16.gmra.mxu0 %v1533
        %v1547 = vpop.f32.mrf.mxu0
        %v1548 = vadd.f32 0.0, %v1547
        %v1549 = vpop.f32.mrf.mxu0
        %1550 = vdwg.mxu0
        %v1551 = vpack.i.b16 %v1043, %v1043
        %v1552 = vperm.slane %v1551, 0
        %v1554 = vsel %vm731, %v1552, 0
        %v1557 = vsel %vm731, %v414, 0
        %1559 = vmatpush.bf16.xpose.msra.mxu0 0
        %1560 = vmatpush.bf16.xpose.msra.mxu0 0
        %1561 = vmatpush.bf16.xpose.msra.mxu0 0
        %1562 = vmatpush.bf16.xpose.msra.mxu0 0
        %1563 = vmatpush.bf16.xpose.msra.mxu0 0
        %1564 = vmatpush.bf16.xpose.msra.mxu0 0
        %1565 = vmatpush.bf16.xpose.msra.mxu0 0
        %1566 = vmatpush.bf16.xpose.msra.mxu0 %v1557
        %1567 = vmatmul.bf16.gmra.mxu0 %v1554
        %v1568 = vpop.f32.mrf.mxu0
        %v1569 = vadd.f32 0.0, %v1568
        %v1570 = vpop.f32.mrf.mxu0
        %1571 = vdwg.mxu0
        %v1572 = vpack.i.b16 %v1044, %v1044
        %v1573 = vperm.slane %v1572, 0
        %v1575 = vsel %vm731, %v1573, 0
        %v1578 = vsel %vm731, %v415, 0
        %1580 = vmatpush.bf16.xpose.msra.mxu0 0
        %1581 = vmatpush.bf16.xpose.msra.mxu0 0
        %1582 = vmatpush.bf16.xpose.msra.mxu0 0
        %1583 = vmatpush.bf16.xpose.msra.mxu0 0
        %1584 = vmatpush.bf16.xpose.msra.mxu0 0
        %1585 = vmatpush.bf16.xpose.msra.mxu0 0
        %1586 = vmatpush.bf16.xpose.msra.mxu0 0
        %1587 = vmatpush.bf16.xpose.msra.mxu0 %v1578
        %1588 = vmatmul.bf16.gmra.mxu0 %v1575
        %v1589 = vpop.f32.mrf.mxu0
        %v1590 = vadd.f32 0.0, %v1589
        %v1591 = vpop.f32.mrf.mxu0
        %1592 = vdwg.mxu0
        %v1593 = vpack.i.b16 %v1045, %v1045
        %v1594 = vperm.slane %v1593, 0
        %v1596 = vsel %vm731, %v1594, 0
        %v1599 = vsel %vm731, %v416, 0
        %1601 = vmatpush.bf16.xpose.msra.mxu0 0
        %1602 = vmatpush.bf16.xpose.msra.mxu0 0
        %1603 = vmatpush.bf16.xpose.msra.mxu0 0
        %1604 = vmatpush.bf16.xpose.msra.mxu0 0
        %1605 = vmatpush.bf16.xpose.msra.mxu0 0
        %1606 = vmatpush.bf16.xpose.msra.mxu0 0
        %1607 = vmatpush.bf16.xpose.msra.mxu0 0
        %1608 = vmatpush.bf16.xpose.msra.mxu0 %v1599
        %1609 = vmatmul.bf16.gmra.mxu0 %v1596
        %v1610 = vpop.f32.mrf.mxu0
        %v1611 = vadd.f32 0.0, %v1610
        %v1612 = vpop.f32.mrf.mxu0
        %1613 = vdwg.mxu0
        %v1614 = vpack.i.b16 %v1046, %v1046
        %v1615 = vperm.slane %v1614, 0
        %v1617 = vsel %vm731, %v1615, 0
        %v1620 = vsel %vm731, %v417, 0
        %1622 = vmatpush.bf16.xpose.msra.mxu0 0
        %1623 = vmatpush.bf16.xpose.msra.mxu0 0
        %1624 = vmatpush.bf16.xpose.msra.mxu0 0
        %1625 = vmatpush.bf16.xpose.msra.mxu0 0
        %1626 = vmatpush.bf16.xpose.msra.mxu0 0
        %1627 = vmatpush.bf16.xpose.msra.mxu0 0
        %1628 = vmatpush.bf16.xpose.msra.mxu0 0
        %1629 = vmatpush.bf16.xpose.msra.mxu0 %v1620
        %1630 = vmatmul.bf16.gmra.mxu0 %v1617
        %v1631 = vpop.f32.mrf.mxu0
        %v1632 = vadd.f32 0.0, %v1631
        %v1633 = vpop.f32.mrf.mxu0
        %1634 = vdwg.mxu0
        %v1635 = vpack.i.b16 %v1047, %v1047
        %v1636 = vperm.slane %v1635, 0
        %v1638 = vsel %vm731, %v1636, 0
        %v1641 = vsel %vm731, %v418, 0
        %1643 = vmatpush.bf16.xpose.msra.mxu0 0
        %1644 = vmatpush.bf16.xpose.msra.mxu0 0
        %1645 = vmatpush.bf16.xpose.msra.mxu0 0
        %1646 = vmatpush.bf16.xpose.msra.mxu0 0
        %1647 = vmatpush.bf16.xpose.msra.mxu0 0
        %1648 = vmatpush.bf16.xpose.msra.mxu0 0
        %1649 = vmatpush.bf16.xpose.msra.mxu0 0
        %1650 = vmatpush.bf16.xpose.msra.mxu0 %v1641
        %1651 = vmatmul.bf16.gmra.mxu0 %v1638
        %v1652 = vpop.f32.mrf.mxu0
        %v1653 = vadd.f32 0.0, %v1652
        %v1654 = vpop.f32.mrf.mxu0
        %1655 = vdwg.mxu0
        %v1656 = vpack.i.b16 %v1048, %v1048
        %v1657 = vperm.slane %v1656, 0
        %v1659 = vsel %vm731, %v1657, 0
        %v1662 = vsel %vm731, %v419, 0
        %1664 = vmatpush.bf16.xpose.msra.mxu0 0
        %1665 = vmatpush.bf16.xpose.msra.mxu0 0
        %1666 = vmatpush.bf16.xpose.msra.mxu0 0
        %1667 = vmatpush.bf16.xpose.msra.mxu0 0
        %1668 = vmatpush.bf16.xpose.msra.mxu0 0
        %1669 = vmatpush.bf16.xpose.msra.mxu0 0
        %1670 = vmatpush.bf16.xpose.msra.mxu0 0
        %1671 = vmatpush.bf16.xpose.msra.mxu0 %v1662
        %1672 = vmatmul.bf16.gmra.mxu0 %v1659
        %v1673 = vpop.f32.mrf.mxu0
        %v1674 = vadd.f32 0.0, %v1673
        %v1675 = vpop.f32.mrf.mxu0
        %1676 = vdwg.mxu0
        %v1677 = vpack.i.b16 %v1049, %v1049
        %v1678 = vperm.slane %v1677, 0
        %v1680 = vsel %vm731, %v1678, 0
        %v1683 = vsel %vm731, %v420, 0
        %1685 = vmatpush.bf16.xpose.msra.mxu0 0
        %1686 = vmatpush.bf16.xpose.msra.mxu0 0
        %1687 = vmatpush.bf16.xpose.msra.mxu0 0
        %1688 = vmatpush.bf16.xpose.msra.mxu0 0
        %1689 = vmatpush.bf16.xpose.msra.mxu0 0
        %1690 = vmatpush.bf16.xpose.msra.mxu0 0
        %1691 = vmatpush.bf16.xpose.msra.mxu0 0
        %1692 = vmatpush.bf16.xpose.msra.mxu0 %v1683
        %1693 = vmatmul.bf16.gmra.mxu0 %v1680
        %v1694 = vpop.f32.mrf.mxu0
        %v1695 = vadd.f32 0.0, %v1694
        %v1696 = vpop.f32.mrf.mxu0
        %1697 = vdwg.mxu0
        %v1698 = vpack.i.b16 %v1050, %v1050
        %v1699 = vperm.slane %v1698, 0
        %v1701 = vsel %vm731, %v1699, 0
        %v1704 = vsel %vm731, %v421, 0
        %1706 = vmatpush.bf16.xpose.msra.mxu0 0
        %1707 = vmatpush.bf16.xpose.msra.mxu0 0
        %1708 = vmatpush.bf16.xpose.msra.mxu0 0
        %1709 = vmatpush.bf16.xpose.msra.mxu0 0
        %1710 = vmatpush.bf16.xpose.msra.mxu0 0
        %1711 = vmatpush.bf16.xpose.msra.mxu0 0
        %1712 = vmatpush.bf16.xpose.msra.mxu0 0
        %1713 = vmatpush.bf16.xpose.msra.mxu0 %v1704
        %1714 = vmatmul.bf16.gmra.mxu0 %v1701
        %v1715 = vpop.f32.mrf.mxu0
        %v1716 = vadd.f32 0.0, %v1715
        %v1717 = vpop.f32.mrf.mxu0
        %1718 = vdwg.mxu0
        %v1719 = vpack.i.b16 %v1051, %v1051
        %v1720 = vperm.slane %v1719, 0
        %v1722 = vsel %vm731, %v1720, 0
        %v1725 = vsel %vm731, %v422, 0
        %1727 = vmatpush.bf16.xpose.msra.mxu0 0
        %1728 = vmatpush.bf16.xpose.msra.mxu0 0
        %1729 = vmatpush.bf16.xpose.msra.mxu0 0
        %1730 = vmatpush.bf16.xpose.msra.mxu0 0
        %1731 = vmatpush.bf16.xpose.msra.mxu0 0
        %1732 = vmatpush.bf16.xpose.msra.mxu0 0
        %1733 = vmatpush.bf16.xpose.msra.mxu0 0
        %1734 = vmatpush.bf16.xpose.msra.mxu0 %v1725
        %1735 = vmatmul.bf16.gmra.mxu0 %v1722
        %v1736 = vpop.f32.mrf.mxu0
        %v1737 = vadd.f32 0.0, %v1736
        %v1738 = vpop.f32.mrf.mxu0
        %1739 = vdwg.mxu0
        %v1740 = vpack.i.b16 %v1052, %v1052
        %v1741 = vperm.slane %v1740, 0
        %v1743 = vsel %vm731, %v1741, 0
        %v1746 = vsel %vm731, %v423, 0
        %1748 = vmatpush.bf16.xpose.msra.mxu0 0
        %1749 = vmatpush.bf16.xpose.msra.mxu0 0
        %1750 = vmatpush.bf16.xpose.msra.mxu0 0
        %1751 = vmatpush.bf16.xpose.msra.mxu0 0
        %1752 = vmatpush.bf16.xpose.msra.mxu0 0
        %1753 = vmatpush.bf16.xpose.msra.mxu0 0
        %1754 = vmatpush.bf16.xpose.msra.mxu0 0
        %1755 = vmatpush.bf16.xpose.msra.mxu0 %v1746
        %1756 = vmatmul.bf16.gmra.mxu0 %v1743
        %v1757 = vpop.f32.mrf.mxu0
        %v1758 = vadd.f32 0.0, %v1757
        %v1759 = vpop.f32.mrf.mxu0
        %1760 = vdwg.mxu0
        %v1761 = vpack.i.b16 %v1053, %v1053
        %v1762 = vperm.slane %v1761, 0
        %v1764 = vsel %vm731, %v1762, 0
        %v1767 = vsel %vm731, %v424, 0
        %1769 = vmatpush.bf16.xpose.msra.mxu0 0
        %1770 = vmatpush.bf16.xpose.msra.mxu0 0
        %1771 = vmatpush.bf16.xpose.msra.mxu0 0
        %1772 = vmatpush.bf16.xpose.msra.mxu0 0
        %1773 = vmatpush.bf16.xpose.msra.mxu0 0
        %1774 = vmatpush.bf16.xpose.msra.mxu0 0
        %1775 = vmatpush.bf16.xpose.msra.mxu0 0
        %1776 = vmatpush.bf16.xpose.msra.mxu0 %v1767
        %1777 = vmatmul.bf16.gmra.mxu0 %v1764
        %v1778 = vpop.f32.mrf.mxu0
        %v1779 = vadd.f32 0.0, %v1778
        %v1780 = vpop.f32.mrf.mxu0
        %1781 = vdwg.mxu0
        %v1782 = vpack.i.b16 %v1054, %v1054
        %v1783 = vperm.slane %v1782, 0
        %v1785 = vsel %vm731, %v1783, 0
        %v1788 = vsel %vm731, %v425, 0
        %1790 = vmatpush.bf16.xpose.msra.mxu0 0
        %1791 = vmatpush.bf16.xpose.msra.mxu0 0
        %1792 = vmatpush.bf16.xpose.msra.mxu0 0
        %1793 = vmatpush.bf16.xpose.msra.mxu0 0
        %1794 = vmatpush.bf16.xpose.msra.mxu0 0
        %1795 = vmatpush.bf16.xpose.msra.mxu0 0
        %1796 = vmatpush.bf16.xpose.msra.mxu0 0
        %1797 = vmatpush.bf16.xpose.msra.mxu0 %v1788
        %1798 = vmatmul.bf16.gmra.mxu0 %v1785
        %v1799 = vpop.f32.mrf.mxu0
        %v1800 = vadd.f32 0.0, %v1799
        %v1801 = vpop.f32.mrf.mxu0
        %1802 = vdwg.mxu0
        %v1803 = vpack.i.b16 %v1055, %v1055
        %v1804 = vperm.slane %v1803, 0
        %v1806 = vsel %vm731, %v1804, 0
        %v1809 = vsel %vm731, %v426, 0
        %1811 = vmatpush.bf16.xpose.msra.mxu0 0
        %1812 = vmatpush.bf16.xpose.msra.mxu0 0
        %1813 = vmatpush.bf16.xpose.msra.mxu0 0
        %1814 = vmatpush.bf16.xpose.msra.mxu0 0
        %1815 = vmatpush.bf16.xpose.msra.mxu0 0
        %1816 = vmatpush.bf16.xpose.msra.mxu0 0
        %1817 = vmatpush.bf16.xpose.msra.mxu0 0
        %1818 = vmatpush.bf16.xpose.msra.mxu0 %v1809
        %1819 = vmatmul.bf16.gmra.mxu0 %v1806
        %v1820 = vpop.f32.mrf.mxu0
        %v1821 = vadd.f32 0.0, %v1820
        %v1822 = vpop.f32.mrf.mxu0
        %1823 = vdwg.mxu0
        %v1824 = vpack.i.b16 %v1056, %v1056
        %v1825 = vperm.slane %v1824, 0
        %v1827 = vsel %vm731, %v1825, 0
        %v1830 = vsel %vm731, %v427, 0
        %1832 = vmatpush.bf16.xpose.msra.mxu0 0
        %1833 = vmatpush.bf16.xpose.msra.mxu0 0
        %1834 = vmatpush.bf16.xpose.msra.mxu0 0
        %1835 = vmatpush.bf16.xpose.msra.mxu0 0
        %1836 = vmatpush.bf16.xpose.msra.mxu0 0
        %1837 = vmatpush.bf16.xpose.msra.mxu0 0
        %1838 = vmatpush.bf16.xpose.msra.mxu0 0
        %1839 = vmatpush.bf16.xpose.msra.mxu0 %v1830
        %1840 = vmatmul.bf16.gmra.mxu0 %v1827
        %v1841 = vpop.f32.mrf.mxu0
        %v1842 = vadd.f32 0.0, %v1841
        %v1843 = vpop.f32.mrf.mxu0
        %1844 = vdwg.mxu0
        %v1845 = vpack.i.b16 %v1057, %v1057
        %v1846 = vperm.slane %v1845, 0
        %v1848 = vsel %vm731, %v1846, 0
        %v1851 = vsel %vm731, %v428, 0
        %1853 = vmatpush.bf16.xpose.msra.mxu0 0
        %1854 = vmatpush.bf16.xpose.msra.mxu0 0
        %1855 = vmatpush.bf16.xpose.msra.mxu0 0
        %1856 = vmatpush.bf16.xpose.msra.mxu0 0
        %1857 = vmatpush.bf16.xpose.msra.mxu0 0
        %1858 = vmatpush.bf16.xpose.msra.mxu0 0
        %1859 = vmatpush.bf16.xpose.msra.mxu0 0
        %1860 = vmatpush.bf16.xpose.msra.mxu0 %v1851
        %1861 = vmatmul.bf16.gmra.mxu0 %v1848
        %v1862 = vpop.f32.mrf.mxu0
        %v1863 = vadd.f32 0.0, %v1862
        %v1864 = vpop.f32.mrf.mxu0
        %1865 = vdwg.mxu0
        %v1866 = vpack.i.b16 %v1058, %v1058
        %v1867 = vperm.slane %v1866, 0
        %v1869 = vsel %vm731, %v1867, 0
        %v1872 = vsel %vm731, %v429, 0
        %1874 = vmatpush.bf16.xpose.msra.mxu0 0
        %1875 = vmatpush.bf16.xpose.msra.mxu0 0
        %1876 = vmatpush.bf16.xpose.msra.mxu0 0
        %1877 = vmatpush.bf16.xpose.msra.mxu0 0
        %1878 = vmatpush.bf16.xpose.msra.mxu0 0
        %1879 = vmatpush.bf16.xpose.msra.mxu0 0
        %1880 = vmatpush.bf16.xpose.msra.mxu0 0
        %1881 = vmatpush.bf16.xpose.msra.mxu0 %v1872
        %1882 = vmatmul.bf16.gmra.mxu0 %v1869
        %v1883 = vpop.f32.mrf.mxu0
        %v1884 = vadd.f32 0.0, %v1883
        %v1885 = vpop.f32.mrf.mxu0
        %1886 = vdwg.mxu0
        %v1887 = vpack.i.b16 %v1059, %v1059
        %v1888 = vperm.slane %v1887, 0
        %v1890 = vsel %vm731, %v1888, 0
        %v1893 = vsel %vm731, %v430, 0
        %1895 = vmatpush.bf16.xpose.msra.mxu0 0
        %1896 = vmatpush.bf16.xpose.msra.mxu0 0
        %1897 = vmatpush.bf16.xpose.msra.mxu0 0
        %1898 = vmatpush.bf16.xpose.msra.mxu0 0
        %1899 = vmatpush.bf16.xpose.msra.mxu0 0
        %1900 = vmatpush.bf16.xpose.msra.mxu0 0
        %1901 = vmatpush.bf16.xpose.msra.mxu0 0
        %1902 = vmatpush.bf16.xpose.msra.mxu0 %v1893
        %1903 = vmatmul.bf16.gmra.mxu0 %v1890
        %v1904 = vpop.f32.mrf.mxu0
        %v1905 = vadd.f32 0.0, %v1904
        %v1906 = vpop.f32.mrf.mxu0
        %1907 = vdwg.mxu0
        %v1908 = vpack.i.b16 %v1060, %v1060
        %v1909 = vperm.slane %v1908, 0
        %v1911 = vsel %vm731, %v1909, 0
        %v1914 = vsel %vm731, %v431, 0
        %1916 = vmatpush.bf16.xpose.msra.mxu0 0
        %1917 = vmatpush.bf16.xpose.msra.mxu0 0
        %1918 = vmatpush.bf16.xpose.msra.mxu0 0
        %1919 = vmatpush.bf16.xpose.msra.mxu0 0
        %1920 = vmatpush.bf16.xpose.msra.mxu0 0
        %1921 = vmatpush.bf16.xpose.msra.mxu0 0
        %1922 = vmatpush.bf16.xpose.msra.mxu0 0
        %1923 = vmatpush.bf16.xpose.msra.mxu0 %v1914
        %1924 = vmatmul.bf16.gmra.mxu0 %v1911
        %v1925 = vpop.f32.mrf.mxu0
        %v1926 = vadd.f32 0.0, %v1925
        %v1927 = vpop.f32.mrf.mxu0
        %1928 = vdwg.mxu0
        %v1929 = vpack.i.b16 %v1061, %v1061
        %v1930 = vperm.slane %v1929, 0
        %v1932 = vsel %vm731, %v1930, 0
        %v1935 = vsel %vm731, %v432, 0
        %1937 = vmatpush.bf16.xpose.msra.mxu0 0
        %1938 = vmatpush.bf16.xpose.msra.mxu0 0
        %1939 = vmatpush.bf16.xpose.msra.mxu0 0
        %1940 = vmatpush.bf16.xpose.msra.mxu0 0
        %1941 = vmatpush.bf16.xpose.msra.mxu0 0
        %1942 = vmatpush.bf16.xpose.msra.mxu0 0
        %1943 = vmatpush.bf16.xpose.msra.mxu0 0
        %1944 = vmatpush.bf16.xpose.msra.mxu0 %v1935
        %1945 = vmatmul.bf16.gmra.mxu0 %v1932
        %v1946 = vpop.f32.mrf.mxu0
        %v1947 = vadd.f32 0.0, %v1946
        %v1948 = vpop.f32.mrf.mxu0
        %1949 = vdwg.mxu0
        %v1950 = vpack.i.b16 %v1062, %v1062
        %v1951 = vperm.slane %v1950, 0
        %v1953 = vsel %vm731, %v1951, 0
        %v1956 = vsel %vm731, %v433, 0
        %1958 = vmatpush.bf16.xpose.msra.mxu0 0
        %1959 = vmatpush.bf16.xpose.msra.mxu0 0
        %1960 = vmatpush.bf16.xpose.msra.mxu0 0
        %1961 = vmatpush.bf16.xpose.msra.mxu0 0
        %1962 = vmatpush.bf16.xpose.msra.mxu0 0
        %1963 = vmatpush.bf16.xpose.msra.mxu0 0
        %1964 = vmatpush.bf16.xpose.msra.mxu0 0
        %1965 = vmatpush.bf16.xpose.msra.mxu0 %v1956
        %1966 = vmatmul.bf16.gmra.mxu0 %v1953
        %v1967 = vpop.f32.mrf.mxu0
        %v1968 = vadd.f32 0.0, %v1967
        %v1969 = vpop.f32.mrf.mxu0
        %1970 = vdwg.mxu0
        %v1971 = vpack.i.b16 %v1063, %v1063
        %v1972 = vperm.slane %v1971, 0
        %v1974 = vsel %vm731, %v1972, 0
        %v1977 = vsel %vm731, %v434, 0
        %1979 = vmatpush.bf16.xpose.msra.mxu0 0
        %1980 = vmatpush.bf16.xpose.msra.mxu0 0
        %1981 = vmatpush.bf16.xpose.msra.mxu0 0
        %1982 = vmatpush.bf16.xpose.msra.mxu0 0
        %1983 = vmatpush.bf16.xpose.msra.mxu0 0
        %1984 = vmatpush.bf16.xpose.msra.mxu0 0
        %1985 = vmatpush.bf16.xpose.msra.mxu0 0
        %1986 = vmatpush.bf16.xpose.msra.mxu0 %v1977
        %1987 = vmatmul.bf16.gmra.mxu0 %v1974
        %v1988 = vpop.f32.mrf.mxu0
        %v1989 = vadd.f32 0.0, %v1988
        %v1990 = vpop.f32.mrf.mxu0
        %1991 = vdwg.mxu0
        %v1992 = vpack.i.b16 %v1064, %v1064
        %v1993 = vperm.slane %v1992, 0
        %v1995 = vsel %vm731, %v1993, 0
        %v1998 = vsel %vm731, %v435, 0
        %2000 = vmatpush.bf16.xpose.msra.mxu0 0
        %2001 = vmatpush.bf16.xpose.msra.mxu0 0
        %2002 = vmatpush.bf16.xpose.msra.mxu0 0
        %2003 = vmatpush.bf16.xpose.msra.mxu0 0
        %2004 = vmatpush.bf16.xpose.msra.mxu0 0
        %2005 = vmatpush.bf16.xpose.msra.mxu0 0
        %2006 = vmatpush.bf16.xpose.msra.mxu0 0
        %2007 = vmatpush.bf16.xpose.msra.mxu0 %v1998
        %2008 = vmatmul.bf16.gmra.mxu0 %v1995
        %v2009 = vpop.f32.mrf.mxu0
        %v2010 = vadd.f32 0.0, %v2009
        %v2011 = vpop.f32.mrf.mxu0
        %2012 = vdwg.mxu0
        %v2013 = vpack.i.b16 %v1065, %v1065
        %v2014 = vperm.slane %v2013, 0
        %v2016 = vsel %vm731, %v2014, 0
        %v2019 = vsel %vm731, %v436, 0
        %2021 = vmatpush.bf16.xpose.msra.mxu0 0
        %2022 = vmatpush.bf16.xpose.msra.mxu0 0
        %2023 = vmatpush.bf16.xpose.msra.mxu0 0
        %2024 = vmatpush.bf16.xpose.msra.mxu0 0
        %2025 = vmatpush.bf16.xpose.msra.mxu0 0
        %2026 = vmatpush.bf16.xpose.msra.mxu0 0
        %2027 = vmatpush.bf16.xpose.msra.mxu0 0
        %2028 = vmatpush.bf16.xpose.msra.mxu0 %v2019
        %2029 = vmatmul.bf16.gmra.mxu0 %v2016
        %v2030 = vpop.f32.mrf.mxu0
        %v2031 = vadd.f32 0.0, %v2030
        %v2032 = vpop.f32.mrf.mxu0
        %2033 = vdwg.mxu0
        %v2034 = vpack.i.b16 %v1066, %v1066
        %v2035 = vperm.slane %v2034, 0
        %v2037 = vsel %vm731, %v2035, 0
        %v2040 = vsel %vm731, %v437, 0
        %2042 = vmatpush.bf16.xpose.msra.mxu0 0
        %2043 = vmatpush.bf16.xpose.msra.mxu0 0
        %2044 = vmatpush.bf16.xpose.msra.mxu0 0
        %2045 = vmatpush.bf16.xpose.msra.mxu0 0
        %2046 = vmatpush.bf16.xpose.msra.mxu0 0
        %2047 = vmatpush.bf16.xpose.msra.mxu0 0
        %2048 = vmatpush.bf16.xpose.msra.mxu0 0
        %2049 = vmatpush.bf16.xpose.msra.mxu0 %v2040
        %2050 = vmatmul.bf16.gmra.mxu0 %v2037
        %v2051 = vpop.f32.mrf.mxu0
        %v2052 = vadd.f32 0.0, %v2051
        %v2053 = vpop.f32.mrf.mxu0
        %2054 = vdwg.mxu0
        %v2055 = vpack.i.b16 %v1067, %v1067
        %v2056 = vperm.slane %v2055, 0
        %v2058 = vsel %vm731, %v2056, 0
        %v2061 = vsel %vm731, %v438, 0
        %2063 = vmatpush.bf16.xpose.msra.mxu0 0
        %2064 = vmatpush.bf16.xpose.msra.mxu0 0
        %2065 = vmatpush.bf16.xpose.msra.mxu0 0
        %2066 = vmatpush.bf16.xpose.msra.mxu0 0
        %2067 = vmatpush.bf16.xpose.msra.mxu0 0
        %2068 = vmatpush.bf16.xpose.msra.mxu0 0
        %2069 = vmatpush.bf16.xpose.msra.mxu0 0
        %2070 = vmatpush.bf16.xpose.msra.mxu0 %v2061
        %2071 = vmatmul.bf16.gmra.mxu0 %v2058
        %v2072 = vpop.f32.mrf.mxu0
        %v2073 = vadd.f32 0.0, %v2072
        %v2074 = vpop.f32.mrf.mxu0
        %2075 = vdwg.mxu0
        %v2076 = vpack.i.b16 %v1068, %v1068
        %v2077 = vperm.slane %v2076, 0
        %v2079 = vsel %vm731, %v2077, 0
        %v2082 = vsel %vm731, %v439, 0
        %2084 = vmatpush.bf16.xpose.msra.mxu0 0
        %2085 = vmatpush.bf16.xpose.msra.mxu0 0
        %2086 = vmatpush.bf16.xpose.msra.mxu0 0
        %2087 = vmatpush.bf16.xpose.msra.mxu0 0
        %2088 = vmatpush.bf16.xpose.msra.mxu0 0
        %2089 = vmatpush.bf16.xpose.msra.mxu0 0
        %2090 = vmatpush.bf16.xpose.msra.mxu0 0
        %2091 = vmatpush.bf16.xpose.msra.mxu0 %v2082
        %2092 = vmatmul.bf16.gmra.mxu0 %v2079
        %v2093 = vpop.f32.mrf.mxu0
        %v2094 = vadd.f32 0.0, %v2093
        %v2095 = vpop.f32.mrf.mxu0
        %2096 = vdwg.mxu0
        %v2097 = vpack.i.b16 %v1069, %v1069
        %v2098 = vperm.slane %v2097, 0
        %v2100 = vsel %vm731, %v2098, 0
        %v2103 = vsel %vm731, %v440, 0
        %2105 = vmatpush.bf16.xpose.msra.mxu0 0
        %2106 = vmatpush.bf16.xpose.msra.mxu0 0
        %2107 = vmatpush.bf16.xpose.msra.mxu0 0
        %2108 = vmatpush.bf16.xpose.msra.mxu0 0
        %2109 = vmatpush.bf16.xpose.msra.mxu0 0
        %2110 = vmatpush.bf16.xpose.msra.mxu0 0
        %2111 = vmatpush.bf16.xpose.msra.mxu0 0
        %2112 = vmatpush.bf16.xpose.msra.mxu0 %v2103
        %2113 = vmatmul.bf16.gmra.mxu0 %v2100
        %v2114 = vpop.f32.mrf.mxu0
        %v2115 = vadd.f32 0.0, %v2114
        %v2116 = vpop.f32.mrf.mxu0
        %2117 = vdwg.mxu0
        %v2118 = vpack.i.b16 %v1070, %v1070
        %v2119 = vperm.slane %v2118, 0
        %v2121 = vsel %vm731, %v2119, 0
        %v2124 = vsel %vm731, %v441, 0
        %2126 = vmatpush.bf16.xpose.msra.mxu0 0
        %2127 = vmatpush.bf16.xpose.msra.mxu0 0
        %2128 = vmatpush.bf16.xpose.msra.mxu0 0
        %2129 = vmatpush.bf16.xpose.msra.mxu0 0
        %2130 = vmatpush.bf16.xpose.msra.mxu0 0
        %2131 = vmatpush.bf16.xpose.msra.mxu0 0
        %2132 = vmatpush.bf16.xpose.msra.mxu0 0
        %2133 = vmatpush.bf16.xpose.msra.mxu0 %v2124
        %2134 = vmatmul.bf16.gmra.mxu0 %v2121
        %v2135 = vpop.f32.mrf.mxu0
        %v2136 = vadd.f32 0.0, %v2135
        %v2137 = vpop.f32.mrf.mxu0
        %2138 = vdwg.mxu0
        %v2139 = vpack.i.b16 %v1071, %v1071
        %v2140 = vperm.slane %v2139, 0
        %v2142 = vsel %vm731, %v2140, 0
        %v2145 = vsel %vm731, %v442, 0
        %2147 = vmatpush.bf16.xpose.msra.mxu0 0
        %2148 = vmatpush.bf16.xpose.msra.mxu0 0
        %2149 = vmatpush.bf16.xpose.msra.mxu0 0
        %2150 = vmatpush.bf16.xpose.msra.mxu0 0
        %2151 = vmatpush.bf16.xpose.msra.mxu0 0
        %2152 = vmatpush.bf16.xpose.msra.mxu0 0
        %2153 = vmatpush.bf16.xpose.msra.mxu0 0
        %2154 = vmatpush.bf16.xpose.msra.mxu0 %v2145
        %2155 = vmatmul.bf16.gmra.mxu0 %v2142
        %v2156 = vpop.f32.mrf.mxu0
        %v2157 = vadd.f32 0.0, %v2156
        %v2158 = vpop.f32.mrf.mxu0
        %2159 = vdwg.mxu0
        %v2160 = vpack.i.b16 %v1072, %v1072
        %v2161 = vperm.slane %v2160, 0
        %v2163 = vsel %vm731, %v2161, 0
        %v2166 = vsel %vm731, %v443, 0
        %2168 = vmatpush.bf16.xpose.msra.mxu0 0
        %2169 = vmatpush.bf16.xpose.msra.mxu0 0
        %2170 = vmatpush.bf16.xpose.msra.mxu0 0
        %2171 = vmatpush.bf16.xpose.msra.mxu0 0
        %2172 = vmatpush.bf16.xpose.msra.mxu0 0
        %2173 = vmatpush.bf16.xpose.msra.mxu0 0
        %2174 = vmatpush.bf16.xpose.msra.mxu0 0
        %2175 = vmatpush.bf16.xpose.msra.mxu0 %v2166
        %2176 = vmatmul.bf16.gmra.mxu0 %v2163
        %v2177 = vpop.f32.mrf.mxu0
        %v2178 = vadd.f32 0.0, %v2177
        %v2179 = vpop.f32.mrf.mxu0
        %2180 = vdwg.mxu0
        %v2181 = vpack.i.b16 %v1073, %v1073
        %v2182 = vperm.slane %v2181, 0
        %v2184 = vsel %vm731, %v2182, 0
        %v2187 = vsel %vm731, %v444, 0
        %2189 = vmatpush.bf16.xpose.msra.mxu0 0
        %2190 = vmatpush.bf16.xpose.msra.mxu0 0
        %2191 = vmatpush.bf16.xpose.msra.mxu0 0
        %2192 = vmatpush.bf16.xpose.msra.mxu0 0
        %2193 = vmatpush.bf16.xpose.msra.mxu0 0
        %2194 = vmatpush.bf16.xpose.msra.mxu0 0
        %2195 = vmatpush.bf16.xpose.msra.mxu0 0
        %2196 = vmatpush.bf16.xpose.msra.mxu0 %v2187
        %2197 = vmatmul.bf16.gmra.mxu0 %v2184
        %v2198 = vpop.f32.mrf.mxu0
        %v2199 = vadd.f32 0.0, %v2198
        %v2200 = vpop.f32.mrf.mxu0
        %2201 = vdwg.mxu0
        %v2202 = vpack.i.b16 %v1074, %v1074
        %v2203 = vperm.slane %v2202, 0
        %v2205 = vsel %vm731, %v2203, 0
        %v2208 = vsel %vm731, %v445, 0
        %2210 = vmatpush.bf16.xpose.msra.mxu0 0
        %2211 = vmatpush.bf16.xpose.msra.mxu0 0
        %2212 = vmatpush.bf16.xpose.msra.mxu0 0
        %2213 = vmatpush.bf16.xpose.msra.mxu0 0
        %2214 = vmatpush.bf16.xpose.msra.mxu0 0
        %2215 = vmatpush.bf16.xpose.msra.mxu0 0
        %2216 = vmatpush.bf16.xpose.msra.mxu0 0
        %2217 = vmatpush.bf16.xpose.msra.mxu0 %v2208
        %2218 = vmatmul.bf16.gmra.mxu0 %v2205
        %v2219 = vpop.f32.mrf.mxu0
        %v2220 = vadd.f32 0.0, %v2219
        %v2221 = vpop.f32.mrf.mxu0
        %2222 = vdwg.mxu0
        %v2223 = vpack.i.b16 %v1075, %v1075
        %v2224 = vperm.slane %v2223, 0
        %v2226 = vsel %vm731, %v2224, 0
        %v2229 = vsel %vm731, %v446, 0
        %2231 = vmatpush.bf16.xpose.msra.mxu0 0
        %2232 = vmatpush.bf16.xpose.msra.mxu0 0
        %2233 = vmatpush.bf16.xpose.msra.mxu0 0
        %2234 = vmatpush.bf16.xpose.msra.mxu0 0
        %2235 = vmatpush.bf16.xpose.msra.mxu0 0
        %2236 = vmatpush.bf16.xpose.msra.mxu0 0
        %2237 = vmatpush.bf16.xpose.msra.mxu0 0
        %2238 = vmatpush.bf16.xpose.msra.mxu0 %v2229
        %2239 = vmatmul.bf16.gmra.mxu0 %v2226
        %v2240 = vpop.f32.mrf.mxu0
        %v2241 = vadd.f32 0.0, %v2240
        %v2242 = vpop.f32.mrf.mxu0
        %2243 = vdwg.mxu0
        %v2244 = vpack.i.b16 %v1076, %v1076
        %v2245 = vperm.slane %v2244, 0
        %v2247 = vsel %vm731, %v2245, 0
        %v2250 = vsel %vm731, %v447, 0
        %2252 = vmatpush.bf16.xpose.msra.mxu0 0
        %2253 = vmatpush.bf16.xpose.msra.mxu0 0
        %2254 = vmatpush.bf16.xpose.msra.mxu0 0
        %2255 = vmatpush.bf16.xpose.msra.mxu0 0
        %2256 = vmatpush.bf16.xpose.msra.mxu0 0
        %2257 = vmatpush.bf16.xpose.msra.mxu0 0
        %2258 = vmatpush.bf16.xpose.msra.mxu0 0
        %2259 = vmatpush.bf16.xpose.msra.mxu0 %v2250
        %2260 = vmatmul.bf16.gmra.mxu0 %v2247
        %v2261 = vpop.f32.mrf.mxu0
        %v2262 = vadd.f32 0.0, %v2261
        %v2263 = vpop.f32.mrf.mxu0
        %2264 = vdwg.mxu0
        %v2265 = vpack.i.b16 %v1077, %v1077
        %v2266 = vperm.slane %v2265, 0
        %v2268 = vsel %vm731, %v2266, 0
        %v2271 = vsel %vm731, %v448, 0
        %2273 = vmatpush.bf16.xpose.msra.mxu0 0
        %2274 = vmatpush.bf16.xpose.msra.mxu0 0
        %2275 = vmatpush.bf16.xpose.msra.mxu0 0
        %2276 = vmatpush.bf16.xpose.msra.mxu0 0
        %2277 = vmatpush.bf16.xpose.msra.mxu0 0
        %2278 = vmatpush.bf16.xpose.msra.mxu0 0
        %2279 = vmatpush.bf16.xpose.msra.mxu0 0
        %2280 = vmatpush.bf16.xpose.msra.mxu0 %v2271
        %2281 = vmatmul.bf16.gmra.mxu0 %v2268
        %v2282 = vpop.f32.mrf.mxu0
        %v2283 = vadd.f32 0.0, %v2282
        %v2284 = vpop.f32.mrf.mxu0
        %2285 = vdwg.mxu0
        %v2286 = vpack.i.b16 %v1078, %v1078
        %v2287 = vperm.slane %v2286, 0
        %v2289 = vsel %vm731, %v2287, 0
        %v2292 = vsel %vm731, %v449, 0
        %2294 = vmatpush.bf16.xpose.msra.mxu0 0
        %2295 = vmatpush.bf16.xpose.msra.mxu0 0
        %2296 = vmatpush.bf16.xpose.msra.mxu0 0
        %2297 = vmatpush.bf16.xpose.msra.mxu0 0
        %2298 = vmatpush.bf16.xpose.msra.mxu0 0
        %2299 = vmatpush.bf16.xpose.msra.mxu0 0
        %2300 = vmatpush.bf16.xpose.msra.mxu0 0
        %2301 = vmatpush.bf16.xpose.msra.mxu0 %v2292
        %2302 = vmatmul.bf16.gmra.mxu0 %v2289
        %v2303 = vpop.f32.mrf.mxu0
        %v2304 = vadd.f32 0.0, %v2303
        %v2305 = vpop.f32.mrf.mxu0
        %2306 = vdwg.mxu0
        %v2307 = vpack.i.b16 %v1079, %v1079
        %v2308 = vperm.slane %v2307, 0
        %v2310 = vsel %vm731, %v2308, 0
        %v2313 = vsel %vm731, %v450, 0
        %2315 = vmatpush.bf16.xpose.msra.mxu0 0
        %2316 = vmatpush.bf16.xpose.msra.mxu0 0
        %2317 = vmatpush.bf16.xpose.msra.mxu0 0
        %2318 = vmatpush.bf16.xpose.msra.mxu0 0
        %2319 = vmatpush.bf16.xpose.msra.mxu0 0
        %2320 = vmatpush.bf16.xpose.msra.mxu0 0
        %2321 = vmatpush.bf16.xpose.msra.mxu0 0
        %2322 = vmatpush.bf16.xpose.msra.mxu0 %v2313
        %2323 = vmatmul.bf16.gmra.mxu0 %v2310
        %v2324 = vpop.f32.mrf.mxu0
        %v2325 = vadd.f32 0.0, %v2324
        %v2326 = vpop.f32.mrf.mxu0
        %2327 = vdwg.mxu0
        %v2328 = vpack.i.b16 %v1080, %v1080
        %v2329 = vperm.slane %v2328, 0
        %v2331 = vsel %vm731, %v2329, 0
        %v2334 = vsel %vm731, %v451, 0
        %2336 = vmatpush.bf16.xpose.msra.mxu0 0
        %2337 = vmatpush.bf16.xpose.msra.mxu0 0
        %2338 = vmatpush.bf16.xpose.msra.mxu0 0
        %2339 = vmatpush.bf16.xpose.msra.mxu0 0
        %2340 = vmatpush.bf16.xpose.msra.mxu0 0
        %2341 = vmatpush.bf16.xpose.msra.mxu0 0
        %2342 = vmatpush.bf16.xpose.msra.mxu0 0
        %2343 = vmatpush.bf16.xpose.msra.mxu0 %v2334
        %2344 = vmatmul.bf16.gmra.mxu0 %v2331
        %v2345 = vpop.f32.mrf.mxu0
        %v2346 = vadd.f32 0.0, %v2345
        %v2347 = vpop.f32.mrf.mxu0
        %2348 = vdwg.mxu0
        %v2349 = vpack.i.b16 %v1081, %v1081
        %v2350 = vperm.slane %v2349, 0
        %v2352 = vsel %vm731, %v2350, 0
        %v2355 = vsel %vm731, %v452, 0
        %2357 = vmatpush.bf16.xpose.msra.mxu0 0
        %2358 = vmatpush.bf16.xpose.msra.mxu0 0
        %2359 = vmatpush.bf16.xpose.msra.mxu0 0
        %2360 = vmatpush.bf16.xpose.msra.mxu0 0
        %2361 = vmatpush.bf16.xpose.msra.mxu0 0
        %2362 = vmatpush.bf16.xpose.msra.mxu0 0
        %2363 = vmatpush.bf16.xpose.msra.mxu0 0
        %2364 = vmatpush.bf16.xpose.msra.mxu0 %v2355
        %2365 = vmatmul.bf16.gmra.mxu0 %v2352
        %v2366 = vpop.f32.mrf.mxu0
        %v2367 = vadd.f32 0.0, %v2366
        %v2368 = vpop.f32.mrf.mxu0
        %2369 = vdwg.mxu0
        %v2370 = vpack.i.b16 %v1082, %v1082
        %v2371 = vperm.slane %v2370, 0
        %v2373 = vsel %vm731, %v2371, 0
        %v2376 = vsel %vm731, %v453, 0
        %2378 = vmatpush.bf16.xpose.msra.mxu0 0
        %2379 = vmatpush.bf16.xpose.msra.mxu0 0
        %2380 = vmatpush.bf16.xpose.msra.mxu0 0
        %2381 = vmatpush.bf16.xpose.msra.mxu0 0
        %2382 = vmatpush.bf16.xpose.msra.mxu0 0
        %2383 = vmatpush.bf16.xpose.msra.mxu0 0
        %2384 = vmatpush.bf16.xpose.msra.mxu0 0
        %2385 = vmatpush.bf16.xpose.msra.mxu0 %v2376
        %2386 = vmatmul.bf16.gmra.mxu0 %v2373
        %v2387 = vpop.f32.mrf.mxu0
        %v2388 = vadd.f32 0.0, %v2387
        %v2389 = vpop.f32.mrf.mxu0
        %2390 = vdwg.mxu0
        %v2391 = vpack.i.b16 %v1083, %v1083
        %v2392 = vperm.slane %v2391, 0
        %v2394 = vsel %vm731, %v2392, 0
        %v2397 = vsel %vm731, %v454, 0
        %2399 = vmatpush.bf16.xpose.msra.mxu0 0
        %2400 = vmatpush.bf16.xpose.msra.mxu0 0
        %2401 = vmatpush.bf16.xpose.msra.mxu0 0
        %2402 = vmatpush.bf16.xpose.msra.mxu0 0
        %2403 = vmatpush.bf16.xpose.msra.mxu0 0
        %2404 = vmatpush.bf16.xpose.msra.mxu0 0
        %2405 = vmatpush.bf16.xpose.msra.mxu0 0
        %2406 = vmatpush.bf16.xpose.msra.mxu0 %v2397
        %2407 = vmatmul.bf16.gmra.mxu0 %v2394
        %v2408 = vpop.f32.mrf.mxu0
        %v2409 = vadd.f32 0.0, %v2408
        %v2410 = vpop.f32.mrf.mxu0
        %2411 = vdwg.mxu0
        %v2412 = vpack.i.b16 %v1084, %v1084
        %v2413 = vperm.slane %v2412, 0
        %v2415 = vsel %vm731, %v2413, 0
        %v2418 = vsel %vm731, %v455, 0
        %2420 = vmatpush.bf16.xpose.msra.mxu0 0
        %2421 = vmatpush.bf16.xpose.msra.mxu0 0
        %2422 = vmatpush.bf16.xpose.msra.mxu0 0
        %2423 = vmatpush.bf16.xpose.msra.mxu0 0
        %2424 = vmatpush.bf16.xpose.msra.mxu0 0
        %2425 = vmatpush.bf16.xpose.msra.mxu0 0
        %2426 = vmatpush.bf16.xpose.msra.mxu0 0
        %2427 = vmatpush.bf16.xpose.msra.mxu0 %v2418
        %2428 = vmatmul.bf16.gmra.mxu0 %v2415
        %v2429 = vpop.f32.mrf.mxu0
        %v2430 = vadd.f32 0.0, %v2429
        %v2431 = vpop.f32.mrf.mxu0
        %2432 = vdwg.mxu0
        %v2433 = vpack.i.b16 %v1085, %v1085
        %v2434 = vperm.slane %v2433, 0
        %v2436 = vsel %vm731, %v2434, 0
        %v2439 = vsel %vm731, %v456, 0
        %2441 = vmatpush.bf16.xpose.msra.mxu0 0
        %2442 = vmatpush.bf16.xpose.msra.mxu0 0
        %2443 = vmatpush.bf16.xpose.msra.mxu0 0
        %2444 = vmatpush.bf16.xpose.msra.mxu0 0
        %2445 = vmatpush.bf16.xpose.msra.mxu0 0
        %2446 = vmatpush.bf16.xpose.msra.mxu0 0
        %2447 = vmatpush.bf16.xpose.msra.mxu0 0
        %2448 = vmatpush.bf16.xpose.msra.mxu0 %v2439
        %2449 = vmatmul.bf16.gmra.mxu0 %v2436
        %v2450 = vpop.f32.mrf.mxu0
        %v2451 = vadd.f32 0.0, %v2450
        %v2452 = vpop.f32.mrf.mxu0
        %2453 = vdwg.mxu0
        %v2454 = vpack.i.b16 %v1086, %v1086
        %v2455 = vperm.slane %v2454, 0
        %v2457 = vsel %vm731, %v2455, 0
        %v2460 = vsel %vm731, %v457, 0
        %2462 = vmatpush.bf16.xpose.msra.mxu0 0
        %2463 = vmatpush.bf16.xpose.msra.mxu0 0
        %2464 = vmatpush.bf16.xpose.msra.mxu0 0
        %2465 = vmatpush.bf16.xpose.msra.mxu0 0
        %2466 = vmatpush.bf16.xpose.msra.mxu0 0
        %2467 = vmatpush.bf16.xpose.msra.mxu0 0
        %2468 = vmatpush.bf16.xpose.msra.mxu0 0
        %2469 = vmatpush.bf16.xpose.msra.mxu0 %v2460
        %2470 = vmatmul.bf16.gmra.mxu0 %v2457
        %v2471 = vpop.f32.mrf.mxu0
        %v2472 = vadd.f32 0.0, %v2471
        %v2473 = vpop.f32.mrf.mxu0
        %2474 = vdwg.mxu0
        %v2475 = vpack.i.b16 %v1087, %v1087
        %v2476 = vperm.slane %v2475, 0
        %v2478 = vsel %vm731, %v2476, 0
        %v2481 = vsel %vm731, %v458, 0
        %2483 = vmatpush.bf16.xpose.msra.mxu0 0
        %2484 = vmatpush.bf16.xpose.msra.mxu0 0
        %2485 = vmatpush.bf16.xpose.msra.mxu0 0
        %2486 = vmatpush.bf16.xpose.msra.mxu0 0
        %2487 = vmatpush.bf16.xpose.msra.mxu0 0
        %2488 = vmatpush.bf16.xpose.msra.mxu0 0
        %2489 = vmatpush.bf16.xpose.msra.mxu0 0
        %2490 = vmatpush.bf16.xpose.msra.mxu0 %v2481
        %2491 = vmatmul.bf16.gmra.mxu0 %v2478
        %v2492 = vpop.f32.mrf.mxu0
        %v2493 = vadd.f32 0.0, %v2492
        %v2494 = vpop.f32.mrf.mxu0
        %2495 = vdwg.mxu0
        %v2496 = vpack.i.b16 %v1088, %v1088
        %v2497 = vperm.slane %v2496, 0
        %v2499 = vsel %vm731, %v2497, 0
        %v2502 = vsel %vm731, %v459, 0
        %2504 = vmatpush.bf16.xpose.msra.mxu0 0
        %2505 = vmatpush.bf16.xpose.msra.mxu0 0
        %2506 = vmatpush.bf16.xpose.msra.mxu0 0
        %2507 = vmatpush.bf16.xpose.msra.mxu0 0
        %2508 = vmatpush.bf16.xpose.msra.mxu0 0
        %2509 = vmatpush.bf16.xpose.msra.mxu0 0
        %2510 = vmatpush.bf16.xpose.msra.mxu0 0
        %2511 = vmatpush.bf16.xpose.msra.mxu0 %v2502
        %2512 = vmatmul.bf16.gmra.mxu0 %v2499
        %v2513 = vpop.f32.mrf.mxu0
        %v2514 = vadd.f32 0.0, %v2513
        %v2515 = vpop.f32.mrf.mxu0
        %2516 = vdwg.mxu0
        %v2517 = vpack.i.b16 %v1089, %v1089
        %v2518 = vperm.slane %v2517, 0
        %v2520 = vsel %vm731, %v2518, 0
        %v2523 = vsel %vm731, %v460, 0
        %2525 = vmatpush.bf16.xpose.msra.mxu0 0
        %2526 = vmatpush.bf16.xpose.msra.mxu0 0
        %2527 = vmatpush.bf16.xpose.msra.mxu0 0
        %2528 = vmatpush.bf16.xpose.msra.mxu0 0
        %2529 = vmatpush.bf16.xpose.msra.mxu0 0
        %2530 = vmatpush.bf16.xpose.msra.mxu0 0
        %2531 = vmatpush.bf16.xpose.msra.mxu0 0
        %2532 = vmatpush.bf16.xpose.msra.mxu0 %v2523
        %2533 = vmatmul.bf16.gmra.mxu0 %v2520
        %v2534 = vpop.f32.mrf.mxu0
        %v2535 = vadd.f32 0.0, %v2534
        %v2536 = vpop.f32.mrf.mxu0
        %2537 = vdwg.mxu0
        %v2538 = vpack.i.b16 %v1090, %v1090
        %v2539 = vperm.slane %v2538, 0
        %v2541 = vsel %vm731, %v2539, 0
        %v2544 = vsel %vm731, %v461, 0
        %2546 = vmatpush.bf16.xpose.msra.mxu0 0
        %2547 = vmatpush.bf16.xpose.msra.mxu0 0
        %2548 = vmatpush.bf16.xpose.msra.mxu0 0
        %2549 = vmatpush.bf16.xpose.msra.mxu0 0
        %2550 = vmatpush.bf16.xpose.msra.mxu0 0
        %2551 = vmatpush.bf16.xpose.msra.mxu0 0
        %2552 = vmatpush.bf16.xpose.msra.mxu0 0
        %2553 = vmatpush.bf16.xpose.msra.mxu0 %v2544
        %2554 = vmatmul.bf16.gmra.mxu0 %v2541
        %v2555 = vpop.f32.mrf.mxu0
        %v2556 = vadd.f32 0.0, %v2555
        %v2557 = vpop.f32.mrf.mxu0
        %2558 = vdwg.mxu0
        %v2559 = vpack.i.b16 %v1091, %v1091
        %v2560 = vperm.slane %v2559, 0
        %v2562 = vsel %vm731, %v2560, 0
        %v2565 = vsel %vm731, %v462, 0
        %2567 = vmatpush.bf16.xpose.msra.mxu0 0
        %2568 = vmatpush.bf16.xpose.msra.mxu0 0
        %2569 = vmatpush.bf16.xpose.msra.mxu0 0
        %2570 = vmatpush.bf16.xpose.msra.mxu0 0
        %2571 = vmatpush.bf16.xpose.msra.mxu0 0
        %2572 = vmatpush.bf16.xpose.msra.mxu0 0
        %2573 = vmatpush.bf16.xpose.msra.mxu0 0
        %2574 = vmatpush.bf16.xpose.msra.mxu0 %v2565
        %2575 = vmatmul.bf16.gmra.mxu0 %v2562
        %v2576 = vpop.f32.mrf.mxu0
        %v2577 = vadd.f32 0.0, %v2576
        %v2578 = vpop.f32.mrf.mxu0
        %2579 = vdwg.mxu0
        %v2580 = vpack.i.b16 %v1092, %v1092
        %v2581 = vperm.slane %v2580, 0
        %v2583 = vsel %vm731, %v2581, 0
        %v2586 = vsel %vm731, %v463, 0
        %2588 = vmatpush.bf16.xpose.msra.mxu0 0
        %2589 = vmatpush.bf16.xpose.msra.mxu0 0
        %2590 = vmatpush.bf16.xpose.msra.mxu0 0
        %2591 = vmatpush.bf16.xpose.msra.mxu0 0
        %2592 = vmatpush.bf16.xpose.msra.mxu0 0
        %2593 = vmatpush.bf16.xpose.msra.mxu0 0
        %2594 = vmatpush.bf16.xpose.msra.mxu0 0
        %2595 = vmatpush.bf16.xpose.msra.mxu0 %v2586
        %2596 = vmatmul.bf16.gmra.mxu0 %v2583
        %v2597 = vpop.f32.mrf.mxu0
        %v2598 = vadd.f32 0.0, %v2597
        %v2599 = vpop.f32.mrf.mxu0
        %2600 = vdwg.mxu0
        %v2601 = vpack.i.b16 %v1093, %v1093
        %v2602 = vperm.slane %v2601, 0
        %v2604 = vsel %vm731, %v2602, 0
        %v2607 = vsel %vm731, %v464, 0
        %2609 = vmatpush.bf16.xpose.msra.mxu0 0
        %2610 = vmatpush.bf16.xpose.msra.mxu0 0
        %2611 = vmatpush.bf16.xpose.msra.mxu0 0
        %2612 = vmatpush.bf16.xpose.msra.mxu0 0
        %2613 = vmatpush.bf16.xpose.msra.mxu0 0
        %2614 = vmatpush.bf16.xpose.msra.mxu0 0
        %2615 = vmatpush.bf16.xpose.msra.mxu0 0
        %2616 = vmatpush.bf16.xpose.msra.mxu0 %v2607
        %2617 = vmatmul.bf16.gmra.mxu0 %v2604
        %v2618 = vpop.f32.mrf.mxu0
        %v2619 = vadd.f32 0.0, %v2618
        %v2620 = vpop.f32.mrf.mxu0
        %2621 = vdwg.mxu0
        %v2622 = vpack.i.b16 %v1094, %v1094
        %v2623 = vperm.slane %v2622, 0
        %v2625 = vsel %vm731, %v2623, 0
        %v2628 = vsel %vm731, %v465, 0
        %2630 = vmatpush.bf16.xpose.msra.mxu0 0
        %2631 = vmatpush.bf16.xpose.msra.mxu0 0
        %2632 = vmatpush.bf16.xpose.msra.mxu0 0
        %2633 = vmatpush.bf16.xpose.msra.mxu0 0
        %2634 = vmatpush.bf16.xpose.msra.mxu0 0
        %2635 = vmatpush.bf16.xpose.msra.mxu0 0
        %2636 = vmatpush.bf16.xpose.msra.mxu0 0
        %2637 = vmatpush.bf16.xpose.msra.mxu0 %v2628
        %2638 = vmatmul.bf16.gmra.mxu0 %v2625
        %v2639 = vpop.f32.mrf.mxu0
        %v2640 = vadd.f32 0.0, %v2639
        %v2641 = vpop.f32.mrf.mxu0
        %2642 = vdwg.mxu0
        %v2643 = vpack.i.b16 %v1095, %v1095
        %v2644 = vperm.slane %v2643, 0
        %v2646 = vsel %vm731, %v2644, 0
        %v2649 = vsel %vm731, %v466, 0
        %2651 = vmatpush.bf16.xpose.msra.mxu0 0
        %2652 = vmatpush.bf16.xpose.msra.mxu0 0
        %2653 = vmatpush.bf16.xpose.msra.mxu0 0
        %2654 = vmatpush.bf16.xpose.msra.mxu0 0
        %2655 = vmatpush.bf16.xpose.msra.mxu0 0
        %2656 = vmatpush.bf16.xpose.msra.mxu0 0
        %2657 = vmatpush.bf16.xpose.msra.mxu0 0
        %2658 = vmatpush.bf16.xpose.msra.mxu0 %v2649
        %2659 = vmatmul.bf16.gmra.mxu0 %v2646
        %v2660 = vpop.f32.mrf.mxu0
        %v2661 = vadd.f32 0.0, %v2660
        %v2662 = vpop.f32.mrf.mxu0
        %2663 = vdwg.mxu0
        %v2664 = vpack.i.b16 %v1096, %v1096
        %v2665 = vperm.slane %v2664, 0
        %v2667 = vsel %vm731, %v2665, 0
        %v2670 = vsel %vm731, %v467, 0
        %2672 = vmatpush.bf16.xpose.msra.mxu0 0
        %2673 = vmatpush.bf16.xpose.msra.mxu0 0
        %2674 = vmatpush.bf16.xpose.msra.mxu0 0
        %2675 = vmatpush.bf16.xpose.msra.mxu0 0
        %2676 = vmatpush.bf16.xpose.msra.mxu0 0
        %2677 = vmatpush.bf16.xpose.msra.mxu0 0
        %2678 = vmatpush.bf16.xpose.msra.mxu0 0
        %2679 = vmatpush.bf16.xpose.msra.mxu0 %v2670
        %2680 = vmatmul.bf16.gmra.mxu0 %v2667
        %v2681 = vpop.f32.mrf.mxu0
        %v2682 = vadd.f32 0.0, %v2681
        %v2683 = vpop.f32.mrf.mxu0
        %2684 = vdwg.mxu0
        %v2685 = vpack.i.b16 %v1097, %v1097
        %v2686 = vperm.slane %v2685, 0
        %v2688 = vsel %vm731, %v2686, 0
        %v2691 = vsel %vm731, %v468, 0
        %2693 = vmatpush.bf16.xpose.msra.mxu0 0
        %2694 = vmatpush.bf16.xpose.msra.mxu0 0
        %2695 = vmatpush.bf16.xpose.msra.mxu0 0
        %2696 = vmatpush.bf16.xpose.msra.mxu0 0
        %2697 = vmatpush.bf16.xpose.msra.mxu0 0
        %2698 = vmatpush.bf16.xpose.msra.mxu0 0
        %2699 = vmatpush.bf16.xpose.msra.mxu0 0
        %2700 = vmatpush.bf16.xpose.msra.mxu0 %v2691
        %2701 = vmatmul.bf16.gmra.mxu0 %v2688
        %v2702 = vpop.f32.mrf.mxu0
        %v2703 = vadd.f32 0.0, %v2702
        %v2704 = vpop.f32.mrf.mxu0
        %2705 = vdwg.mxu0
        %v2706 = vpack.i.b16 %v1098, %v1098
        %v2707 = vperm.slane %v2706, 0
        %v2709 = vsel %vm731, %v2707, 0
        %v2712 = vsel %vm731, %v469, 0
        %2714 = vmatpush.bf16.xpose.msra.mxu0 0
        %2715 = vmatpush.bf16.xpose.msra.mxu0 0
        %2716 = vmatpush.bf16.xpose.msra.mxu0 0
        %2717 = vmatpush.bf16.xpose.msra.mxu0 0
        %2718 = vmatpush.bf16.xpose.msra.mxu0 0
        %2719 = vmatpush.bf16.xpose.msra.mxu0 0
        %2720 = vmatpush.bf16.xpose.msra.mxu0 0
        %2721 = vmatpush.bf16.xpose.msra.mxu0 %v2712
        %2722 = vmatmul.bf16.gmra.mxu0 %v2709
        %v2723 = vpop.f32.mrf.mxu0
        %v2724 = vadd.f32 0.0, %v2723
        %v2725 = vpop.f32.mrf.mxu0
        %2726 = vdwg.mxu0
        %v2727 = vpack.i.b16 %v1099, %v1099
        %v2728 = vperm.slane %v2727, 0
        %v2730 = vsel %vm731, %v2728, 0
        %v2733 = vsel %vm731, %v470, 0
        %2735 = vmatpush.bf16.xpose.msra.mxu0 0
        %2736 = vmatpush.bf16.xpose.msra.mxu0 0
        %2737 = vmatpush.bf16.xpose.msra.mxu0 0
        %2738 = vmatpush.bf16.xpose.msra.mxu0 0
        %2739 = vmatpush.bf16.xpose.msra.mxu0 0
        %2740 = vmatpush.bf16.xpose.msra.mxu0 0
        %2741 = vmatpush.bf16.xpose.msra.mxu0 0
        %2742 = vmatpush.bf16.xpose.msra.mxu0 %v2733
        %2743 = vmatmul.bf16.gmra.mxu0 %v2730
        %v2744 = vpop.f32.mrf.mxu0
        %v2745 = vadd.f32 0.0, %v2744
        %v2746 = vpop.f32.mrf.mxu0
        %2747 = vdwg.mxu0
        %v2748 = vpack.i.b16 %v1100, %v1100
        %v2749 = vperm.slane %v2748, 0
        %v2751 = vsel %vm731, %v2749, 0
        %v2754 = vsel %vm731, %v471, 0
        %2756 = vmatpush.bf16.xpose.msra.mxu0 0
        %2757 = vmatpush.bf16.xpose.msra.mxu0 0
        %2758 = vmatpush.bf16.xpose.msra.mxu0 0
        %2759 = vmatpush.bf16.xpose.msra.mxu0 0
        %2760 = vmatpush.bf16.xpose.msra.mxu0 0
        %2761 = vmatpush.bf16.xpose.msra.mxu0 0
        %2762 = vmatpush.bf16.xpose.msra.mxu0 0
        %2763 = vmatpush.bf16.xpose.msra.mxu0 %v2754
        %2764 = vmatmul.bf16.gmra.mxu0 %v2751
        %v2765 = vpop.f32.mrf.mxu0
        %v2766 = vadd.f32 0.0, %v2765
        %v2767 = vpop.f32.mrf.mxu0
        %2768 = vdwg.mxu0
        %v2769 = vpack.i.b16 %v1101, %v1101
        %v2770 = vperm.slane %v2769, 0
        %v2772 = vsel %vm731, %v2770, 0
        %v2775 = vsel %vm731, %v472, 0
        %2777 = vmatpush.bf16.xpose.msra.mxu0 0
        %2778 = vmatpush.bf16.xpose.msra.mxu0 0
        %2779 = vmatpush.bf16.xpose.msra.mxu0 0
        %2780 = vmatpush.bf16.xpose.msra.mxu0 0
        %2781 = vmatpush.bf16.xpose.msra.mxu0 0
        %2782 = vmatpush.bf16.xpose.msra.mxu0 0
        %2783 = vmatpush.bf16.xpose.msra.mxu0 0
        %2784 = vmatpush.bf16.xpose.msra.mxu0 %v2775
        %2785 = vmatmul.bf16.gmra.mxu0 %v2772
        %v2786 = vpop.f32.mrf.mxu0
        %v2787 = vadd.f32 0.0, %v2786
        %v2788 = vpop.f32.mrf.mxu0
        %2789 = vdwg.mxu0
        %v2790 = vpack.i.b16 %v1102, %v1102
        %v2791 = vperm.slane %v2790, 0
        %v2793 = vsel %vm731, %v2791, 0
        %v2796 = vsel %vm731, %v473, 0
        %2798 = vmatpush.bf16.xpose.msra.mxu0 0
        %2799 = vmatpush.bf16.xpose.msra.mxu0 0
        %2800 = vmatpush.bf16.xpose.msra.mxu0 0
        %2801 = vmatpush.bf16.xpose.msra.mxu0 0
        %2802 = vmatpush.bf16.xpose.msra.mxu0 0
        %2803 = vmatpush.bf16.xpose.msra.mxu0 0
        %2804 = vmatpush.bf16.xpose.msra.mxu0 0
        %2805 = vmatpush.bf16.xpose.msra.mxu0 %v2796
        %2806 = vmatmul.bf16.gmra.mxu0 %v2793
        %v2807 = vpop.f32.mrf.mxu0
        %v2808 = vadd.f32 0.0, %v2807
        %v2809 = vpop.f32.mrf.mxu0
        %2810 = vdwg.mxu0
        %v2811 = vpack.i.b16 %v1103, %v1103
        %v2812 = vperm.slane %v2811, 0
        %v2814 = vsel %vm731, %v2812, 0
        %v2817 = vsel %vm731, %v474, 0
        %2819 = vmatpush.bf16.xpose.msra.mxu0 0
        %2820 = vmatpush.bf16.xpose.msra.mxu0 0
        %2821 = vmatpush.bf16.xpose.msra.mxu0 0
        %2822 = vmatpush.bf16.xpose.msra.mxu0 0
        %2823 = vmatpush.bf16.xpose.msra.mxu0 0
        %2824 = vmatpush.bf16.xpose.msra.mxu0 0
        %2825 = vmatpush.bf16.xpose.msra.mxu0 0
        %2826 = vmatpush.bf16.xpose.msra.mxu0 %v2817
        %2827 = vmatmul.bf16.gmra.mxu0 %v2814
        %v2828 = vpop.f32.mrf.mxu0
        %v2829 = vadd.f32 0.0, %v2828
        %v2830 = vpop.f32.mrf.mxu0
        %2831 = vdwg.mxu0
        %v2832 = vpack.i.b16 %v1104, %v1104
        %v2833 = vperm.slane %v2832, 0
        %v2835 = vsel %vm731, %v2833, 0
        %v2838 = vsel %vm731, %v475, 0
        %2840 = vmatpush.bf16.xpose.msra.mxu0 0
        %2841 = vmatpush.bf16.xpose.msra.mxu0 0
        %2842 = vmatpush.bf16.xpose.msra.mxu0 0
        %2843 = vmatpush.bf16.xpose.msra.mxu0 0
        %2844 = vmatpush.bf16.xpose.msra.mxu0 0
        %2845 = vmatpush.bf16.xpose.msra.mxu0 0
        %2846 = vmatpush.bf16.xpose.msra.mxu0 0
        %2847 = vmatpush.bf16.xpose.msra.mxu0 %v2838
        %2848 = vmatmul.bf16.gmra.mxu0 %v2835
        %v2849 = vpop.f32.mrf.mxu0
        %v2850 = vadd.f32 0.0, %v2849
        %v2851 = vpop.f32.mrf.mxu0
        %2852 = vdwg.mxu0
        %v2853 = vpack.i.b16 %v1105, %v1105
        %v2854 = vperm.slane %v2853, 0
        %v2856 = vsel %vm731, %v2854, 0
        %v2859 = vsel %vm731, %v476, 0
        %2861 = vmatpush.bf16.xpose.msra.mxu0 0
        %2862 = vmatpush.bf16.xpose.msra.mxu0 0
        %2863 = vmatpush.bf16.xpose.msra.mxu0 0
        %2864 = vmatpush.bf16.xpose.msra.mxu0 0
        %2865 = vmatpush.bf16.xpose.msra.mxu0 0
        %2866 = vmatpush.bf16.xpose.msra.mxu0 0
        %2867 = vmatpush.bf16.xpose.msra.mxu0 0
        %2868 = vmatpush.bf16.xpose.msra.mxu0 %v2859
        %2869 = vmatmul.bf16.gmra.mxu0 %v2856
        %v2870 = vpop.f32.mrf.mxu0
        %v2871 = vadd.f32 0.0, %v2870
        %v2872 = vpop.f32.mrf.mxu0
        %2873 = vdwg.mxu0
        %v2874 = vpack.i.b16 %v1106, %v1106
        %v2875 = vperm.slane %v2874, 0
        %v2877 = vsel %vm731, %v2875, 0
        %v2880 = vsel %vm731, %v477, 0
        %2882 = vmatpush.bf16.xpose.msra.mxu0 0
        %2883 = vmatpush.bf16.xpose.msra.mxu0 0
        %2884 = vmatpush.bf16.xpose.msra.mxu0 0
        %2885 = vmatpush.bf16.xpose.msra.mxu0 0
        %2886 = vmatpush.bf16.xpose.msra.mxu0 0
        %2887 = vmatpush.bf16.xpose.msra.mxu0 0
        %2888 = vmatpush.bf16.xpose.msra.mxu0 0
        %2889 = vmatpush.bf16.xpose.msra.mxu0 %v2880
        %2890 = vmatmul.bf16.gmra.mxu0 %v2877
        %v2891 = vpop.f32.mrf.mxu0
        %v2892 = vadd.f32 0.0, %v2891
        %v2893 = vpop.f32.mrf.mxu0
        %2894 = vdwg.mxu0
        %v2895 = vpack.i.b16 %v1107, %v1107
        %v2896 = vperm.slane %v2895, 0
        %v2898 = vsel %vm731, %v2896, 0
        %v2901 = vsel %vm731, %v478, 0
        %2903 = vmatpush.bf16.xpose.msra.mxu0 0
        %2904 = vmatpush.bf16.xpose.msra.mxu0 0
        %2905 = vmatpush.bf16.xpose.msra.mxu0 0
        %2906 = vmatpush.bf16.xpose.msra.mxu0 0
        %2907 = vmatpush.bf16.xpose.msra.mxu0 0
        %2908 = vmatpush.bf16.xpose.msra.mxu0 0
        %2909 = vmatpush.bf16.xpose.msra.mxu0 0
        %2910 = vmatpush.bf16.xpose.msra.mxu0 %v2901
        %2911 = vmatmul.bf16.gmra.mxu0 %v2898
        %v2912 = vpop.f32.mrf.mxu0
        %v2913 = vadd.f32 0.0, %v2912
        %v2914 = vpop.f32.mrf.mxu0
        %2915 = vdwg.mxu0
        %v2916 = vpack.i.b16 %v1108, %v1108
        %v2917 = vperm.slane %v2916, 0
        %v2919 = vsel %vm731, %v2917, 0
        %v2922 = vsel %vm731, %v479, 0
        %2924 = vmatpush.bf16.xpose.msra.mxu0 0
        %2925 = vmatpush.bf16.xpose.msra.mxu0 0
        %2926 = vmatpush.bf16.xpose.msra.mxu0 0
        %2927 = vmatpush.bf16.xpose.msra.mxu0 0
        %2928 = vmatpush.bf16.xpose.msra.mxu0 0
        %2929 = vmatpush.bf16.xpose.msra.mxu0 0
        %2930 = vmatpush.bf16.xpose.msra.mxu0 0
        %2931 = vmatpush.bf16.xpose.msra.mxu0 %v2922
        %2932 = vmatmul.bf16.gmra.mxu0 %v2919
        %v2933 = vpop.f32.mrf.mxu0
        %v2934 = vadd.f32 0.0, %v2933
        %v2935 = vpop.f32.mrf.mxu0
        %2936 = vdwg.mxu0
        %v2937 = vpack.i.b16 %v1109, %v1109
        %v2938 = vperm.slane %v2937, 0
        %v2940 = vsel %vm731, %v2938, 0
        %v2943 = vsel %vm731, %v480, 0
        %2945 = vmatpush.bf16.xpose.msra.mxu0 0
        %2946 = vmatpush.bf16.xpose.msra.mxu0 0
        %2947 = vmatpush.bf16.xpose.msra.mxu0 0
        %2948 = vmatpush.bf16.xpose.msra.mxu0 0
        %2949 = vmatpush.bf16.xpose.msra.mxu0 0
        %2950 = vmatpush.bf16.xpose.msra.mxu0 0
        %2951 = vmatpush.bf16.xpose.msra.mxu0 0
        %2952 = vmatpush.bf16.xpose.msra.mxu0 %v2943
        %2953 = vmatmul.bf16.gmra.mxu0 %v2940
        %v2954 = vpop.f32.mrf.mxu0
        %v2955 = vadd.f32 0.0, %v2954
        %v2956 = vpop.f32.mrf.mxu0
        %2957 = vdwg.mxu0
        %v2958 = vpack.i.b16 %v1110, %v1110
        %v2959 = vperm.slane %v2958, 0
        %v2961 = vsel %vm731, %v2959, 0
        %v2964 = vsel %vm731, %v481, 0
        %2966 = vmatpush.bf16.xpose.msra.mxu0 0
        %2967 = vmatpush.bf16.xpose.msra.mxu0 0
        %2968 = vmatpush.bf16.xpose.msra.mxu0 0
        %2969 = vmatpush.bf16.xpose.msra.mxu0 0
        %2970 = vmatpush.bf16.xpose.msra.mxu0 0
        %2971 = vmatpush.bf16.xpose.msra.mxu0 0
        %2972 = vmatpush.bf16.xpose.msra.mxu0 0
        %2973 = vmatpush.bf16.xpose.msra.mxu0 %v2964
        %2974 = vmatmul.bf16.gmra.mxu0 %v2961
        %v2975 = vpop.f32.mrf.mxu0
        %v2976 = vadd.f32 0.0, %v2975
        %v2977 = vpop.f32.mrf.mxu0
        %2978 = vdwg.mxu0
        %v2979 = vpack.i.b16 %v1111, %v1111
        %v2980 = vperm.slane %v2979, 0
        %v2982 = vsel %vm731, %v2980, 0
        %v2985 = vsel %vm731, %v482, 0
        %2987 = vmatpush.bf16.xpose.msra.mxu0 0
        %2988 = vmatpush.bf16.xpose.msra.mxu0 0
        %2989 = vmatpush.bf16.xpose.msra.mxu0 0
        %2990 = vmatpush.bf16.xpose.msra.mxu0 0
        %2991 = vmatpush.bf16.xpose.msra.mxu0 0
        %2992 = vmatpush.bf16.xpose.msra.mxu0 0
        %2993 = vmatpush.bf16.xpose.msra.mxu0 0
        %2994 = vmatpush.bf16.xpose.msra.mxu0 %v2985
        %2995 = vmatmul.bf16.gmra.mxu0 %v2982
        %v2996 = vpop.f32.mrf.mxu0
        %v2997 = vadd.f32 0.0, %v2996
        %v2998 = vpop.f32.mrf.mxu0
        %2999 = vdwg.mxu0
        %v3000 = vpack.i.b16 %v1112, %v1112
        %v3001 = vperm.slane %v3000, 0
        %v3003 = vsel %vm731, %v3001, 0
        %v3006 = vsel %vm731, %v483, 0
        %3008 = vmatpush.bf16.xpose.msra.mxu0 0
        %3009 = vmatpush.bf16.xpose.msra.mxu0 0
        %3010 = vmatpush.bf16.xpose.msra.mxu0 0
        %3011 = vmatpush.bf16.xpose.msra.mxu0 0
        %3012 = vmatpush.bf16.xpose.msra.mxu0 0
        %3013 = vmatpush.bf16.xpose.msra.mxu0 0
        %3014 = vmatpush.bf16.xpose.msra.mxu0 0
        %3015 = vmatpush.bf16.xpose.msra.mxu0 %v3006
        %3016 = vmatmul.bf16.gmra.mxu0 %v3003
        %v3017 = vpop.f32.mrf.mxu0
        %v3018 = vadd.f32 0.0, %v3017
        %v3019 = vpop.f32.mrf.mxu0
        %3020 = vdwg.mxu0
        %v3021 = vpack.i.b16 %v1113, %v1113
        %v3022 = vperm.slane %v3021, 0
        %v3024 = vsel %vm731, %v3022, 0
        %v3027 = vsel %vm731, %v484, 0
        %3029 = vmatpush.bf16.xpose.msra.mxu0 0
        %3030 = vmatpush.bf16.xpose.msra.mxu0 0
        %3031 = vmatpush.bf16.xpose.msra.mxu0 0
        %3032 = vmatpush.bf16.xpose.msra.mxu0 0
        %3033 = vmatpush.bf16.xpose.msra.mxu0 0
        %3034 = vmatpush.bf16.xpose.msra.mxu0 0
        %3035 = vmatpush.bf16.xpose.msra.mxu0 0
        %3036 = vmatpush.bf16.xpose.msra.mxu0 %v3027
        %3037 = vmatmul.bf16.gmra.mxu0 %v3024
        %v3038 = vpop.f32.mrf.mxu0
        %v3039 = vadd.f32 0.0, %v3038
        %v3040 = vpop.f32.mrf.mxu0
        %3041 = vdwg.mxu0
        %v3042 = vpack.i.b16 %v1114, %v1114
        %v3043 = vperm.slane %v3042, 0
        %v3045 = vsel %vm731, %v3043, 0
        %v3048 = vsel %vm731, %v485, 0
        %3050 = vmatpush.bf16.xpose.msra.mxu0 0
        %3051 = vmatpush.bf16.xpose.msra.mxu0 0
        %3052 = vmatpush.bf16.xpose.msra.mxu0 0
        %3053 = vmatpush.bf16.xpose.msra.mxu0 0
        %3054 = vmatpush.bf16.xpose.msra.mxu0 0
        %3055 = vmatpush.bf16.xpose.msra.mxu0 0
        %3056 = vmatpush.bf16.xpose.msra.mxu0 0
        %3057 = vmatpush.bf16.xpose.msra.mxu0 %v3048
        %3058 = vmatmul.bf16.gmra.mxu0 %v3045
        %v3059 = vpop.f32.mrf.mxu0
        %v3060 = vadd.f32 0.0, %v3059
        %v3061 = vpop.f32.mrf.mxu0
        %3062 = vdwg.mxu0
        %v3063 = vpack.i.b16 %v1115, %v1115
        %v3064 = vperm.slane %v3063, 0
        %v3066 = vsel %vm731, %v3064, 0
        %v3069 = vsel %vm731, %v486, 0
        %3071 = vmatpush.bf16.xpose.msra.mxu0 0
        %3072 = vmatpush.bf16.xpose.msra.mxu0 0
        %3073 = vmatpush.bf16.xpose.msra.mxu0 0
        %3074 = vmatpush.bf16.xpose.msra.mxu0 0
        %3075 = vmatpush.bf16.xpose.msra.mxu0 0
        %3076 = vmatpush.bf16.xpose.msra.mxu0 0
        %3077 = vmatpush.bf16.xpose.msra.mxu0 0
        %3078 = vmatpush.bf16.xpose.msra.mxu0 %v3069
        %3079 = vmatmul.bf16.gmra.mxu0 %v3066
        %v3080 = vpop.f32.mrf.mxu0
        %v3081 = vadd.f32 0.0, %v3080
        %v3082 = vpop.f32.mrf.mxu0
        %3083 = vdwg.mxu0
        %v3084 = vpack.i.b16 %v1116, %v1116
        %v3085 = vperm.slane %v3084, 0
        %v3087 = vsel %vm731, %v3085, 0
        %v3090 = vsel %vm731, %v487, 0
        %3092 = vmatpush.bf16.xpose.msra.mxu0 0
        %3093 = vmatpush.bf16.xpose.msra.mxu0 0
        %3094 = vmatpush.bf16.xpose.msra.mxu0 0
        %3095 = vmatpush.bf16.xpose.msra.mxu0 0
        %3096 = vmatpush.bf16.xpose.msra.mxu0 0
        %3097 = vmatpush.bf16.xpose.msra.mxu0 0
        %3098 = vmatpush.bf16.xpose.msra.mxu0 0
        %3099 = vmatpush.bf16.xpose.msra.mxu0 %v3090
        %3100 = vmatmul.bf16.gmra.mxu0 %v3087
        %v3101 = vpop.f32.mrf.mxu0
        %v3102 = vadd.f32 0.0, %v3101
        %v3103 = vpop.f32.mrf.mxu0
        %3104 = vdwg.mxu0
        %v3105 = vpack.i.b16 %v1117, %v1117
        %v3106 = vperm.slane %v3105, 0
        %v3108 = vsel %vm731, %v3106, 0
        %v3111 = vsel %vm731, %v488, 0
        %3113 = vmatpush.bf16.xpose.msra.mxu0 0
        %3114 = vmatpush.bf16.xpose.msra.mxu0 0
        %3115 = vmatpush.bf16.xpose.msra.mxu0 0
        %3116 = vmatpush.bf16.xpose.msra.mxu0 0
        %3117 = vmatpush.bf16.xpose.msra.mxu0 0
        %3118 = vmatpush.bf16.xpose.msra.mxu0 0
        %3119 = vmatpush.bf16.xpose.msra.mxu0 0
        %3120 = vmatpush.bf16.xpose.msra.mxu0 %v3111
        %3121 = vmatmul.bf16.gmra.mxu0 %v3108
        %v3122 = vpop.f32.mrf.mxu0
        %v3123 = vadd.f32 0.0, %v3122
        %v3124 = vpop.f32.mrf.mxu0
        %3125 = vdwg.mxu0
        %v3126 = vpack.i.b16 %v1118, %v1118
        %v3127 = vperm.slane %v3126, 0
        %v3129 = vsel %vm731, %v3127, 0
        %v3132 = vsel %vm731, %v489, 0
        %3134 = vmatpush.bf16.xpose.msra.mxu0 0
        %3135 = vmatpush.bf16.xpose.msra.mxu0 0
        %3136 = vmatpush.bf16.xpose.msra.mxu0 0
        %3137 = vmatpush.bf16.xpose.msra.mxu0 0
        %3138 = vmatpush.bf16.xpose.msra.mxu0 0
        %3139 = vmatpush.bf16.xpose.msra.mxu0 0
        %3140 = vmatpush.bf16.xpose.msra.mxu0 0
        %3141 = vmatpush.bf16.xpose.msra.mxu0 %v3132
        %3142 = vmatmul.bf16.gmra.mxu0 %v3129
        %v3143 = vpop.f32.mrf.mxu0
        %v3144 = vadd.f32 0.0, %v3143
        %v3145 = vpop.f32.mrf.mxu0
        %3146 = vdwg.mxu0
        %v3147 = vpack.i.b16 %v1119, %v1119
        %v3148 = vperm.slane %v3147, 0
        %v3150 = vsel %vm731, %v3148, 0
        %v3153 = vsel %vm731, %v490, 0
        %3155 = vmatpush.bf16.xpose.msra.mxu0 0
        %3156 = vmatpush.bf16.xpose.msra.mxu0 0
        %3157 = vmatpush.bf16.xpose.msra.mxu0 0
        %3158 = vmatpush.bf16.xpose.msra.mxu0 0
        %3159 = vmatpush.bf16.xpose.msra.mxu0 0
        %3160 = vmatpush.bf16.xpose.msra.mxu0 0
        %3161 = vmatpush.bf16.xpose.msra.mxu0 0
        %3162 = vmatpush.bf16.xpose.msra.mxu0 %v3153
        %3163 = vmatmul.bf16.gmra.mxu0 %v3150
        %v3164 = vpop.f32.mrf.mxu0
        %v3165 = vadd.f32 0.0, %v3164
        %v3166 = vpop.f32.mrf.mxu0
        %3167 = vdwg.mxu0
        %v3168 = vpack.i.b16 %v1120, %v1120
        %v3169 = vperm.slane %v3168, 0
        %v3171 = vsel %vm731, %v3169, 0
        %v3174 = vsel %vm731, %v491, 0
        %3176 = vmatpush.bf16.xpose.msra.mxu0 0
        %3177 = vmatpush.bf16.xpose.msra.mxu0 0
        %3178 = vmatpush.bf16.xpose.msra.mxu0 0
        %3179 = vmatpush.bf16.xpose.msra.mxu0 0
        %3180 = vmatpush.bf16.xpose.msra.mxu0 0
        %3181 = vmatpush.bf16.xpose.msra.mxu0 0
        %3182 = vmatpush.bf16.xpose.msra.mxu0 0
        %3183 = vmatpush.bf16.xpose.msra.mxu0 %v3174
        %3184 = vmatmul.bf16.gmra.mxu0 %v3171
        %v3185 = vpop.f32.mrf.mxu0
        %v3186 = vadd.f32 0.0, %v3185
        %v3187 = vpop.f32.mrf.mxu0
        %3188 = vdwg.mxu0
        %v3189 = vpack.i.b16 %v1121, %v1121
        %v3190 = vperm.slane %v3189, 0
        %v3192 = vsel %vm731, %v3190, 0
        %v3195 = vsel %vm731, %v492, 0
        %3197 = vmatpush.bf16.xpose.msra.mxu0 0
        %3198 = vmatpush.bf16.xpose.msra.mxu0 0
        %3199 = vmatpush.bf16.xpose.msra.mxu0 0
        %3200 = vmatpush.bf16.xpose.msra.mxu0 0
        %3201 = vmatpush.bf16.xpose.msra.mxu0 0
        %3202 = vmatpush.bf16.xpose.msra.mxu0 0
        %3203 = vmatpush.bf16.xpose.msra.mxu0 0
        %3204 = vmatpush.bf16.xpose.msra.mxu0 %v3195
        %3205 = vmatmul.bf16.gmra.mxu0 %v3192
        %v3206 = vpop.f32.mrf.mxu0
        %v3207 = vadd.f32 0.0, %v3206
        %v3208 = vpop.f32.mrf.mxu0
        %3209 = vdwg.mxu0
        %v3210 = vpack.i.b16 %v1122, %v1122
        %v3211 = vperm.slane %v3210, 0
        %v3213 = vsel %vm731, %v3211, 0
        %v3216 = vsel %vm731, %v493, 0
        %3218 = vmatpush.bf16.xpose.msra.mxu0 0
        %3219 = vmatpush.bf16.xpose.msra.mxu0 0
        %3220 = vmatpush.bf16.xpose.msra.mxu0 0
        %3221 = vmatpush.bf16.xpose.msra.mxu0 0
        %3222 = vmatpush.bf16.xpose.msra.mxu0 0
        %3223 = vmatpush.bf16.xpose.msra.mxu0 0
        %3224 = vmatpush.bf16.xpose.msra.mxu0 0
        %3225 = vmatpush.bf16.xpose.msra.mxu0 %v3216
        %3226 = vmatmul.bf16.gmra.mxu0 %v3213
        %v3227 = vpop.f32.mrf.mxu0
        %v3228 = vadd.f32 0.0, %v3227
        %v3229 = vpop.f32.mrf.mxu0
        %3230 = vdwg.mxu0
        %v3231 = vpack.i.b16 %v1123, %v1123
        %v3232 = vperm.slane %v3231, 0
        %v3234 = vsel %vm731, %v3232, 0
        %v3237 = vsel %vm731, %v494, 0
        %3239 = vmatpush.bf16.xpose.msra.mxu0 0
        %3240 = vmatpush.bf16.xpose.msra.mxu0 0
        %3241 = vmatpush.bf16.xpose.msra.mxu0 0
        %3242 = vmatpush.bf16.xpose.msra.mxu0 0
        %3243 = vmatpush.bf16.xpose.msra.mxu0 0
        %3244 = vmatpush.bf16.xpose.msra.mxu0 0
        %3245 = vmatpush.bf16.xpose.msra.mxu0 0
        %3246 = vmatpush.bf16.xpose.msra.mxu0 %v3237
        %3247 = vmatmul.bf16.gmra.mxu0 %v3234
        %v3248 = vpop.f32.mrf.mxu0
        %v3249 = vadd.f32 0.0, %v3248
        %v3250 = vpop.f32.mrf.mxu0
        %3251 = vdwg.mxu0
        %v3252 = vpack.i.b16 %v1124, %v1124
        %v3253 = vperm.slane %v3252, 0
        %v3255 = vsel %vm731, %v3253, 0
        %v3258 = vsel %vm731, %v495, 0
        %3260 = vmatpush.bf16.xpose.msra.mxu0 0
        %3261 = vmatpush.bf16.xpose.msra.mxu0 0
        %3262 = vmatpush.bf16.xpose.msra.mxu0 0
        %3263 = vmatpush.bf16.xpose.msra.mxu0 0
        %3264 = vmatpush.bf16.xpose.msra.mxu0 0
        %3265 = vmatpush.bf16.xpose.msra.mxu0 0
        %3266 = vmatpush.bf16.xpose.msra.mxu0 0
        %3267 = vmatpush.bf16.xpose.msra.mxu0 %v3258
        %3268 = vmatmul.bf16.gmra.mxu0 %v3255
        %v3269 = vpop.f32.mrf.mxu0
        %v3270 = vadd.f32 0.0, %v3269
        %v3271 = vpop.f32.mrf.mxu0
        %3272 = vdwg.mxu0
        %v3273 = vpack.i.b16 %v1125, %v1125
        %v3274 = vperm.slane %v3273, 0
        %v3276 = vsel %vm731, %v3274, 0
        %v3279 = vsel %vm731, %v496, 0
        %3281 = vmatpush.bf16.xpose.msra.mxu0 0
        %3282 = vmatpush.bf16.xpose.msra.mxu0 0
        %3283 = vmatpush.bf16.xpose.msra.mxu0 0
        %3284 = vmatpush.bf16.xpose.msra.mxu0 0
        %3285 = vmatpush.bf16.xpose.msra.mxu0 0
        %3286 = vmatpush.bf16.xpose.msra.mxu0 0
        %3287 = vmatpush.bf16.xpose.msra.mxu0 0
        %3288 = vmatpush.bf16.xpose.msra.mxu0 %v3279
        %3289 = vmatmul.bf16.gmra.mxu0 %v3276
        %v3290 = vpop.f32.mrf.mxu0
        %v3291 = vadd.f32 0.0, %v3290
        %v3292 = vpop.f32.mrf.mxu0
        %3293 = vdwg.mxu0
        %v3294 = vpack.i.b16 %v1126, %v1126
        %v3295 = vperm.slane %v3294, 0
        %v3297 = vsel %vm731, %v3295, 0
        %v3300 = vsel %vm731, %v497, 0
        %3302 = vmatpush.bf16.xpose.msra.mxu0 0
        %3303 = vmatpush.bf16.xpose.msra.mxu0 0
        %3304 = vmatpush.bf16.xpose.msra.mxu0 0
        %3305 = vmatpush.bf16.xpose.msra.mxu0 0
        %3306 = vmatpush.bf16.xpose.msra.mxu0 0
        %3307 = vmatpush.bf16.xpose.msra.mxu0 0
        %3308 = vmatpush.bf16.xpose.msra.mxu0 0
        %3309 = vmatpush.bf16.xpose.msra.mxu0 %v3300
        %3310 = vmatmul.bf16.gmra.mxu0 %v3297
        %v3311 = vpop.f32.mrf.mxu0
        %v3312 = vadd.f32 0.0, %v3311
        %v3313 = vpop.f32.mrf.mxu0
        %3314 = vdwg.mxu0
        %v3315 = vpack.i.b16 %v1127, %v1127
        %v3316 = vperm.slane %v3315, 0
        %v3318 = vsel %vm731, %v3316, 0
        %v3321 = vsel %vm731, %v498, 0
        %3323 = vmatpush.bf16.xpose.msra.mxu0 0
        %3324 = vmatpush.bf16.xpose.msra.mxu0 0
        %3325 = vmatpush.bf16.xpose.msra.mxu0 0
        %3326 = vmatpush.bf16.xpose.msra.mxu0 0
        %3327 = vmatpush.bf16.xpose.msra.mxu0 0
        %3328 = vmatpush.bf16.xpose.msra.mxu0 0
        %3329 = vmatpush.bf16.xpose.msra.mxu0 0
        %3330 = vmatpush.bf16.xpose.msra.mxu0 %v3321
        %3331 = vmatmul.bf16.gmra.mxu0 %v3318
        %v3332 = vpop.f32.mrf.mxu0
        %v3333 = vadd.f32 0.0, %v3332
        %v3334 = vpop.f32.mrf.mxu0
        %3335 = vdwg.mxu0
        %v3336 = vpack.i.b16 %v1128, %v1128
        %v3337 = vperm.slane %v3336, 0
        %v3339 = vsel %vm731, %v3337, 0
        %v3342 = vsel %vm731, %v499, 0
        %3344 = vmatpush.bf16.xpose.msra.mxu0 0
        %3345 = vmatpush.bf16.xpose.msra.mxu0 0
        %3346 = vmatpush.bf16.xpose.msra.mxu0 0
        %3347 = vmatpush.bf16.xpose.msra.mxu0 0
        %3348 = vmatpush.bf16.xpose.msra.mxu0 0
        %3349 = vmatpush.bf16.xpose.msra.mxu0 0
        %3350 = vmatpush.bf16.xpose.msra.mxu0 0
        %3351 = vmatpush.bf16.xpose.msra.mxu0 %v3342
        %3352 = vmatmul.bf16.gmra.mxu0 %v3339
        %v3353 = vpop.f32.mrf.mxu0
        %v3354 = vadd.f32 0.0, %v3353
        %v3355 = vpop.f32.mrf.mxu0
        %3356 = vdwg.mxu0
        %v3357 = vpack.i.b16 %v1129, %v1129
        %v3358 = vperm.slane %v3357, 0
        %v3360 = vsel %vm731, %v3358, 0
        %v3363 = vsel %vm731, %v500, 0
        %3365 = vmatpush.bf16.xpose.msra.mxu0 0
        %3366 = vmatpush.bf16.xpose.msra.mxu0 0
        %3367 = vmatpush.bf16.xpose.msra.mxu0 0
        %3368 = vmatpush.bf16.xpose.msra.mxu0 0
        %3369 = vmatpush.bf16.xpose.msra.mxu0 0
        %3370 = vmatpush.bf16.xpose.msra.mxu0 0
        %3371 = vmatpush.bf16.xpose.msra.mxu0 0
        %3372 = vmatpush.bf16.xpose.msra.mxu0 %v3363
        %3373 = vmatmul.bf16.gmra.mxu0 %v3360
        %v3374 = vpop.f32.mrf.mxu0
        %v3375 = vadd.f32 0.0, %v3374
        %v3376 = vpop.f32.mrf.mxu0
        %3377 = vdwg.mxu0
        %v3378 = vpack.i.b16 %v1130, %v1130
        %v3379 = vperm.slane %v3378, 0
        %v3381 = vsel %vm731, %v3379, 0
        %v3384 = vsel %vm731, %v501, 0
        %3386 = vmatpush.bf16.xpose.msra.mxu0 0
        %3387 = vmatpush.bf16.xpose.msra.mxu0 0
        %3388 = vmatpush.bf16.xpose.msra.mxu0 0
        %3389 = vmatpush.bf16.xpose.msra.mxu0 0
        %3390 = vmatpush.bf16.xpose.msra.mxu0 0
        %3391 = vmatpush.bf16.xpose.msra.mxu0 0
        %3392 = vmatpush.bf16.xpose.msra.mxu0 0
        %3393 = vmatpush.bf16.xpose.msra.mxu0 %v3384
        %3394 = vmatmul.bf16.gmra.mxu0 %v3381
        %v3395 = vpop.f32.mrf.mxu0
        %v3396 = vadd.f32 0.0, %v3395
        %v3397 = vpop.f32.mrf.mxu0
        %3398 = vdwg.mxu0
        %v3399 = vpack.i.b16 %v1131, %v1131
        %v3400 = vperm.slane %v3399, 0
        %v3402 = vsel %vm731, %v3400, 0
        %v3405 = vsel %vm731, %v502, 0
        %3407 = vmatpush.bf16.xpose.msra.mxu0 0
        %3408 = vmatpush.bf16.xpose.msra.mxu0 0
        %3409 = vmatpush.bf16.xpose.msra.mxu0 0
        %3410 = vmatpush.bf16.xpose.msra.mxu0 0
        %3411 = vmatpush.bf16.xpose.msra.mxu0 0
        %3412 = vmatpush.bf16.xpose.msra.mxu0 0
        %3413 = vmatpush.bf16.xpose.msra.mxu0 0
        %3414 = vmatpush.bf16.xpose.msra.mxu0 %v3405
        %3415 = vmatmul.bf16.gmra.mxu0 %v3402
        %v3416 = vpop.f32.mrf.mxu0
        %v3417 = vadd.f32 0.0, %v3416
        %v3418 = vpop.f32.mrf.mxu0
        %3419 = vdwg.mxu0
        %v3420 = vpack.i.b16 %v1132, %v1132
        %v3421 = vperm.slane %v3420, 0
        %v3423 = vsel %vm731, %v3421, 0
        %v3426 = vsel %vm731, %v503, 0
        %3428 = vmatpush.bf16.xpose.msra.mxu0 0
        %3429 = vmatpush.bf16.xpose.msra.mxu0 0
        %3430 = vmatpush.bf16.xpose.msra.mxu0 0
        %3431 = vmatpush.bf16.xpose.msra.mxu0 0
        %3432 = vmatpush.bf16.xpose.msra.mxu0 0
        %3433 = vmatpush.bf16.xpose.msra.mxu0 0
        %3434 = vmatpush.bf16.xpose.msra.mxu0 0
        %3435 = vmatpush.bf16.xpose.msra.mxu0 %v3426
        %3436 = vmatmul.bf16.gmra.mxu0 %v3423
        %v3437 = vpop.f32.mrf.mxu0
        %v3438 = vadd.f32 0.0, %v3437
        %v3439 = vpop.f32.mrf.mxu0
        %3440 = vdwg.mxu0
        %v3441 = vpack.i.b16 %v1133, %v1133
        %v3442 = vperm.slane %v3441, 0
        %v3444 = vsel %vm731, %v3442, 0
        %v3447 = vsel %vm731, %v504, 0
        %3449 = vmatpush.bf16.xpose.msra.mxu0 0
        %3450 = vmatpush.bf16.xpose.msra.mxu0 0
        %3451 = vmatpush.bf16.xpose.msra.mxu0 0
        %3452 = vmatpush.bf16.xpose.msra.mxu0 0
        %3453 = vmatpush.bf16.xpose.msra.mxu0 0
        %3454 = vmatpush.bf16.xpose.msra.mxu0 0
        %3455 = vmatpush.bf16.xpose.msra.mxu0 0
        %3456 = vmatpush.bf16.xpose.msra.mxu0 %v3447
        %3457 = vmatmul.bf16.gmra.mxu0 %v3444
        %v3458 = vpop.f32.mrf.mxu0
        %v3459 = vadd.f32 0.0, %v3458
        %v3460 = vpop.f32.mrf.mxu0
        %3461 = vdwg.mxu0
        %v3462 = vpack.i.b16 %v1134, %v1134
        %v3463 = vperm.slane %v3462, 0
        %v3465 = vsel %vm731, %v3463, 0
        %v3468 = vsel %vm731, %v505, 0
        %3470 = vmatpush.bf16.xpose.msra.mxu0 0
        %3471 = vmatpush.bf16.xpose.msra.mxu0 0
        %3472 = vmatpush.bf16.xpose.msra.mxu0 0
        %3473 = vmatpush.bf16.xpose.msra.mxu0 0
        %3474 = vmatpush.bf16.xpose.msra.mxu0 0
        %3475 = vmatpush.bf16.xpose.msra.mxu0 0
        %3476 = vmatpush.bf16.xpose.msra.mxu0 0
        %3477 = vmatpush.bf16.xpose.msra.mxu0 %v3468
        %3478 = vmatmul.bf16.gmra.mxu0 %v3465
        %v3479 = vpop.f32.mrf.mxu0
        %v3480 = vadd.f32 0.0, %v3479
        %v3481 = vpop.f32.mrf.mxu0
        %3482 = vdwg.mxu0
        %v3483 = vpack.i.b16 %v1135, %v1135
        %v3484 = vperm.slane %v3483, 0
        %v3486 = vsel %vm731, %v3484, 0
        %v3489 = vsel %vm731, %v506, 0
        %3491 = vmatpush.bf16.xpose.msra.mxu0 0
        %3492 = vmatpush.bf16.xpose.msra.mxu0 0
        %3493 = vmatpush.bf16.xpose.msra.mxu0 0
        %3494 = vmatpush.bf16.xpose.msra.mxu0 0
        %3495 = vmatpush.bf16.xpose.msra.mxu0 0
        %3496 = vmatpush.bf16.xpose.msra.mxu0 0
        %3497 = vmatpush.bf16.xpose.msra.mxu0 0
        %3498 = vmatpush.bf16.xpose.msra.mxu0 %v3489
        %3499 = vmatmul.bf16.gmra.mxu0 %v3486
        %v3500 = vpop.f32.mrf.mxu0
        %v3501 = vadd.f32 0.0, %v3500
        %v3502 = vpop.f32.mrf.mxu0
        %3503 = vdwg.mxu0
        %v3504 = vpack.i.b16 %v1136, %v1136
        %v3505 = vperm.slane %v3504, 0
        %v3507 = vsel %vm731, %v3505, 0
        %v3510 = vsel %vm731, %v507, 0
        %3512 = vmatpush.bf16.xpose.msra.mxu0 0
        %3513 = vmatpush.bf16.xpose.msra.mxu0 0
        %3514 = vmatpush.bf16.xpose.msra.mxu0 0
        %3515 = vmatpush.bf16.xpose.msra.mxu0 0
        %3516 = vmatpush.bf16.xpose.msra.mxu0 0
        %3517 = vmatpush.bf16.xpose.msra.mxu0 0
        %3518 = vmatpush.bf16.xpose.msra.mxu0 0
        %3519 = vmatpush.bf16.xpose.msra.mxu0 %v3510
        %3520 = vmatmul.bf16.gmra.mxu0 %v3507
        %v3521 = vpop.f32.mrf.mxu0
        %v3522 = vadd.f32 0.0, %v3521
        %v3523 = vpop.f32.mrf.mxu0
        %3524 = vdwg.mxu0
        %v3525 = vpack.i.b16 %v1137, %v1137
        %v3526 = vperm.slane %v3525, 0
        %v3528 = vsel %vm731, %v3526, 0
        %v3531 = vsel %vm731, %v508, 0
        %3533 = vmatpush.bf16.xpose.msra.mxu0 0
        %3534 = vmatpush.bf16.xpose.msra.mxu0 0
        %3535 = vmatpush.bf16.xpose.msra.mxu0 0
        %3536 = vmatpush.bf16.xpose.msra.mxu0 0
        %3537 = vmatpush.bf16.xpose.msra.mxu0 0
        %3538 = vmatpush.bf16.xpose.msra.mxu0 0
        %3539 = vmatpush.bf16.xpose.msra.mxu0 0
        %3540 = vmatpush.bf16.xpose.msra.mxu0 %v3531
        %3541 = vmatmul.bf16.gmra.mxu0 %v3528
        %v3542 = vpop.f32.mrf.mxu0
        %v3543 = vadd.f32 0.0, %v3542
        %v3544 = vpop.f32.mrf.mxu0
        %3545 = vdwg.mxu0
        %v3546 = vpack.i.b16 %v1138, %v1138
        %v3547 = vperm.slane %v3546, 0
        %v3549 = vsel %vm731, %v3547, 0
        %v3552 = vsel %vm731, %v509, 0
        %3554 = vmatpush.bf16.xpose.msra.mxu0 0
        %3555 = vmatpush.bf16.xpose.msra.mxu0 0
        %3556 = vmatpush.bf16.xpose.msra.mxu0 0
        %3557 = vmatpush.bf16.xpose.msra.mxu0 0
        %3558 = vmatpush.bf16.xpose.msra.mxu0 0
        %3559 = vmatpush.bf16.xpose.msra.mxu0 0
        %3560 = vmatpush.bf16.xpose.msra.mxu0 0
        %3561 = vmatpush.bf16.xpose.msra.mxu0 %v3552
        %3562 = vmatmul.bf16.gmra.mxu0 %v3549
        %v3563 = vpop.f32.mrf.mxu0
        %v3564 = vadd.f32 0.0, %v3563
        %v3565 = vpop.f32.mrf.mxu0
        %3566 = vdwg.mxu0
        %v3567 = vpack.i.b16 %v1139, %v1139
        %v3568 = vperm.slane %v3567, 0
        %v3570 = vsel %vm731, %v3568, 0
        %v3573 = vsel %vm731, %v510, 0
        %3575 = vmatpush.bf16.xpose.msra.mxu0 0
        %3576 = vmatpush.bf16.xpose.msra.mxu0 0
        %3577 = vmatpush.bf16.xpose.msra.mxu0 0
        %3578 = vmatpush.bf16.xpose.msra.mxu0 0
        %3579 = vmatpush.bf16.xpose.msra.mxu0 0
        %3580 = vmatpush.bf16.xpose.msra.mxu0 0
        %3581 = vmatpush.bf16.xpose.msra.mxu0 0
        %3582 = vmatpush.bf16.xpose.msra.mxu0 %v3573
        %3583 = vmatmul.bf16.gmra.mxu0 %v3570
        %v3584 = vpop.f32.mrf.mxu0
        %v3585 = vadd.f32 0.0, %v3584
        %v3586 = vpop.f32.mrf.mxu0
        %3587 = vdwg.mxu0
        %v3588 = vpack.i.b16 %v1140, %v1140
        %v3589 = vperm.slane %v3588, 0
        %v3591 = vsel %vm731, %v3589, 0
        %v3594 = vsel %vm731, %v511, 0
        %3596 = vmatpush.bf16.xpose.msra.mxu0 0
        %3597 = vmatpush.bf16.xpose.msra.mxu0 0
        %3598 = vmatpush.bf16.xpose.msra.mxu0 0
        %3599 = vmatpush.bf16.xpose.msra.mxu0 0
        %3600 = vmatpush.bf16.xpose.msra.mxu0 0
        %3601 = vmatpush.bf16.xpose.msra.mxu0 0
        %3602 = vmatpush.bf16.xpose.msra.mxu0 0
        %3603 = vmatpush.bf16.xpose.msra.mxu0 %v3594
        %3604 = vmatmul.bf16.gmra.mxu0 %v3591
        %v3605 = vpop.f32.mrf.mxu0
        %v3606 = vadd.f32 0.0, %v3605
        %v3607 = vpop.f32.mrf.mxu0
        %3608 = vdwg.mxu0
        %v3609 = vpack.i.b16 %v1141, %v1141
        %v3610 = vperm.slane %v3609, 0
        %v3612 = vsel %vm731, %v3610, 0
        %v3615 = vsel %vm731, %v512, 0
        %3617 = vmatpush.bf16.xpose.msra.mxu0 0
        %3618 = vmatpush.bf16.xpose.msra.mxu0 0
        %3619 = vmatpush.bf16.xpose.msra.mxu0 0
        %3620 = vmatpush.bf16.xpose.msra.mxu0 0
        %3621 = vmatpush.bf16.xpose.msra.mxu0 0
        %3622 = vmatpush.bf16.xpose.msra.mxu0 0
        %3623 = vmatpush.bf16.xpose.msra.mxu0 0
        %3624 = vmatpush.bf16.xpose.msra.mxu0 %v3615
        %3625 = vmatmul.bf16.gmra.mxu0 %v3612
        %v3626 = vpop.f32.mrf.mxu0
        %v3627 = vadd.f32 0.0, %v3626
        %v3628 = vpop.f32.mrf.mxu0
        %3629 = vdwg.mxu0
        %v3630 = vpack.i.b16 %v1142, %v1142
        %v3631 = vperm.slane %v3630, 0
        %v3633 = vsel %vm731, %v3631, 0
        %v3636 = vsel %vm731, %v513, 0
        %3638 = vmatpush.bf16.xpose.msra.mxu0 0
        %3639 = vmatpush.bf16.xpose.msra.mxu0 0
        %3640 = vmatpush.bf16.xpose.msra.mxu0 0
        %3641 = vmatpush.bf16.xpose.msra.mxu0 0
        %3642 = vmatpush.bf16.xpose.msra.mxu0 0
        %3643 = vmatpush.bf16.xpose.msra.mxu0 0
        %3644 = vmatpush.bf16.xpose.msra.mxu0 0
        %3645 = vmatpush.bf16.xpose.msra.mxu0 %v3636
        %3646 = vmatmul.bf16.gmra.mxu0 %v3633
        %v3647 = vpop.f32.mrf.mxu0
        %v3648 = vadd.f32 0.0, %v3647
        %v3649 = vpop.f32.mrf.mxu0
        %3650 = vdwg.mxu0
        %v3651 = vpack.i.b16 %v1143, %v1143
        %v3652 = vperm.slane %v3651, 0
        %v3654 = vsel %vm731, %v3652, 0
        %v3657 = vsel %vm731, %v514, 0
        %3659 = vmatpush.bf16.xpose.msra.mxu0 0
        %3660 = vmatpush.bf16.xpose.msra.mxu0 0
        %3661 = vmatpush.bf16.xpose.msra.mxu0 0
        %3662 = vmatpush.bf16.xpose.msra.mxu0 0
        %3663 = vmatpush.bf16.xpose.msra.mxu0 0
        %3664 = vmatpush.bf16.xpose.msra.mxu0 0
        %3665 = vmatpush.bf16.xpose.msra.mxu0 0
        %3666 = vmatpush.bf16.xpose.msra.mxu0 %v3657
        %3667 = vmatmul.bf16.gmra.mxu0 %v3654
        %v3668 = vpop.f32.mrf.mxu0
        %v3669 = vadd.f32 0.0, %v3668
        %v3670 = vpop.f32.mrf.mxu0
        %3671 = vdwg.mxu0
        %v3672 = vpack.i.b16 %v1144, %v1144
        %v3673 = vperm.slane %v3672, 0
        %v3675 = vsel %vm731, %v3673, 0
        %v3678 = vsel %vm731, %v515, 0
        %3680 = vmatpush.bf16.xpose.msra.mxu0 0
        %3681 = vmatpush.bf16.xpose.msra.mxu0 0
        %3682 = vmatpush.bf16.xpose.msra.mxu0 0
        %3683 = vmatpush.bf16.xpose.msra.mxu0 0
        %3684 = vmatpush.bf16.xpose.msra.mxu0 0
        %3685 = vmatpush.bf16.xpose.msra.mxu0 0
        %3686 = vmatpush.bf16.xpose.msra.mxu0 0
        %3687 = vmatpush.bf16.xpose.msra.mxu0 %v3678
        %3688 = vmatmul.bf16.gmra.mxu0 %v3675
        %v3689 = vpop.f32.mrf.mxu0
        %v3690 = vadd.f32 0.0, %v3689
        %v3691 = vpop.f32.mrf.mxu0
        %3692 = vdwg.mxu0
        %v3693 = vpack.i.b16 %v1145, %v1145
        %v3694 = vperm.slane %v3693, 0
        %v3696 = vsel %vm731, %v3694, 0
        %v3699 = vsel %vm731, %v516, 0
        %3701 = vmatpush.bf16.xpose.msra.mxu0 0
        %3702 = vmatpush.bf16.xpose.msra.mxu0 0
        %3703 = vmatpush.bf16.xpose.msra.mxu0 0
        %3704 = vmatpush.bf16.xpose.msra.mxu0 0
        %3705 = vmatpush.bf16.xpose.msra.mxu0 0
        %3706 = vmatpush.bf16.xpose.msra.mxu0 0
        %3707 = vmatpush.bf16.xpose.msra.mxu0 0
        %3708 = vmatpush.bf16.xpose.msra.mxu0 %v3699
        %3709 = vmatmul.bf16.gmra.mxu0 %v3696
        %v3710 = vpop.f32.mrf.mxu0
        %v3711 = vadd.f32 0.0, %v3710
        %v3712 = vpop.f32.mrf.mxu0
        %3713 = vdwg.mxu0
        %v3714 = vpack.i.b16 %v1146, %v1146
        %v3715 = vperm.slane %v3714, 0
        %v3717 = vsel %vm731, %v3715, 0
        %v3720 = vsel %vm731, %v517, 0
        %3722 = vmatpush.bf16.xpose.msra.mxu0 0
        %3723 = vmatpush.bf16.xpose.msra.mxu0 0
        %3724 = vmatpush.bf16.xpose.msra.mxu0 0
        %3725 = vmatpush.bf16.xpose.msra.mxu0 0
        %3726 = vmatpush.bf16.xpose.msra.mxu0 0
        %3727 = vmatpush.bf16.xpose.msra.mxu0 0
        %3728 = vmatpush.bf16.xpose.msra.mxu0 0
        %3729 = vmatpush.bf16.xpose.msra.mxu0 %v3720
        %3730 = vmatmul.bf16.gmra.mxu0 %v3717
        %v3731 = vpop.f32.mrf.mxu0
        %v3732 = vadd.f32 0.0, %v3731
        %v3733 = vpop.f32.mrf.mxu0
        %3734 = vdwg.mxu0
        %v3735 = vpack.i.b16 %v1147, %v1147
        %v3736 = vperm.slane %v3735, 0
        %v3738 = vsel %vm731, %v3736, 0
        %v3741 = vsel %vm731, %v518, 0
        %3743 = vmatpush.bf16.xpose.msra.mxu0 0
        %3744 = vmatpush.bf16.xpose.msra.mxu0 0
        %3745 = vmatpush.bf16.xpose.msra.mxu0 0
        %3746 = vmatpush.bf16.xpose.msra.mxu0 0
        %3747 = vmatpush.bf16.xpose.msra.mxu0 0
        %3748 = vmatpush.bf16.xpose.msra.mxu0 0
        %3749 = vmatpush.bf16.xpose.msra.mxu0 0
        %3750 = vmatpush.bf16.xpose.msra.mxu0 %v3741
        %3751 = vmatmul.bf16.gmra.mxu0 %v3738
        %v3752 = vpop.f32.mrf.mxu0
        %v3753 = vadd.f32 0.0, %v3752
        %v3754 = vpop.f32.mrf.mxu0
        %3755 = vdwg.mxu0
        %v3756 = vpack.i.b16 %v1148, %v1148
        %v3757 = vperm.slane %v3756, 0
        %v3759 = vsel %vm731, %v3757, 0
        %v3762 = vsel %vm731, %v519, 0
        %3764 = vmatpush.bf16.xpose.msra.mxu0 0
        %3765 = vmatpush.bf16.xpose.msra.mxu0 0
        %3766 = vmatpush.bf16.xpose.msra.mxu0 0
        %3767 = vmatpush.bf16.xpose.msra.mxu0 0
        %3768 = vmatpush.bf16.xpose.msra.mxu0 0
        %3769 = vmatpush.bf16.xpose.msra.mxu0 0
        %3770 = vmatpush.bf16.xpose.msra.mxu0 0
        %3771 = vmatpush.bf16.xpose.msra.mxu0 %v3762
        %3772 = vmatmul.bf16.gmra.mxu0 %v3759
        %v3773 = vpop.f32.mrf.mxu0
        %v3774 = vadd.f32 0.0, %v3773
        %v3775 = vpop.f32.mrf.mxu0
        %3776 = vdwg.mxu0
        %v3777 = vpack.i.b16 %v1149, %v1149
        %v3778 = vperm.slane %v3777, 0
        %v3780 = vsel %vm731, %v3778, 0
        %v3783 = vsel %vm731, %v520, 0
        %3785 = vmatpush.bf16.xpose.msra.mxu0 0
        %3786 = vmatpush.bf16.xpose.msra.mxu0 0
        %3787 = vmatpush.bf16.xpose.msra.mxu0 0
        %3788 = vmatpush.bf16.xpose.msra.mxu0 0
        %3789 = vmatpush.bf16.xpose.msra.mxu0 0
        %3790 = vmatpush.bf16.xpose.msra.mxu0 0
        %3791 = vmatpush.bf16.xpose.msra.mxu0 0
        %3792 = vmatpush.bf16.xpose.msra.mxu0 %v3783
        %3793 = vmatmul.bf16.gmra.mxu0 %v3780
        %v3794 = vpop.f32.mrf.mxu0
        %v3795 = vadd.f32 0.0, %v3794
        %v3796 = vpop.f32.mrf.mxu0
        %3797 = vdwg.mxu0
        %v3798 = vpack.i.b16 %v1150, %v1150
        %v3799 = vperm.slane %v3798, 0
        %v3801 = vsel %vm731, %v3799, 0
        %v3804 = vsel %vm731, %v521, 0
        %3806 = vmatpush.bf16.xpose.msra.mxu0 0
        %3807 = vmatpush.bf16.xpose.msra.mxu0 0
        %3808 = vmatpush.bf16.xpose.msra.mxu0 0
        %3809 = vmatpush.bf16.xpose.msra.mxu0 0
        %3810 = vmatpush.bf16.xpose.msra.mxu0 0
        %3811 = vmatpush.bf16.xpose.msra.mxu0 0
        %3812 = vmatpush.bf16.xpose.msra.mxu0 0
        %3813 = vmatpush.bf16.xpose.msra.mxu0 %v3804
        %3814 = vmatmul.bf16.gmra.mxu0 %v3801
        %v3815 = vpop.f32.mrf.mxu0
        %v3816 = vadd.f32 0.0, %v3815
        %v3817 = vpop.f32.mrf.mxu0
        %3818 = vdwg.mxu0
        %v3819 = vpack.i.b16 %v1151, %v1151
        %v3820 = vperm.slane %v3819, 0
        %v3822 = vsel %vm731, %v3820, 0
        %v3825 = vsel %vm731, %v522, 0
        %3827 = vmatpush.bf16.xpose.msra.mxu0 0
        %3828 = vmatpush.bf16.xpose.msra.mxu0 0
        %3829 = vmatpush.bf16.xpose.msra.mxu0 0
        %3830 = vmatpush.bf16.xpose.msra.mxu0 0
        %3831 = vmatpush.bf16.xpose.msra.mxu0 0
        %3832 = vmatpush.bf16.xpose.msra.mxu0 0
        %3833 = vmatpush.bf16.xpose.msra.mxu0 0
        %3834 = vmatpush.bf16.xpose.msra.mxu0 %v3825
        %3835 = vmatmul.bf16.gmra.mxu0 %v3822
        %v3836 = vpop.f32.mrf.mxu0
        %v3837 = vadd.f32 0.0, %v3836
        %v3838 = vpop.f32.mrf.mxu0
        %3839 = vdwg.mxu0
        %v3841 = vsel %vm731, %v523, 0
        %3843 = vmatpush.bf16.xpose.msra.mxu0 0
        %3844 = vmatpush.bf16.xpose.msra.mxu0 0
        %3845 = vmatpush.bf16.xpose.msra.mxu0 0
        %3846 = vmatpush.bf16.xpose.msra.mxu0 0
        %3847 = vmatpush.bf16.xpose.msra.mxu0 0
        %3848 = vmatpush.bf16.xpose.msra.mxu0 0
        %3849 = vmatpush.bf16.xpose.msra.mxu0 0
        %3850 = vmatpush.bf16.xpose.msra.mxu0 %v3841
        %3851 = vmatmul.bf16.gmra.mxu0 %v1155
        %v3852 = vpop.f32.mrf.mxu0
        %v3853 = vadd.f32 0.0, %v3852
        %v3854 = vpop.f32.mrf.mxu0
        %3855 = vdwg.mxu0
        %v3857 = vsel %vm731, %v524, 0
        %3859 = vmatpush.bf16.xpose.msra.mxu0 0
        %3860 = vmatpush.bf16.xpose.msra.mxu0 0
        %3861 = vmatpush.bf16.xpose.msra.mxu0 0
        %3862 = vmatpush.bf16.xpose.msra.mxu0 0
        %3863 = vmatpush.bf16.xpose.msra.mxu0 0
        %3864 = vmatpush.bf16.xpose.msra.mxu0 0
        %3865 = vmatpush.bf16.xpose.msra.mxu0 0
        %3866 = vmatpush.bf16.xpose.msra.mxu0 %v3857
        %3867 = vmatmul.bf16.gmra.mxu0 %v1176
        %v3868 = vpop.f32.mrf.mxu0
        %v3869 = vadd.f32 0.0, %v3868
        %v3870 = vpop.f32.mrf.mxu0
        %3871 = vdwg.mxu0
        %v3873 = vsel %vm731, %v525, 0
        %3875 = vmatpush.bf16.xpose.msra.mxu0 0
        %3876 = vmatpush.bf16.xpose.msra.mxu0 0
        %3877 = vmatpush.bf16.xpose.msra.mxu0 0
        %3878 = vmatpush.bf16.xpose.msra.mxu0 0
        %3879 = vmatpush.bf16.xpose.msra.mxu0 0
        %3880 = vmatpush.bf16.xpose.msra.mxu0 0
        %3881 = vmatpush.bf16.xpose.msra.mxu0 0
        %3882 = vmatpush.bf16.xpose.msra.mxu0 %v3873
        %3883 = vmatmul.bf16.gmra.mxu0 %v1197
        %v3884 = vpop.f32.mrf.mxu0
        %v3885 = vadd.f32 0.0, %v3884
        %v3886 = vpop.f32.mrf.mxu0
        %3887 = vdwg.mxu0
        %v3889 = vsel %vm731, %v526, 0
        %3891 = vmatpush.bf16.xpose.msra.mxu0 0
        %3892 = vmatpush.bf16.xpose.msra.mxu0 0
        %3893 = vmatpush.bf16.xpose.msra.mxu0 0
        %3894 = vmatpush.bf16.xpose.msra.mxu0 0
        %3895 = vmatpush.bf16.xpose.msra.mxu0 0
        %3896 = vmatpush.bf16.xpose.msra.mxu0 0
        %3897 = vmatpush.bf16.xpose.msra.mxu0 0
        %3898 = vmatpush.bf16.xpose.msra.mxu0 %v3889
        %3899 = vmatmul.bf16.gmra.mxu0 %v1218
        %v3900 = vpop.f32.mrf.mxu0
        %v3901 = vadd.f32 0.0, %v3900
        %v3902 = vpop.f32.mrf.mxu0
        %3903 = vdwg.mxu0
        %v3905 = vsel %vm731, %v527, 0
        %3907 = vmatpush.bf16.xpose.msra.mxu0 0
        %3908 = vmatpush.bf16.xpose.msra.mxu0 0
        %3909 = vmatpush.bf16.xpose.msra.mxu0 0
        %3910 = vmatpush.bf16.xpose.msra.mxu0 0
        %3911 = vmatpush.bf16.xpose.msra.mxu0 0
        %3912 = vmatpush.bf16.xpose.msra.mxu0 0
        %3913 = vmatpush.bf16.xpose.msra.mxu0 0
        %3914 = vmatpush.bf16.xpose.msra.mxu0 %v3905
        %3915 = vmatmul.bf16.gmra.mxu0 %v1239
        %v3916 = vpop.f32.mrf.mxu0
        %v3917 = vadd.f32 0.0, %v3916
        %v3918 = vpop.f32.mrf.mxu0
        %3919 = vdwg.mxu0
        %v3921 = vsel %vm731, %v528, 0
        %3923 = vmatpush.bf16.xpose.msra.mxu0 0
        %3924 = vmatpush.bf16.xpose.msra.mxu0 0
        %3925 = vmatpush.bf16.xpose.msra.mxu0 0
        %3926 = vmatpush.bf16.xpose.msra.mxu0 0
        %3927 = vmatpush.bf16.xpose.msra.mxu0 0
        %3928 = vmatpush.bf16.xpose.msra.mxu0 0
        %3929 = vmatpush.bf16.xpose.msra.mxu0 0
        %3930 = vmatpush.bf16.xpose.msra.mxu0 %v3921
        %3931 = vmatmul.bf16.gmra.mxu0 %v1260
        %v3932 = vpop.f32.mrf.mxu0
        %v3933 = vadd.f32 0.0, %v3932
        %v3934 = vpop.f32.mrf.mxu0
        %3935 = vdwg.mxu0
        %v3937 = vsel %vm731, %v529, 0
        %3939 = vmatpush.bf16.xpose.msra.mxu0 0
        %3940 = vmatpush.bf16.xpose.msra.mxu0 0
        %3941 = vmatpush.bf16.xpose.msra.mxu0 0
        %3942 = vmatpush.bf16.xpose.msra.mxu0 0
        %3943 = vmatpush.bf16.xpose.msra.mxu0 0
        %3944 = vmatpush.bf16.xpose.msra.mxu0 0
        %3945 = vmatpush.bf16.xpose.msra.mxu0 0
        %3946 = vmatpush.bf16.xpose.msra.mxu0 %v3937
        %3947 = vmatmul.bf16.gmra.mxu0 %v1281
        %v3948 = vpop.f32.mrf.mxu0
        %v3949 = vadd.f32 0.0, %v3948
        %v3950 = vpop.f32.mrf.mxu0
        %3951 = vdwg.mxu0
        %v3953 = vsel %vm731, %v530, 0
        %3955 = vmatpush.bf16.xpose.msra.mxu0 0
        %3956 = vmatpush.bf16.xpose.msra.mxu0 0
        %3957 = vmatpush.bf16.xpose.msra.mxu0 0
        %3958 = vmatpush.bf16.xpose.msra.mxu0 0
        %3959 = vmatpush.bf16.xpose.msra.mxu0 0
        %3960 = vmatpush.bf16.xpose.msra.mxu0 0
        %3961 = vmatpush.bf16.xpose.msra.mxu0 0
        %3962 = vmatpush.bf16.xpose.msra.mxu0 %v3953
        %3963 = vmatmul.bf16.gmra.mxu0 %v1302
        %v3964 = vpop.f32.mrf.mxu0
        %v3965 = vadd.f32 0.0, %v3964
        %v3966 = vpop.f32.mrf.mxu0
        %3967 = vdwg.mxu0
        %v3969 = vsel %vm731, %v531, 0
        %3971 = vmatpush.bf16.xpose.msra.mxu0 0
        %3972 = vmatpush.bf16.xpose.msra.mxu0 0
        %3973 = vmatpush.bf16.xpose.msra.mxu0 0
        %3974 = vmatpush.bf16.xpose.msra.mxu0 0
        %3975 = vmatpush.bf16.xpose.msra.mxu0 0
        %3976 = vmatpush.bf16.xpose.msra.mxu0 0
        %3977 = vmatpush.bf16.xpose.msra.mxu0 0
        %3978 = vmatpush.bf16.xpose.msra.mxu0 %v3969
        %3979 = vmatmul.bf16.gmra.mxu0 %v1323
        %v3980 = vpop.f32.mrf.mxu0
        %v3981 = vadd.f32 0.0, %v3980
        %v3982 = vpop.f32.mrf.mxu0
        %3983 = vdwg.mxu0
        %v3985 = vsel %vm731, %v532, 0
        %3987 = vmatpush.bf16.xpose.msra.mxu0 0
        %3988 = vmatpush.bf16.xpose.msra.mxu0 0
        %3989 = vmatpush.bf16.xpose.msra.mxu0 0
        %3990 = vmatpush.bf16.xpose.msra.mxu0 0
        %3991 = vmatpush.bf16.xpose.msra.mxu0 0
        %3992 = vmatpush.bf16.xpose.msra.mxu0 0
        %3993 = vmatpush.bf16.xpose.msra.mxu0 0
        %3994 = vmatpush.bf16.xpose.msra.mxu0 %v3985
        %3995 = vmatmul.bf16.gmra.mxu0 %v1344
        %v3996 = vpop.f32.mrf.mxu0
        %v3997 = vadd.f32 0.0, %v3996
        %v3998 = vpop.f32.mrf.mxu0
        %3999 = vdwg.mxu0
        %v4001 = vsel %vm731, %v533, 0
        %4003 = vmatpush.bf16.xpose.msra.mxu0 0
        %4004 = vmatpush.bf16.xpose.msra.mxu0 0
        %4005 = vmatpush.bf16.xpose.msra.mxu0 0
        %4006 = vmatpush.bf16.xpose.msra.mxu0 0
        %4007 = vmatpush.bf16.xpose.msra.mxu0 0
        %4008 = vmatpush.bf16.xpose.msra.mxu0 0
        %4009 = vmatpush.bf16.xpose.msra.mxu0 0
        %4010 = vmatpush.bf16.xpose.msra.mxu0 %v4001
        %4011 = vmatmul.bf16.gmra.mxu0 %v1365
        %v4012 = vpop.f32.mrf.mxu0
        %v4013 = vadd.f32 0.0, %v4012
        %v4014 = vpop.f32.mrf.mxu0
        %4015 = vdwg.mxu0
        %v4017 = vsel %vm731, %v534, 0
        %4019 = vmatpush.bf16.xpose.msra.mxu0 0
        %4020 = vmatpush.bf16.xpose.msra.mxu0 0
        %4021 = vmatpush.bf16.xpose.msra.mxu0 0
        %4022 = vmatpush.bf16.xpose.msra.mxu0 0
        %4023 = vmatpush.bf16.xpose.msra.mxu0 0
        %4024 = vmatpush.bf16.xpose.msra.mxu0 0
        %4025 = vmatpush.bf16.xpose.msra.mxu0 0
        %4026 = vmatpush.bf16.xpose.msra.mxu0 %v4017
        %4027 = vmatmul.bf16.gmra.mxu0 %v1386
        %v4028 = vpop.f32.mrf.mxu0
        %v4029 = vadd.f32 0.0, %v4028
        %v4030 = vpop.f32.mrf.mxu0
        %4031 = vdwg.mxu0
        %v4033 = vsel %vm731, %v535, 0
        %4035 = vmatpush.bf16.xpose.msra.mxu0 0
        %4036 = vmatpush.bf16.xpose.msra.mxu0 0
        %4037 = vmatpush.bf16.xpose.msra.mxu0 0
        %4038 = vmatpush.bf16.xpose.msra.mxu0 0
        %4039 = vmatpush.bf16.xpose.msra.mxu0 0
        %4040 = vmatpush.bf16.xpose.msra.mxu0 0
        %4041 = vmatpush.bf16.xpose.msra.mxu0 0
        %4042 = vmatpush.bf16.xpose.msra.mxu0 %v4033
        %4043 = vmatmul.bf16.gmra.mxu0 %v1407
        %v4044 = vpop.f32.mrf.mxu0
        %v4045 = vadd.f32 0.0, %v4044
        %v4046 = vpop.f32.mrf.mxu0
        %4047 = vdwg.mxu0
        %v4049 = vsel %vm731, %v536, 0
        %4051 = vmatpush.bf16.xpose.msra.mxu0 0
        %4052 = vmatpush.bf16.xpose.msra.mxu0 0
        %4053 = vmatpush.bf16.xpose.msra.mxu0 0
        %4054 = vmatpush.bf16.xpose.msra.mxu0 0
        %4055 = vmatpush.bf16.xpose.msra.mxu0 0
        %4056 = vmatpush.bf16.xpose.msra.mxu0 0
        %4057 = vmatpush.bf16.xpose.msra.mxu0 0
        %4058 = vmatpush.bf16.xpose.msra.mxu0 %v4049
        %4059 = vmatmul.bf16.gmra.mxu0 %v1428
        %v4060 = vpop.f32.mrf.mxu0
        %v4061 = vadd.f32 0.0, %v4060
        %v4062 = vpop.f32.mrf.mxu0
        %4063 = vdwg.mxu0
        %v4065 = vsel %vm731, %v537, 0
        %4067 = vmatpush.bf16.xpose.msra.mxu0 0
        %4068 = vmatpush.bf16.xpose.msra.mxu0 0
        %4069 = vmatpush.bf16.xpose.msra.mxu0 0
        %4070 = vmatpush.bf16.xpose.msra.mxu0 0
        %4071 = vmatpush.bf16.xpose.msra.mxu0 0
        %4072 = vmatpush.bf16.xpose.msra.mxu0 0
        %4073 = vmatpush.bf16.xpose.msra.mxu0 0
        %4074 = vmatpush.bf16.xpose.msra.mxu0 %v4065
        %4075 = vmatmul.bf16.gmra.mxu0 %v1449
        %v4076 = vpop.f32.mrf.mxu0
        %v4077 = vadd.f32 0.0, %v4076
        %v4078 = vpop.f32.mrf.mxu0
        %4079 = vdwg.mxu0
        %v4081 = vsel %vm731, %v538, 0
        %4083 = vmatpush.bf16.xpose.msra.mxu0 0
        %4084 = vmatpush.bf16.xpose.msra.mxu0 0
        %4085 = vmatpush.bf16.xpose.msra.mxu0 0
        %4086 = vmatpush.bf16.xpose.msra.mxu0 0
        %4087 = vmatpush.bf16.xpose.msra.mxu0 0
        %4088 = vmatpush.bf16.xpose.msra.mxu0 0
        %4089 = vmatpush.bf16.xpose.msra.mxu0 0
        %4090 = vmatpush.bf16.xpose.msra.mxu0 %v4081
        %4091 = vmatmul.bf16.gmra.mxu0 %v1470
        %v4092 = vpop.f32.mrf.mxu0
        %v4093 = vadd.f32 0.0, %v4092
        %v4094 = vpop.f32.mrf.mxu0
        %4095 = vdwg.mxu0
        %v4097 = vsel %vm731, %v539, 0
        %4099 = vmatpush.bf16.xpose.msra.mxu0 0
        %4100 = vmatpush.bf16.xpose.msra.mxu0 0
        %4101 = vmatpush.bf16.xpose.msra.mxu0 0
        %4102 = vmatpush.bf16.xpose.msra.mxu0 0
        %4103 = vmatpush.bf16.xpose.msra.mxu0 0
        %4104 = vmatpush.bf16.xpose.msra.mxu0 0
        %4105 = vmatpush.bf16.xpose.msra.mxu0 0
        %4106 = vmatpush.bf16.xpose.msra.mxu0 %v4097
        %4107 = vmatmul.bf16.gmra.mxu0 %v1491
        %v4108 = vpop.f32.mrf.mxu0
        %v4109 = vadd.f32 0.0, %v4108
        %v4110 = vpop.f32.mrf.mxu0
        %4111 = vdwg.mxu0
        %v4113 = vsel %vm731, %v540, 0
        %4115 = vmatpush.bf16.xpose.msra.mxu0 0
        %4116 = vmatpush.bf16.xpose.msra.mxu0 0
        %4117 = vmatpush.bf16.xpose.msra.mxu0 0
        %4118 = vmatpush.bf16.xpose.msra.mxu0 0
        %4119 = vmatpush.bf16.xpose.msra.mxu0 0
        %4120 = vmatpush.bf16.xpose.msra.mxu0 0
        %4121 = vmatpush.bf16.xpose.msra.mxu0 0
        %4122 = vmatpush.bf16.xpose.msra.mxu0 %v4113
        %4123 = vmatmul.bf16.gmra.mxu0 %v1512
        %v4124 = vpop.f32.mrf.mxu0
        %v4125 = vadd.f32 0.0, %v4124
        %v4126 = vpop.f32.mrf.mxu0
        %4127 = vdwg.mxu0
        %v4129 = vsel %vm731, %v541, 0
        %4131 = vmatpush.bf16.xpose.msra.mxu0 0
        %4132 = vmatpush.bf16.xpose.msra.mxu0 0
        %4133 = vmatpush.bf16.xpose.msra.mxu0 0
        %4134 = vmatpush.bf16.xpose.msra.mxu0 0
        %4135 = vmatpush.bf16.xpose.msra.mxu0 0
        %4136 = vmatpush.bf16.xpose.msra.mxu0 0
        %4137 = vmatpush.bf16.xpose.msra.mxu0 0
        %4138 = vmatpush.bf16.xpose.msra.mxu0 %v4129
        %4139 = vmatmul.bf16.gmra.mxu0 %v1533
        %v4140 = vpop.f32.mrf.mxu0
        %v4141 = vadd.f32 0.0, %v4140
        %v4142 = vpop.f32.mrf.mxu0
        %4143 = vdwg.mxu0
        %v4145 = vsel %vm731, %v542, 0
        %4147 = vmatpush.bf16.xpose.msra.mxu0 0
        %4148 = vmatpush.bf16.xpose.msra.mxu0 0
        %4149 = vmatpush.bf16.xpose.msra.mxu0 0
        %4150 = vmatpush.bf16.xpose.msra.mxu0 0
        %4151 = vmatpush.bf16.xpose.msra.mxu0 0
        %4152 = vmatpush.bf16.xpose.msra.mxu0 0
        %4153 = vmatpush.bf16.xpose.msra.mxu0 0
        %4154 = vmatpush.bf16.xpose.msra.mxu0 %v4145
        %4155 = vmatmul.bf16.gmra.mxu0 %v1554
        %v4156 = vpop.f32.mrf.mxu0
        %v4157 = vadd.f32 0.0, %v4156
        %v4158 = vpop.f32.mrf.mxu0
        %4159 = vdwg.mxu0
        %v4161 = vsel %vm731, %v543, 0
        %4163 = vmatpush.bf16.xpose.msra.mxu0 0
        %4164 = vmatpush.bf16.xpose.msra.mxu0 0
        %4165 = vmatpush.bf16.xpose.msra.mxu0 0
        %4166 = vmatpush.bf16.xpose.msra.mxu0 0
        %4167 = vmatpush.bf16.xpose.msra.mxu0 0
        %4168 = vmatpush.bf16.xpose.msra.mxu0 0
        %4169 = vmatpush.bf16.xpose.msra.mxu0 0
        %4170 = vmatpush.bf16.xpose.msra.mxu0 %v4161
        %4171 = vmatmul.bf16.gmra.mxu0 %v1575
        %v4172 = vpop.f32.mrf.mxu0
        %v4173 = vadd.f32 0.0, %v4172
        %v4174 = vpop.f32.mrf.mxu0
        %4175 = vdwg.mxu0
        %v4177 = vsel %vm731, %v544, 0
        %4179 = vmatpush.bf16.xpose.msra.mxu0 0
        %4180 = vmatpush.bf16.xpose.msra.mxu0 0
        %4181 = vmatpush.bf16.xpose.msra.mxu0 0
        %4182 = vmatpush.bf16.xpose.msra.mxu0 0
        %4183 = vmatpush.bf16.xpose.msra.mxu0 0
        %4184 = vmatpush.bf16.xpose.msra.mxu0 0
        %4185 = vmatpush.bf16.xpose.msra.mxu0 0
        %4186 = vmatpush.bf16.xpose.msra.mxu0 %v4177
        %4187 = vmatmul.bf16.gmra.mxu0 %v1596
        %v4188 = vpop.f32.mrf.mxu0
        %v4189 = vadd.f32 0.0, %v4188
        %v4190 = vpop.f32.mrf.mxu0
        %4191 = vdwg.mxu0
        %v4193 = vsel %vm731, %v545, 0
        %4195 = vmatpush.bf16.xpose.msra.mxu0 0
        %4196 = vmatpush.bf16.xpose.msra.mxu0 0
        %4197 = vmatpush.bf16.xpose.msra.mxu0 0
        %4198 = vmatpush.bf16.xpose.msra.mxu0 0
        %4199 = vmatpush.bf16.xpose.msra.mxu0 0
        %4200 = vmatpush.bf16.xpose.msra.mxu0 0
        %4201 = vmatpush.bf16.xpose.msra.mxu0 0
        %4202 = vmatpush.bf16.xpose.msra.mxu0 %v4193
        %4203 = vmatmul.bf16.gmra.mxu0 %v1617
        %v4204 = vpop.f32.mrf.mxu0
        %v4205 = vadd.f32 0.0, %v4204
        %v4206 = vpop.f32.mrf.mxu0
        %4207 = vdwg.mxu0
        %v4209 = vsel %vm731, %v546, 0
        %4211 = vmatpush.bf16.xpose.msra.mxu0 0
        %4212 = vmatpush.bf16.xpose.msra.mxu0 0
        %4213 = vmatpush.bf16.xpose.msra.mxu0 0
        %4214 = vmatpush.bf16.xpose.msra.mxu0 0
        %4215 = vmatpush.bf16.xpose.msra.mxu0 0
        %4216 = vmatpush.bf16.xpose.msra.mxu0 0
        %4217 = vmatpush.bf16.xpose.msra.mxu0 0
        %4218 = vmatpush.bf16.xpose.msra.mxu0 %v4209
        %4219 = vmatmul.bf16.gmra.mxu0 %v1638
        %v4220 = vpop.f32.mrf.mxu0
        %v4221 = vadd.f32 0.0, %v4220
        %v4222 = vpop.f32.mrf.mxu0
        %4223 = vdwg.mxu0
        %v4225 = vsel %vm731, %v547, 0
        %4227 = vmatpush.bf16.xpose.msra.mxu0 0
        %4228 = vmatpush.bf16.xpose.msra.mxu0 0
        %4229 = vmatpush.bf16.xpose.msra.mxu0 0
        %4230 = vmatpush.bf16.xpose.msra.mxu0 0
        %4231 = vmatpush.bf16.xpose.msra.mxu0 0
        %4232 = vmatpush.bf16.xpose.msra.mxu0 0
        %4233 = vmatpush.bf16.xpose.msra.mxu0 0
        %4234 = vmatpush.bf16.xpose.msra.mxu0 %v4225
        %4235 = vmatmul.bf16.gmra.mxu0 %v1659
        %v4236 = vpop.f32.mrf.mxu0
        %v4237 = vadd.f32 0.0, %v4236
        %v4238 = vpop.f32.mrf.mxu0
        %4239 = vdwg.mxu0
        %v4241 = vsel %vm731, %v548, 0
        %4243 = vmatpush.bf16.xpose.msra.mxu0 0
        %4244 = vmatpush.bf16.xpose.msra.mxu0 0
        %4245 = vmatpush.bf16.xpose.msra.mxu0 0
        %4246 = vmatpush.bf16.xpose.msra.mxu0 0
        %4247 = vmatpush.bf16.xpose.msra.mxu0 0
        %4248 = vmatpush.bf16.xpose.msra.mxu0 0
        %4249 = vmatpush.bf16.xpose.msra.mxu0 0
        %4250 = vmatpush.bf16.xpose.msra.mxu0 %v4241
        %4251 = vmatmul.bf16.gmra.mxu0 %v1680
        %v4252 = vpop.f32.mrf.mxu0
        %v4253 = vadd.f32 0.0, %v4252
        %v4254 = vpop.f32.mrf.mxu0
        %4255 = vdwg.mxu0
        %v4257 = vsel %vm731, %v549, 0
        %4259 = vmatpush.bf16.xpose.msra.mxu0 0
        %4260 = vmatpush.bf16.xpose.msra.mxu0 0
        %4261 = vmatpush.bf16.xpose.msra.mxu0 0
        %4262 = vmatpush.bf16.xpose.msra.mxu0 0
        %4263 = vmatpush.bf16.xpose.msra.mxu0 0
        %4264 = vmatpush.bf16.xpose.msra.mxu0 0
        %4265 = vmatpush.bf16.xpose.msra.mxu0 0
        %4266 = vmatpush.bf16.xpose.msra.mxu0 %v4257
        %4267 = vmatmul.bf16.gmra.mxu0 %v1701
        %v4268 = vpop.f32.mrf.mxu0
        %v4269 = vadd.f32 0.0, %v4268
        %v4270 = vpop.f32.mrf.mxu0
        %4271 = vdwg.mxu0
        %v4273 = vsel %vm731, %v550, 0
        %4275 = vmatpush.bf16.xpose.msra.mxu0 0
        %4276 = vmatpush.bf16.xpose.msra.mxu0 0
        %4277 = vmatpush.bf16.xpose.msra.mxu0 0
        %4278 = vmatpush.bf16.xpose.msra.mxu0 0
        %4279 = vmatpush.bf16.xpose.msra.mxu0 0
        %4280 = vmatpush.bf16.xpose.msra.mxu0 0
        %4281 = vmatpush.bf16.xpose.msra.mxu0 0
        %4282 = vmatpush.bf16.xpose.msra.mxu0 %v4273
        %4283 = vmatmul.bf16.gmra.mxu0 %v1722
        %v4284 = vpop.f32.mrf.mxu0
        %v4285 = vadd.f32 0.0, %v4284
        %v4286 = vpop.f32.mrf.mxu0
        %4287 = vdwg.mxu0
        %v4289 = vsel %vm731, %v551, 0
        %4291 = vmatpush.bf16.xpose.msra.mxu0 0
        %4292 = vmatpush.bf16.xpose.msra.mxu0 0
        %4293 = vmatpush.bf16.xpose.msra.mxu0 0
        %4294 = vmatpush.bf16.xpose.msra.mxu0 0
        %4295 = vmatpush.bf16.xpose.msra.mxu0 0
        %4296 = vmatpush.bf16.xpose.msra.mxu0 0
        %4297 = vmatpush.bf16.xpose.msra.mxu0 0
        %4298 = vmatpush.bf16.xpose.msra.mxu0 %v4289
        %4299 = vmatmul.bf16.gmra.mxu0 %v1743
        %v4300 = vpop.f32.mrf.mxu0
        %v4301 = vadd.f32 0.0, %v4300
        %v4302 = vpop.f32.mrf.mxu0
        %4303 = vdwg.mxu0
        %v4305 = vsel %vm731, %v552, 0
        %4307 = vmatpush.bf16.xpose.msra.mxu0 0
        %4308 = vmatpush.bf16.xpose.msra.mxu0 0
        %4309 = vmatpush.bf16.xpose.msra.mxu0 0
        %4310 = vmatpush.bf16.xpose.msra.mxu0 0
        %4311 = vmatpush.bf16.xpose.msra.mxu0 0
        %4312 = vmatpush.bf16.xpose.msra.mxu0 0
        %4313 = vmatpush.bf16.xpose.msra.mxu0 0
        %4314 = vmatpush.bf16.xpose.msra.mxu0 %v4305
        %4315 = vmatmul.bf16.gmra.mxu0 %v1764
        %v4316 = vpop.f32.mrf.mxu0
        %v4317 = vadd.f32 0.0, %v4316
        %v4318 = vpop.f32.mrf.mxu0
        %4319 = vdwg.mxu0
        %v4321 = vsel %vm731, %v553, 0
        %4323 = vmatpush.bf16.xpose.msra.mxu0 0
        %4324 = vmatpush.bf16.xpose.msra.mxu0 0
        %4325 = vmatpush.bf16.xpose.msra.mxu0 0
        %4326 = vmatpush.bf16.xpose.msra.mxu0 0
        %4327 = vmatpush.bf16.xpose.msra.mxu0 0
        %4328 = vmatpush.bf16.xpose.msra.mxu0 0
        %4329 = vmatpush.bf16.xpose.msra.mxu0 0
        %4330 = vmatpush.bf16.xpose.msra.mxu0 %v4321
        %4331 = vmatmul.bf16.gmra.mxu0 %v1785
        %v4332 = vpop.f32.mrf.mxu0
        %v4333 = vadd.f32 0.0, %v4332
        %v4334 = vpop.f32.mrf.mxu0
        %4335 = vdwg.mxu0
        %v4337 = vsel %vm731, %v554, 0
        %4339 = vmatpush.bf16.xpose.msra.mxu0 0
        %4340 = vmatpush.bf16.xpose.msra.mxu0 0
        %4341 = vmatpush.bf16.xpose.msra.mxu0 0
        %4342 = vmatpush.bf16.xpose.msra.mxu0 0
        %4343 = vmatpush.bf16.xpose.msra.mxu0 0
        %4344 = vmatpush.bf16.xpose.msra.mxu0 0
        %4345 = vmatpush.bf16.xpose.msra.mxu0 0
        %4346 = vmatpush.bf16.xpose.msra.mxu0 %v4337
        %4347 = vmatmul.bf16.gmra.mxu0 %v1806
        %v4348 = vpop.f32.mrf.mxu0
        %v4349 = vadd.f32 0.0, %v4348
        %v4350 = vpop.f32.mrf.mxu0
        %4351 = vdwg.mxu0
        %v4353 = vsel %vm731, %v555, 0
        %4355 = vmatpush.bf16.xpose.msra.mxu0 0
        %4356 = vmatpush.bf16.xpose.msra.mxu0 0
        %4357 = vmatpush.bf16.xpose.msra.mxu0 0
        %4358 = vmatpush.bf16.xpose.msra.mxu0 0
        %4359 = vmatpush.bf16.xpose.msra.mxu0 0
        %4360 = vmatpush.bf16.xpose.msra.mxu0 0
        %4361 = vmatpush.bf16.xpose.msra.mxu0 0
        %4362 = vmatpush.bf16.xpose.msra.mxu0 %v4353
        %4363 = vmatmul.bf16.gmra.mxu0 %v1827
        %v4364 = vpop.f32.mrf.mxu0
        %v4365 = vadd.f32 0.0, %v4364
        %v4366 = vpop.f32.mrf.mxu0
        %4367 = vdwg.mxu0
        %v4369 = vsel %vm731, %v556, 0
        %4371 = vmatpush.bf16.xpose.msra.mxu0 0
        %4372 = vmatpush.bf16.xpose.msra.mxu0 0
        %4373 = vmatpush.bf16.xpose.msra.mxu0 0
        %4374 = vmatpush.bf16.xpose.msra.mxu0 0
        %4375 = vmatpush.bf16.xpose.msra.mxu0 0
        %4376 = vmatpush.bf16.xpose.msra.mxu0 0
        %4377 = vmatpush.bf16.xpose.msra.mxu0 0
        %4378 = vmatpush.bf16.xpose.msra.mxu0 %v4369
        %4379 = vmatmul.bf16.gmra.mxu0 %v1848
        %v4380 = vpop.f32.mrf.mxu0
        %v4381 = vadd.f32 0.0, %v4380
        %v4382 = vpop.f32.mrf.mxu0
        %4383 = vdwg.mxu0
        %v4385 = vsel %vm731, %v557, 0
        %4387 = vmatpush.bf16.xpose.msra.mxu0 0
        %4388 = vmatpush.bf16.xpose.msra.mxu0 0
        %4389 = vmatpush.bf16.xpose.msra.mxu0 0
        %4390 = vmatpush.bf16.xpose.msra.mxu0 0
        %4391 = vmatpush.bf16.xpose.msra.mxu0 0
        %4392 = vmatpush.bf16.xpose.msra.mxu0 0
        %4393 = vmatpush.bf16.xpose.msra.mxu0 0
        %4394 = vmatpush.bf16.xpose.msra.mxu0 %v4385
        %4395 = vmatmul.bf16.gmra.mxu0 %v1869
        %v4396 = vpop.f32.mrf.mxu0
        %v4397 = vadd.f32 0.0, %v4396
        %v4398 = vpop.f32.mrf.mxu0
        %4399 = vdwg.mxu0
        %v4401 = vsel %vm731, %v558, 0
        %4403 = vmatpush.bf16.xpose.msra.mxu0 0
        %4404 = vmatpush.bf16.xpose.msra.mxu0 0
        %4405 = vmatpush.bf16.xpose.msra.mxu0 0
        %4406 = vmatpush.bf16.xpose.msra.mxu0 0
        %4407 = vmatpush.bf16.xpose.msra.mxu0 0
        %4408 = vmatpush.bf16.xpose.msra.mxu0 0
        %4409 = vmatpush.bf16.xpose.msra.mxu0 0
        %4410 = vmatpush.bf16.xpose.msra.mxu0 %v4401
        %4411 = vmatmul.bf16.gmra.mxu0 %v1890
        %v4412 = vpop.f32.mrf.mxu0
        %v4413 = vadd.f32 0.0, %v4412
        %v4414 = vpop.f32.mrf.mxu0
        %4415 = vdwg.mxu0
        %v4417 = vsel %vm731, %v559, 0
        %4419 = vmatpush.bf16.xpose.msra.mxu0 0
        %4420 = vmatpush.bf16.xpose.msra.mxu0 0
        %4421 = vmatpush.bf16.xpose.msra.mxu0 0
        %4422 = vmatpush.bf16.xpose.msra.mxu0 0
        %4423 = vmatpush.bf16.xpose.msra.mxu0 0
        %4424 = vmatpush.bf16.xpose.msra.mxu0 0
        %4425 = vmatpush.bf16.xpose.msra.mxu0 0
        %4426 = vmatpush.bf16.xpose.msra.mxu0 %v4417
        %4427 = vmatmul.bf16.gmra.mxu0 %v1911
        %v4428 = vpop.f32.mrf.mxu0
        %v4429 = vadd.f32 0.0, %v4428
        %v4430 = vpop.f32.mrf.mxu0
        %4431 = vdwg.mxu0
        %v4433 = vsel %vm731, %v560, 0
        %4435 = vmatpush.bf16.xpose.msra.mxu0 0
        %4436 = vmatpush.bf16.xpose.msra.mxu0 0
        %4437 = vmatpush.bf16.xpose.msra.mxu0 0
        %4438 = vmatpush.bf16.xpose.msra.mxu0 0
        %4439 = vmatpush.bf16.xpose.msra.mxu0 0
        %4440 = vmatpush.bf16.xpose.msra.mxu0 0
        %4441 = vmatpush.bf16.xpose.msra.mxu0 0
        %4442 = vmatpush.bf16.xpose.msra.mxu0 %v4433
        %4443 = vmatmul.bf16.gmra.mxu0 %v1932
        %v4444 = vpop.f32.mrf.mxu0
        %v4445 = vadd.f32 0.0, %v4444
        %v4446 = vpop.f32.mrf.mxu0
        %4447 = vdwg.mxu0
        %v4449 = vsel %vm731, %v561, 0
        %4451 = vmatpush.bf16.xpose.msra.mxu0 0
        %4452 = vmatpush.bf16.xpose.msra.mxu0 0
        %4453 = vmatpush.bf16.xpose.msra.mxu0 0
        %4454 = vmatpush.bf16.xpose.msra.mxu0 0
        %4455 = vmatpush.bf16.xpose.msra.mxu0 0
        %4456 = vmatpush.bf16.xpose.msra.mxu0 0
        %4457 = vmatpush.bf16.xpose.msra.mxu0 0
        %4458 = vmatpush.bf16.xpose.msra.mxu0 %v4449
        %4459 = vmatmul.bf16.gmra.mxu0 %v1953
        %v4460 = vpop.f32.mrf.mxu0
        %v4461 = vadd.f32 0.0, %v4460
        %v4462 = vpop.f32.mrf.mxu0
        %4463 = vdwg.mxu0
        %v4465 = vsel %vm731, %v562, 0
        %4467 = vmatpush.bf16.xpose.msra.mxu0 0
        %4468 = vmatpush.bf16.xpose.msra.mxu0 0
        %4469 = vmatpush.bf16.xpose.msra.mxu0 0
        %4470 = vmatpush.bf16.xpose.msra.mxu0 0
        %4471 = vmatpush.bf16.xpose.msra.mxu0 0
        %4472 = vmatpush.bf16.xpose.msra.mxu0 0
        %4473 = vmatpush.bf16.xpose.msra.mxu0 0
        %4474 = vmatpush.bf16.xpose.msra.mxu0 %v4465
        %4475 = vmatmul.bf16.gmra.mxu0 %v1974
        %v4476 = vpop.f32.mrf.mxu0
        %v4477 = vadd.f32 0.0, %v4476
        %v4478 = vpop.f32.mrf.mxu0
        %4479 = vdwg.mxu0
        %v4481 = vsel %vm731, %v563, 0
        %4483 = vmatpush.bf16.xpose.msra.mxu0 0
        %4484 = vmatpush.bf16.xpose.msra.mxu0 0
        %4485 = vmatpush.bf16.xpose.msra.mxu0 0
        %4486 = vmatpush.bf16.xpose.msra.mxu0 0
        %4487 = vmatpush.bf16.xpose.msra.mxu0 0
        %4488 = vmatpush.bf16.xpose.msra.mxu0 0
        %4489 = vmatpush.bf16.xpose.msra.mxu0 0
        %4490 = vmatpush.bf16.xpose.msra.mxu0 %v4481
        %4491 = vmatmul.bf16.gmra.mxu0 %v1995
        %v4492 = vpop.f32.mrf.mxu0
        %v4493 = vadd.f32 0.0, %v4492
        %v4494 = vpop.f32.mrf.mxu0
        %4495 = vdwg.mxu0
        %v4497 = vsel %vm731, %v564, 0
        %4499 = vmatpush.bf16.xpose.msra.mxu0 0
        %4500 = vmatpush.bf16.xpose.msra.mxu0 0
        %4501 = vmatpush.bf16.xpose.msra.mxu0 0
        %4502 = vmatpush.bf16.xpose.msra.mxu0 0
        %4503 = vmatpush.bf16.xpose.msra.mxu0 0
        %4504 = vmatpush.bf16.xpose.msra.mxu0 0
        %4505 = vmatpush.bf16.xpose.msra.mxu0 0
        %4506 = vmatpush.bf16.xpose.msra.mxu0 %v4497
        %4507 = vmatmul.bf16.gmra.mxu0 %v2016
        %v4508 = vpop.f32.mrf.mxu0
        %v4509 = vadd.f32 0.0, %v4508
        %v4510 = vpop.f32.mrf.mxu0
        %4511 = vdwg.mxu0
        %v4513 = vsel %vm731, %v565, 0
        %4515 = vmatpush.bf16.xpose.msra.mxu0 0
        %4516 = vmatpush.bf16.xpose.msra.mxu0 0
        %4517 = vmatpush.bf16.xpose.msra.mxu0 0
        %4518 = vmatpush.bf16.xpose.msra.mxu0 0
        %4519 = vmatpush.bf16.xpose.msra.mxu0 0
        %4520 = vmatpush.bf16.xpose.msra.mxu0 0
        %4521 = vmatpush.bf16.xpose.msra.mxu0 0
        %4522 = vmatpush.bf16.xpose.msra.mxu0 %v4513
        %4523 = vmatmul.bf16.gmra.mxu0 %v2037
        %v4524 = vpop.f32.mrf.mxu0
        %v4525 = vadd.f32 0.0, %v4524
        %v4526 = vpop.f32.mrf.mxu0
        %4527 = vdwg.mxu0
        %v4529 = vsel %vm731, %v566, 0
        %4531 = vmatpush.bf16.xpose.msra.mxu0 0
        %4532 = vmatpush.bf16.xpose.msra.mxu0 0
        %4533 = vmatpush.bf16.xpose.msra.mxu0 0
        %4534 = vmatpush.bf16.xpose.msra.mxu0 0
        %4535 = vmatpush.bf16.xpose.msra.mxu0 0
        %4536 = vmatpush.bf16.xpose.msra.mxu0 0
        %4537 = vmatpush.bf16.xpose.msra.mxu0 0
        %4538 = vmatpush.bf16.xpose.msra.mxu0 %v4529
        %4539 = vmatmul.bf16.gmra.mxu0 %v2058
        %v4540 = vpop.f32.mrf.mxu0
        %v4541 = vadd.f32 0.0, %v4540
        %v4542 = vpop.f32.mrf.mxu0
        %4543 = vdwg.mxu0
        %v4545 = vsel %vm731, %v567, 0
        %4547 = vmatpush.bf16.xpose.msra.mxu0 0
        %4548 = vmatpush.bf16.xpose.msra.mxu0 0
        %4549 = vmatpush.bf16.xpose.msra.mxu0 0
        %4550 = vmatpush.bf16.xpose.msra.mxu0 0
        %4551 = vmatpush.bf16.xpose.msra.mxu0 0
        %4552 = vmatpush.bf16.xpose.msra.mxu0 0
        %4553 = vmatpush.bf16.xpose.msra.mxu0 0
        %4554 = vmatpush.bf16.xpose.msra.mxu0 %v4545
        %4555 = vmatmul.bf16.gmra.mxu0 %v2079
        %v4556 = vpop.f32.mrf.mxu0
        %v4557 = vadd.f32 0.0, %v4556
        %v4558 = vpop.f32.mrf.mxu0
        %4559 = vdwg.mxu0
        %v4561 = vsel %vm731, %v568, 0
        %4563 = vmatpush.bf16.xpose.msra.mxu0 0
        %4564 = vmatpush.bf16.xpose.msra.mxu0 0
        %4565 = vmatpush.bf16.xpose.msra.mxu0 0
        %4566 = vmatpush.bf16.xpose.msra.mxu0 0
        %4567 = vmatpush.bf16.xpose.msra.mxu0 0
        %4568 = vmatpush.bf16.xpose.msra.mxu0 0
        %4569 = vmatpush.bf16.xpose.msra.mxu0 0
        %4570 = vmatpush.bf16.xpose.msra.mxu0 %v4561
        %4571 = vmatmul.bf16.gmra.mxu0 %v2100
        %v4572 = vpop.f32.mrf.mxu0
        %v4573 = vadd.f32 0.0, %v4572
        %v4574 = vpop.f32.mrf.mxu0
        %4575 = vdwg.mxu0
        %v4577 = vsel %vm731, %v569, 0
        %4579 = vmatpush.bf16.xpose.msra.mxu0 0
        %4580 = vmatpush.bf16.xpose.msra.mxu0 0
        %4581 = vmatpush.bf16.xpose.msra.mxu0 0
        %4582 = vmatpush.bf16.xpose.msra.mxu0 0
        %4583 = vmatpush.bf16.xpose.msra.mxu0 0
        %4584 = vmatpush.bf16.xpose.msra.mxu0 0
        %4585 = vmatpush.bf16.xpose.msra.mxu0 0
        %4586 = vmatpush.bf16.xpose.msra.mxu0 %v4577
        %4587 = vmatmul.bf16.gmra.mxu0 %v2121
        %v4588 = vpop.f32.mrf.mxu0
        %v4589 = vadd.f32 0.0, %v4588
        %v4590 = vpop.f32.mrf.mxu0
        %4591 = vdwg.mxu0
        %v4593 = vsel %vm731, %v570, 0
        %4595 = vmatpush.bf16.xpose.msra.mxu0 0
        %4596 = vmatpush.bf16.xpose.msra.mxu0 0
        %4597 = vmatpush.bf16.xpose.msra.mxu0 0
        %4598 = vmatpush.bf16.xpose.msra.mxu0 0
        %4599 = vmatpush.bf16.xpose.msra.mxu0 0
        %4600 = vmatpush.bf16.xpose.msra.mxu0 0
        %4601 = vmatpush.bf16.xpose.msra.mxu0 0
        %4602 = vmatpush.bf16.xpose.msra.mxu0 %v4593
        %4603 = vmatmul.bf16.gmra.mxu0 %v2142
        %v4604 = vpop.f32.mrf.mxu0
        %v4605 = vadd.f32 0.0, %v4604
        %v4606 = vpop.f32.mrf.mxu0
        %4607 = vdwg.mxu0
        %v4609 = vsel %vm731, %v571, 0
        %4611 = vmatpush.bf16.xpose.msra.mxu0 0
        %4612 = vmatpush.bf16.xpose.msra.mxu0 0
        %4613 = vmatpush.bf16.xpose.msra.mxu0 0
        %4614 = vmatpush.bf16.xpose.msra.mxu0 0
        %4615 = vmatpush.bf16.xpose.msra.mxu0 0
        %4616 = vmatpush.bf16.xpose.msra.mxu0 0
        %4617 = vmatpush.bf16.xpose.msra.mxu0 0
        %4618 = vmatpush.bf16.xpose.msra.mxu0 %v4609
        %4619 = vmatmul.bf16.gmra.mxu0 %v2163
        %v4620 = vpop.f32.mrf.mxu0
        %v4621 = vadd.f32 0.0, %v4620
        %v4622 = vpop.f32.mrf.mxu0
        %4623 = vdwg.mxu0
        %v4625 = vsel %vm731, %v572, 0
        %4627 = vmatpush.bf16.xpose.msra.mxu0 0
        %4628 = vmatpush.bf16.xpose.msra.mxu0 0
        %4629 = vmatpush.bf16.xpose.msra.mxu0 0
        %4630 = vmatpush.bf16.xpose.msra.mxu0 0
        %4631 = vmatpush.bf16.xpose.msra.mxu0 0
        %4632 = vmatpush.bf16.xpose.msra.mxu0 0
        %4633 = vmatpush.bf16.xpose.msra.mxu0 0
        %4634 = vmatpush.bf16.xpose.msra.mxu0 %v4625
        %4635 = vmatmul.bf16.gmra.mxu0 %v2184
        %v4636 = vpop.f32.mrf.mxu0
        %v4637 = vadd.f32 0.0, %v4636
        %v4638 = vpop.f32.mrf.mxu0
        %4639 = vdwg.mxu0
        %v4641 = vsel %vm731, %v573, 0
        %4643 = vmatpush.bf16.xpose.msra.mxu0 0
        %4644 = vmatpush.bf16.xpose.msra.mxu0 0
        %4645 = vmatpush.bf16.xpose.msra.mxu0 0
        %4646 = vmatpush.bf16.xpose.msra.mxu0 0
        %4647 = vmatpush.bf16.xpose.msra.mxu0 0
        %4648 = vmatpush.bf16.xpose.msra.mxu0 0
        %4649 = vmatpush.bf16.xpose.msra.mxu0 0
        %4650 = vmatpush.bf16.xpose.msra.mxu0 %v4641
        %4651 = vmatmul.bf16.gmra.mxu0 %v2205
        %v4652 = vpop.f32.mrf.mxu0
        %v4653 = vadd.f32 0.0, %v4652
        %v4654 = vpop.f32.mrf.mxu0
        %4655 = vdwg.mxu0
        %v4657 = vsel %vm731, %v574, 0
        %4659 = vmatpush.bf16.xpose.msra.mxu0 0
        %4660 = vmatpush.bf16.xpose.msra.mxu0 0
        %4661 = vmatpush.bf16.xpose.msra.mxu0 0
        %4662 = vmatpush.bf16.xpose.msra.mxu0 0
        %4663 = vmatpush.bf16.xpose.msra.mxu0 0
        %4664 = vmatpush.bf16.xpose.msra.mxu0 0
        %4665 = vmatpush.bf16.xpose.msra.mxu0 0
        %4666 = vmatpush.bf16.xpose.msra.mxu0 %v4657
        %4667 = vmatmul.bf16.gmra.mxu0 %v2226
        %v4668 = vpop.f32.mrf.mxu0
        %v4669 = vadd.f32 0.0, %v4668
        %v4670 = vpop.f32.mrf.mxu0
        %4671 = vdwg.mxu0
        %v4673 = vsel %vm731, %v575, 0
        %4675 = vmatpush.bf16.xpose.msra.mxu0 0
        %4676 = vmatpush.bf16.xpose.msra.mxu0 0
        %4677 = vmatpush.bf16.xpose.msra.mxu0 0
        %4678 = vmatpush.bf16.xpose.msra.mxu0 0
        %4679 = vmatpush.bf16.xpose.msra.mxu0 0
        %4680 = vmatpush.bf16.xpose.msra.mxu0 0
        %4681 = vmatpush.bf16.xpose.msra.mxu0 0
        %4682 = vmatpush.bf16.xpose.msra.mxu0 %v4673
        %4683 = vmatmul.bf16.gmra.mxu0 %v2247
        %v4684 = vpop.f32.mrf.mxu0
        %v4685 = vadd.f32 0.0, %v4684
        %v4686 = vpop.f32.mrf.mxu0
        %4687 = vdwg.mxu0
        %v4689 = vsel %vm731, %v576, 0
        %4691 = vmatpush.bf16.xpose.msra.mxu0 0
        %4692 = vmatpush.bf16.xpose.msra.mxu0 0
        %4693 = vmatpush.bf16.xpose.msra.mxu0 0
        %4694 = vmatpush.bf16.xpose.msra.mxu0 0
        %4695 = vmatpush.bf16.xpose.msra.mxu0 0
        %4696 = vmatpush.bf16.xpose.msra.mxu0 0
        %4697 = vmatpush.bf16.xpose.msra.mxu0 0
        %4698 = vmatpush.bf16.xpose.msra.mxu0 %v4689
        %4699 = vmatmul.bf16.gmra.mxu0 %v2268
        %v4700 = vpop.f32.mrf.mxu0
        %v4701 = vadd.f32 0.0, %v4700
        %v4702 = vpop.f32.mrf.mxu0
        %4703 = vdwg.mxu0
        %v4705 = vsel %vm731, %v577, 0
        %4707 = vmatpush.bf16.xpose.msra.mxu0 0
        %4708 = vmatpush.bf16.xpose.msra.mxu0 0
        %4709 = vmatpush.bf16.xpose.msra.mxu0 0
        %4710 = vmatpush.bf16.xpose.msra.mxu0 0
        %4711 = vmatpush.bf16.xpose.msra.mxu0 0
        %4712 = vmatpush.bf16.xpose.msra.mxu0 0
        %4713 = vmatpush.bf16.xpose.msra.mxu0 0
        %4714 = vmatpush.bf16.xpose.msra.mxu0 %v4705
        %4715 = vmatmul.bf16.gmra.mxu0 %v2289
        %v4716 = vpop.f32.mrf.mxu0
        %v4717 = vadd.f32 0.0, %v4716
        %v4718 = vpop.f32.mrf.mxu0
        %4719 = vdwg.mxu0
        %v4721 = vsel %vm731, %v578, 0
        %4723 = vmatpush.bf16.xpose.msra.mxu0 0
        %4724 = vmatpush.bf16.xpose.msra.mxu0 0
        %4725 = vmatpush.bf16.xpose.msra.mxu0 0
        %4726 = vmatpush.bf16.xpose.msra.mxu0 0
        %4727 = vmatpush.bf16.xpose.msra.mxu0 0
        %4728 = vmatpush.bf16.xpose.msra.mxu0 0
        %4729 = vmatpush.bf16.xpose.msra.mxu0 0
        %4730 = vmatpush.bf16.xpose.msra.mxu0 %v4721
        %4731 = vmatmul.bf16.gmra.mxu0 %v2310
        %v4732 = vpop.f32.mrf.mxu0
        %v4733 = vadd.f32 0.0, %v4732
        %v4734 = vpop.f32.mrf.mxu0
        %4735 = vdwg.mxu0
        %v4737 = vsel %vm731, %v579, 0
        %4739 = vmatpush.bf16.xpose.msra.mxu0 0
        %4740 = vmatpush.bf16.xpose.msra.mxu0 0
        %4741 = vmatpush.bf16.xpose.msra.mxu0 0
        %4742 = vmatpush.bf16.xpose.msra.mxu0 0
        %4743 = vmatpush.bf16.xpose.msra.mxu0 0
        %4744 = vmatpush.bf16.xpose.msra.mxu0 0
        %4745 = vmatpush.bf16.xpose.msra.mxu0 0
        %4746 = vmatpush.bf16.xpose.msra.mxu0 %v4737
        %4747 = vmatmul.bf16.gmra.mxu0 %v2331
        %v4748 = vpop.f32.mrf.mxu0
        %v4749 = vadd.f32 0.0, %v4748
        %v4750 = vpop.f32.mrf.mxu0
        %4751 = vdwg.mxu0
        %v4753 = vsel %vm731, %v580, 0
        %4755 = vmatpush.bf16.xpose.msra.mxu0 0
        %4756 = vmatpush.bf16.xpose.msra.mxu0 0
        %4757 = vmatpush.bf16.xpose.msra.mxu0 0
        %4758 = vmatpush.bf16.xpose.msra.mxu0 0
        %4759 = vmatpush.bf16.xpose.msra.mxu0 0
        %4760 = vmatpush.bf16.xpose.msra.mxu0 0
        %4761 = vmatpush.bf16.xpose.msra.mxu0 0
        %4762 = vmatpush.bf16.xpose.msra.mxu0 %v4753
        %4763 = vmatmul.bf16.gmra.mxu0 %v2352
        %v4764 = vpop.f32.mrf.mxu0
        %v4765 = vadd.f32 0.0, %v4764
        %v4766 = vpop.f32.mrf.mxu0
        %4767 = vdwg.mxu0
        %v4769 = vsel %vm731, %v581, 0
        %4771 = vmatpush.bf16.xpose.msra.mxu0 0
        %4772 = vmatpush.bf16.xpose.msra.mxu0 0
        %4773 = vmatpush.bf16.xpose.msra.mxu0 0
        %4774 = vmatpush.bf16.xpose.msra.mxu0 0
        %4775 = vmatpush.bf16.xpose.msra.mxu0 0
        %4776 = vmatpush.bf16.xpose.msra.mxu0 0
        %4777 = vmatpush.bf16.xpose.msra.mxu0 0
        %4778 = vmatpush.bf16.xpose.msra.mxu0 %v4769
        %4779 = vmatmul.bf16.gmra.mxu0 %v2373
        %v4780 = vpop.f32.mrf.mxu0
        %v4781 = vadd.f32 0.0, %v4780
        %v4782 = vpop.f32.mrf.mxu0
        %4783 = vdwg.mxu0
        %v4785 = vsel %vm731, %v582, 0
        %4787 = vmatpush.bf16.xpose.msra.mxu0 0
        %4788 = vmatpush.bf16.xpose.msra.mxu0 0
        %4789 = vmatpush.bf16.xpose.msra.mxu0 0
        %4790 = vmatpush.bf16.xpose.msra.mxu0 0
        %4791 = vmatpush.bf16.xpose.msra.mxu0 0
        %4792 = vmatpush.bf16.xpose.msra.mxu0 0
        %4793 = vmatpush.bf16.xpose.msra.mxu0 0
        %4794 = vmatpush.bf16.xpose.msra.mxu0 %v4785
        %4795 = vmatmul.bf16.gmra.mxu0 %v2394
        %v4796 = vpop.f32.mrf.mxu0
        %v4797 = vadd.f32 0.0, %v4796
        %v4798 = vpop.f32.mrf.mxu0
        %4799 = vdwg.mxu0
        %v4801 = vsel %vm731, %v583, 0
        %4803 = vmatpush.bf16.xpose.msra.mxu0 0
        %4804 = vmatpush.bf16.xpose.msra.mxu0 0
        %4805 = vmatpush.bf16.xpose.msra.mxu0 0
        %4806 = vmatpush.bf16.xpose.msra.mxu0 0
        %4807 = vmatpush.bf16.xpose.msra.mxu0 0
        %4808 = vmatpush.bf16.xpose.msra.mxu0 0
        %4809 = vmatpush.bf16.xpose.msra.mxu0 0
        %4810 = vmatpush.bf16.xpose.msra.mxu0 %v4801
        %4811 = vmatmul.bf16.gmra.mxu0 %v2415
        %v4812 = vpop.f32.mrf.mxu0
        %v4813 = vadd.f32 0.0, %v4812
        %v4814 = vpop.f32.mrf.mxu0
        %4815 = vdwg.mxu0
        %v4817 = vsel %vm731, %v584, 0
        %4819 = vmatpush.bf16.xpose.msra.mxu0 0
        %4820 = vmatpush.bf16.xpose.msra.mxu0 0
        %4821 = vmatpush.bf16.xpose.msra.mxu0 0
        %4822 = vmatpush.bf16.xpose.msra.mxu0 0
        %4823 = vmatpush.bf16.xpose.msra.mxu0 0
        %4824 = vmatpush.bf16.xpose.msra.mxu0 0
        %4825 = vmatpush.bf16.xpose.msra.mxu0 0
        %4826 = vmatpush.bf16.xpose.msra.mxu0 %v4817
        %4827 = vmatmul.bf16.gmra.mxu0 %v2436
        %v4828 = vpop.f32.mrf.mxu0
        %v4829 = vadd.f32 0.0, %v4828
        %v4830 = vpop.f32.mrf.mxu0
        %4831 = vdwg.mxu0
        %v4833 = vsel %vm731, %v585, 0
        %4835 = vmatpush.bf16.xpose.msra.mxu0 0
        %4836 = vmatpush.bf16.xpose.msra.mxu0 0
        %4837 = vmatpush.bf16.xpose.msra.mxu0 0
        %4838 = vmatpush.bf16.xpose.msra.mxu0 0
        %4839 = vmatpush.bf16.xpose.msra.mxu0 0
        %4840 = vmatpush.bf16.xpose.msra.mxu0 0
        %4841 = vmatpush.bf16.xpose.msra.mxu0 0
        %4842 = vmatpush.bf16.xpose.msra.mxu0 %v4833
        %4843 = vmatmul.bf16.gmra.mxu0 %v2457
        %v4844 = vpop.f32.mrf.mxu0
        %v4845 = vadd.f32 0.0, %v4844
        %v4846 = vpop.f32.mrf.mxu0
        %4847 = vdwg.mxu0
        %v4849 = vsel %vm731, %v586, 0
        %4851 = vmatpush.bf16.xpose.msra.mxu0 0
        %4852 = vmatpush.bf16.xpose.msra.mxu0 0
        %4853 = vmatpush.bf16.xpose.msra.mxu0 0
        %4854 = vmatpush.bf16.xpose.msra.mxu0 0
        %4855 = vmatpush.bf16.xpose.msra.mxu0 0
        %4856 = vmatpush.bf16.xpose.msra.mxu0 0
        %4857 = vmatpush.bf16.xpose.msra.mxu0 0
        %4858 = vmatpush.bf16.xpose.msra.mxu0 %v4849
        %4859 = vmatmul.bf16.gmra.mxu0 %v2478
        %v4860 = vpop.f32.mrf.mxu0
        %v4861 = vadd.f32 0.0, %v4860
        %v4862 = vpop.f32.mrf.mxu0
        %4863 = vdwg.mxu0
        %v4865 = vsel %vm731, %v587, 0
        %4867 = vmatpush.bf16.xpose.msra.mxu0 0
        %4868 = vmatpush.bf16.xpose.msra.mxu0 0
        %4869 = vmatpush.bf16.xpose.msra.mxu0 0
        %4870 = vmatpush.bf16.xpose.msra.mxu0 0
        %4871 = vmatpush.bf16.xpose.msra.mxu0 0
        %4872 = vmatpush.bf16.xpose.msra.mxu0 0
        %4873 = vmatpush.bf16.xpose.msra.mxu0 0
        %4874 = vmatpush.bf16.xpose.msra.mxu0 %v4865
        %4875 = vmatmul.bf16.gmra.mxu0 %v2499
        %v4876 = vpop.f32.mrf.mxu0
        %v4877 = vadd.f32 0.0, %v4876
        %v4878 = vpop.f32.mrf.mxu0
        %4879 = vdwg.mxu0
        %v4881 = vsel %vm731, %v588, 0
        %4883 = vmatpush.bf16.xpose.msra.mxu0 0
        %4884 = vmatpush.bf16.xpose.msra.mxu0 0
        %4885 = vmatpush.bf16.xpose.msra.mxu0 0
        %4886 = vmatpush.bf16.xpose.msra.mxu0 0
        %4887 = vmatpush.bf16.xpose.msra.mxu0 0
        %4888 = vmatpush.bf16.xpose.msra.mxu0 0
        %4889 = vmatpush.bf16.xpose.msra.mxu0 0
        %4890 = vmatpush.bf16.xpose.msra.mxu0 %v4881
        %4891 = vmatmul.bf16.gmra.mxu0 %v2520
        %v4892 = vpop.f32.mrf.mxu0
        %v4893 = vadd.f32 0.0, %v4892
        %v4894 = vpop.f32.mrf.mxu0
        %4895 = vdwg.mxu0
        %v4897 = vsel %vm731, %v589, 0
        %4899 = vmatpush.bf16.xpose.msra.mxu0 0
        %4900 = vmatpush.bf16.xpose.msra.mxu0 0
        %4901 = vmatpush.bf16.xpose.msra.mxu0 0
        %4902 = vmatpush.bf16.xpose.msra.mxu0 0
        %4903 = vmatpush.bf16.xpose.msra.mxu0 0
        %4904 = vmatpush.bf16.xpose.msra.mxu0 0
        %4905 = vmatpush.bf16.xpose.msra.mxu0 0
        %4906 = vmatpush.bf16.xpose.msra.mxu0 %v4897
        %4907 = vmatmul.bf16.gmra.mxu0 %v2541
        %v4908 = vpop.f32.mrf.mxu0
        %v4909 = vadd.f32 0.0, %v4908
        %v4910 = vpop.f32.mrf.mxu0
        %4911 = vdwg.mxu0
        %v4913 = vsel %vm731, %v590, 0
        %4915 = vmatpush.bf16.xpose.msra.mxu0 0
        %4916 = vmatpush.bf16.xpose.msra.mxu0 0
        %4917 = vmatpush.bf16.xpose.msra.mxu0 0
        %4918 = vmatpush.bf16.xpose.msra.mxu0 0
        %4919 = vmatpush.bf16.xpose.msra.mxu0 0
        %4920 = vmatpush.bf16.xpose.msra.mxu0 0
        %4921 = vmatpush.bf16.xpose.msra.mxu0 0
        %4922 = vmatpush.bf16.xpose.msra.mxu0 %v4913
        %4923 = vmatmul.bf16.gmra.mxu0 %v2562
        %v4924 = vpop.f32.mrf.mxu0
        %v4925 = vadd.f32 0.0, %v4924
        %v4926 = vpop.f32.mrf.mxu0
        %4927 = vdwg.mxu0
        %v4929 = vsel %vm731, %v591, 0
        %4931 = vmatpush.bf16.xpose.msra.mxu0 0
        %4932 = vmatpush.bf16.xpose.msra.mxu0 0
        %4933 = vmatpush.bf16.xpose.msra.mxu0 0
        %4934 = vmatpush.bf16.xpose.msra.mxu0 0
        %4935 = vmatpush.bf16.xpose.msra.mxu0 0
        %4936 = vmatpush.bf16.xpose.msra.mxu0 0
        %4937 = vmatpush.bf16.xpose.msra.mxu0 0
        %4938 = vmatpush.bf16.xpose.msra.mxu0 %v4929
        %4939 = vmatmul.bf16.gmra.mxu0 %v2583
        %v4940 = vpop.f32.mrf.mxu0
        %v4941 = vadd.f32 0.0, %v4940
        %v4942 = vpop.f32.mrf.mxu0
        %4943 = vdwg.mxu0
        %v4945 = vsel %vm731, %v592, 0
        %4947 = vmatpush.bf16.xpose.msra.mxu0 0
        %4948 = vmatpush.bf16.xpose.msra.mxu0 0
        %4949 = vmatpush.bf16.xpose.msra.mxu0 0
        %4950 = vmatpush.bf16.xpose.msra.mxu0 0
        %4951 = vmatpush.bf16.xpose.msra.mxu0 0
        %4952 = vmatpush.bf16.xpose.msra.mxu0 0
        %4953 = vmatpush.bf16.xpose.msra.mxu0 0
        %4954 = vmatpush.bf16.xpose.msra.mxu0 %v4945
        %4955 = vmatmul.bf16.gmra.mxu0 %v2604
        %v4956 = vpop.f32.mrf.mxu0
        %v4957 = vadd.f32 0.0, %v4956
        %v4958 = vpop.f32.mrf.mxu0
        %4959 = vdwg.mxu0
        %v4961 = vsel %vm731, %v593, 0
        %4963 = vmatpush.bf16.xpose.msra.mxu0 0
        %4964 = vmatpush.bf16.xpose.msra.mxu0 0
        %4965 = vmatpush.bf16.xpose.msra.mxu0 0
        %4966 = vmatpush.bf16.xpose.msra.mxu0 0
        %4967 = vmatpush.bf16.xpose.msra.mxu0 0
        %4968 = vmatpush.bf16.xpose.msra.mxu0 0
        %4969 = vmatpush.bf16.xpose.msra.mxu0 0
        %4970 = vmatpush.bf16.xpose.msra.mxu0 %v4961
        %4971 = vmatmul.bf16.gmra.mxu0 %v2625
        %v4972 = vpop.f32.mrf.mxu0
        %v4973 = vadd.f32 0.0, %v4972
        %v4974 = vpop.f32.mrf.mxu0
        %4975 = vdwg.mxu0
        %v4977 = vsel %vm731, %v594, 0
        %4979 = vmatpush.bf16.xpose.msra.mxu0 0
        %4980 = vmatpush.bf16.xpose.msra.mxu0 0
        %4981 = vmatpush.bf16.xpose.msra.mxu0 0
        %4982 = vmatpush.bf16.xpose.msra.mxu0 0
        %4983 = vmatpush.bf16.xpose.msra.mxu0 0
        %4984 = vmatpush.bf16.xpose.msra.mxu0 0
        %4985 = vmatpush.bf16.xpose.msra.mxu0 0
        %4986 = vmatpush.bf16.xpose.msra.mxu0 %v4977
        %4987 = vmatmul.bf16.gmra.mxu0 %v2646
        %v4988 = vpop.f32.mrf.mxu0
        %v4989 = vadd.f32 0.0, %v4988
        %v4990 = vpop.f32.mrf.mxu0
        %4991 = vdwg.mxu0
        %v4993 = vsel %vm731, %v595, 0
        %4995 = vmatpush.bf16.xpose.msra.mxu0 0
        %4996 = vmatpush.bf16.xpose.msra.mxu0 0
        %4997 = vmatpush.bf16.xpose.msra.mxu0 0
        %4998 = vmatpush.bf16.xpose.msra.mxu0 0
        %4999 = vmatpush.bf16.xpose.msra.mxu0 0
        %5000 = vmatpush.bf16.xpose.msra.mxu0 0
        %5001 = vmatpush.bf16.xpose.msra.mxu0 0
        %5002 = vmatpush.bf16.xpose.msra.mxu0 %v4993
        %5003 = vmatmul.bf16.gmra.mxu0 %v2667
        %v5004 = vpop.f32.mrf.mxu0
        %v5005 = vadd.f32 0.0, %v5004
        %v5006 = vpop.f32.mrf.mxu0
        %5007 = vdwg.mxu0
        %v5009 = vsel %vm731, %v596, 0
        %5011 = vmatpush.bf16.xpose.msra.mxu0 0
        %5012 = vmatpush.bf16.xpose.msra.mxu0 0
        %5013 = vmatpush.bf16.xpose.msra.mxu0 0
        %5014 = vmatpush.bf16.xpose.msra.mxu0 0
        %5015 = vmatpush.bf16.xpose.msra.mxu0 0
        %5016 = vmatpush.bf16.xpose.msra.mxu0 0
        %5017 = vmatpush.bf16.xpose.msra.mxu0 0
        %5018 = vmatpush.bf16.xpose.msra.mxu0 %v5009
        %5019 = vmatmul.bf16.gmra.mxu0 %v2688
        %v5020 = vpop.f32.mrf.mxu0
        %v5021 = vadd.f32 0.0, %v5020
        %v5022 = vpop.f32.mrf.mxu0
        %5023 = vdwg.mxu0
        %v5025 = vsel %vm731, %v597, 0
        %5027 = vmatpush.bf16.xpose.msra.mxu0 0
        %5028 = vmatpush.bf16.xpose.msra.mxu0 0
        %5029 = vmatpush.bf16.xpose.msra.mxu0 0
        %5030 = vmatpush.bf16.xpose.msra.mxu0 0
        %5031 = vmatpush.bf16.xpose.msra.mxu0 0
        %5032 = vmatpush.bf16.xpose.msra.mxu0 0
        %5033 = vmatpush.bf16.xpose.msra.mxu0 0
        %5034 = vmatpush.bf16.xpose.msra.mxu0 %v5025
        %5035 = vmatmul.bf16.gmra.mxu0 %v2709
        %v5036 = vpop.f32.mrf.mxu0
        %v5037 = vadd.f32 0.0, %v5036
        %v5038 = vpop.f32.mrf.mxu0
        %5039 = vdwg.mxu0
        %v5041 = vsel %vm731, %v598, 0
        %5043 = vmatpush.bf16.xpose.msra.mxu0 0
        %5044 = vmatpush.bf16.xpose.msra.mxu0 0
        %5045 = vmatpush.bf16.xpose.msra.mxu0 0
        %5046 = vmatpush.bf16.xpose.msra.mxu0 0
        %5047 = vmatpush.bf16.xpose.msra.mxu0 0
        %5048 = vmatpush.bf16.xpose.msra.mxu0 0
        %5049 = vmatpush.bf16.xpose.msra.mxu0 0
        %5050 = vmatpush.bf16.xpose.msra.mxu0 %v5041
        %5051 = vmatmul.bf16.gmra.mxu0 %v2730
        %v5052 = vpop.f32.mrf.mxu0
        %v5053 = vadd.f32 0.0, %v5052
        %v5054 = vpop.f32.mrf.mxu0
        %5055 = vdwg.mxu0
        %v5057 = vsel %vm731, %v599, 0
        %5059 = vmatpush.bf16.xpose.msra.mxu0 0
        %5060 = vmatpush.bf16.xpose.msra.mxu0 0
        %5061 = vmatpush.bf16.xpose.msra.mxu0 0
        %5062 = vmatpush.bf16.xpose.msra.mxu0 0
        %5063 = vmatpush.bf16.xpose.msra.mxu0 0
        %5064 = vmatpush.bf16.xpose.msra.mxu0 0
        %5065 = vmatpush.bf16.xpose.msra.mxu0 0
        %5066 = vmatpush.bf16.xpose.msra.mxu0 %v5057
        %5067 = vmatmul.bf16.gmra.mxu0 %v2751
        %v5068 = vpop.f32.mrf.mxu0
        %v5069 = vadd.f32 0.0, %v5068
        %v5070 = vpop.f32.mrf.mxu0
        %5071 = vdwg.mxu0
        %v5073 = vsel %vm731, %v600, 0
        %5075 = vmatpush.bf16.xpose.msra.mxu0 0
        %5076 = vmatpush.bf16.xpose.msra.mxu0 0
        %5077 = vmatpush.bf16.xpose.msra.mxu0 0
        %5078 = vmatpush.bf16.xpose.msra.mxu0 0
        %5079 = vmatpush.bf16.xpose.msra.mxu0 0
        %5080 = vmatpush.bf16.xpose.msra.mxu0 0
        %5081 = vmatpush.bf16.xpose.msra.mxu0 0
        %5082 = vmatpush.bf16.xpose.msra.mxu0 %v5073
        %5083 = vmatmul.bf16.gmra.mxu0 %v2772
        %v5084 = vpop.f32.mrf.mxu0
        %v5085 = vadd.f32 0.0, %v5084
        %v5086 = vpop.f32.mrf.mxu0
        %5087 = vdwg.mxu0
        %v5089 = vsel %vm731, %v601, 0
        %5091 = vmatpush.bf16.xpose.msra.mxu0 0
        %5092 = vmatpush.bf16.xpose.msra.mxu0 0
        %5093 = vmatpush.bf16.xpose.msra.mxu0 0
        %5094 = vmatpush.bf16.xpose.msra.mxu0 0
        %5095 = vmatpush.bf16.xpose.msra.mxu0 0
        %5096 = vmatpush.bf16.xpose.msra.mxu0 0
        %5097 = vmatpush.bf16.xpose.msra.mxu0 0
        %5098 = vmatpush.bf16.xpose.msra.mxu0 %v5089
        %5099 = vmatmul.bf16.gmra.mxu0 %v2793
        %v5100 = vpop.f32.mrf.mxu0
        %v5101 = vadd.f32 0.0, %v5100
        %v5102 = vpop.f32.mrf.mxu0
        %5103 = vdwg.mxu0
        %v5105 = vsel %vm731, %v602, 0
        %5107 = vmatpush.bf16.xpose.msra.mxu0 0
        %5108 = vmatpush.bf16.xpose.msra.mxu0 0
        %5109 = vmatpush.bf16.xpose.msra.mxu0 0
        %5110 = vmatpush.bf16.xpose.msra.mxu0 0
        %5111 = vmatpush.bf16.xpose.msra.mxu0 0
        %5112 = vmatpush.bf16.xpose.msra.mxu0 0
        %5113 = vmatpush.bf16.xpose.msra.mxu0 0
        %5114 = vmatpush.bf16.xpose.msra.mxu0 %v5105
        %5115 = vmatmul.bf16.gmra.mxu0 %v2814
        %v5116 = vpop.f32.mrf.mxu0
        %v5117 = vadd.f32 0.0, %v5116
        %v5118 = vpop.f32.mrf.mxu0
        %5119 = vdwg.mxu0
        %v5121 = vsel %vm731, %v603, 0
        %5123 = vmatpush.bf16.xpose.msra.mxu0 0
        %5124 = vmatpush.bf16.xpose.msra.mxu0 0
        %5125 = vmatpush.bf16.xpose.msra.mxu0 0
        %5126 = vmatpush.bf16.xpose.msra.mxu0 0
        %5127 = vmatpush.bf16.xpose.msra.mxu0 0
        %5128 = vmatpush.bf16.xpose.msra.mxu0 0
        %5129 = vmatpush.bf16.xpose.msra.mxu0 0
        %5130 = vmatpush.bf16.xpose.msra.mxu0 %v5121
        %5131 = vmatmul.bf16.gmra.mxu0 %v2835
        %v5132 = vpop.f32.mrf.mxu0
        %v5133 = vadd.f32 0.0, %v5132
        %v5134 = vpop.f32.mrf.mxu0
        %5135 = vdwg.mxu0
        %v5137 = vsel %vm731, %v604, 0
        %5139 = vmatpush.bf16.xpose.msra.mxu0 0
        %5140 = vmatpush.bf16.xpose.msra.mxu0 0
        %5141 = vmatpush.bf16.xpose.msra.mxu0 0
        %5142 = vmatpush.bf16.xpose.msra.mxu0 0
        %5143 = vmatpush.bf16.xpose.msra.mxu0 0
        %5144 = vmatpush.bf16.xpose.msra.mxu0 0
        %5145 = vmatpush.bf16.xpose.msra.mxu0 0
        %5146 = vmatpush.bf16.xpose.msra.mxu0 %v5137
        %5147 = vmatmul.bf16.gmra.mxu0 %v2856
        %v5148 = vpop.f32.mrf.mxu0
        %v5149 = vadd.f32 0.0, %v5148
        %v5150 = vpop.f32.mrf.mxu0
        %5151 = vdwg.mxu0
        %v5153 = vsel %vm731, %v605, 0
        %5155 = vmatpush.bf16.xpose.msra.mxu0 0
        %5156 = vmatpush.bf16.xpose.msra.mxu0 0
        %5157 = vmatpush.bf16.xpose.msra.mxu0 0
        %5158 = vmatpush.bf16.xpose.msra.mxu0 0
        %5159 = vmatpush.bf16.xpose.msra.mxu0 0
        %5160 = vmatpush.bf16.xpose.msra.mxu0 0
        %5161 = vmatpush.bf16.xpose.msra.mxu0 0
        %5162 = vmatpush.bf16.xpose.msra.mxu0 %v5153
        %5163 = vmatmul.bf16.gmra.mxu0 %v2877
        %v5164 = vpop.f32.mrf.mxu0
        %v5165 = vadd.f32 0.0, %v5164
        %v5166 = vpop.f32.mrf.mxu0
        %5167 = vdwg.mxu0
        %v5169 = vsel %vm731, %v606, 0
        %5171 = vmatpush.bf16.xpose.msra.mxu0 0
        %5172 = vmatpush.bf16.xpose.msra.mxu0 0
        %5173 = vmatpush.bf16.xpose.msra.mxu0 0
        %5174 = vmatpush.bf16.xpose.msra.mxu0 0
        %5175 = vmatpush.bf16.xpose.msra.mxu0 0
        %5176 = vmatpush.bf16.xpose.msra.mxu0 0
        %5177 = vmatpush.bf16.xpose.msra.mxu0 0
        %5178 = vmatpush.bf16.xpose.msra.mxu0 %v5169
        %5179 = vmatmul.bf16.gmra.mxu0 %v2898
        %v5180 = vpop.f32.mrf.mxu0
        %v5181 = vadd.f32 0.0, %v5180
        %v5182 = vpop.f32.mrf.mxu0
        %5183 = vdwg.mxu0
        %v5185 = vsel %vm731, %v607, 0
        %5187 = vmatpush.bf16.xpose.msra.mxu0 0
        %5188 = vmatpush.bf16.xpose.msra.mxu0 0
        %5189 = vmatpush.bf16.xpose.msra.mxu0 0
        %5190 = vmatpush.bf16.xpose.msra.mxu0 0
        %5191 = vmatpush.bf16.xpose.msra.mxu0 0
        %5192 = vmatpush.bf16.xpose.msra.mxu0 0
        %5193 = vmatpush.bf16.xpose.msra.mxu0 0
        %5194 = vmatpush.bf16.xpose.msra.mxu0 %v5185
        %5195 = vmatmul.bf16.gmra.mxu0 %v2919
        %v5196 = vpop.f32.mrf.mxu0
        %v5197 = vadd.f32 0.0, %v5196
        %v5198 = vpop.f32.mrf.mxu0
        %5199 = vdwg.mxu0
        %v5201 = vsel %vm731, %v608, 0
        %5203 = vmatpush.bf16.xpose.msra.mxu0 0
        %5204 = vmatpush.bf16.xpose.msra.mxu0 0
        %5205 = vmatpush.bf16.xpose.msra.mxu0 0
        %5206 = vmatpush.bf16.xpose.msra.mxu0 0
        %5207 = vmatpush.bf16.xpose.msra.mxu0 0
        %5208 = vmatpush.bf16.xpose.msra.mxu0 0
        %5209 = vmatpush.bf16.xpose.msra.mxu0 0
        %5210 = vmatpush.bf16.xpose.msra.mxu0 %v5201
        %5211 = vmatmul.bf16.gmra.mxu0 %v2940
        %v5212 = vpop.f32.mrf.mxu0
        %v5213 = vadd.f32 0.0, %v5212
        %v5214 = vpop.f32.mrf.mxu0
        %5215 = vdwg.mxu0
        %v5217 = vsel %vm731, %v609, 0
        %5219 = vmatpush.bf16.xpose.msra.mxu0 0
        %5220 = vmatpush.bf16.xpose.msra.mxu0 0
        %5221 = vmatpush.bf16.xpose.msra.mxu0 0
        %5222 = vmatpush.bf16.xpose.msra.mxu0 0
        %5223 = vmatpush.bf16.xpose.msra.mxu0 0
        %5224 = vmatpush.bf16.xpose.msra.mxu0 0
        %5225 = vmatpush.bf16.xpose.msra.mxu0 0
        %5226 = vmatpush.bf16.xpose.msra.mxu0 %v5217
        %5227 = vmatmul.bf16.gmra.mxu0 %v2961
        %v5228 = vpop.f32.mrf.mxu0
        %v5229 = vadd.f32 0.0, %v5228
        %v5230 = vpop.f32.mrf.mxu0
        %5231 = vdwg.mxu0
        %v5233 = vsel %vm731, %v610, 0
        %5235 = vmatpush.bf16.xpose.msra.mxu0 0
        %5236 = vmatpush.bf16.xpose.msra.mxu0 0
        %5237 = vmatpush.bf16.xpose.msra.mxu0 0
        %5238 = vmatpush.bf16.xpose.msra.mxu0 0
        %5239 = vmatpush.bf16.xpose.msra.mxu0 0
        %5240 = vmatpush.bf16.xpose.msra.mxu0 0
        %5241 = vmatpush.bf16.xpose.msra.mxu0 0
        %5242 = vmatpush.bf16.xpose.msra.mxu0 %v5233
        %5243 = vmatmul.bf16.gmra.mxu0 %v2982
        %v5244 = vpop.f32.mrf.mxu0
        %v5245 = vadd.f32 0.0, %v5244
        %v5246 = vpop.f32.mrf.mxu0
        %5247 = vdwg.mxu0
        %v5249 = vsel %vm731, %v611, 0
        %5251 = vmatpush.bf16.xpose.msra.mxu0 0
        %5252 = vmatpush.bf16.xpose.msra.mxu0 0
        %5253 = vmatpush.bf16.xpose.msra.mxu0 0
        %5254 = vmatpush.bf16.xpose.msra.mxu0 0
        %5255 = vmatpush.bf16.xpose.msra.mxu0 0
        %5256 = vmatpush.bf16.xpose.msra.mxu0 0
        %5257 = vmatpush.bf16.xpose.msra.mxu0 0
        %5258 = vmatpush.bf16.xpose.msra.mxu0 %v5249
        %5259 = vmatmul.bf16.gmra.mxu0 %v3003
        %v5260 = vpop.f32.mrf.mxu0
        %v5261 = vadd.f32 0.0, %v5260
        %v5262 = vpop.f32.mrf.mxu0
        %5263 = vdwg.mxu0
        %v5265 = vsel %vm731, %v612, 0
        %5267 = vmatpush.bf16.xpose.msra.mxu0 0
        %5268 = vmatpush.bf16.xpose.msra.mxu0 0
        %5269 = vmatpush.bf16.xpose.msra.mxu0 0
        %5270 = vmatpush.bf16.xpose.msra.mxu0 0
        %5271 = vmatpush.bf16.xpose.msra.mxu0 0
        %5272 = vmatpush.bf16.xpose.msra.mxu0 0
        %5273 = vmatpush.bf16.xpose.msra.mxu0 0
        %5274 = vmatpush.bf16.xpose.msra.mxu0 %v5265
        %5275 = vmatmul.bf16.gmra.mxu0 %v3024
        %v5276 = vpop.f32.mrf.mxu0
        %v5277 = vadd.f32 0.0, %v5276
        %v5278 = vpop.f32.mrf.mxu0
        %5279 = vdwg.mxu0
        %v5281 = vsel %vm731, %v613, 0
        %5283 = vmatpush.bf16.xpose.msra.mxu0 0
        %5284 = vmatpush.bf16.xpose.msra.mxu0 0
        %5285 = vmatpush.bf16.xpose.msra.mxu0 0
        %5286 = vmatpush.bf16.xpose.msra.mxu0 0
        %5287 = vmatpush.bf16.xpose.msra.mxu0 0
        %5288 = vmatpush.bf16.xpose.msra.mxu0 0
        %5289 = vmatpush.bf16.xpose.msra.mxu0 0
        %5290 = vmatpush.bf16.xpose.msra.mxu0 %v5281
        %5291 = vmatmul.bf16.gmra.mxu0 %v3045
        %v5292 = vpop.f32.mrf.mxu0
        %v5293 = vadd.f32 0.0, %v5292
        %v5294 = vpop.f32.mrf.mxu0
        %5295 = vdwg.mxu0
        %v5297 = vsel %vm731, %v614, 0
        %5299 = vmatpush.bf16.xpose.msra.mxu0 0
        %5300 = vmatpush.bf16.xpose.msra.mxu0 0
        %5301 = vmatpush.bf16.xpose.msra.mxu0 0
        %5302 = vmatpush.bf16.xpose.msra.mxu0 0
        %5303 = vmatpush.bf16.xpose.msra.mxu0 0
        %5304 = vmatpush.bf16.xpose.msra.mxu0 0
        %5305 = vmatpush.bf16.xpose.msra.mxu0 0
        %5306 = vmatpush.bf16.xpose.msra.mxu0 %v5297
        %5307 = vmatmul.bf16.gmra.mxu0 %v3066
        %v5308 = vpop.f32.mrf.mxu0
        %v5309 = vadd.f32 0.0, %v5308
        %v5310 = vpop.f32.mrf.mxu0
        %5311 = vdwg.mxu0
        %v5313 = vsel %vm731, %v615, 0
        %5315 = vmatpush.bf16.xpose.msra.mxu0 0
        %5316 = vmatpush.bf16.xpose.msra.mxu0 0
        %5317 = vmatpush.bf16.xpose.msra.mxu0 0
        %5318 = vmatpush.bf16.xpose.msra.mxu0 0
        %5319 = vmatpush.bf16.xpose.msra.mxu0 0
        %5320 = vmatpush.bf16.xpose.msra.mxu0 0
        %5321 = vmatpush.bf16.xpose.msra.mxu0 0
        %5322 = vmatpush.bf16.xpose.msra.mxu0 %v5313
        %5323 = vmatmul.bf16.gmra.mxu0 %v3087
        %v5324 = vpop.f32.mrf.mxu0
        %v5325 = vadd.f32 0.0, %v5324
        %v5326 = vpop.f32.mrf.mxu0
        %5327 = vdwg.mxu0
        %v5329 = vsel %vm731, %v616, 0
        %5331 = vmatpush.bf16.xpose.msra.mxu0 0
        %5332 = vmatpush.bf16.xpose.msra.mxu0 0
        %5333 = vmatpush.bf16.xpose.msra.mxu0 0
        %5334 = vmatpush.bf16.xpose.msra.mxu0 0
        %5335 = vmatpush.bf16.xpose.msra.mxu0 0
        %5336 = vmatpush.bf16.xpose.msra.mxu0 0
        %5337 = vmatpush.bf16.xpose.msra.mxu0 0
        %5338 = vmatpush.bf16.xpose.msra.mxu0 %v5329
        %5339 = vmatmul.bf16.gmra.mxu0 %v3108
        %v5340 = vpop.f32.mrf.mxu0
        %v5341 = vadd.f32 0.0, %v5340
        %v5342 = vpop.f32.mrf.mxu0
        %5343 = vdwg.mxu0
        %v5345 = vsel %vm731, %v617, 0
        %5347 = vmatpush.bf16.xpose.msra.mxu0 0
        %5348 = vmatpush.bf16.xpose.msra.mxu0 0
        %5349 = vmatpush.bf16.xpose.msra.mxu0 0
        %5350 = vmatpush.bf16.xpose.msra.mxu0 0
        %5351 = vmatpush.bf16.xpose.msra.mxu0 0
        %5352 = vmatpush.bf16.xpose.msra.mxu0 0
        %5353 = vmatpush.bf16.xpose.msra.mxu0 0
        %5354 = vmatpush.bf16.xpose.msra.mxu0 %v5345
        %5355 = vmatmul.bf16.gmra.mxu0 %v3129
        %v5356 = vpop.f32.mrf.mxu0
        %v5357 = vadd.f32 0.0, %v5356
        %v5358 = vpop.f32.mrf.mxu0
        %5359 = vdwg.mxu0
        %v5361 = vsel %vm731, %v618, 0
        %5363 = vmatpush.bf16.xpose.msra.mxu0 0
        %5364 = vmatpush.bf16.xpose.msra.mxu0 0
        %5365 = vmatpush.bf16.xpose.msra.mxu0 0
        %5366 = vmatpush.bf16.xpose.msra.mxu0 0
        %5367 = vmatpush.bf16.xpose.msra.mxu0 0
        %5368 = vmatpush.bf16.xpose.msra.mxu0 0
        %5369 = vmatpush.bf16.xpose.msra.mxu0 0
        %5370 = vmatpush.bf16.xpose.msra.mxu0 %v5361
        %5371 = vmatmul.bf16.gmra.mxu0 %v3150
        %v5372 = vpop.f32.mrf.mxu0
        %v5373 = vadd.f32 0.0, %v5372
        %v5374 = vpop.f32.mrf.mxu0
        %5375 = vdwg.mxu0
        %v5377 = vsel %vm731, %v619, 0
        %5379 = vmatpush.bf16.xpose.msra.mxu0 0
        %5380 = vmatpush.bf16.xpose.msra.mxu0 0
        %5381 = vmatpush.bf16.xpose.msra.mxu0 0
        %5382 = vmatpush.bf16.xpose.msra.mxu0 0
        %5383 = vmatpush.bf16.xpose.msra.mxu0 0
        %5384 = vmatpush.bf16.xpose.msra.mxu0 0
        %5385 = vmatpush.bf16.xpose.msra.mxu0 0
        %5386 = vmatpush.bf16.xpose.msra.mxu0 %v5377
        %5387 = vmatmul.bf16.gmra.mxu0 %v3171
        %v5388 = vpop.f32.mrf.mxu0
        %v5389 = vadd.f32 0.0, %v5388
        %v5390 = vpop.f32.mrf.mxu0
        %5391 = vdwg.mxu0
        %v5393 = vsel %vm731, %v620, 0
        %5395 = vmatpush.bf16.xpose.msra.mxu0 0
        %5396 = vmatpush.bf16.xpose.msra.mxu0 0
        %5397 = vmatpush.bf16.xpose.msra.mxu0 0
        %5398 = vmatpush.bf16.xpose.msra.mxu0 0
        %5399 = vmatpush.bf16.xpose.msra.mxu0 0
        %5400 = vmatpush.bf16.xpose.msra.mxu0 0
        %5401 = vmatpush.bf16.xpose.msra.mxu0 0
        %5402 = vmatpush.bf16.xpose.msra.mxu0 %v5393
        %5403 = vmatmul.bf16.gmra.mxu0 %v3192
        %v5404 = vpop.f32.mrf.mxu0
        %v5405 = vadd.f32 0.0, %v5404
        %v5406 = vpop.f32.mrf.mxu0
        %5407 = vdwg.mxu0
        %v5409 = vsel %vm731, %v621, 0
        %5411 = vmatpush.bf16.xpose.msra.mxu0 0
        %5412 = vmatpush.bf16.xpose.msra.mxu0 0
        %5413 = vmatpush.bf16.xpose.msra.mxu0 0
        %5414 = vmatpush.bf16.xpose.msra.mxu0 0
        %5415 = vmatpush.bf16.xpose.msra.mxu0 0
        %5416 = vmatpush.bf16.xpose.msra.mxu0 0
        %5417 = vmatpush.bf16.xpose.msra.mxu0 0
        %5418 = vmatpush.bf16.xpose.msra.mxu0 %v5409
        %5419 = vmatmul.bf16.gmra.mxu0 %v3213
        %v5420 = vpop.f32.mrf.mxu0
        %v5421 = vadd.f32 0.0, %v5420
        %v5422 = vpop.f32.mrf.mxu0
        %5423 = vdwg.mxu0
        %v5425 = vsel %vm731, %v622, 0
        %5427 = vmatpush.bf16.xpose.msra.mxu0 0
        %5428 = vmatpush.bf16.xpose.msra.mxu0 0
        %5429 = vmatpush.bf16.xpose.msra.mxu0 0
        %5430 = vmatpush.bf16.xpose.msra.mxu0 0
        %5431 = vmatpush.bf16.xpose.msra.mxu0 0
        %5432 = vmatpush.bf16.xpose.msra.mxu0 0
        %5433 = vmatpush.bf16.xpose.msra.mxu0 0
        %5434 = vmatpush.bf16.xpose.msra.mxu0 %v5425
        %5435 = vmatmul.bf16.gmra.mxu0 %v3234
        %v5436 = vpop.f32.mrf.mxu0
        %v5437 = vadd.f32 0.0, %v5436
        %v5438 = vpop.f32.mrf.mxu0
        %5439 = vdwg.mxu0
        %v5441 = vsel %vm731, %v623, 0
        %5443 = vmatpush.bf16.xpose.msra.mxu0 0
        %5444 = vmatpush.bf16.xpose.msra.mxu0 0
        %5445 = vmatpush.bf16.xpose.msra.mxu0 0
        %5446 = vmatpush.bf16.xpose.msra.mxu0 0
        %5447 = vmatpush.bf16.xpose.msra.mxu0 0
        %5448 = vmatpush.bf16.xpose.msra.mxu0 0
        %5449 = vmatpush.bf16.xpose.msra.mxu0 0
        %5450 = vmatpush.bf16.xpose.msra.mxu0 %v5441
        %5451 = vmatmul.bf16.gmra.mxu0 %v3255
        %v5452 = vpop.f32.mrf.mxu0
        %v5453 = vadd.f32 0.0, %v5452
        %v5454 = vpop.f32.mrf.mxu0
        %5455 = vdwg.mxu0
        %v5457 = vsel %vm731, %v624, 0
        %5459 = vmatpush.bf16.xpose.msra.mxu0 0
        %5460 = vmatpush.bf16.xpose.msra.mxu0 0
        %5461 = vmatpush.bf16.xpose.msra.mxu0 0
        %5462 = vmatpush.bf16.xpose.msra.mxu0 0
        %5463 = vmatpush.bf16.xpose.msra.mxu0 0
        %5464 = vmatpush.bf16.xpose.msra.mxu0 0
        %5465 = vmatpush.bf16.xpose.msra.mxu0 0
        %5466 = vmatpush.bf16.xpose.msra.mxu0 %v5457
        %5467 = vmatmul.bf16.gmra.mxu0 %v3276
        %v5468 = vpop.f32.mrf.mxu0
        %v5469 = vadd.f32 0.0, %v5468
        %v5470 = vpop.f32.mrf.mxu0
        %5471 = vdwg.mxu0
        %v5473 = vsel %vm731, %v625, 0
        %5475 = vmatpush.bf16.xpose.msra.mxu0 0
        %5476 = vmatpush.bf16.xpose.msra.mxu0 0
        %5477 = vmatpush.bf16.xpose.msra.mxu0 0
        %5478 = vmatpush.bf16.xpose.msra.mxu0 0
        %5479 = vmatpush.bf16.xpose.msra.mxu0 0
        %5480 = vmatpush.bf16.xpose.msra.mxu0 0
        %5481 = vmatpush.bf16.xpose.msra.mxu0 0
        %5482 = vmatpush.bf16.xpose.msra.mxu0 %v5473
        %5483 = vmatmul.bf16.gmra.mxu0 %v3297
        %v5484 = vpop.f32.mrf.mxu0
        %v5485 = vadd.f32 0.0, %v5484
        %v5486 = vpop.f32.mrf.mxu0
        %5487 = vdwg.mxu0
        %v5489 = vsel %vm731, %v626, 0
        %5491 = vmatpush.bf16.xpose.msra.mxu0 0
        %5492 = vmatpush.bf16.xpose.msra.mxu0 0
        %5493 = vmatpush.bf16.xpose.msra.mxu0 0
        %5494 = vmatpush.bf16.xpose.msra.mxu0 0
        %5495 = vmatpush.bf16.xpose.msra.mxu0 0
        %5496 = vmatpush.bf16.xpose.msra.mxu0 0
        %5497 = vmatpush.bf16.xpose.msra.mxu0 0
        %5498 = vmatpush.bf16.xpose.msra.mxu0 %v5489
        %5499 = vmatmul.bf16.gmra.mxu0 %v3318
        %v5500 = vpop.f32.mrf.mxu0
        %v5501 = vadd.f32 0.0, %v5500
        %v5502 = vpop.f32.mrf.mxu0
        %5503 = vdwg.mxu0
        %v5505 = vsel %vm731, %v627, 0
        %5507 = vmatpush.bf16.xpose.msra.mxu0 0
        %5508 = vmatpush.bf16.xpose.msra.mxu0 0
        %5509 = vmatpush.bf16.xpose.msra.mxu0 0
        %5510 = vmatpush.bf16.xpose.msra.mxu0 0
        %5511 = vmatpush.bf16.xpose.msra.mxu0 0
        %5512 = vmatpush.bf16.xpose.msra.mxu0 0
        %5513 = vmatpush.bf16.xpose.msra.mxu0 0
        %5514 = vmatpush.bf16.xpose.msra.mxu0 %v5505
        %5515 = vmatmul.bf16.gmra.mxu0 %v3339
        %v5516 = vpop.f32.mrf.mxu0
        %v5517 = vadd.f32 0.0, %v5516
        %v5518 = vpop.f32.mrf.mxu0
        %5519 = vdwg.mxu0
        %v5521 = vsel %vm731, %v628, 0
        %5523 = vmatpush.bf16.xpose.msra.mxu0 0
        %5524 = vmatpush.bf16.xpose.msra.mxu0 0
        %5525 = vmatpush.bf16.xpose.msra.mxu0 0
        %5526 = vmatpush.bf16.xpose.msra.mxu0 0
        %5527 = vmatpush.bf16.xpose.msra.mxu0 0
        %5528 = vmatpush.bf16.xpose.msra.mxu0 0
        %5529 = vmatpush.bf16.xpose.msra.mxu0 0
        %5530 = vmatpush.bf16.xpose.msra.mxu0 %v5521
        %5531 = vmatmul.bf16.gmra.mxu0 %v3360
        %v5532 = vpop.f32.mrf.mxu0
        %v5533 = vadd.f32 0.0, %v5532
        %v5534 = vpop.f32.mrf.mxu0
        %5535 = vdwg.mxu0
        %v5537 = vsel %vm731, %v629, 0
        %5539 = vmatpush.bf16.xpose.msra.mxu0 0
        %5540 = vmatpush.bf16.xpose.msra.mxu0 0
        %5541 = vmatpush.bf16.xpose.msra.mxu0 0
        %5542 = vmatpush.bf16.xpose.msra.mxu0 0
        %5543 = vmatpush.bf16.xpose.msra.mxu0 0
        %5544 = vmatpush.bf16.xpose.msra.mxu0 0
        %5545 = vmatpush.bf16.xpose.msra.mxu0 0
        %5546 = vmatpush.bf16.xpose.msra.mxu0 %v5537
        %5547 = vmatmul.bf16.gmra.mxu0 %v3381
        %v5548 = vpop.f32.mrf.mxu0
        %v5549 = vadd.f32 0.0, %v5548
        %v5550 = vpop.f32.mrf.mxu0
        %5551 = vdwg.mxu0
        %v5553 = vsel %vm731, %v630, 0
        %5555 = vmatpush.bf16.xpose.msra.mxu0 0
        %5556 = vmatpush.bf16.xpose.msra.mxu0 0
        %5557 = vmatpush.bf16.xpose.msra.mxu0 0
        %5558 = vmatpush.bf16.xpose.msra.mxu0 0
        %5559 = vmatpush.bf16.xpose.msra.mxu0 0
        %5560 = vmatpush.bf16.xpose.msra.mxu0 0
        %5561 = vmatpush.bf16.xpose.msra.mxu0 0
        %5562 = vmatpush.bf16.xpose.msra.mxu0 %v5553
        %5563 = vmatmul.bf16.gmra.mxu0 %v3402
        %v5564 = vpop.f32.mrf.mxu0
        %v5565 = vadd.f32 0.0, %v5564
        %v5566 = vpop.f32.mrf.mxu0
        %5567 = vdwg.mxu0
        %v5569 = vsel %vm731, %v631, 0
        %5571 = vmatpush.bf16.xpose.msra.mxu0 0
        %5572 = vmatpush.bf16.xpose.msra.mxu0 0
        %5573 = vmatpush.bf16.xpose.msra.mxu0 0
        %5574 = vmatpush.bf16.xpose.msra.mxu0 0
        %5575 = vmatpush.bf16.xpose.msra.mxu0 0
        %5576 = vmatpush.bf16.xpose.msra.mxu0 0
        %5577 = vmatpush.bf16.xpose.msra.mxu0 0
        %5578 = vmatpush.bf16.xpose.msra.mxu0 %v5569
        %5579 = vmatmul.bf16.gmra.mxu0 %v3423
        %v5580 = vpop.f32.mrf.mxu0
        %v5581 = vadd.f32 0.0, %v5580
        %v5582 = vpop.f32.mrf.mxu0
        %5583 = vdwg.mxu0
        %v5585 = vsel %vm731, %v632, 0
        %5587 = vmatpush.bf16.xpose.msra.mxu0 0
        %5588 = vmatpush.bf16.xpose.msra.mxu0 0
        %5589 = vmatpush.bf16.xpose.msra.mxu0 0
        %5590 = vmatpush.bf16.xpose.msra.mxu0 0
        %5591 = vmatpush.bf16.xpose.msra.mxu0 0
        %5592 = vmatpush.bf16.xpose.msra.mxu0 0
        %5593 = vmatpush.bf16.xpose.msra.mxu0 0
        %5594 = vmatpush.bf16.xpose.msra.mxu0 %v5585
        %5595 = vmatmul.bf16.gmra.mxu0 %v3444
        %v5596 = vpop.f32.mrf.mxu0
        %v5597 = vadd.f32 0.0, %v5596
        %v5598 = vpop.f32.mrf.mxu0
        %5599 = vdwg.mxu0
        %v5601 = vsel %vm731, %v633, 0
        %5603 = vmatpush.bf16.xpose.msra.mxu0 0
        %5604 = vmatpush.bf16.xpose.msra.mxu0 0
        %5605 = vmatpush.bf16.xpose.msra.mxu0 0
        %5606 = vmatpush.bf16.xpose.msra.mxu0 0
        %5607 = vmatpush.bf16.xpose.msra.mxu0 0
        %5608 = vmatpush.bf16.xpose.msra.mxu0 0
        %5609 = vmatpush.bf16.xpose.msra.mxu0 0
        %5610 = vmatpush.bf16.xpose.msra.mxu0 %v5601
        %5611 = vmatmul.bf16.gmra.mxu0 %v3465
        %v5612 = vpop.f32.mrf.mxu0
        %v5613 = vadd.f32 0.0, %v5612
        %v5614 = vpop.f32.mrf.mxu0
        %5615 = vdwg.mxu0
        %v5617 = vsel %vm731, %v634, 0
        %5619 = vmatpush.bf16.xpose.msra.mxu0 0
        %5620 = vmatpush.bf16.xpose.msra.mxu0 0
        %5621 = vmatpush.bf16.xpose.msra.mxu0 0
        %5622 = vmatpush.bf16.xpose.msra.mxu0 0
        %5623 = vmatpush.bf16.xpose.msra.mxu0 0
        %5624 = vmatpush.bf16.xpose.msra.mxu0 0
        %5625 = vmatpush.bf16.xpose.msra.mxu0 0
        %5626 = vmatpush.bf16.xpose.msra.mxu0 %v5617
        %5627 = vmatmul.bf16.gmra.mxu0 %v3486
        %v5628 = vpop.f32.mrf.mxu0
        %v5629 = vadd.f32 0.0, %v5628
        %v5630 = vpop.f32.mrf.mxu0
        %5631 = vdwg.mxu0
        %v5633 = vsel %vm731, %v635, 0
        %5635 = vmatpush.bf16.xpose.msra.mxu0 0
        %5636 = vmatpush.bf16.xpose.msra.mxu0 0
        %5637 = vmatpush.bf16.xpose.msra.mxu0 0
        %5638 = vmatpush.bf16.xpose.msra.mxu0 0
        %5639 = vmatpush.bf16.xpose.msra.mxu0 0
        %5640 = vmatpush.bf16.xpose.msra.mxu0 0
        %5641 = vmatpush.bf16.xpose.msra.mxu0 0
        %5642 = vmatpush.bf16.xpose.msra.mxu0 %v5633
        %5643 = vmatmul.bf16.gmra.mxu0 %v3507
        %v5644 = vpop.f32.mrf.mxu0
        %v5645 = vadd.f32 0.0, %v5644
        %v5646 = vpop.f32.mrf.mxu0
        %5647 = vdwg.mxu0
        %v5649 = vsel %vm731, %v636, 0
        %5651 = vmatpush.bf16.xpose.msra.mxu0 0
        %5652 = vmatpush.bf16.xpose.msra.mxu0 0
        %5653 = vmatpush.bf16.xpose.msra.mxu0 0
        %5654 = vmatpush.bf16.xpose.msra.mxu0 0
        %5655 = vmatpush.bf16.xpose.msra.mxu0 0
        %5656 = vmatpush.bf16.xpose.msra.mxu0 0
        %5657 = vmatpush.bf16.xpose.msra.mxu0 0
        %5658 = vmatpush.bf16.xpose.msra.mxu0 %v5649
        %5659 = vmatmul.bf16.gmra.mxu0 %v3528
        %v5660 = vpop.f32.mrf.mxu0
        %v5661 = vadd.f32 0.0, %v5660
        %v5662 = vpop.f32.mrf.mxu0
        %5663 = vdwg.mxu0
        %v5665 = vsel %vm731, %v637, 0
        %5667 = vmatpush.bf16.xpose.msra.mxu0 0
        %5668 = vmatpush.bf16.xpose.msra.mxu0 0
        %5669 = vmatpush.bf16.xpose.msra.mxu0 0
        %5670 = vmatpush.bf16.xpose.msra.mxu0 0
        %5671 = vmatpush.bf16.xpose.msra.mxu0 0
        %5672 = vmatpush.bf16.xpose.msra.mxu0 0
        %5673 = vmatpush.bf16.xpose.msra.mxu0 0
        %5674 = vmatpush.bf16.xpose.msra.mxu0 %v5665
        %5675 = vmatmul.bf16.gmra.mxu0 %v3549
        %v5676 = vpop.f32.mrf.mxu0
        %v5677 = vadd.f32 0.0, %v5676
        %v5678 = vpop.f32.mrf.mxu0
        %5679 = vdwg.mxu0
        %v5681 = vsel %vm731, %v638, 0
        %5683 = vmatpush.bf16.xpose.msra.mxu0 0
        %5684 = vmatpush.bf16.xpose.msra.mxu0 0
        %5685 = vmatpush.bf16.xpose.msra.mxu0 0
        %5686 = vmatpush.bf16.xpose.msra.mxu0 0
        %5687 = vmatpush.bf16.xpose.msra.mxu0 0
        %5688 = vmatpush.bf16.xpose.msra.mxu0 0
        %5689 = vmatpush.bf16.xpose.msra.mxu0 0
        %5690 = vmatpush.bf16.xpose.msra.mxu0 %v5681
        %5691 = vmatmul.bf16.gmra.mxu0 %v3570
        %v5692 = vpop.f32.mrf.mxu0
        %v5693 = vadd.f32 0.0, %v5692
        %v5694 = vpop.f32.mrf.mxu0
        %5695 = vdwg.mxu0
        %v5697 = vsel %vm731, %v639, 0
        %5699 = vmatpush.bf16.xpose.msra.mxu0 0
        %5700 = vmatpush.bf16.xpose.msra.mxu0 0
        %5701 = vmatpush.bf16.xpose.msra.mxu0 0
        %5702 = vmatpush.bf16.xpose.msra.mxu0 0
        %5703 = vmatpush.bf16.xpose.msra.mxu0 0
        %5704 = vmatpush.bf16.xpose.msra.mxu0 0
        %5705 = vmatpush.bf16.xpose.msra.mxu0 0
        %5706 = vmatpush.bf16.xpose.msra.mxu0 %v5697
        %5707 = vmatmul.bf16.gmra.mxu0 %v3591
        %v5708 = vpop.f32.mrf.mxu0
        %v5709 = vadd.f32 0.0, %v5708
        %v5710 = vpop.f32.mrf.mxu0
        %5711 = vdwg.mxu0
        %v5713 = vsel %vm731, %v640, 0
        %5715 = vmatpush.bf16.xpose.msra.mxu0 0
        %5716 = vmatpush.bf16.xpose.msra.mxu0 0
        %5717 = vmatpush.bf16.xpose.msra.mxu0 0
        %5718 = vmatpush.bf16.xpose.msra.mxu0 0
        %5719 = vmatpush.bf16.xpose.msra.mxu0 0
        %5720 = vmatpush.bf16.xpose.msra.mxu0 0
        %5721 = vmatpush.bf16.xpose.msra.mxu0 0
        %5722 = vmatpush.bf16.xpose.msra.mxu0 %v5713
        %5723 = vmatmul.bf16.gmra.mxu0 %v3612
        %v5724 = vpop.f32.mrf.mxu0
        %v5725 = vadd.f32 0.0, %v5724
        %v5726 = vpop.f32.mrf.mxu0
        %5727 = vdwg.mxu0
        %v5729 = vsel %vm731, %v641, 0
        %5731 = vmatpush.bf16.xpose.msra.mxu0 0
        %5732 = vmatpush.bf16.xpose.msra.mxu0 0
        %5733 = vmatpush.bf16.xpose.msra.mxu0 0
        %5734 = vmatpush.bf16.xpose.msra.mxu0 0
        %5735 = vmatpush.bf16.xpose.msra.mxu0 0
        %5736 = vmatpush.bf16.xpose.msra.mxu0 0
        %5737 = vmatpush.bf16.xpose.msra.mxu0 0
        %5738 = vmatpush.bf16.xpose.msra.mxu0 %v5729
        %5739 = vmatmul.bf16.gmra.mxu0 %v3633
        %v5740 = vpop.f32.mrf.mxu0
        %v5741 = vadd.f32 0.0, %v5740
        %v5742 = vpop.f32.mrf.mxu0
        %5743 = vdwg.mxu0
        %v5745 = vsel %vm731, %v642, 0
        %5747 = vmatpush.bf16.xpose.msra.mxu0 0
        %5748 = vmatpush.bf16.xpose.msra.mxu0 0
        %5749 = vmatpush.bf16.xpose.msra.mxu0 0
        %5750 = vmatpush.bf16.xpose.msra.mxu0 0
        %5751 = vmatpush.bf16.xpose.msra.mxu0 0
        %5752 = vmatpush.bf16.xpose.msra.mxu0 0
        %5753 = vmatpush.bf16.xpose.msra.mxu0 0
        %5754 = vmatpush.bf16.xpose.msra.mxu0 %v5745
        %5755 = vmatmul.bf16.gmra.mxu0 %v3654
        %v5756 = vpop.f32.mrf.mxu0
        %v5757 = vadd.f32 0.0, %v5756
        %v5758 = vpop.f32.mrf.mxu0
        %5759 = vdwg.mxu0
        %v5761 = vsel %vm731, %v643, 0
        %5763 = vmatpush.bf16.xpose.msra.mxu0 0
        %5764 = vmatpush.bf16.xpose.msra.mxu0 0
        %5765 = vmatpush.bf16.xpose.msra.mxu0 0
        %5766 = vmatpush.bf16.xpose.msra.mxu0 0
        %5767 = vmatpush.bf16.xpose.msra.mxu0 0
        %5768 = vmatpush.bf16.xpose.msra.mxu0 0
        %5769 = vmatpush.bf16.xpose.msra.mxu0 0
        %5770 = vmatpush.bf16.xpose.msra.mxu0 %v5761
        %5771 = vmatmul.bf16.gmra.mxu0 %v3675
        %v5772 = vpop.f32.mrf.mxu0
        %v5773 = vadd.f32 0.0, %v5772
        %v5774 = vpop.f32.mrf.mxu0
        %5775 = vdwg.mxu0
        %v5777 = vsel %vm731, %v644, 0
        %5779 = vmatpush.bf16.xpose.msra.mxu0 0
        %5780 = vmatpush.bf16.xpose.msra.mxu0 0
        %5781 = vmatpush.bf16.xpose.msra.mxu0 0
        %5782 = vmatpush.bf16.xpose.msra.mxu0 0
        %5783 = vmatpush.bf16.xpose.msra.mxu0 0
        %5784 = vmatpush.bf16.xpose.msra.mxu0 0
        %5785 = vmatpush.bf16.xpose.msra.mxu0 0
        %5786 = vmatpush.bf16.xpose.msra.mxu0 %v5777
        %5787 = vmatmul.bf16.gmra.mxu0 %v3696
        %v5788 = vpop.f32.mrf.mxu0
        %v5789 = vadd.f32 0.0, %v5788
        %v5790 = vpop.f32.mrf.mxu0
        %5791 = vdwg.mxu0
        %v5793 = vsel %vm731, %v645, 0
        %5795 = vmatpush.bf16.xpose.msra.mxu0 0
        %5796 = vmatpush.bf16.xpose.msra.mxu0 0
        %5797 = vmatpush.bf16.xpose.msra.mxu0 0
        %5798 = vmatpush.bf16.xpose.msra.mxu0 0
        %5799 = vmatpush.bf16.xpose.msra.mxu0 0
        %5800 = vmatpush.bf16.xpose.msra.mxu0 0
        %5801 = vmatpush.bf16.xpose.msra.mxu0 0
        %5802 = vmatpush.bf16.xpose.msra.mxu0 %v5793
        %5803 = vmatmul.bf16.gmra.mxu0 %v3717
        %v5804 = vpop.f32.mrf.mxu0
        %v5805 = vadd.f32 0.0, %v5804
        %v5806 = vpop.f32.mrf.mxu0
        %5807 = vdwg.mxu0
        %v5809 = vsel %vm731, %v646, 0
        %5811 = vmatpush.bf16.xpose.msra.mxu0 0
        %5812 = vmatpush.bf16.xpose.msra.mxu0 0
        %5813 = vmatpush.bf16.xpose.msra.mxu0 0
        %5814 = vmatpush.bf16.xpose.msra.mxu0 0
        %5815 = vmatpush.bf16.xpose.msra.mxu0 0
        %5816 = vmatpush.bf16.xpose.msra.mxu0 0
        %5817 = vmatpush.bf16.xpose.msra.mxu0 0
        %5818 = vmatpush.bf16.xpose.msra.mxu0 %v5809
        %5819 = vmatmul.bf16.gmra.mxu0 %v3738
        %v5820 = vpop.f32.mrf.mxu0
        %v5821 = vadd.f32 0.0, %v5820
        %v5822 = vpop.f32.mrf.mxu0
        %5823 = vdwg.mxu0
        %v5825 = vsel %vm731, %v647, 0
        %5827 = vmatpush.bf16.xpose.msra.mxu0 0
        %5828 = vmatpush.bf16.xpose.msra.mxu0 0
        %5829 = vmatpush.bf16.xpose.msra.mxu0 0
        %5830 = vmatpush.bf16.xpose.msra.mxu0 0
        %5831 = vmatpush.bf16.xpose.msra.mxu0 0
        %5832 = vmatpush.bf16.xpose.msra.mxu0 0
        %5833 = vmatpush.bf16.xpose.msra.mxu0 0
        %5834 = vmatpush.bf16.xpose.msra.mxu0 %v5825
        %5835 = vmatmul.bf16.gmra.mxu0 %v3759
        %v5836 = vpop.f32.mrf.mxu0
        %v5837 = vadd.f32 0.0, %v5836
        %v5838 = vpop.f32.mrf.mxu0
        %5839 = vdwg.mxu0
        %v5841 = vsel %vm731, %v648, 0
        %5843 = vmatpush.bf16.xpose.msra.mxu0 0
        %5844 = vmatpush.bf16.xpose.msra.mxu0 0
        %5845 = vmatpush.bf16.xpose.msra.mxu0 0
        %5846 = vmatpush.bf16.xpose.msra.mxu0 0
        %5847 = vmatpush.bf16.xpose.msra.mxu0 0
        %5848 = vmatpush.bf16.xpose.msra.mxu0 0
        %5849 = vmatpush.bf16.xpose.msra.mxu0 0
        %5850 = vmatpush.bf16.xpose.msra.mxu0 %v5841
        %5851 = vmatmul.bf16.gmra.mxu0 %v3780
        %v5852 = vpop.f32.mrf.mxu0
        %v5853 = vadd.f32 0.0, %v5852
        %v5854 = vpop.f32.mrf.mxu0
        %5855 = vdwg.mxu0
        %v5857 = vsel %vm731, %v649, 0
        %5859 = vmatpush.bf16.xpose.msra.mxu0 0
        %5860 = vmatpush.bf16.xpose.msra.mxu0 0
        %5861 = vmatpush.bf16.xpose.msra.mxu0 0
        %5862 = vmatpush.bf16.xpose.msra.mxu0 0
        %5863 = vmatpush.bf16.xpose.msra.mxu0 0
        %5864 = vmatpush.bf16.xpose.msra.mxu0 0
        %5865 = vmatpush.bf16.xpose.msra.mxu0 0
        %5866 = vmatpush.bf16.xpose.msra.mxu0 %v5857
        %5867 = vmatmul.bf16.gmra.mxu0 %v3801
        %v5868 = vpop.f32.mrf.mxu0
        %v5869 = vadd.f32 0.0, %v5868
        %v5870 = vpop.f32.mrf.mxu0
        %5871 = vdwg.mxu0
        %v5873 = vsel %vm731, %v650, 0
        %5875 = vmatpush.bf16.xpose.msra.mxu0 0
        %5876 = vmatpush.bf16.xpose.msra.mxu0 0
        %5877 = vmatpush.bf16.xpose.msra.mxu0 0
        %5878 = vmatpush.bf16.xpose.msra.mxu0 0
        %5879 = vmatpush.bf16.xpose.msra.mxu0 0
        %5880 = vmatpush.bf16.xpose.msra.mxu0 0
        %5881 = vmatpush.bf16.xpose.msra.mxu0 0
        %5882 = vmatpush.bf16.xpose.msra.mxu0 %v5873
        %5883 = vmatmul.bf16.gmra.mxu0 %v3822
        %v5884 = vpop.f32.mrf.mxu0
        %v5885 = vadd.f32 0.0, %v5884
        %v5886 = vpop.f32.mrf.mxu0
        %5887 = vdwg.mxu0
        %v5888 = vsub.f32 0.0, %v734
        %v5889 = vsub.f32 0.0, %v737
        %v5890 = vsub.f32 0.0, %v740
        %v5891 = vsub.f32 0.0, %v743
        %v5892 = vsub.f32 0.0, %v746
        %v5893 = vsub.f32 0.0, %v749
        %v5894 = vsub.f32 0.0, %v752
        %v5895 = vsub.f32 0.0, %v755
        %v5896 = vsub.f32 0.0, %v758
        %v5897 = vsub.f32 0.0, %v761
        %v5898 = vsub.f32 0.0, %v764
        %v5899 = vsub.f32 0.0, %v767
        %v5900 = vsub.f32 0.0, %v770
        %v5901 = vsub.f32 0.0, %v773
        %v5902 = vsub.f32 0.0, %v776
        %v5903 = vsub.f32 0.0, %v779
        %v5904 = vmax.f32 %v5888, 0.0
        %v5905 = vmax.f32 %v5889, 0.0
        %v5906 = vmax.f32 %v5890, 0.0
        %v5907 = vmax.f32 %v5891, 0.0
        %v5908 = vmax.f32 %v5892, 0.0
        %v5909 = vmax.f32 %v5893, 0.0
        %v5910 = vmax.f32 %v5894, 0.0
        %v5911 = vmax.f32 %v5895, 0.0
        %v5912 = vmax.f32 %v5896, 0.0
        %v5913 = vmax.f32 %v5897, 0.0
        %v5914 = vmax.f32 %v5898, 0.0
        %v5915 = vmax.f32 %v5899, 0.0
        %v5916 = vmax.f32 %v5900, 0.0
        %v5917 = vmax.f32 %v5901, 0.0
        %v5918 = vmax.f32 %v5902, 0.0
        %v5919 = vmax.f32 %v5903, 0.0
        %v5920 = vand.u32 2147483647, %v5888
        %v5921 = vand.u32 2147483647, %v5889
        %v5922 = vand.u32 2147483647, %v5890
        %v5923 = vand.u32 2147483647, %v5891
        %v5924 = vand.u32 2147483647, %v5892
        %v5925 = vand.u32 2147483647, %v5893
        %v5926 = vand.u32 2147483647, %v5894
        %v5927 = vand.u32 2147483647, %v5895
        %v5928 = vand.u32 2147483647, %v5896
        %v5929 = vand.u32 2147483647, %v5897
        %v5930 = vand.u32 2147483647, %v5898
        %v5931 = vand.u32 2147483647, %v5899
        %v5932 = vand.u32 2147483647, %v5900
        %v5933 = vand.u32 2147483647, %v5901
        %v5934 = vand.u32 2147483647, %v5902
        %v5935 = vand.u32 2147483647, %v5903
        %v5936 = vsub.f32 0.0, %v5920
        %v5937 = vsub.f32 0.0, %v5921
        %v5938 = vsub.f32 0.0, %v5922
        %v5939 = vsub.f32 0.0, %v5923
        %v5940 = vsub.f32 0.0, %v5924
        %v5941 = vsub.f32 0.0, %v5925
        %v5942 = vsub.f32 0.0, %v5926
        %v5943 = vsub.f32 0.0, %v5927
        %v5944 = vsub.f32 0.0, %v5928
        %v5945 = vsub.f32 0.0, %v5929
        %v5946 = vsub.f32 0.0, %v5930
        %v5947 = vsub.f32 0.0, %v5931
        %v5948 = vsub.f32 0.0, %v5932
        %v5949 = vsub.f32 0.0, %v5933
        %v5950 = vsub.f32 0.0, %v5934
        %v5951 = vsub.f32 0.0, %v5935
        %v5952 = vmul.f32 %v5936, 1.442695
        %v5953 = vpow.pop %v5952
        %v5954 = vmul.f32 %v5937, 1.442695
        %v5955 = vpow.pop %v5954
        %v5956 = vmul.f32 %v5938, 1.442695
        %v5957 = vpow.pop %v5956
        %v5958 = vmul.f32 %v5939, 1.442695
        %v5959 = vpow.pop %v5958
        %v5960 = vmul.f32 %v5940, 1.442695
        %v5961 = vpow.pop %v5960
        %v5962 = vmul.f32 %v5941, 1.442695
        %v5963 = vpow.pop %v5962
        %v5964 = vmul.f32 %v5942, 1.442695
        %v5965 = vpow.pop %v5964
        %v5966 = vmul.f32 %v5943, 1.442695
        %v5967 = vpow.pop %v5966
        %v5968 = vmul.f32 %v5944, 1.442695
        %v5969 = vpow.pop %v5968
        %v5970 = vmul.f32 %v5945, 1.442695
        %v5971 = vpow.pop %v5970
        %v5972 = vmul.f32 %v5946, 1.442695
        %v5973 = vpow.pop %v5972
        %v5974 = vmul.f32 %v5947, 1.442695
        %v5975 = vpow.pop %v5974
        %v5976 = vmul.f32 %v5948, 1.442695
        %v5977 = vpow.pop %v5976
        %v5978 = vmul.f32 %v5949, 1.442695
        %v5979 = vpow.pop %v5978
        %v5980 = vmul.f32 %v5950, 1.442695
        %v5981 = vpow.pop %v5980
        %v5982 = vmul.f32 %v5951, 1.442695
        %v5983 = vpow.pop %v5982
        %v5984 = vadd.f32 %v5953, 1.0
        %v5985 = vlog2.pop %v5984
        %v5986 = vmul.f32 %v5985, 0.6931472
        %v5987 = vmul.f32 -0.5, %v5953
        %v5988 = vadd.f32 %v5987, 1.0
        %v5989 = vmul.f32 %v5988, %v5953
        %v5990 = vand.u32 2147483647, %v5953
        %vm5991 = vcmp.lt.f32.partialorder %v5990, 0.0004427343
        %v5992 = vsel %vm5991, %v5989, %v5986
        %v5993 = vadd.f32 %v5955, 1.0
        %v5994 = vlog2.pop %v5993
        %v5995 = vmul.f32 %v5994, 0.6931472
        %v5996 = vmul.f32 -0.5, %v5955
        %v5997 = vadd.f32 %v5996, 1.0
        %v5998 = vmul.f32 %v5997, %v5955
        %v5999 = vand.u32 2147483647, %v5955
        %vm6000 = vcmp.lt.f32.partialorder %v5999, 0.0004427343
        %v6001 = vsel %vm6000, %v5998, %v5995
        %v6002 = vadd.f32 %v5957, 1.0
        %v6003 = vlog2.pop %v6002
        %v6004 = vmul.f32 %v6003, 0.6931472
        %v6005 = vmul.f32 -0.5, %v5957
        %v6006 = vadd.f32 %v6005, 1.0
        %v6007 = vmul.f32 %v6006, %v5957
        %v6008 = vand.u32 2147483647, %v5957
        %vm6009 = vcmp.lt.f32.partialorder %v6008, 0.0004427343
        %v6010 = vsel %vm6009, %v6007, %v6004
        %v6011 = vadd.f32 %v5959, 1.0
        %v6012 = vlog2.pop %v6011
        %v6013 = vmul.f32 %v6012, 0.6931472
        %v6014 = vmul.f32 -0.5, %v5959
        %v6015 = vadd.f32 %v6014, 1.0
        %v6016 = vmul.f32 %v6015, %v5959
        %v6017 = vand.u32 2147483647, %v5959
        %vm6018 = vcmp.lt.f32.partialorder %v6017, 0.0004427343
        %v6019 = vsel %vm6018, %v6016, %v6013
        %v6020 = vadd.f32 %v5961, 1.0
        %v6021 = vlog2.pop %v6020
        %v6022 = vmul.f32 %v6021, 0.6931472
        %v6023 = vmul.f32 -0.5, %v5961
        %v6024 = vadd.f32 %v6023, 1.0
        %v6025 = vmul.f32 %v6024, %v5961
        %v6026 = vand.u32 2147483647, %v5961
        %vm6027 = vcmp.lt.f32.partialorder %v6026, 0.0004427343
        %v6028 = vsel %vm6027, %v6025, %v6022
        %v6029 = vadd.f32 %v5963, 1.0
        %v6030 = vlog2.pop %v6029
        %v6031 = vmul.f32 %v6030, 0.6931472
        %v6032 = vmul.f32 -0.5, %v5963
        %v6033 = vadd.f32 %v6032, 1.0
        %v6034 = vmul.f32 %v6033, %v5963
        %v6035 = vand.u32 2147483647, %v5963
        %vm6036 = vcmp.lt.f32.partialorder %v6035, 0.0004427343
        %v6037 = vsel %vm6036, %v6034, %v6031
        %v6038 = vadd.f32 %v5965, 1.0
        %v6039 = vlog2.pop %v6038
        %v6040 = vmul.f32 %v6039, 0.6931472
        %v6041 = vmul.f32 -0.5, %v5965
        %v6042 = vadd.f32 %v6041, 1.0
        %v6043 = vmul.f32 %v6042, %v5965
        %v6044 = vand.u32 2147483647, %v5965
        %vm6045 = vcmp.lt.f32.partialorder %v6044, 0.0004427343
        %v6046 = vsel %vm6045, %v6043, %v6040
        %v6047 = vadd.f32 %v5967, 1.0
        %v6048 = vlog2.pop %v6047
        %v6049 = vmul.f32 %v6048, 0.6931472
        %v6050 = vmul.f32 -0.5, %v5967
        %v6051 = vadd.f32 %v6050, 1.0
        %v6052 = vmul.f32 %v6051, %v5967
        %v6053 = vand.u32 2147483647, %v5967
        %vm6054 = vcmp.lt.f32.partialorder %v6053, 0.0004427343
        %v6055 = vsel %vm6054, %v6052, %v6049
        %v6056 = vadd.f32 %v5969, 1.0
        %v6057 = vlog2.pop %v6056
        %v6058 = vmul.f32 %v6057, 0.6931472
        %v6059 = vmul.f32 -0.5, %v5969
        %v6060 = vadd.f32 %v6059, 1.0
        %v6061 = vmul.f32 %v6060, %v5969
        %v6062 = vand.u32 2147483647, %v5969
        %vm6063 = vcmp.lt.f32.partialorder %v6062, 0.0004427343
        %v6064 = vsel %vm6063, %v6061, %v6058
        %v6065 = vadd.f32 %v5971, 1.0
        %v6066 = vlog2.pop %v6065
        %v6067 = vmul.f32 %v6066, 0.6931472
        %v6068 = vmul.f32 -0.5, %v5971
        %v6069 = vadd.f32 %v6068, 1.0
        %v6070 = vmul.f32 %v6069, %v5971
        %v6071 = vand.u32 2147483647, %v5971
        %vm6072 = vcmp.lt.f32.partialorder %v6071, 0.0004427343
        %v6073 = vsel %vm6072, %v6070, %v6067
        %v6074 = vadd.f32 %v5973, 1.0
        %v6075 = vlog2.pop %v6074
        %v6076 = vmul.f32 %v6075, 0.6931472
        %v6077 = vmul.f32 -0.5, %v5973
        %v6078 = vadd.f32 %v6077, 1.0
        %v6079 = vmul.f32 %v6078, %v5973
        %v6080 = vand.u32 2147483647, %v5973
        %vm6081 = vcmp.lt.f32.partialorder %v6080, 0.0004427343
        %v6082 = vsel %vm6081, %v6079, %v6076
        %v6083 = vadd.f32 %v5975, 1.0
        %v6084 = vlog2.pop %v6083
        %v6085 = vmul.f32 %v6084, 0.6931472
        %v6086 = vmul.f32 -0.5, %v5975
        %v6087 = vadd.f32 %v6086, 1.0
        %v6088 = vmul.f32 %v6087, %v5975
        %v6089 = vand.u32 2147483647, %v5975
        %vm6090 = vcmp.lt.f32.partialorder %v6089, 0.0004427343
        %v6091 = vsel %vm6090, %v6088, %v6085
        %v6092 = vadd.f32 %v5977, 1.0
        %v6093 = vlog2.pop %v6092
        %v6094 = vmul.f32 %v6093, 0.6931472
        %v6095 = vmul.f32 -0.5, %v5977
        %v6096 = vadd.f32 %v6095, 1.0
        %v6097 = vmul.f32 %v6096, %v5977
        %v6098 = vand.u32 2147483647, %v5977
        %vm6099 = vcmp.lt.f32.partialorder %v6098, 0.0004427343
        %v6100 = vsel %vm6099, %v6097, %v6094
        %v6101 = vadd.f32 %v5979, 1.0
        %v6102 = vlog2.pop %v6101
        %v6103 = vmul.f32 %v6102, 0.6931472
        %v6104 = vmul.f32 -0.5, %v5979
        %v6105 = vadd.f32 %v6104, 1.0
        %v6106 = vmul.f32 %v6105, %v5979
        %v6107 = vand.u32 2147483647, %v5979
        %vm6108 = vcmp.lt.f32.partialorder %v6107, 0.0004427343
        %v6109 = vsel %vm6108, %v6106, %v6103
        %v6110 = vadd.f32 %v5981, 1.0
        %v6111 = vlog2.pop %v6110
        %v6112 = vmul.f32 %v6111, 0.6931472
        %v6113 = vmul.f32 -0.5, %v5981
        %v6114 = vadd.f32 %v6113, 1.0
        %v6115 = vmul.f32 %v6114, %v5981
        %v6116 = vand.u32 2147483647, %v5981
        %vm6117 = vcmp.lt.f32.partialorder %v6116, 0.0004427343
        %v6118 = vsel %vm6117, %v6115, %v6112
        %v6119 = vadd.f32 %v5983, 1.0
        %v6120 = vlog2.pop %v6119
        %v6121 = vmul.f32 %v6120, 0.6931472
        %v6122 = vmul.f32 -0.5, %v5983
        %v6123 = vadd.f32 %v6122, 1.0
        %v6124 = vmul.f32 %v6123, %v5983
        %v6125 = vand.u32 2147483647, %v5983
        %vm6126 = vcmp.lt.f32.partialorder %v6125, 0.0004427343
        %v6127 = vsel %vm6126, %v6124, %v6121
        %v6128 = vadd.f32 %v5904, %v5992
        %v6129 = vadd.f32 %v5905, %v6001
        %v6130 = vadd.f32 %v5906, %v6010
        %v6131 = vadd.f32 %v5907, %v6019
        %v6132 = vadd.f32 %v5908, %v6028
        %v6133 = vadd.f32 %v5909, %v6037
        %v6134 = vadd.f32 %v5910, %v6046
        %v6135 = vadd.f32 %v5911, %v6055
        %v6136 = vadd.f32 %v5912, %v6064
        %v6137 = vadd.f32 %v5913, %v6073
        %v6138 = vadd.f32 %v5914, %v6082
        %v6139 = vadd.f32 %v5915, %v6091
        %v6140 = vadd.f32 %v5916, %v6100
        %v6141 = vadd.f32 %v5917, %v6109
        %v6142 = vadd.f32 %v5918, %v6118
        %v6143 = vadd.f32 %v5919, %v6127
        %v6160 = vlaneseq
        %v6161 = vand.u32 %v6160, 127
        %v6162 = vperm.slane %v6128, %v6161
        %v6163 = vadd.s32 %v6161, 4294967288
        %v6164 = vperm.slane %v6129, %v6163
        %vm6165 = vcmask 130112
        %v6166 = vsel %vm6165, %v6164, %v6162
        %v6167 = vadd.s32 %v6161, 4294967280
        %v6168 = vperm.slane %v6130, %v6167
        %vm6169 = vcmask 195712
        %v6170 = vsel %vm6169, %v6168, %v6166
        %v6171 = vadd.s32 %v6161, 4294967272
        %v6172 = vperm.slane %v6131, %v6171
        %vm6173 = vcmask 261312
        %v6174 = vsel %vm6173, %v6172, %v6170
        %v6175 = vadd.s32 %v6161, 4294967264
        %v6176 = vperm.slane %v6132, %v6175
        %vm6177 = vcmask 326912
        %v6178 = vsel %vm6177, %v6176, %v6174
        %v6179 = vadd.s32 %v6161, 4294967256
        %v6180 = vperm.slane %v6133, %v6179
        %vm6181 = vcmask 392512
        %v6182 = vsel %vm6181, %v6180, %v6178
        %v6183 = vadd.s32 %v6161, 4294967248
        %v6184 = vperm.slane %v6134, %v6183
        %vm6185 = vcmask 458112
        %v6186 = vsel %vm6185, %v6184, %v6182
        %v6187 = vadd.s32 %v6161, 4294967240
        %v6188 = vperm.slane %v6135, %v6187
        %vm6189 = vcmask 523712
        %v6190 = vsel %vm6189, %v6188, %v6186
        %v6191 = vadd.s32 %v6161, 4294967232
        %v6192 = vperm.slane %v6136, %v6191
        %vm6193 = vcmask 589312
        %v6194 = vsel %vm6193, %v6192, %v6190
        %v6195 = vadd.s32 %v6161, 4294967224
        %v6196 = vperm.slane %v6137, %v6195
        %vm6197 = vcmask 654912
        %v6198 = vsel %vm6197, %v6196, %v6194
        %v6199 = vadd.s32 %v6161, 4294967216
        %v6200 = vperm.slane %v6138, %v6199
        %vm6201 = vcmask 720512
        %v6202 = vsel %vm6201, %v6200, %v6198
        %v6203 = vadd.s32 %v6161, 4294967208
        %v6204 = vperm.slane %v6139, %v6203
        %vm6205 = vcmask 786112
        %v6206 = vsel %vm6205, %v6204, %v6202
        %v6207 = vadd.s32 %v6161, 4294967200
        %v6208 = vperm.slane %v6140, %v6207
        %vm6209 = vcmask 851712
        %v6210 = vsel %vm6209, %v6208, %v6206
        %v6211 = vadd.s32 %v6161, 4294967192
        %v6212 = vperm.slane %v6141, %v6211
        %vm6213 = vcmask 917312
        %v6214 = vsel %vm6213, %v6212, %v6210
        %v6215 = vadd.s32 %v6161, 4294967184
        %v6216 = vperm.slane %v6142, %v6215
        %vm6217 = vcmask 982912
        %v6218 = vsel %vm6217, %v6216, %v6214
        %v6219 = vadd.s32 %v6161, 4294967176
        %v6220 = vperm.slane %v6143, %v6219
        %vm6221 = vcmask 1048512
        %v6222 = vsel %vm6221, %v6220, %v6218
        %6224 = vst [vmem:[%s325] sm:$0x1] %v6222
        %v6225 = vmax.f32 %v1170, 0.0
        %v6226 = vmax.f32 %v1191, 0.0
        %v6227 = vmax.f32 %v1212, 0.0
        %v6228 = vmax.f32 %v1233, 0.0
        %v6229 = vmax.f32 %v1254, 0.0
        %v6230 = vmax.f32 %v1275, 0.0
        %v6231 = vmax.f32 %v1296, 0.0
        %v6232 = vmax.f32 %v1317, 0.0
        %v6233 = vmax.f32 %v1338, 0.0
        %v6234 = vmax.f32 %v1359, 0.0
        %v6235 = vmax.f32 %v1380, 0.0
        %v6236 = vmax.f32 %v1401, 0.0
        %v6237 = vmax.f32 %v1422, 0.0
        %v6238 = vmax.f32 %v1443, 0.0
        %v6239 = vmax.f32 %v1464, 0.0
        %v6240 = vmax.f32 %v1485, 0.0
        %v6241 = vmax.f32 %v1506, 0.0
        %v6242 = vmax.f32 %v1527, 0.0
        %v6243 = vmax.f32 %v1548, 0.0
        %v6244 = vmax.f32 %v1569, 0.0
        %v6245 = vmax.f32 %v1590, 0.0
        %v6246 = vmax.f32 %v1611, 0.0
        %v6247 = vmax.f32 %v1632, 0.0
        %v6248 = vmax.f32 %v1653, 0.0
        %v6249 = vmax.f32 %v1674, 0.0
        %v6250 = vmax.f32 %v1695, 0.0
        %v6251 = vmax.f32 %v1716, 0.0
        %v6252 = vmax.f32 %v1737, 0.0
        %v6253 = vmax.f32 %v1758, 0.0
        %v6254 = vmax.f32 %v1779, 0.0
        %v6255 = vmax.f32 %v1800, 0.0
        %v6256 = vmax.f32 %v1821, 0.0
        %v6257 = vmax.f32 %v1842, 0.0
        %v6258 = vmax.f32 %v1863, 0.0
        %v6259 = vmax.f32 %v1884, 0.0
        %v6260 = vmax.f32 %v1905, 0.0
        %v6261 = vmax.f32 %v1926, 0.0
        %v6262 = vmax.f32 %v1947, 0.0
        %v6263 = vmax.f32 %v1968, 0.0
        %v6264 = vmax.f32 %v1989, 0.0
        %v6265 = vmax.f32 %v2010, 0.0
        %v6266 = vmax.f32 %v2031, 0.0
        %v6267 = vmax.f32 %v2052, 0.0
        %v6268 = vmax.f32 %v2073, 0.0
        %v6269 = vmax.f32 %v2094, 0.0
        %v6270 = vmax.f32 %v2115, 0.0
        %v6271 = vmax.f32 %v2136, 0.0
        %v6272 = vmax.f32 %v2157, 0.0
        %v6273 = vmax.f32 %v2178, 0.0
        %v6274 = vmax.f32 %v2199, 0.0
        %v6275 = vmax.f32 %v2220, 0.0
        %v6276 = vmax.f32 %v2241, 0.0
        %v6277 = vmax.f32 %v2262, 0.0
        %v6278 = vmax.f32 %v2283, 0.0
        %v6279 = vmax.f32 %v2304, 0.0
        %v6280 = vmax.f32 %v2325, 0.0
        %v6281 = vmax.f32 %v2346, 0.0
        %v6282 = vmax.f32 %v2367, 0.0
        %v6283 = vmax.f32 %v2388, 0.0
        %v6284 = vmax.f32 %v2409, 0.0
        %v6285 = vmax.f32 %v2430, 0.0
        %v6286 = vmax.f32 %v2451, 0.0
        %v6287 = vmax.f32 %v2472, 0.0
        %v6288 = vmax.f32 %v2493, 0.0
        %v6289 = vmax.f32 %v2514, 0.0
        %v6290 = vmax.f32 %v2535, 0.0
        %v6291 = vmax.f32 %v2556, 0.0
        %v6292 = vmax.f32 %v2577, 0.0
        %v6293 = vmax.f32 %v2598, 0.0
        %v6294 = vmax.f32 %v2619, 0.0
        %v6295 = vmax.f32 %v2640, 0.0
        %v6296 = vmax.f32 %v2661, 0.0
        %v6297 = vmax.f32 %v2682, 0.0
        %v6298 = vmax.f32 %v2703, 0.0
        %v6299 = vmax.f32 %v2724, 0.0
        %v6300 = vmax.f32 %v2745, 0.0
        %v6301 = vmax.f32 %v2766, 0.0
        %v6302 = vmax.f32 %v2787, 0.0
        %v6303 = vmax.f32 %v2808, 0.0
        %v6304 = vmax.f32 %v2829, 0.0
        %v6305 = vmax.f32 %v2850, 0.0
        %v6306 = vmax.f32 %v2871, 0.0
        %v6307 = vmax.f32 %v2892, 0.0
        %v6308 = vmax.f32 %v2913, 0.0
        %v6309 = vmax.f32 %v2934, 0.0
        %v6310 = vmax.f32 %v2955, 0.0
        %v6311 = vmax.f32 %v2976, 0.0
        %v6312 = vmax.f32 %v2997, 0.0
        %v6313 = vmax.f32 %v3018, 0.0
        %v6314 = vmax.f32 %v3039, 0.0
        %v6315 = vmax.f32 %v3060, 0.0
        %v6316 = vmax.f32 %v3081, 0.0
        %v6317 = vmax.f32 %v3102, 0.0
        %v6318 = vmax.f32 %v3123, 0.0
        %v6319 = vmax.f32 %v3144, 0.0
        %v6320 = vmax.f32 %v3165, 0.0
        %v6321 = vmax.f32 %v3186, 0.0
        %v6322 = vmax.f32 %v3207, 0.0
        %v6323 = vmax.f32 %v3228, 0.0
        %v6324 = vmax.f32 %v3249, 0.0
        %v6325 = vmax.f32 %v3270, 0.0
        %v6326 = vmax.f32 %v3291, 0.0
        %v6327 = vmax.f32 %v3312, 0.0
        %v6328 = vmax.f32 %v3333, 0.0
        %v6329 = vmax.f32 %v3354, 0.0
        %v6330 = vmax.f32 %v3375, 0.0
        %v6331 = vmax.f32 %v3396, 0.0
        %v6332 = vmax.f32 %v3417, 0.0
        %v6333 = vmax.f32 %v3438, 0.0
        %v6334 = vmax.f32 %v3459, 0.0
        %v6335 = vmax.f32 %v3480, 0.0
        %v6336 = vmax.f32 %v3501, 0.0
        %v6337 = vmax.f32 %v3522, 0.0
        %v6338 = vmax.f32 %v3543, 0.0
        %v6339 = vmax.f32 %v3564, 0.0
        %v6340 = vmax.f32 %v3585, 0.0
        %v6341 = vmax.f32 %v3606, 0.0
        %v6342 = vmax.f32 %v3627, 0.0
        %v6343 = vmax.f32 %v3648, 0.0
        %v6344 = vmax.f32 %v3669, 0.0
        %v6345 = vmax.f32 %v3690, 0.0
        %v6346 = vmax.f32 %v3711, 0.0
        %v6347 = vmax.f32 %v3732, 0.0
        %v6348 = vmax.f32 %v3753, 0.0
        %v6349 = vmax.f32 %v3774, 0.0
        %v6350 = vmax.f32 %v3795, 0.0
        %v6351 = vmax.f32 %v3816, 0.0
        %v6352 = vmax.f32 %v3837, 0.0
        %v6353 = vand.u32 2147483647, %v1170
        %v6354 = vand.u32 2147483647, %v1191
        %v6355 = vand.u32 2147483647, %v1212
        %v6356 = vand.u32 2147483647, %v1233
        %v6357 = vand.u32 2147483647, %v1254
        %v6358 = vand.u32 2147483647, %v1275
        %v6359 = vand.u32 2147483647, %v1296
        %v6360 = vand.u32 2147483647, %v1317
        %v6361 = vand.u32 2147483647, %v1338
        %v6362 = vand.u32 2147483647, %v1359
        %v6363 = vand.u32 2147483647, %v1380
        %v6364 = vand.u32 2147483647, %v1401
        %v6365 = vand.u32 2147483647, %v1422
        %v6366 = vand.u32 2147483647, %v1443
        %v6367 = vand.u32 2147483647, %v1464
        %v6368 = vand.u32 2147483647, %v1485
        %v6369 = vand.u32 2147483647, %v1506
        %v6370 = vand.u32 2147483647, %v1527
        %v6371 = vand.u32 2147483647, %v1548
        %v6372 = vand.u32 2147483647, %v1569
        %v6373 = vand.u32 2147483647, %v1590
        %v6374 = vand.u32 2147483647, %v1611
        %v6375 = vand.u32 2147483647, %v1632
        %v6376 = vand.u32 2147483647, %v1653
        %v6377 = vand.u32 2147483647, %v1674
        %v6378 = vand.u32 2147483647, %v1695
        %v6379 = vand.u32 2147483647, %v1716
        %v6380 = vand.u32 2147483647, %v1737
        %v6381 = vand.u32 2147483647, %v1758
        %v6382 = vand.u32 2147483647, %v1779
        %v6383 = vand.u32 2147483647, %v1800
        %v6384 = vand.u32 2147483647, %v1821
        %v6385 = vand.u32 2147483647, %v1842
        %v6386 = vand.u32 2147483647, %v1863
        %v6387 = vand.u32 2147483647, %v1884
        %v6388 = vand.u32 2147483647, %v1905
        %v6389 = vand.u32 2147483647, %v1926
        %v6390 = vand.u32 2147483647, %v1947
        %v6391 = vand.u32 2147483647, %v1968
        %v6392 = vand.u32 2147483647, %v1989
        %v6393 = vand.u32 2147483647, %v2010
        %v6394 = vand.u32 2147483647, %v2031
        %v6395 = vand.u32 2147483647, %v2052
        %v6396 = vand.u32 2147483647, %v2073
        %v6397 = vand.u32 2147483647, %v2094
        %v6398 = vand.u32 2147483647, %v2115
        %v6399 = vand.u32 2147483647, %v2136
        %v6400 = vand.u32 2147483647, %v2157
        %v6401 = vand.u32 2147483647, %v2178
        %v6402 = vand.u32 2147483647, %v2199
        %v6403 = vand.u32 2147483647, %v2220
        %v6404 = vand.u32 2147483647, %v2241
        %v6405 = vand.u32 2147483647, %v2262
        %v6406 = vand.u32 2147483647, %v2283
        %v6407 = vand.u32 2147483647, %v2304
        %v6408 = vand.u32 2147483647, %v2325
        %v6409 = vand.u32 2147483647, %v2346
        %v6410 = vand.u32 2147483647, %v2367
        %v6411 = vand.u32 2147483647, %v2388
        %v6412 = vand.u32 2147483647, %v2409
        %v6413 = vand.u32 2147483647, %v2430
        %v6414 = vand.u32 2147483647, %v2451
        %v6415 = vand.u32 2147483647, %v2472
        %v6416 = vand.u32 2147483647, %v2493
        %v6417 = vand.u32 2147483647, %v2514
        %v6418 = vand.u32 2147483647, %v2535
        %v6419 = vand.u32 2147483647, %v2556
        %v6420 = vand.u32 2147483647, %v2577
        %v6421 = vand.u32 2147483647, %v2598
        %v6422 = vand.u32 2147483647, %v2619
        %v6423 = vand.u32 2147483647, %v2640
        %v6424 = vand.u32 2147483647, %v2661
        %v6425 = vand.u32 2147483647, %v2682
        %v6426 = vand.u32 2147483647, %v2703
        %v6427 = vand.u32 2147483647, %v2724
        %v6428 = vand.u32 2147483647, %v2745
        %v6429 = vand.u32 2147483647, %v2766
        %v6430 = vand.u32 2147483647, %v2787
        %v6431 = vand.u32 2147483647, %v2808
        %v6432 = vand.u32 2147483647, %v2829
        %v6433 = vand.u32 2147483647, %v2850
        %v6434 = vand.u32 2147483647, %v2871
        %v6435 = vand.u32 2147483647, %v2892
        %v6436 = vand.u32 2147483647, %v2913
        %v6437 = vand.u32 2147483647, %v2934
        %v6438 = vand.u32 2147483647, %v2955
        %v6439 = vand.u32 2147483647, %v2976
        %v6440 = vand.u32 2147483647, %v2997
        %v6441 = vand.u32 2147483647, %v3018
        %v6442 = vand.u32 2147483647, %v3039
        %v6443 = vand.u32 2147483647, %v3060
        %v6444 = vand.u32 2147483647, %v3081
        %v6445 = vand.u32 2147483647, %v3102
        %v6446 = vand.u32 2147483647, %v3123
        %v6447 = vand.u32 2147483647, %v3144
        %v6448 = vand.u32 2147483647, %v3165
        %v6449 = vand.u32 2147483647, %v3186
        %v6450 = vand.u32 2147483647, %v3207
        %v6451 = vand.u32 2147483647, %v3228
        %v6452 = vand.u32 2147483647, %v3249
        %v6453 = vand.u32 2147483647, %v3270
        %v6454 = vand.u32 2147483647, %v3291
        %v6455 = vand.u32 2147483647, %v3312
        %v6456 = vand.u32 2147483647, %v3333
        %v6457 = vand.u32 2147483647, %v3354
        %v6458 = vand.u32 2147483647, %v3375
        %v6459 = vand.u32 2147483647, %v3396
        %v6460 = vand.u32 2147483647, %v3417
        %v6461 = vand.u32 2147483647, %v3438
        %v6462 = vand.u32 2147483647, %v3459
        %v6463 = vand.u32 2147483647, %v3480
        %v6464 = vand.u32 2147483647, %v3501
        %v6465 = vand.u32 2147483647, %v3522
        %v6466 = vand.u32 2147483647, %v3543
        %v6467 = vand.u32 2147483647, %v3564
        %v6468 = vand.u32 2147483647, %v3585
        %v6469 = vand.u32 2147483647, %v3606
        %v6470 = vand.u32 2147483647, %v3627
        %v6471 = vand.u32 2147483647, %v3648
        %v6472 = vand.u32 2147483647, %v3669
        %v6473 = vand.u32 2147483647, %v3690
        %v6474 = vand.u32 2147483647, %v3711
        %v6475 = vand.u32 2147483647, %v3732
        %v6476 = vand.u32 2147483647, %v3753
        %v6477 = vand.u32 2147483647, %v3774
        %v6478 = vand.u32 2147483647, %v3795
        %v6479 = vand.u32 2147483647, %v3816
        %v6480 = vand.u32 2147483647, %v3837
        %v6481 = vsub.f32 0.0, %v6353
        %v6482 = vsub.f32 0.0, %v6354
        %v6483 = vsub.f32 0.0, %v6355
        %v6484 = vsub.f32 0.0, %v6356
        %v6485 = vsub.f32 0.0, %v6357
        %v6486 = vsub.f32 0.0, %v6358
        %v6487 = vsub.f32 0.0, %v6359
        %v6488 = vsub.f32 0.0, %v6360
        %v6489 = vsub.f32 0.0, %v6361
        %v6490 = vsub.f32 0.0, %v6362
        %v6491 = vsub.f32 0.0, %v6363
        %v6492 = vsub.f32 0.0, %v6364
        %v6493 = vsub.f32 0.0, %v6365
        %v6494 = vsub.f32 0.0, %v6366
        %v6495 = vsub.f32 0.0, %v6367
        %v6496 = vsub.f32 0.0, %v6368
        %v6497 = vsub.f32 0.0, %v6369
        %v6498 = vsub.f32 0.0, %v6370
        %v6499 = vsub.f32 0.0, %v6371
        %v6500 = vsub.f32 0.0, %v6372
        %v6501 = vsub.f32 0.0, %v6373
        %v6502 = vsub.f32 0.0, %v6374
        %v6503 = vsub.f32 0.0, %v6375
        %v6504 = vsub.f32 0.0, %v6376
        %v6505 = vsub.f32 0.0, %v6377
        %v6506 = vsub.f32 0.0, %v6378
        %v6507 = vsub.f32 0.0, %v6379
        %v6508 = vsub.f32 0.0, %v6380
        %v6509 = vsub.f32 0.0, %v6381
        %v6510 = vsub.f32 0.0, %v6382
        %v6511 = vsub.f32 0.0, %v6383
        %v6512 = vsub.f32 0.0, %v6384
        %v6513 = vsub.f32 0.0, %v6385
        %v6514 = vsub.f32 0.0, %v6386
        %v6515 = vsub.f32 0.0, %v6387
        %v6516 = vsub.f32 0.0, %v6388
        %v6517 = vsub.f32 0.0, %v6389
        %v6518 = vsub.f32 0.0, %v6390
        %v6519 = vsub.f32 0.0, %v6391
        %v6520 = vsub.f32 0.0, %v6392
        %v6521 = vsub.f32 0.0, %v6393
        %v6522 = vsub.f32 0.0, %v6394
        %v6523 = vsub.f32 0.0, %v6395
        %v6524 = vsub.f32 0.0, %v6396
        %v6525 = vsub.f32 0.0, %v6397
        %v6526 = vsub.f32 0.0, %v6398
        %v6527 = vsub.f32 0.0, %v6399
        %v6528 = vsub.f32 0.0, %v6400
        %v6529 = vsub.f32 0.0, %v6401
        %v6530 = vsub.f32 0.0, %v6402
        %v6531 = vsub.f32 0.0, %v6403
        %v6532 = vsub.f32 0.0, %v6404
        %v6533 = vsub.f32 0.0, %v6405
        %v6534 = vsub.f32 0.0, %v6406
        %v6535 = vsub.f32 0.0, %v6407
        %v6536 = vsub.f32 0.0, %v6408
        %v6537 = vsub.f32 0.0, %v6409
        %v6538 = vsub.f32 0.0, %v6410
        %v6539 = vsub.f32 0.0, %v6411
        %v6540 = vsub.f32 0.0, %v6412
        %v6541 = vsub.f32 0.0, %v6413
        %v6542 = vsub.f32 0.0, %v6414
        %v6543 = vsub.f32 0.0, %v6415
        %v6544 = vsub.f32 0.0, %v6416
        %v6545 = vsub.f32 0.0, %v6417
        %v6546 = vsub.f32 0.0, %v6418
        %v6547 = vsub.f32 0.0, %v6419
        %v6548 = vsub.f32 0.0, %v6420
        %v6549 = vsub.f32 0.0, %v6421
        %v6550 = vsub.f32 0.0, %v6422
        %v6551 = vsub.f32 0.0, %v6423
        %v6552 = vsub.f32 0.0, %v6424
        %v6553 = vsub.f32 0.0, %v6425
        %v6554 = vsub.f32 0.0, %v6426
        %v6555 = vsub.f32 0.0, %v6427
        %v6556 = vsub.f32 0.0, %v6428
        %v6557 = vsub.f32 0.0, %v6429
        %v6558 = vsub.f32 0.0, %v6430
        %v6559 = vsub.f32 0.0, %v6431
        %v6560 = vsub.f32 0.0, %v6432
        %v6561 = vsub.f32 0.0, %v6433
        %v6562 = vsub.f32 0.0, %v6434
        %v6563 = vsub.f32 0.0, %v6435
        %v6564 = vsub.f32 0.0, %v6436
        %v6565 = vsub.f32 0.0, %v6437
        %v6566 = vsub.f32 0.0, %v6438
        %v6567 = vsub.f32 0.0, %v6439
        %v6568 = vsub.f32 0.0, %v6440
        %v6569 = vsub.f32 0.0, %v6441
        %v6570 = vsub.f32 0.0, %v6442
        %v6571 = vsub.f32 0.0, %v6443
        %v6572 = vsub.f32 0.0, %v6444
        %v6573 = vsub.f32 0.0, %v6445
        %v6574 = vsub.f32 0.0, %v6446
        %v6575 = vsub.f32 0.0, %v6447
        %v6576 = vsub.f32 0.0, %v6448
        %v6577 = vsub.f32 0.0, %v6449
        %v6578 = vsub.f32 0.0, %v6450
        %v6579 = vsub.f32 0.0, %v6451
        %v6580 = vsub.f32 0.0, %v6452
        %v6581 = vsub.f32 0.0, %v6453
        %v6582 = vsub.f32 0.0, %v6454
        %v6583 = vsub.f32 0.0, %v6455
        %v6584 = vsub.f32 0.0, %v6456
        %v6585 = vsub.f32 0.0, %v6457
        %v6586 = vsub.f32 0.0, %v6458
        %v6587 = vsub.f32 0.0, %v6459
        %v6588 = vsub.f32 0.0, %v6460
        %v6589 = vsub.f32 0.0, %v6461
        %v6590 = vsub.f32 0.0, %v6462
        %v6591 = vsub.f32 0.0, %v6463
        %v6592 = vsub.f32 0.0, %v6464
        %v6593 = vsub.f32 0.0, %v6465
        %v6594 = vsub.f32 0.0, %v6466
        %v6595 = vsub.f32 0.0, %v6467
        %v6596 = vsub.f32 0.0, %v6468
        %v6597 = vsub.f32 0.0, %v6469
        %v6598 = vsub.f32 0.0, %v6470
        %v6599 = vsub.f32 0.0, %v6471
        %v6600 = vsub.f32 0.0, %v6472
        %v6601 = vsub.f32 0.0, %v6473
        %v6602 = vsub.f32 0.0, %v6474
        %v6603 = vsub.f32 0.0, %v6475
        %v6604 = vsub.f32 0.0, %v6476
        %v6605 = vsub.f32 0.0, %v6477
        %v6606 = vsub.f32 0.0, %v6478
        %v6607 = vsub.f32 0.0, %v6479
        %v6608 = vsub.f32 0.0, %v6480
        %v6609 = vmul.f32 %v6481, 1.442695
        %v6610 = vpow.pop %v6609
        %v6611 = vmul.f32 %v6482, 1.442695
        %v6612 = vpow.pop %v6611
        %v6613 = vmul.f32 %v6483, 1.442695
        %v6614 = vpow.pop %v6613
        %v6615 = vmul.f32 %v6484, 1.442695
        %v6616 = vpow.pop %v6615
        %v6617 = vmul.f32 %v6485, 1.442695
        %v6618 = vpow.pop %v6617
        %v6619 = vmul.f32 %v6486, 1.442695
        %v6620 = vpow.pop %v6619
        %v6621 = vmul.f32 %v6487, 1.442695
        %v6622 = vpow.pop %v6621
        %v6623 = vmul.f32 %v6488, 1.442695
        %v6624 = vpow.pop %v6623
        %v6625 = vmul.f32 %v6489, 1.442695
        %v6626 = vpow.pop %v6625
        %v6627 = vmul.f32 %v6490, 1.442695
        %v6628 = vpow.pop %v6627
        %v6629 = vmul.f32 %v6491, 1.442695
        %v6630 = vpow.pop %v6629
        %v6631 = vmul.f32 %v6492, 1.442695
        %v6632 = vpow.pop %v6631
        %v6633 = vmul.f32 %v6493, 1.442695
        %v6634 = vpow.pop %v6633
        %v6635 = vmul.f32 %v6494, 1.442695
        %v6636 = vpow.pop %v6635
        %v6637 = vmul.f32 %v6495, 1.442695
        %v6638 = vpow.pop %v6637
        %v6639 = vmul.f32 %v6496, 1.442695
        %v6640 = vpow.pop %v6639
        %v6641 = vmul.f32 %v6497, 1.442695
        %v6642 = vpow.pop %v6641
        %v6643 = vmul.f32 %v6498, 1.442695
        %v6644 = vpow.pop %v6643
        %v6645 = vmul.f32 %v6499, 1.442695
        %v6646 = vpow.pop %v6645
        %v6647 = vmul.f32 %v6500, 1.442695
        %v6648 = vpow.pop %v6647
        %v6649 = vmul.f32 %v6501, 1.442695
        %v6650 = vpow.pop %v6649
        %v6651 = vmul.f32 %v6502, 1.442695
        %v6652 = vpow.pop %v6651
        %v6653 = vmul.f32 %v6503, 1.442695
        %v6654 = vpow.pop %v6653
        %v6655 = vmul.f32 %v6504, 1.442695
        %v6656 = vpow.pop %v6655
        %v6657 = vmul.f32 %v6505, 1.442695
        %v6658 = vpow.pop %v6657
        %v6659 = vmul.f32 %v6506, 1.442695
        %v6660 = vpow.pop %v6659
        %v6661 = vmul.f32 %v6507, 1.442695
        %v6662 = vpow.pop %v6661
        %v6663 = vmul.f32 %v6508, 1.442695
        %v6664 = vpow.pop %v6663
        %v6665 = vmul.f32 %v6509, 1.442695
        %v6666 = vpow.pop %v6665
        %v6667 = vmul.f32 %v6510, 1.442695
        %v6668 = vpow.pop %v6667
        %v6669 = vmul.f32 %v6511, 1.442695
        %v6670 = vpow.pop %v6669
        %v6671 = vmul.f32 %v6512, 1.442695
        %v6672 = vpow.pop %v6671
        %v6673 = vmul.f32 %v6513, 1.442695
        %v6674 = vpow.pop %v6673
        %v6675 = vmul.f32 %v6514, 1.442695
        %v6676 = vpow.pop %v6675
        %v6677 = vmul.f32 %v6515, 1.442695
        %v6678 = vpow.pop %v6677
        %v6679 = vmul.f32 %v6516, 1.442695
        %v6680 = vpow.pop %v6679
        %v6681 = vmul.f32 %v6517, 1.442695
        %v6682 = vpow.pop %v6681
        %v6683 = vmul.f32 %v6518, 1.442695
        %v6684 = vpow.pop %v6683
        %v6685 = vmul.f32 %v6519, 1.442695
        %v6686 = vpow.pop %v6685
        %v6687 = vmul.f32 %v6520, 1.442695
        %v6688 = vpow.pop %v6687
        %v6689 = vmul.f32 %v6521, 1.442695
        %v6690 = vpow.pop %v6689
        %v6691 = vmul.f32 %v6522, 1.442695
        %v6692 = vpow.pop %v6691
        %v6693 = vmul.f32 %v6523, 1.442695
        %v6694 = vpow.pop %v6693
        %v6695 = vmul.f32 %v6524, 1.442695
        %v6696 = vpow.pop %v6695
        %v6697 = vmul.f32 %v6525, 1.442695
        %v6698 = vpow.pop %v6697
        %v6699 = vmul.f32 %v6526, 1.442695
        %v6700 = vpow.pop %v6699
        %v6701 = vmul.f32 %v6527, 1.442695
        %v6702 = vpow.pop %v6701
        %v6703 = vmul.f32 %v6528, 1.442695
        %v6704 = vpow.pop %v6703
        %v6705 = vmul.f32 %v6529, 1.442695
        %v6706 = vpow.pop %v6705
        %v6707 = vmul.f32 %v6530, 1.442695
        %v6708 = vpow.pop %v6707
        %v6709 = vmul.f32 %v6531, 1.442695
        %v6710 = vpow.pop %v6709
        %v6711 = vmul.f32 %v6532, 1.442695
        %v6712 = vpow.pop %v6711
        %v6713 = vmul.f32 %v6533, 1.442695
        %v6714 = vpow.pop %v6713
        %v6715 = vmul.f32 %v6534, 1.442695
        %v6716 = vpow.pop %v6715
        %v6717 = vmul.f32 %v6535, 1.442695
        %v6718 = vpow.pop %v6717
        %v6719 = vmul.f32 %v6536, 1.442695
        %v6720 = vpow.pop %v6719
        %v6721 = vmul.f32 %v6537, 1.442695
        %v6722 = vpow.pop %v6721
        %v6723 = vmul.f32 %v6538, 1.442695
        %v6724 = vpow.pop %v6723
        %v6725 = vmul.f32 %v6539, 1.442695
        %v6726 = vpow.pop %v6725
        %v6727 = vmul.f32 %v6540, 1.442695
        %v6728 = vpow.pop %v6727
        %v6729 = vmul.f32 %v6541, 1.442695
        %v6730 = vpow.pop %v6729
        %v6731 = vmul.f32 %v6542, 1.442695
        %v6732 = vpow.pop %v6731
        %v6733 = vmul.f32 %v6543, 1.442695
        %v6734 = vpow.pop %v6733
        %v6735 = vmul.f32 %v6544, 1.442695
        %v6736 = vpow.pop %v6735
        %v6737 = vmul.f32 %v6545, 1.442695
        %v6738 = vpow.pop %v6737
        %v6739 = vmul.f32 %v6546, 1.442695
        %v6740 = vpow.pop %v6739
        %v6741 = vmul.f32 %v6547, 1.442695
        %v6742 = vpow.pop %v6741
        %v6743 = vmul.f32 %v6548, 1.442695
        %v6744 = vpow.pop %v6743
        %v6745 = vmul.f32 %v6549, 1.442695
        %v6746 = vpow.pop %v6745
        %v6747 = vmul.f32 %v6550, 1.442695
        %v6748 = vpow.pop %v6747
        %v6749 = vmul.f32 %v6551, 1.442695
        %v6750 = vpow.pop %v6749
        %v6751 = vmul.f32 %v6552, 1.442695
        %v6752 = vpow.pop %v6751
        %v6753 = vmul.f32 %v6553, 1.442695
        %v6754 = vpow.pop %v6753
        %v6755 = vmul.f32 %v6554, 1.442695
        %v6756 = vpow.pop %v6755
        %v6757 = vmul.f32 %v6555, 1.442695
        %v6758 = vpow.pop %v6757
        %v6759 = vmul.f32 %v6556, 1.442695
        %v6760 = vpow.pop %v6759
        %v6761 = vmul.f32 %v6557, 1.442695
        %v6762 = vpow.pop %v6761
        %v6763 = vmul.f32 %v6558, 1.442695
        %v6764 = vpow.pop %v6763
        %v6765 = vmul.f32 %v6559, 1.442695
        %v6766 = vpow.pop %v6765
        %v6767 = vmul.f32 %v6560, 1.442695
        %v6768 = vpow.pop %v6767
        %v6769 = vmul.f32 %v6561, 1.442695
        %v6770 = vpow.pop %v6769
        %v6771 = vmul.f32 %v6562, 1.442695
        %v6772 = vpow.pop %v6771
        %v6773 = vmul.f32 %v6563, 1.442695
        %v6774 = vpow.pop %v6773
        %v6775 = vmul.f32 %v6564, 1.442695
        %v6776 = vpow.pop %v6775
        %v6777 = vmul.f32 %v6565, 1.442695
        %v6778 = vpow.pop %v6777
        %v6779 = vmul.f32 %v6566, 1.442695
        %v6780 = vpow.pop %v6779
        %v6781 = vmul.f32 %v6567, 1.442695
        %v6782 = vpow.pop %v6781
        %v6783 = vmul.f32 %v6568, 1.442695
        %v6784 = vpow.pop %v6783
        %v6785 = vmul.f32 %v6569, 1.442695
        %v6786 = vpow.pop %v6785
        %v6787 = vmul.f32 %v6570, 1.442695
        %v6788 = vpow.pop %v6787
        %v6789 = vmul.f32 %v6571, 1.442695
        %v6790 = vpow.pop %v6789
        %v6791 = vmul.f32 %v6572, 1.442695
        %v6792 = vpow.pop %v6791
        %v6793 = vmul.f32 %v6573, 1.442695
        %v6794 = vpow.pop %v6793
        %v6795 = vmul.f32 %v6574, 1.442695
        %v6796 = vpow.pop %v6795
        %v6797 = vmul.f32 %v6575, 1.442695
        %v6798 = vpow.pop %v6797
        %v6799 = vmul.f32 %v6576, 1.442695
        %v6800 = vpow.pop %v6799
        %v6801 = vmul.f32 %v6577, 1.442695
        %v6802 = vpow.pop %v6801
        %v6803 = vmul.f32 %v6578, 1.442695
        %v6804 = vpow.pop %v6803
        %v6805 = vmul.f32 %v6579, 1.442695
        %v6806 = vpow.pop %v6805
        %v6807 = vmul.f32 %v6580, 1.442695
        %v6808 = vpow.pop %v6807
        %v6809 = vmul.f32 %v6581, 1.442695
        %v6810 = vpow.pop %v6809
        %v6811 = vmul.f32 %v6582, 1.442695
        %v6812 = vpow.pop %v6811
        %v6813 = vmul.f32 %v6583, 1.442695
        %v6814 = vpow.pop %v6813
        %v6815 = vmul.f32 %v6584, 1.442695
        %v6816 = vpow.pop %v6815
        %v6817 = vmul.f32 %v6585, 1.442695
        %v6818 = vpow.pop %v6817
        %v6819 = vmul.f32 %v6586, 1.442695
        %v6820 = vpow.pop %v6819
        %v6821 = vmul.f32 %v6587, 1.442695
        %v6822 = vpow.pop %v6821
        %v6823 = vmul.f32 %v6588, 1.442695
        %v6824 = vpow.pop %v6823
        %v6825 = vmul.f32 %v6589, 1.442695
        %v6826 = vpow.pop %v6825
        %v6827 = vmul.f32 %v6590, 1.442695
        %v6828 = vpow.pop %v6827
        %v6829 = vmul.f32 %v6591, 1.442695
        %v6830 = vpow.pop %v6829
        %v6831 = vmul.f32 %v6592, 1.442695
        %v6832 = vpow.pop %v6831
        %v6833 = vmul.f32 %v6593, 1.442695
        %v6834 = vpow.pop %v6833
        %v6835 = vmul.f32 %v6594, 1.442695
        %v6836 = vpow.pop %v6835
        %v6837 = vmul.f32 %v6595, 1.442695
        %v6838 = vpow.pop %v6837
        %v6839 = vmul.f32 %v6596, 1.442695
        %v6840 = vpow.pop %v6839
        %v6841 = vmul.f32 %v6597, 1.442695
        %v6842 = vpow.pop %v6841
        %v6843 = vmul.f32 %v6598, 1.442695
        %v6844 = vpow.pop %v6843
        %v6845 = vmul.f32 %v6599, 1.442695
        %v6846 = vpow.pop %v6845
        %v6847 = vmul.f32 %v6600, 1.442695
        %v6848 = vpow.pop %v6847
        %v6849 = vmul.f32 %v6601, 1.442695
        %v6850 = vpow.pop %v6849
        %v6851 = vmul.f32 %v6602, 1.442695
        %v6852 = vpow.pop %v6851
        %v6853 = vmul.f32 %v6603, 1.442695
        %v6854 = vpow.pop %v6853
        %v6855 = vmul.f32 %v6604, 1.442695
        %v6856 = vpow.pop %v6855
        %v6857 = vmul.f32 %v6605, 1.442695
        %v6858 = vpow.pop %v6857
        %v6859 = vmul.f32 %v6606, 1.442695
        %v6860 = vpow.pop %v6859
        %v6861 = vmul.f32 %v6607, 1.442695
        %v6862 = vpow.pop %v6861
        %v6863 = vmul.f32 %v6608, 1.442695
        %v6864 = vpow.pop %v6863
        %v6865 = vadd.f32 %v6610, 1.0
        %v6866 = vlog2.pop %v6865
        %v6867 = vmul.f32 %v6866, 0.6931472
        %v6868 = vmul.f32 -0.5, %v6610
        %v6869 = vadd.f32 %v6868, 1.0
        %v6870 = vmul.f32 %v6869, %v6610
        %v6871 = vand.u32 2147483647, %v6610
        %vm6872 = vcmp.lt.f32.partialorder %v6871, 0.0004427343
        %v6873 = vsel %vm6872, %v6870, %v6867
        %v6874 = vadd.f32 %v6612, 1.0
        %v6875 = vlog2.pop %v6874
        %v6876 = vmul.f32 %v6875, 0.6931472
        %v6877 = vmul.f32 -0.5, %v6612
        %v6878 = vadd.f32 %v6877, 1.0
        %v6879 = vmul.f32 %v6878, %v6612
        %v6880 = vand.u32 2147483647, %v6612
        %vm6881 = vcmp.lt.f32.partialorder %v6880, 0.0004427343
        %v6882 = vsel %vm6881, %v6879, %v6876
        %v6883 = vadd.f32 %v6614, 1.0
        %v6884 = vlog2.pop %v6883
        %v6885 = vmul.f32 %v6884, 0.6931472
        %v6886 = vmul.f32 -0.5, %v6614
        %v6887 = vadd.f32 %v6886, 1.0
        %v6888 = vmul.f32 %v6887, %v6614
        %v6889 = vand.u32 2147483647, %v6614
        %vm6890 = vcmp.lt.f32.partialorder %v6889, 0.0004427343
        %v6891 = vsel %vm6890, %v6888, %v6885
        %v6892 = vadd.f32 %v6616, 1.0
        %v6893 = vlog2.pop %v6892
        %v6894 = vmul.f32 %v6893, 0.6931472
        %v6895 = vmul.f32 -0.5, %v6616
        %v6896 = vadd.f32 %v6895, 1.0
        %v6897 = vmul.f32 %v6896, %v6616
        %v6898 = vand.u32 2147483647, %v6616
        %vm6899 = vcmp.lt.f32.partialorder %v6898, 0.0004427343
        %v6900 = vsel %vm6899, %v6897, %v6894
        %v6901 = vadd.f32 %v6618, 1.0
        %v6902 = vlog2.pop %v6901
        %v6903 = vmul.f32 %v6902, 0.6931472
        %v6904 = vmul.f32 -0.5, %v6618
        %v6905 = vadd.f32 %v6904, 1.0
        %v6906 = vmul.f32 %v6905, %v6618
        %v6907 = vand.u32 2147483647, %v6618
        %vm6908 = vcmp.lt.f32.partialorder %v6907, 0.0004427343
        %v6909 = vsel %vm6908, %v6906, %v6903
        %v6910 = vadd.f32 %v6620, 1.0
        %v6911 = vlog2.pop %v6910
        %v6912 = vmul.f32 %v6911, 0.6931472
        %v6913 = vmul.f32 -0.5, %v6620
        %v6914 = vadd.f32 %v6913, 1.0
        %v6915 = vmul.f32 %v6914, %v6620
        %v6916 = vand.u32 2147483647, %v6620
        %vm6917 = vcmp.lt.f32.partialorder %v6916, 0.0004427343
        %v6918 = vsel %vm6917, %v6915, %v6912
        %v6919 = vadd.f32 %v6622, 1.0
        %v6920 = vlog2.pop %v6919
        %v6921 = vmul.f32 %v6920, 0.6931472
        %v6922 = vmul.f32 -0.5, %v6622
        %v6923 = vadd.f32 %v6922, 1.0
        %v6924 = vmul.f32 %v6923, %v6622
        %v6925 = vand.u32 2147483647, %v6622
        %vm6926 = vcmp.lt.f32.partialorder %v6925, 0.0004427343
        %v6927 = vsel %vm6926, %v6924, %v6921
        %v6928 = vadd.f32 %v6624, 1.0
        %v6929 = vlog2.pop %v6928
        %v6930 = vmul.f32 %v6929, 0.6931472
        %v6931 = vmul.f32 -0.5, %v6624
        %v6932 = vadd.f32 %v6931, 1.0
        %v6933 = vmul.f32 %v6932, %v6624
        %v6934 = vand.u32 2147483647, %v6624
        %vm6935 = vcmp.lt.f32.partialorder %v6934, 0.0004427343
        %v6936 = vsel %vm6935, %v6933, %v6930
        %v6937 = vadd.f32 %v6626, 1.0
        %v6938 = vlog2.pop %v6937
        %v6939 = vmul.f32 %v6938, 0.6931472
        %v6940 = vmul.f32 -0.5, %v6626
        %v6941 = vadd.f32 %v6940, 1.0
        %v6942 = vmul.f32 %v6941, %v6626
        %v6943 = vand.u32 2147483647, %v6626
        %vm6944 = vcmp.lt.f32.partialorder %v6943, 0.0004427343
        %v6945 = vsel %vm6944, %v6942, %v6939
        %v6946 = vadd.f32 %v6628, 1.0
        %v6947 = vlog2.pop %v6946
        %v6948 = vmul.f32 %v6947, 0.6931472
        %v6949 = vmul.f32 -0.5, %v6628
        %v6950 = vadd.f32 %v6949, 1.0
        %v6951 = vmul.f32 %v6950, %v6628
        %v6952 = vand.u32 2147483647, %v6628
        %vm6953 = vcmp.lt.f32.partialorder %v6952, 0.0004427343
        %v6954 = vsel %vm6953, %v6951, %v6948
        %v6955 = vadd.f32 %v6630, 1.0
        %v6956 = vlog2.pop %v6955
        %v6957 = vmul.f32 %v6956, 0.6931472
        %v6958 = vmul.f32 -0.5, %v6630
        %v6959 = vadd.f32 %v6958, 1.0
        %v6960 = vmul.f32 %v6959, %v6630
        %v6961 = vand.u32 2147483647, %v6630
        %vm6962 = vcmp.lt.f32.partialorder %v6961, 0.0004427343
        %v6963 = vsel %vm6962, %v6960, %v6957
        %v6964 = vadd.f32 %v6632, 1.0
        %v6965 = vlog2.pop %v6964
        %v6966 = vmul.f32 %v6965, 0.6931472
        %v6967 = vmul.f32 -0.5, %v6632
        %v6968 = vadd.f32 %v6967, 1.0
        %v6969 = vmul.f32 %v6968, %v6632
        %v6970 = vand.u32 2147483647, %v6632
        %vm6971 = vcmp.lt.f32.partialorder %v6970, 0.0004427343
        %v6972 = vsel %vm6971, %v6969, %v6966
        %v6973 = vadd.f32 %v6634, 1.0
        %v6974 = vlog2.pop %v6973
        %v6975 = vmul.f32 %v6974, 0.6931472
        %v6976 = vmul.f32 -0.5, %v6634
        %v6977 = vadd.f32 %v6976, 1.0
        %v6978 = vmul.f32 %v6977, %v6634
        %v6979 = vand.u32 2147483647, %v6634
        %vm6980 = vcmp.lt.f32.partialorder %v6979, 0.0004427343
        %v6981 = vsel %vm6980, %v6978, %v6975
        %v6982 = vadd.f32 %v6636, 1.0
        %v6983 = vlog2.pop %v6982
        %v6984 = vmul.f32 %v6983, 0.6931472
        %v6985 = vmul.f32 -0.5, %v6636
        %v6986 = vadd.f32 %v6985, 1.0
        %v6987 = vmul.f32 %v6986, %v6636
        %v6988 = vand.u32 2147483647, %v6636
        %vm6989 = vcmp.lt.f32.partialorder %v6988, 0.0004427343
        %v6990 = vsel %vm6989, %v6987, %v6984
        %v6991 = vadd.f32 %v6638, 1.0
        %v6992 = vlog2.pop %v6991
        %v6993 = vmul.f32 %v6992, 0.6931472
        %v6994 = vmul.f32 -0.5, %v6638
        %v6995 = vadd.f32 %v6994, 1.0
        %v6996 = vmul.f32 %v6995, %v6638
        %v6997 = vand.u32 2147483647, %v6638
        %vm6998 = vcmp.lt.f32.partialorder %v6997, 0.0004427343
        %v6999 = vsel %vm6998, %v6996, %v6993
        %v7000 = vadd.f32 %v6640, 1.0
        %v7001 = vlog2.pop %v7000
        %v7002 = vmul.f32 %v7001, 0.6931472
        %v7003 = vmul.f32 -0.5, %v6640
        %v7004 = vadd.f32 %v7003, 1.0
        %v7005 = vmul.f32 %v7004, %v6640
        %v7006 = vand.u32 2147483647, %v6640
        %vm7007 = vcmp.lt.f32.partialorder %v7006, 0.0004427343
        %v7008 = vsel %vm7007, %v7005, %v7002
        %v7009 = vadd.f32 %v6642, 1.0
        %v7010 = vlog2.pop %v7009
        %v7011 = vmul.f32 %v7010, 0.6931472
        %v7012 = vmul.f32 -0.5, %v6642
        %v7013 = vadd.f32 %v7012, 1.0
        %v7014 = vmul.f32 %v7013, %v6642
        %v7015 = vand.u32 2147483647, %v6642
        %vm7016 = vcmp.lt.f32.partialorder %v7015, 0.0004427343
        %v7017 = vsel %vm7016, %v7014, %v7011
        %v7018 = vadd.f32 %v6644, 1.0
        %v7019 = vlog2.pop %v7018
        %v7020 = vmul.f32 %v7019, 0.6931472
        %v7021 = vmul.f32 -0.5, %v6644
        %v7022 = vadd.f32 %v7021, 1.0
        %v7023 = vmul.f32 %v7022, %v6644
        %v7024 = vand.u32 2147483647, %v6644
        %vm7025 = vcmp.lt.f32.partialorder %v7024, 0.0004427343
        %v7026 = vsel %vm7025, %v7023, %v7020
        %v7027 = vadd.f32 %v6646, 1.0
        %v7028 = vlog2.pop %v7027
        %v7029 = vmul.f32 %v7028, 0.6931472
        %v7030 = vmul.f32 -0.5, %v6646
        %v7031 = vadd.f32 %v7030, 1.0
        %v7032 = vmul.f32 %v7031, %v6646
        %v7033 = vand.u32 2147483647, %v6646
        %vm7034 = vcmp.lt.f32.partialorder %v7033, 0.0004427343
        %v7035 = vsel %vm7034, %v7032, %v7029
        %v7036 = vadd.f32 %v6648, 1.0
        %v7037 = vlog2.pop %v7036
        %v7038 = vmul.f32 %v7037, 0.6931472
        %v7039 = vmul.f32 -0.5, %v6648
        %v7040 = vadd.f32 %v7039, 1.0
        %v7041 = vmul.f32 %v7040, %v6648
        %v7042 = vand.u32 2147483647, %v6648
        %vm7043 = vcmp.lt.f32.partialorder %v7042, 0.0004427343
        %v7044 = vsel %vm7043, %v7041, %v7038
        %v7045 = vadd.f32 %v6650, 1.0
        %v7046 = vlog2.pop %v7045
        %v7047 = vmul.f32 %v7046, 0.6931472
        %v7048 = vmul.f32 -0.5, %v6650
        %v7049 = vadd.f32 %v7048, 1.0
        %v7050 = vmul.f32 %v7049, %v6650
        %v7051 = vand.u32 2147483647, %v6650
        %vm7052 = vcmp.lt.f32.partialorder %v7051, 0.0004427343
        %v7053 = vsel %vm7052, %v7050, %v7047
        %v7054 = vadd.f32 %v6652, 1.0
        %v7055 = vlog2.pop %v7054
        %v7056 = vmul.f32 %v7055, 0.6931472
        %v7057 = vmul.f32 -0.5, %v6652
        %v7058 = vadd.f32 %v7057, 1.0
        %v7059 = vmul.f32 %v7058, %v6652
        %v7060 = vand.u32 2147483647, %v6652
        %vm7061 = vcmp.lt.f32.partialorder %v7060, 0.0004427343
        %v7062 = vsel %vm7061, %v7059, %v7056
        %v7063 = vadd.f32 %v6654, 1.0
        %v7064 = vlog2.pop %v7063
        %v7065 = vmul.f32 %v7064, 0.6931472
        %v7066 = vmul.f32 -0.5, %v6654
        %v7067 = vadd.f32 %v7066, 1.0
        %v7068 = vmul.f32 %v7067, %v6654
        %v7069 = vand.u32 2147483647, %v6654
        %vm7070 = vcmp.lt.f32.partialorder %v7069, 0.0004427343
        %v7071 = vsel %vm7070, %v7068, %v7065
        %v7072 = vadd.f32 %v6656, 1.0
        %v7073 = vlog2.pop %v7072
        %v7074 = vmul.f32 %v7073, 0.6931472
        %v7075 = vmul.f32 -0.5, %v6656
        %v7076 = vadd.f32 %v7075, 1.0
        %v7077 = vmul.f32 %v7076, %v6656
        %v7078 = vand.u32 2147483647, %v6656
        %vm7079 = vcmp.lt.f32.partialorder %v7078, 0.0004427343
        %v7080 = vsel %vm7079, %v7077, %v7074
        %v7081 = vadd.f32 %v6658, 1.0
        %v7082 = vlog2.pop %v7081
        %v7083 = vmul.f32 %v7082, 0.6931472
        %v7084 = vmul.f32 -0.5, %v6658
        %v7085 = vadd.f32 %v7084, 1.0
        %v7086 = vmul.f32 %v7085, %v6658
        %v7087 = vand.u32 2147483647, %v6658
        %vm7088 = vcmp.lt.f32.partialorder %v7087, 0.0004427343
        %v7089 = vsel %vm7088, %v7086, %v7083
        %v7090 = vadd.f32 %v6660, 1.0
        %v7091 = vlog2.pop %v7090
        %v7092 = vmul.f32 %v7091, 0.6931472
        %v7093 = vmul.f32 -0.5, %v6660
        %v7094 = vadd.f32 %v7093, 1.0
        %v7095 = vmul.f32 %v7094, %v6660
        %v7096 = vand.u32 2147483647, %v6660
        %vm7097 = vcmp.lt.f32.partialorder %v7096, 0.0004427343
        %v7098 = vsel %vm7097, %v7095, %v7092
        %v7099 = vadd.f32 %v6662, 1.0
        %v7100 = vlog2.pop %v7099
        %v7101 = vmul.f32 %v7100, 0.6931472
        %v7102 = vmul.f32 -0.5, %v6662
        %v7103 = vadd.f32 %v7102, 1.0
        %v7104 = vmul.f32 %v7103, %v6662
        %v7105 = vand.u32 2147483647, %v6662
        %vm7106 = vcmp.lt.f32.partialorder %v7105, 0.0004427343
        %v7107 = vsel %vm7106, %v7104, %v7101
        %v7108 = vadd.f32 %v6664, 1.0
        %v7109 = vlog2.pop %v7108
        %v7110 = vmul.f32 %v7109, 0.6931472
        %v7111 = vmul.f32 -0.5, %v6664
        %v7112 = vadd.f32 %v7111, 1.0
        %v7113 = vmul.f32 %v7112, %v6664
        %v7114 = vand.u32 2147483647, %v6664
        %vm7115 = vcmp.lt.f32.partialorder %v7114, 0.0004427343
        %v7116 = vsel %vm7115, %v7113, %v7110
        %v7117 = vadd.f32 %v6666, 1.0
        %v7118 = vlog2.pop %v7117
        %v7119 = vmul.f32 %v7118, 0.6931472
        %v7120 = vmul.f32 -0.5, %v6666
        %v7121 = vadd.f32 %v7120, 1.0
        %v7122 = vmul.f32 %v7121, %v6666
        %v7123 = vand.u32 2147483647, %v6666
        %vm7124 = vcmp.lt.f32.partialorder %v7123, 0.0004427343
        %v7125 = vsel %vm7124, %v7122, %v7119
        %v7126 = vadd.f32 %v6668, 1.0
        %v7127 = vlog2.pop %v7126
        %v7128 = vmul.f32 %v7127, 0.6931472
        %v7129 = vmul.f32 -0.5, %v6668
        %v7130 = vadd.f32 %v7129, 1.0
        %v7131 = vmul.f32 %v7130, %v6668
        %v7132 = vand.u32 2147483647, %v6668
        %vm7133 = vcmp.lt.f32.partialorder %v7132, 0.0004427343
        %v7134 = vsel %vm7133, %v7131, %v7128
        %v7135 = vadd.f32 %v6670, 1.0
        %v7136 = vlog2.pop %v7135
        %v7137 = vmul.f32 %v7136, 0.6931472
        %v7138 = vmul.f32 -0.5, %v6670
        %v7139 = vadd.f32 %v7138, 1.0
        %v7140 = vmul.f32 %v7139, %v6670
        %v7141 = vand.u32 2147483647, %v6670
        %vm7142 = vcmp.lt.f32.partialorder %v7141, 0.0004427343
        %v7143 = vsel %vm7142, %v7140, %v7137
        %v7144 = vadd.f32 %v6672, 1.0
        %v7145 = vlog2.pop %v7144
        %v7146 = vmul.f32 %v7145, 0.6931472
        %v7147 = vmul.f32 -0.5, %v6672
        %v7148 = vadd.f32 %v7147, 1.0
        %v7149 = vmul.f32 %v7148, %v6672
        %v7150 = vand.u32 2147483647, %v6672
        %vm7151 = vcmp.lt.f32.partialorder %v7150, 0.0004427343
        %v7152 = vsel %vm7151, %v7149, %v7146
        %v7153 = vadd.f32 %v6674, 1.0
        %v7154 = vlog2.pop %v7153
        %v7155 = vmul.f32 %v7154, 0.6931472
        %v7156 = vmul.f32 -0.5, %v6674
        %v7157 = vadd.f32 %v7156, 1.0
        %v7158 = vmul.f32 %v7157, %v6674
        %v7159 = vand.u32 2147483647, %v6674
        %vm7160 = vcmp.lt.f32.partialorder %v7159, 0.0004427343
        %v7161 = vsel %vm7160, %v7158, %v7155
        %v7162 = vadd.f32 %v6676, 1.0
        %v7163 = vlog2.pop %v7162
        %v7164 = vmul.f32 %v7163, 0.6931472
        %v7165 = vmul.f32 -0.5, %v6676
        %v7166 = vadd.f32 %v7165, 1.0
        %v7167 = vmul.f32 %v7166, %v6676
        %v7168 = vand.u32 2147483647, %v6676
        %vm7169 = vcmp.lt.f32.partialorder %v7168, 0.0004427343
        %v7170 = vsel %vm7169, %v7167, %v7164
        %v7171 = vadd.f32 %v6678, 1.0
        %v7172 = vlog2.pop %v7171
        %v7173 = vmul.f32 %v7172, 0.6931472
        %v7174 = vmul.f32 -0.5, %v6678
        %v7175 = vadd.f32 %v7174, 1.0
        %v7176 = vmul.f32 %v7175, %v6678
        %v7177 = vand.u32 2147483647, %v6678
        %vm7178 = vcmp.lt.f32.partialorder %v7177, 0.0004427343
        %v7179 = vsel %vm7178, %v7176, %v7173
        %v7180 = vadd.f32 %v6680, 1.0
        %v7181 = vlog2.pop %v7180
        %v7182 = vmul.f32 %v7181, 0.6931472
        %v7183 = vmul.f32 -0.5, %v6680
        %v7184 = vadd.f32 %v7183, 1.0
        %v7185 = vmul.f32 %v7184, %v6680
        %v7186 = vand.u32 2147483647, %v6680
        %vm7187 = vcmp.lt.f32.partialorder %v7186, 0.0004427343
        %v7188 = vsel %vm7187, %v7185, %v7182
        %v7189 = vadd.f32 %v6682, 1.0
        %v7190 = vlog2.pop %v7189
        %v7191 = vmul.f32 %v7190, 0.6931472
        %v7192 = vmul.f32 -0.5, %v6682
        %v7193 = vadd.f32 %v7192, 1.0
        %v7194 = vmul.f32 %v7193, %v6682
        %v7195 = vand.u32 2147483647, %v6682
        %vm7196 = vcmp.lt.f32.partialorder %v7195, 0.0004427343
        %v7197 = vsel %vm7196, %v7194, %v7191
        %v7198 = vadd.f32 %v6684, 1.0
        %v7199 = vlog2.pop %v7198
        %v7200 = vmul.f32 %v7199, 0.6931472
        %v7201 = vmul.f32 -0.5, %v6684
        %v7202 = vadd.f32 %v7201, 1.0
        %v7203 = vmul.f32 %v7202, %v6684
        %v7204 = vand.u32 2147483647, %v6684
        %vm7205 = vcmp.lt.f32.partialorder %v7204, 0.0004427343
        %v7206 = vsel %vm7205, %v7203, %v7200
        %v7207 = vadd.f32 %v6686, 1.0
        %v7208 = vlog2.pop %v7207
        %v7209 = vmul.f32 %v7208, 0.6931472
        %v7210 = vmul.f32 -0.5, %v6686
        %v7211 = vadd.f32 %v7210, 1.0
        %v7212 = vmul.f32 %v7211, %v6686
        %v7213 = vand.u32 2147483647, %v6686
        %vm7214 = vcmp.lt.f32.partialorder %v7213, 0.0004427343
        %v7215 = vsel %vm7214, %v7212, %v7209
        %v7216 = vadd.f32 %v6688, 1.0
        %v7217 = vlog2.pop %v7216
        %v7218 = vmul.f32 %v7217, 0.6931472
        %v7219 = vmul.f32 -0.5, %v6688
        %v7220 = vadd.f32 %v7219, 1.0
        %v7221 = vmul.f32 %v7220, %v6688
        %v7222 = vand.u32 2147483647, %v6688
        %vm7223 = vcmp.lt.f32.partialorder %v7222, 0.0004427343
        %v7224 = vsel %vm7223, %v7221, %v7218
        %v7225 = vadd.f32 %v6690, 1.0
        %v7226 = vlog2.pop %v7225
        %v7227 = vmul.f32 %v7226, 0.6931472
        %v7228 = vmul.f32 -0.5, %v6690
        %v7229 = vadd.f32 %v7228, 1.0
        %v7230 = vmul.f32 %v7229, %v6690
        %v7231 = vand.u32 2147483647, %v6690
        %vm7232 = vcmp.lt.f32.partialorder %v7231, 0.0004427343
        %v7233 = vsel %vm7232, %v7230, %v7227
        %v7234 = vadd.f32 %v6692, 1.0
        %v7235 = vlog2.pop %v7234
        %v7236 = vmul.f32 %v7235, 0.6931472
        %v7237 = vmul.f32 -0.5, %v6692
        %v7238 = vadd.f32 %v7237, 1.0
        %v7239 = vmul.f32 %v7238, %v6692
        %v7240 = vand.u32 2147483647, %v6692
        %vm7241 = vcmp.lt.f32.partialorder %v7240, 0.0004427343
        %v7242 = vsel %vm7241, %v7239, %v7236
        %v7243 = vadd.f32 %v6694, 1.0
        %v7244 = vlog2.pop %v7243
        %v7245 = vmul.f32 %v7244, 0.6931472
        %v7246 = vmul.f32 -0.5, %v6694
        %v7247 = vadd.f32 %v7246, 1.0
        %v7248 = vmul.f32 %v7247, %v6694
        %v7249 = vand.u32 2147483647, %v6694
        %vm7250 = vcmp.lt.f32.partialorder %v7249, 0.0004427343
        %v7251 = vsel %vm7250, %v7248, %v7245
        %v7252 = vadd.f32 %v6696, 1.0
        %v7253 = vlog2.pop %v7252
        %v7254 = vmul.f32 %v7253, 0.6931472
        %v7255 = vmul.f32 -0.5, %v6696
        %v7256 = vadd.f32 %v7255, 1.0
        %v7257 = vmul.f32 %v7256, %v6696
        %v7258 = vand.u32 2147483647, %v6696
        %vm7259 = vcmp.lt.f32.partialorder %v7258, 0.0004427343
        %v7260 = vsel %vm7259, %v7257, %v7254
        %v7261 = vadd.f32 %v6698, 1.0
        %v7262 = vlog2.pop %v7261
        %v7263 = vmul.f32 %v7262, 0.6931472
        %v7264 = vmul.f32 -0.5, %v6698
        %v7265 = vadd.f32 %v7264, 1.0
        %v7266 = vmul.f32 %v7265, %v6698
        %v7267 = vand.u32 2147483647, %v6698
        %vm7268 = vcmp.lt.f32.partialorder %v7267, 0.0004427343
        %v7269 = vsel %vm7268, %v7266, %v7263
        %v7270 = vadd.f32 %v6700, 1.0
        %v7271 = vlog2.pop %v7270
        %v7272 = vmul.f32 %v7271, 0.6931472
        %v7273 = vmul.f32 -0.5, %v6700
        %v7274 = vadd.f32 %v7273, 1.0
        %v7275 = vmul.f32 %v7274, %v6700
        %v7276 = vand.u32 2147483647, %v6700
        %vm7277 = vcmp.lt.f32.partialorder %v7276, 0.0004427343
        %v7278 = vsel %vm7277, %v7275, %v7272
        %v7279 = vadd.f32 %v6702, 1.0
        %v7280 = vlog2.pop %v7279
        %v7281 = vmul.f32 %v7280, 0.6931472
        %v7282 = vmul.f32 -0.5, %v6702
        %v7283 = vadd.f32 %v7282, 1.0
        %v7284 = vmul.f32 %v7283, %v6702
        %v7285 = vand.u32 2147483647, %v6702
        %vm7286 = vcmp.lt.f32.partialorder %v7285, 0.0004427343
        %v7287 = vsel %vm7286, %v7284, %v7281
        %v7288 = vadd.f32 %v6704, 1.0
        %v7289 = vlog2.pop %v7288
        %v7290 = vmul.f32 %v7289, 0.6931472
        %v7291 = vmul.f32 -0.5, %v6704
        %v7292 = vadd.f32 %v7291, 1.0
        %v7293 = vmul.f32 %v7292, %v6704
        %v7294 = vand.u32 2147483647, %v6704
        %vm7295 = vcmp.lt.f32.partialorder %v7294, 0.0004427343
        %v7296 = vsel %vm7295, %v7293, %v7290
        %v7297 = vadd.f32 %v6706, 1.0
        %v7298 = vlog2.pop %v7297
        %v7299 = vmul.f32 %v7298, 0.6931472
        %v7300 = vmul.f32 -0.5, %v6706
        %v7301 = vadd.f32 %v7300, 1.0
        %v7302 = vmul.f32 %v7301, %v6706
        %v7303 = vand.u32 2147483647, %v6706
        %vm7304 = vcmp.lt.f32.partialorder %v7303, 0.0004427343
        %v7305 = vsel %vm7304, %v7302, %v7299
        %v7306 = vadd.f32 %v6708, 1.0
        %v7307 = vlog2.pop %v7306
        %v7308 = vmul.f32 %v7307, 0.6931472
        %v7309 = vmul.f32 -0.5, %v6708
        %v7310 = vadd.f32 %v7309, 1.0
        %v7311 = vmul.f32 %v7310, %v6708
        %v7312 = vand.u32 2147483647, %v6708
        %vm7313 = vcmp.lt.f32.partialorder %v7312, 0.0004427343
        %v7314 = vsel %vm7313, %v7311, %v7308
        %v7315 = vadd.f32 %v6710, 1.0
        %v7316 = vlog2.pop %v7315
        %v7317 = vmul.f32 %v7316, 0.6931472
        %v7318 = vmul.f32 -0.5, %v6710
        %v7319 = vadd.f32 %v7318, 1.0
        %v7320 = vmul.f32 %v7319, %v6710
        %v7321 = vand.u32 2147483647, %v6710
        %vm7322 = vcmp.lt.f32.partialorder %v7321, 0.0004427343
        %v7323 = vsel %vm7322, %v7320, %v7317
        %v7324 = vadd.f32 %v6712, 1.0
        %v7325 = vlog2.pop %v7324
        %v7326 = vmul.f32 %v7325, 0.6931472
        %v7327 = vmul.f32 -0.5, %v6712
        %v7328 = vadd.f32 %v7327, 1.0
        %v7329 = vmul.f32 %v7328, %v6712
        %v7330 = vand.u32 2147483647, %v6712
        %vm7331 = vcmp.lt.f32.partialorder %v7330, 0.0004427343
        %v7332 = vsel %vm7331, %v7329, %v7326
        %v7333 = vadd.f32 %v6714, 1.0
        %v7334 = vlog2.pop %v7333
        %v7335 = vmul.f32 %v7334, 0.6931472
        %v7336 = vmul.f32 -0.5, %v6714
        %v7337 = vadd.f32 %v7336, 1.0
        %v7338 = vmul.f32 %v7337, %v6714
        %v7339 = vand.u32 2147483647, %v6714
        %vm7340 = vcmp.lt.f32.partialorder %v7339, 0.0004427343
        %v7341 = vsel %vm7340, %v7338, %v7335
        %v7342 = vadd.f32 %v6716, 1.0
        %v7343 = vlog2.pop %v7342
        %v7344 = vmul.f32 %v7343, 0.6931472
        %v7345 = vmul.f32 -0.5, %v6716
        %v7346 = vadd.f32 %v7345, 1.0
        %v7347 = vmul.f32 %v7346, %v6716
        %v7348 = vand.u32 2147483647, %v6716
        %vm7349 = vcmp.lt.f32.partialorder %v7348, 0.0004427343
        %v7350 = vsel %vm7349, %v7347, %v7344
        %v7351 = vadd.f32 %v6718, 1.0
        %v7352 = vlog2.pop %v7351
        %v7353 = vmul.f32 %v7352, 0.6931472
        %v7354 = vmul.f32 -0.5, %v6718
        %v7355 = vadd.f32 %v7354, 1.0
        %v7356 = vmul.f32 %v7355, %v6718
        %v7357 = vand.u32 2147483647, %v6718
        %vm7358 = vcmp.lt.f32.partialorder %v7357, 0.0004427343
        %v7359 = vsel %vm7358, %v7356, %v7353
        %v7360 = vadd.f32 %v6720, 1.0
        %v7361 = vlog2.pop %v7360
        %v7362 = vmul.f32 %v7361, 0.6931472
        %v7363 = vmul.f32 -0.5, %v6720
        %v7364 = vadd.f32 %v7363, 1.0
        %v7365 = vmul.f32 %v7364, %v6720
        %v7366 = vand.u32 2147483647, %v6720
        %vm7367 = vcmp.lt.f32.partialorder %v7366, 0.0004427343
        %v7368 = vsel %vm7367, %v7365, %v7362
        %v7369 = vadd.f32 %v6722, 1.0
        %v7370 = vlog2.pop %v7369
        %v7371 = vmul.f32 %v7370, 0.6931472
        %v7372 = vmul.f32 -0.5, %v6722
        %v7373 = vadd.f32 %v7372, 1.0
        %v7374 = vmul.f32 %v7373, %v6722
        %v7375 = vand.u32 2147483647, %v6722
        %vm7376 = vcmp.lt.f32.partialorder %v7375, 0.0004427343
        %v7377 = vsel %vm7376, %v7374, %v7371
        %v7378 = vadd.f32 %v6724, 1.0
        %v7379 = vlog2.pop %v7378
        %v7380 = vmul.f32 %v7379, 0.6931472
        %v7381 = vmul.f32 -0.5, %v6724
        %v7382 = vadd.f32 %v7381, 1.0
        %v7383 = vmul.f32 %v7382, %v6724
        %v7384 = vand.u32 2147483647, %v6724
        %vm7385 = vcmp.lt.f32.partialorder %v7384, 0.0004427343
        %v7386 = vsel %vm7385, %v7383, %v7380
        %v7387 = vadd.f32 %v6726, 1.0
        %v7388 = vlog2.pop %v7387
        %v7389 = vmul.f32 %v7388, 0.6931472
        %v7390 = vmul.f32 -0.5, %v6726
        %v7391 = vadd.f32 %v7390, 1.0
        %v7392 = vmul.f32 %v7391, %v6726
        %v7393 = vand.u32 2147483647, %v6726
        %vm7394 = vcmp.lt.f32.partialorder %v7393, 0.0004427343
        %v7395 = vsel %vm7394, %v7392, %v7389
        %v7396 = vadd.f32 %v6728, 1.0
        %v7397 = vlog2.pop %v7396
        %v7398 = vmul.f32 %v7397, 0.6931472
        %v7399 = vmul.f32 -0.5, %v6728
        %v7400 = vadd.f32 %v7399, 1.0
        %v7401 = vmul.f32 %v7400, %v6728
        %v7402 = vand.u32 2147483647, %v6728
        %vm7403 = vcmp.lt.f32.partialorder %v7402, 0.0004427343
        %v7404 = vsel %vm7403, %v7401, %v7398
        %v7405 = vadd.f32 %v6730, 1.0
        %v7406 = vlog2.pop %v7405
        %v7407 = vmul.f32 %v7406, 0.6931472
        %v7408 = vmul.f32 -0.5, %v6730
        %v7409 = vadd.f32 %v7408, 1.0
        %v7410 = vmul.f32 %v7409, %v6730
        %v7411 = vand.u32 2147483647, %v6730
        %vm7412 = vcmp.lt.f32.partialorder %v7411, 0.0004427343
        %v7413 = vsel %vm7412, %v7410, %v7407
        %v7414 = vadd.f32 %v6732, 1.0
        %v7415 = vlog2.pop %v7414
        %v7416 = vmul.f32 %v7415, 0.6931472
        %v7417 = vmul.f32 -0.5, %v6732
        %v7418 = vadd.f32 %v7417, 1.0
        %v7419 = vmul.f32 %v7418, %v6732
        %v7420 = vand.u32 2147483647, %v6732
        %vm7421 = vcmp.lt.f32.partialorder %v7420, 0.0004427343
        %v7422 = vsel %vm7421, %v7419, %v7416
        %v7423 = vadd.f32 %v6734, 1.0
        %v7424 = vlog2.pop %v7423
        %v7425 = vmul.f32 %v7424, 0.6931472
        %v7426 = vmul.f32 -0.5, %v6734
        %v7427 = vadd.f32 %v7426, 1.0
        %v7428 = vmul.f32 %v7427, %v6734
        %v7429 = vand.u32 2147483647, %v6734
        %vm7430 = vcmp.lt.f32.partialorder %v7429, 0.0004427343
        %v7431 = vsel %vm7430, %v7428, %v7425
        %v7432 = vadd.f32 %v6736, 1.0
        %v7433 = vlog2.pop %v7432
        %v7434 = vmul.f32 %v7433, 0.6931472
        %v7435 = vmul.f32 -0.5, %v6736
        %v7436 = vadd.f32 %v7435, 1.0
        %v7437 = vmul.f32 %v7436, %v6736
        %v7438 = vand.u32 2147483647, %v6736
        %vm7439 = vcmp.lt.f32.partialorder %v7438, 0.0004427343
        %v7440 = vsel %vm7439, %v7437, %v7434
        %v7441 = vadd.f32 %v6738, 1.0
        %v7442 = vlog2.pop %v7441
        %v7443 = vmul.f32 %v7442, 0.6931472
        %v7444 = vmul.f32 -0.5, %v6738
        %v7445 = vadd.f32 %v7444, 1.0
        %v7446 = vmul.f32 %v7445, %v6738
        %v7447 = vand.u32 2147483647, %v6738
        %vm7448 = vcmp.lt.f32.partialorder %v7447, 0.0004427343
        %v7449 = vsel %vm7448, %v7446, %v7443
        %v7450 = vadd.f32 %v6740, 1.0
        %v7451 = vlog2.pop %v7450
        %v7452 = vmul.f32 %v7451, 0.6931472
        %v7453 = vmul.f32 -0.5, %v6740
        %v7454 = vadd.f32 %v7453, 1.0
        %v7455 = vmul.f32 %v7454, %v6740
        %v7456 = vand.u32 2147483647, %v6740
        %vm7457 = vcmp.lt.f32.partialorder %v7456, 0.0004427343
        %v7458 = vsel %vm7457, %v7455, %v7452
        %v7459 = vadd.f32 %v6742, 1.0
        %v7460 = vlog2.pop %v7459
        %v7461 = vmul.f32 %v7460, 0.6931472
        %v7462 = vmul.f32 -0.5, %v6742
        %v7463 = vadd.f32 %v7462, 1.0
        %v7464 = vmul.f32 %v7463, %v6742
        %v7465 = vand.u32 2147483647, %v6742
        %vm7466 = vcmp.lt.f32.partialorder %v7465, 0.0004427343
        %v7467 = vsel %vm7466, %v7464, %v7461
        %v7468 = vadd.f32 %v6744, 1.0
        %v7469 = vlog2.pop %v7468
        %v7470 = vmul.f32 %v7469, 0.6931472
        %v7471 = vmul.f32 -0.5, %v6744
        %v7472 = vadd.f32 %v7471, 1.0
        %v7473 = vmul.f32 %v7472, %v6744
        %v7474 = vand.u32 2147483647, %v6744
        %vm7475 = vcmp.lt.f32.partialorder %v7474, 0.0004427343
        %v7476 = vsel %vm7475, %v7473, %v7470
        %v7477 = vadd.f32 %v6746, 1.0
        %v7478 = vlog2.pop %v7477
        %v7479 = vmul.f32 %v7478, 0.6931472
        %v7480 = vmul.f32 -0.5, %v6746
        %v7481 = vadd.f32 %v7480, 1.0
        %v7482 = vmul.f32 %v7481, %v6746
        %v7483 = vand.u32 2147483647, %v6746
        %vm7484 = vcmp.lt.f32.partialorder %v7483, 0.0004427343
        %v7485 = vsel %vm7484, %v7482, %v7479
        %v7486 = vadd.f32 %v6748, 1.0
        %v7487 = vlog2.pop %v7486
        %v7488 = vmul.f32 %v7487, 0.6931472
        %v7489 = vmul.f32 -0.5, %v6748
        %v7490 = vadd.f32 %v7489, 1.0
        %v7491 = vmul.f32 %v7490, %v6748
        %v7492 = vand.u32 2147483647, %v6748
        %vm7493 = vcmp.lt.f32.partialorder %v7492, 0.0004427343
        %v7494 = vsel %vm7493, %v7491, %v7488
        %v7495 = vadd.f32 %v6750, 1.0
        %v7496 = vlog2.pop %v7495
        %v7497 = vmul.f32 %v7496, 0.6931472
        %v7498 = vmul.f32 -0.5, %v6750
        %v7499 = vadd.f32 %v7498, 1.0
        %v7500 = vmul.f32 %v7499, %v6750
        %v7501 = vand.u32 2147483647, %v6750
        %vm7502 = vcmp.lt.f32.partialorder %v7501, 0.0004427343
        %v7503 = vsel %vm7502, %v7500, %v7497
        %v7504 = vadd.f32 %v6752, 1.0
        %v7505 = vlog2.pop %v7504
        %v7506 = vmul.f32 %v7505, 0.6931472
        %v7507 = vmul.f32 -0.5, %v6752
        %v7508 = vadd.f32 %v7507, 1.0
        %v7509 = vmul.f32 %v7508, %v6752
        %v7510 = vand.u32 2147483647, %v6752
        %vm7511 = vcmp.lt.f32.partialorder %v7510, 0.0004427343
        %v7512 = vsel %vm7511, %v7509, %v7506
        %v7513 = vadd.f32 %v6754, 1.0
        %v7514 = vlog2.pop %v7513
        %v7515 = vmul.f32 %v7514, 0.6931472
        %v7516 = vmul.f32 -0.5, %v6754
        %v7517 = vadd.f32 %v7516, 1.0
        %v7518 = vmul.f32 %v7517, %v6754
        %v7519 = vand.u32 2147483647, %v6754
        %vm7520 = vcmp.lt.f32.partialorder %v7519, 0.0004427343
        %v7521 = vsel %vm7520, %v7518, %v7515
        %v7522 = vadd.f32 %v6756, 1.0
        %v7523 = vlog2.pop %v7522
        %v7524 = vmul.f32 %v7523, 0.6931472
        %v7525 = vmul.f32 -0.5, %v6756
        %v7526 = vadd.f32 %v7525, 1.0
        %v7527 = vmul.f32 %v7526, %v6756
        %v7528 = vand.u32 2147483647, %v6756
        %vm7529 = vcmp.lt.f32.partialorder %v7528, 0.0004427343
        %v7530 = vsel %vm7529, %v7527, %v7524
        %v7531 = vadd.f32 %v6758, 1.0
        %v7532 = vlog2.pop %v7531
        %v7533 = vmul.f32 %v7532, 0.6931472
        %v7534 = vmul.f32 -0.5, %v6758
        %v7535 = vadd.f32 %v7534, 1.0
        %v7536 = vmul.f32 %v7535, %v6758
        %v7537 = vand.u32 2147483647, %v6758
        %vm7538 = vcmp.lt.f32.partialorder %v7537, 0.0004427343
        %v7539 = vsel %vm7538, %v7536, %v7533
        %v7540 = vadd.f32 %v6760, 1.0
        %v7541 = vlog2.pop %v7540
        %v7542 = vmul.f32 %v7541, 0.6931472
        %v7543 = vmul.f32 -0.5, %v6760
        %v7544 = vadd.f32 %v7543, 1.0
        %v7545 = vmul.f32 %v7544, %v6760
        %v7546 = vand.u32 2147483647, %v6760
        %vm7547 = vcmp.lt.f32.partialorder %v7546, 0.0004427343
        %v7548 = vsel %vm7547, %v7545, %v7542
        %v7549 = vadd.f32 %v6762, 1.0
        %v7550 = vlog2.pop %v7549
        %v7551 = vmul.f32 %v7550, 0.6931472
        %v7552 = vmul.f32 -0.5, %v6762
        %v7553 = vadd.f32 %v7552, 1.0
        %v7554 = vmul.f32 %v7553, %v6762
        %v7555 = vand.u32 2147483647, %v6762
        %vm7556 = vcmp.lt.f32.partialorder %v7555, 0.0004427343
        %v7557 = vsel %vm7556, %v7554, %v7551
        %v7558 = vadd.f32 %v6764, 1.0
        %v7559 = vlog2.pop %v7558
        %v7560 = vmul.f32 %v7559, 0.6931472
        %v7561 = vmul.f32 -0.5, %v6764
        %v7562 = vadd.f32 %v7561, 1.0
        %v7563 = vmul.f32 %v7562, %v6764
        %v7564 = vand.u32 2147483647, %v6764
        %vm7565 = vcmp.lt.f32.partialorder %v7564, 0.0004427343
        %v7566 = vsel %vm7565, %v7563, %v7560
        %v7567 = vadd.f32 %v6766, 1.0
        %v7568 = vlog2.pop %v7567
        %v7569 = vmul.f32 %v7568, 0.6931472
        %v7570 = vmul.f32 -0.5, %v6766
        %v7571 = vadd.f32 %v7570, 1.0
        %v7572 = vmul.f32 %v7571, %v6766
        %v7573 = vand.u32 2147483647, %v6766
        %vm7574 = vcmp.lt.f32.partialorder %v7573, 0.0004427343
        %v7575 = vsel %vm7574, %v7572, %v7569
        %v7576 = vadd.f32 %v6768, 1.0
        %v7577 = vlog2.pop %v7576
        %v7578 = vmul.f32 %v7577, 0.6931472
        %v7579 = vmul.f32 -0.5, %v6768
        %v7580 = vadd.f32 %v7579, 1.0
        %v7581 = vmul.f32 %v7580, %v6768
        %v7582 = vand.u32 2147483647, %v6768
        %vm7583 = vcmp.lt.f32.partialorder %v7582, 0.0004427343
        %v7584 = vsel %vm7583, %v7581, %v7578
        %v7585 = vadd.f32 %v6770, 1.0
        %v7586 = vlog2.pop %v7585
        %v7587 = vmul.f32 %v7586, 0.6931472
        %v7588 = vmul.f32 -0.5, %v6770
        %v7589 = vadd.f32 %v7588, 1.0
        %v7590 = vmul.f32 %v7589, %v6770
        %v7591 = vand.u32 2147483647, %v6770
        %vm7592 = vcmp.lt.f32.partialorder %v7591, 0.0004427343
        %v7593 = vsel %vm7592, %v7590, %v7587
        %v7594 = vadd.f32 %v6772, 1.0
        %v7595 = vlog2.pop %v7594
        %v7596 = vmul.f32 %v7595, 0.6931472
        %v7597 = vmul.f32 -0.5, %v6772
        %v7598 = vadd.f32 %v7597, 1.0
        %v7599 = vmul.f32 %v7598, %v6772
        %v7600 = vand.u32 2147483647, %v6772
        %vm7601 = vcmp.lt.f32.partialorder %v7600, 0.0004427343
        %v7602 = vsel %vm7601, %v7599, %v7596
        %v7603 = vadd.f32 %v6774, 1.0
        %v7604 = vlog2.pop %v7603
        %v7605 = vmul.f32 %v7604, 0.6931472
        %v7606 = vmul.f32 -0.5, %v6774
        %v7607 = vadd.f32 %v7606, 1.0
        %v7608 = vmul.f32 %v7607, %v6774
        %v7609 = vand.u32 2147483647, %v6774
        %vm7610 = vcmp.lt.f32.partialorder %v7609, 0.0004427343
        %v7611 = vsel %vm7610, %v7608, %v7605
        %v7612 = vadd.f32 %v6776, 1.0
        %v7613 = vlog2.pop %v7612
        %v7614 = vmul.f32 %v7613, 0.6931472
        %v7615 = vmul.f32 -0.5, %v6776
        %v7616 = vadd.f32 %v7615, 1.0
        %v7617 = vmul.f32 %v7616, %v6776
        %v7618 = vand.u32 2147483647, %v6776
        %vm7619 = vcmp.lt.f32.partialorder %v7618, 0.0004427343
        %v7620 = vsel %vm7619, %v7617, %v7614
        %v7621 = vadd.f32 %v6778, 1.0
        %v7622 = vlog2.pop %v7621
        %v7623 = vmul.f32 %v7622, 0.6931472
        %v7624 = vmul.f32 -0.5, %v6778
        %v7625 = vadd.f32 %v7624, 1.0
        %v7626 = vmul.f32 %v7625, %v6778
        %v7627 = vand.u32 2147483647, %v6778
        %vm7628 = vcmp.lt.f32.partialorder %v7627, 0.0004427343
        %v7629 = vsel %vm7628, %v7626, %v7623
        %v7630 = vadd.f32 %v6780, 1.0
        %v7631 = vlog2.pop %v7630
        %v7632 = vmul.f32 %v7631, 0.6931472
        %v7633 = vmul.f32 -0.5, %v6780
        %v7634 = vadd.f32 %v7633, 1.0
        %v7635 = vmul.f32 %v7634, %v6780
        %v7636 = vand.u32 2147483647, %v6780
        %vm7637 = vcmp.lt.f32.partialorder %v7636, 0.0004427343
        %v7638 = vsel %vm7637, %v7635, %v7632
        %v7639 = vadd.f32 %v6782, 1.0
        %v7640 = vlog2.pop %v7639
        %v7641 = vmul.f32 %v7640, 0.6931472
        %v7642 = vmul.f32 -0.5, %v6782
        %v7643 = vadd.f32 %v7642, 1.0
        %v7644 = vmul.f32 %v7643, %v6782
        %v7645 = vand.u32 2147483647, %v6782
        %vm7646 = vcmp.lt.f32.partialorder %v7645, 0.0004427343
        %v7647 = vsel %vm7646, %v7644, %v7641
        %v7648 = vadd.f32 %v6784, 1.0
        %v7649 = vlog2.pop %v7648
        %v7650 = vmul.f32 %v7649, 0.6931472
        %v7651 = vmul.f32 -0.5, %v6784
        %v7652 = vadd.f32 %v7651, 1.0
        %v7653 = vmul.f32 %v7652, %v6784
        %v7654 = vand.u32 2147483647, %v6784
        %vm7655 = vcmp.lt.f32.partialorder %v7654, 0.0004427343
        %v7656 = vsel %vm7655, %v7653, %v7650
        %v7657 = vadd.f32 %v6786, 1.0
        %v7658 = vlog2.pop %v7657
        %v7659 = vmul.f32 %v7658, 0.6931472
        %v7660 = vmul.f32 -0.5, %v6786
        %v7661 = vadd.f32 %v7660, 1.0
        %v7662 = vmul.f32 %v7661, %v6786
        %v7663 = vand.u32 2147483647, %v6786
        %vm7664 = vcmp.lt.f32.partialorder %v7663, 0.0004427343
        %v7665 = vsel %vm7664, %v7662, %v7659
        %v7666 = vadd.f32 %v6788, 1.0
        %v7667 = vlog2.pop %v7666
        %v7668 = vmul.f32 %v7667, 0.6931472
        %v7669 = vmul.f32 -0.5, %v6788
        %v7670 = vadd.f32 %v7669, 1.0
        %v7671 = vmul.f32 %v7670, %v6788
        %v7672 = vand.u32 2147483647, %v6788
        %vm7673 = vcmp.lt.f32.partialorder %v7672, 0.0004427343
        %v7674 = vsel %vm7673, %v7671, %v7668
        %v7675 = vadd.f32 %v6790, 1.0
        %v7676 = vlog2.pop %v7675
        %v7677 = vmul.f32 %v7676, 0.6931472
        %v7678 = vmul.f32 -0.5, %v6790
        %v7679 = vadd.f32 %v7678, 1.0
        %v7680 = vmul.f32 %v7679, %v6790
        %v7681 = vand.u32 2147483647, %v6790
        %vm7682 = vcmp.lt.f32.partialorder %v7681, 0.0004427343
        %v7683 = vsel %vm7682, %v7680, %v7677
        %v7684 = vadd.f32 %v6792, 1.0
        %v7685 = vlog2.pop %v7684
        %v7686 = vmul.f32 %v7685, 0.6931472
        %v7687 = vmul.f32 -0.5, %v6792
        %v7688 = vadd.f32 %v7687, 1.0
        %v7689 = vmul.f32 %v7688, %v6792
        %v7690 = vand.u32 2147483647, %v6792
        %vm7691 = vcmp.lt.f32.partialorder %v7690, 0.0004427343
        %v7692 = vsel %vm7691, %v7689, %v7686
        %v7693 = vadd.f32 %v6794, 1.0
        %v7694 = vlog2.pop %v7693
        %v7695 = vmul.f32 %v7694, 0.6931472
        %v7696 = vmul.f32 -0.5, %v6794
        %v7697 = vadd.f32 %v7696, 1.0
        %v7698 = vmul.f32 %v7697, %v6794
        %v7699 = vand.u32 2147483647, %v6794
        %vm7700 = vcmp.lt.f32.partialorder %v7699, 0.0004427343
        %v7701 = vsel %vm7700, %v7698, %v7695
        %v7702 = vadd.f32 %v6796, 1.0
        %v7703 = vlog2.pop %v7702
        %v7704 = vmul.f32 %v7703, 0.6931472
        %v7705 = vmul.f32 -0.5, %v6796
        %v7706 = vadd.f32 %v7705, 1.0
        %v7707 = vmul.f32 %v7706, %v6796
        %v7708 = vand.u32 2147483647, %v6796
        %vm7709 = vcmp.lt.f32.partialorder %v7708, 0.0004427343
        %v7710 = vsel %vm7709, %v7707, %v7704
        %v7711 = vadd.f32 %v6798, 1.0
        %v7712 = vlog2.pop %v7711
        %v7713 = vmul.f32 %v7712, 0.6931472
        %v7714 = vmul.f32 -0.5, %v6798
        %v7715 = vadd.f32 %v7714, 1.0
        %v7716 = vmul.f32 %v7715, %v6798
        %v7717 = vand.u32 2147483647, %v6798
        %vm7718 = vcmp.lt.f32.partialorder %v7717, 0.0004427343
        %v7719 = vsel %vm7718, %v7716, %v7713
        %v7720 = vadd.f32 %v6800, 1.0
        %v7721 = vlog2.pop %v7720
        %v7722 = vmul.f32 %v7721, 0.6931472
        %v7723 = vmul.f32 -0.5, %v6800
        %v7724 = vadd.f32 %v7723, 1.0
        %v7725 = vmul.f32 %v7724, %v6800
        %v7726 = vand.u32 2147483647, %v6800
        %vm7727 = vcmp.lt.f32.partialorder %v7726, 0.0004427343
        %v7728 = vsel %vm7727, %v7725, %v7722
        %v7729 = vadd.f32 %v6802, 1.0
        %v7730 = vlog2.pop %v7729
        %v7731 = vmul.f32 %v7730, 0.6931472
        %v7732 = vmul.f32 -0.5, %v6802
        %v7733 = vadd.f32 %v7732, 1.0
        %v7734 = vmul.f32 %v7733, %v6802
        %v7735 = vand.u32 2147483647, %v6802
        %vm7736 = vcmp.lt.f32.partialorder %v7735, 0.0004427343
        %v7737 = vsel %vm7736, %v7734, %v7731
        %v7738 = vadd.f32 %v6804, 1.0
        %v7739 = vlog2.pop %v7738
        %v7740 = vmul.f32 %v7739, 0.6931472
        %v7741 = vmul.f32 -0.5, %v6804
        %v7742 = vadd.f32 %v7741, 1.0
        %v7743 = vmul.f32 %v7742, %v6804
        %v7744 = vand.u32 2147483647, %v6804
        %vm7745 = vcmp.lt.f32.partialorder %v7744, 0.0004427343
        %v7746 = vsel %vm7745, %v7743, %v7740
        %v7747 = vadd.f32 %v6806, 1.0
        %v7748 = vlog2.pop %v7747
        %v7749 = vmul.f32 %v7748, 0.6931472
        %v7750 = vmul.f32 -0.5, %v6806
        %v7751 = vadd.f32 %v7750, 1.0
        %v7752 = vmul.f32 %v7751, %v6806
        %v7753 = vand.u32 2147483647, %v6806
        %vm7754 = vcmp.lt.f32.partialorder %v7753, 0.0004427343
        %v7755 = vsel %vm7754, %v7752, %v7749
        %v7756 = vadd.f32 %v6808, 1.0
        %v7757 = vlog2.pop %v7756
        %v7758 = vmul.f32 %v7757, 0.6931472
        %v7759 = vmul.f32 -0.5, %v6808
        %v7760 = vadd.f32 %v7759, 1.0
        %v7761 = vmul.f32 %v7760, %v6808
        %v7762 = vand.u32 2147483647, %v6808
        %vm7763 = vcmp.lt.f32.partialorder %v7762, 0.0004427343
        %v7764 = vsel %vm7763, %v7761, %v7758
        %v7765 = vadd.f32 %v6810, 1.0
        %v7766 = vlog2.pop %v7765
        %v7767 = vmul.f32 %v7766, 0.6931472
        %v7768 = vmul.f32 -0.5, %v6810
        %v7769 = vadd.f32 %v7768, 1.0
        %v7770 = vmul.f32 %v7769, %v6810
        %v7771 = vand.u32 2147483647, %v6810
        %vm7772 = vcmp.lt.f32.partialorder %v7771, 0.0004427343
        %v7773 = vsel %vm7772, %v7770, %v7767
        %v7774 = vadd.f32 %v6812, 1.0
        %v7775 = vlog2.pop %v7774
        %v7776 = vmul.f32 %v7775, 0.6931472
        %v7777 = vmul.f32 -0.5, %v6812
        %v7778 = vadd.f32 %v7777, 1.0
        %v7779 = vmul.f32 %v7778, %v6812
        %v7780 = vand.u32 2147483647, %v6812
        %vm7781 = vcmp.lt.f32.partialorder %v7780, 0.0004427343
        %v7782 = vsel %vm7781, %v7779, %v7776
        %v7783 = vadd.f32 %v6814, 1.0
        %v7784 = vlog2.pop %v7783
        %v7785 = vmul.f32 %v7784, 0.6931472
        %v7786 = vmul.f32 -0.5, %v6814
        %v7787 = vadd.f32 %v7786, 1.0
        %v7788 = vmul.f32 %v7787, %v6814
        %v7789 = vand.u32 2147483647, %v6814
        %vm7790 = vcmp.lt.f32.partialorder %v7789, 0.0004427343
        %v7791 = vsel %vm7790, %v7788, %v7785
        %v7792 = vadd.f32 %v6816, 1.0
        %v7793 = vlog2.pop %v7792
        %v7794 = vmul.f32 %v7793, 0.6931472
        %v7795 = vmul.f32 -0.5, %v6816
        %v7796 = vadd.f32 %v7795, 1.0
        %v7797 = vmul.f32 %v7796, %v6816
        %v7798 = vand.u32 2147483647, %v6816
        %vm7799 = vcmp.lt.f32.partialorder %v7798, 0.0004427343
        %v7800 = vsel %vm7799, %v7797, %v7794
        %v7801 = vadd.f32 %v6818, 1.0
        %v7802 = vlog2.pop %v7801
        %v7803 = vmul.f32 %v7802, 0.6931472
        %v7804 = vmul.f32 -0.5, %v6818
        %v7805 = vadd.f32 %v7804, 1.0
        %v7806 = vmul.f32 %v7805, %v6818
        %v7807 = vand.u32 2147483647, %v6818
        %vm7808 = vcmp.lt.f32.partialorder %v7807, 0.0004427343
        %v7809 = vsel %vm7808, %v7806, %v7803
        %v7810 = vadd.f32 %v6820, 1.0
        %v7811 = vlog2.pop %v7810
        %v7812 = vmul.f32 %v7811, 0.6931472
        %v7813 = vmul.f32 -0.5, %v6820
        %v7814 = vadd.f32 %v7813, 1.0
        %v7815 = vmul.f32 %v7814, %v6820
        %v7816 = vand.u32 2147483647, %v6820
        %vm7817 = vcmp.lt.f32.partialorder %v7816, 0.0004427343
        %v7818 = vsel %vm7817, %v7815, %v7812
        %v7819 = vadd.f32 %v6822, 1.0
        %v7820 = vlog2.pop %v7819
        %v7821 = vmul.f32 %v7820, 0.6931472
        %v7822 = vmul.f32 -0.5, %v6822
        %v7823 = vadd.f32 %v7822, 1.0
        %v7824 = vmul.f32 %v7823, %v6822
        %v7825 = vand.u32 2147483647, %v6822
        %vm7826 = vcmp.lt.f32.partialorder %v7825, 0.0004427343
        %v7827 = vsel %vm7826, %v7824, %v7821
        %v7828 = vadd.f32 %v6824, 1.0
        %v7829 = vlog2.pop %v7828
        %v7830 = vmul.f32 %v7829, 0.6931472
        %v7831 = vmul.f32 -0.5, %v6824
        %v7832 = vadd.f32 %v7831, 1.0
        %v7833 = vmul.f32 %v7832, %v6824
        %v7834 = vand.u32 2147483647, %v6824
        %vm7835 = vcmp.lt.f32.partialorder %v7834, 0.0004427343
        %v7836 = vsel %vm7835, %v7833, %v7830
        %v7837 = vadd.f32 %v6826, 1.0
        %v7838 = vlog2.pop %v7837
        %v7839 = vmul.f32 %v7838, 0.6931472
        %v7840 = vmul.f32 -0.5, %v6826
        %v7841 = vadd.f32 %v7840, 1.0
        %v7842 = vmul.f32 %v7841, %v6826
        %v7843 = vand.u32 2147483647, %v6826
        %vm7844 = vcmp.lt.f32.partialorder %v7843, 0.0004427343
        %v7845 = vsel %vm7844, %v7842, %v7839
        %v7846 = vadd.f32 %v6828, 1.0
        %v7847 = vlog2.pop %v7846
        %v7848 = vmul.f32 %v7847, 0.6931472
        %v7849 = vmul.f32 -0.5, %v6828
        %v7850 = vadd.f32 %v7849, 1.0
        %v7851 = vmul.f32 %v7850, %v6828
        %v7852 = vand.u32 2147483647, %v6828
        %vm7853 = vcmp.lt.f32.partialorder %v7852, 0.0004427343
        %v7854 = vsel %vm7853, %v7851, %v7848
        %v7855 = vadd.f32 %v6830, 1.0
        %v7856 = vlog2.pop %v7855
        %v7857 = vmul.f32 %v7856, 0.6931472
        %v7858 = vmul.f32 -0.5, %v6830
        %v7859 = vadd.f32 %v7858, 1.0
        %v7860 = vmul.f32 %v7859, %v6830
        %v7861 = vand.u32 2147483647, %v6830
        %vm7862 = vcmp.lt.f32.partialorder %v7861, 0.0004427343
        %v7863 = vsel %vm7862, %v7860, %v7857
        %v7864 = vadd.f32 %v6832, 1.0
        %v7865 = vlog2.pop %v7864
        %v7866 = vmul.f32 %v7865, 0.6931472
        %v7867 = vmul.f32 -0.5, %v6832
        %v7868 = vadd.f32 %v7867, 1.0
        %v7869 = vmul.f32 %v7868, %v6832
        %v7870 = vand.u32 2147483647, %v6832
        %vm7871 = vcmp.lt.f32.partialorder %v7870, 0.0004427343
        %v7872 = vsel %vm7871, %v7869, %v7866
        %v7873 = vadd.f32 %v6834, 1.0
        %v7874 = vlog2.pop %v7873
        %v7875 = vmul.f32 %v7874, 0.6931472
        %v7876 = vmul.f32 -0.5, %v6834
        %v7877 = vadd.f32 %v7876, 1.0
        %v7878 = vmul.f32 %v7877, %v6834
        %v7879 = vand.u32 2147483647, %v6834
        %vm7880 = vcmp.lt.f32.partialorder %v7879, 0.0004427343
        %v7881 = vsel %vm7880, %v7878, %v7875
        %v7882 = vadd.f32 %v6836, 1.0
        %v7883 = vlog2.pop %v7882
        %v7884 = vmul.f32 %v7883, 0.6931472
        %v7885 = vmul.f32 -0.5, %v6836
        %v7886 = vadd.f32 %v7885, 1.0
        %v7887 = vmul.f32 %v7886, %v6836
        %v7888 = vand.u32 2147483647, %v6836
        %vm7889 = vcmp.lt.f32.partialorder %v7888, 0.0004427343
        %v7890 = vsel %vm7889, %v7887, %v7884
        %v7891 = vadd.f32 %v6838, 1.0
        %v7892 = vlog2.pop %v7891
        %v7893 = vmul.f32 %v7892, 0.6931472
        %v7894 = vmul.f32 -0.5, %v6838
        %v7895 = vadd.f32 %v7894, 1.0
        %v7896 = vmul.f32 %v7895, %v6838
        %v7897 = vand.u32 2147483647, %v6838
        %vm7898 = vcmp.lt.f32.partialorder %v7897, 0.0004427343
        %v7899 = vsel %vm7898, %v7896, %v7893
        %v7900 = vadd.f32 %v6840, 1.0
        %v7901 = vlog2.pop %v7900
        %v7902 = vmul.f32 %v7901, 0.6931472
        %v7903 = vmul.f32 -0.5, %v6840
        %v7904 = vadd.f32 %v7903, 1.0
        %v7905 = vmul.f32 %v7904, %v6840
        %v7906 = vand.u32 2147483647, %v6840
        %vm7907 = vcmp.lt.f32.partialorder %v7906, 0.0004427343
        %v7908 = vsel %vm7907, %v7905, %v7902
        %v7909 = vadd.f32 %v6842, 1.0
        %v7910 = vlog2.pop %v7909
        %v7911 = vmul.f32 %v7910, 0.6931472
        %v7912 = vmul.f32 -0.5, %v6842
        %v7913 = vadd.f32 %v7912, 1.0
        %v7914 = vmul.f32 %v7913, %v6842
        %v7915 = vand.u32 2147483647, %v6842
        %vm7916 = vcmp.lt.f32.partialorder %v7915, 0.0004427343
        %v7917 = vsel %vm7916, %v7914, %v7911
        %v7918 = vadd.f32 %v6844, 1.0
        %v7919 = vlog2.pop %v7918
        %v7920 = vmul.f32 %v7919, 0.6931472
        %v7921 = vmul.f32 -0.5, %v6844
        %v7922 = vadd.f32 %v7921, 1.0
        %v7923 = vmul.f32 %v7922, %v6844
        %v7924 = vand.u32 2147483647, %v6844
        %vm7925 = vcmp.lt.f32.partialorder %v7924, 0.0004427343
        %v7926 = vsel %vm7925, %v7923, %v7920
        %v7927 = vadd.f32 %v6846, 1.0
        %v7928 = vlog2.pop %v7927
        %v7929 = vmul.f32 %v7928, 0.6931472
        %v7930 = vmul.f32 -0.5, %v6846
        %v7931 = vadd.f32 %v7930, 1.0
        %v7932 = vmul.f32 %v7931, %v6846
        %v7933 = vand.u32 2147483647, %v6846
        %vm7934 = vcmp.lt.f32.partialorder %v7933, 0.0004427343
        %v7935 = vsel %vm7934, %v7932, %v7929
        %v7936 = vadd.f32 %v6848, 1.0
        %v7937 = vlog2.pop %v7936
        %v7938 = vmul.f32 %v7937, 0.6931472
        %v7939 = vmul.f32 -0.5, %v6848
        %v7940 = vadd.f32 %v7939, 1.0
        %v7941 = vmul.f32 %v7940, %v6848
        %v7942 = vand.u32 2147483647, %v6848
        %vm7943 = vcmp.lt.f32.partialorder %v7942, 0.0004427343
        %v7944 = vsel %vm7943, %v7941, %v7938
        %v7945 = vadd.f32 %v6850, 1.0
        %v7946 = vlog2.pop %v7945
        %v7947 = vmul.f32 %v7946, 0.6931472
        %v7948 = vmul.f32 -0.5, %v6850
        %v7949 = vadd.f32 %v7948, 1.0
        %v7950 = vmul.f32 %v7949, %v6850
        %v7951 = vand.u32 2147483647, %v6850
        %vm7952 = vcmp.lt.f32.partialorder %v7951, 0.0004427343
        %v7953 = vsel %vm7952, %v7950, %v7947
        %v7954 = vadd.f32 %v6852, 1.0
        %v7955 = vlog2.pop %v7954
        %v7956 = vmul.f32 %v7955, 0.6931472
        %v7957 = vmul.f32 -0.5, %v6852
        %v7958 = vadd.f32 %v7957, 1.0
        %v7959 = vmul.f32 %v7958, %v6852
        %v7960 = vand.u32 2147483647, %v6852
        %vm7961 = vcmp.lt.f32.partialorder %v7960, 0.0004427343
        %v7962 = vsel %vm7961, %v7959, %v7956
        %v7963 = vadd.f32 %v6854, 1.0
        %v7964 = vlog2.pop %v7963
        %v7965 = vmul.f32 %v7964, 0.6931472
        %v7966 = vmul.f32 -0.5, %v6854
        %v7967 = vadd.f32 %v7966, 1.0
        %v7968 = vmul.f32 %v7967, %v6854
        %v7969 = vand.u32 2147483647, %v6854
        %vm7970 = vcmp.lt.f32.partialorder %v7969, 0.0004427343
        %v7971 = vsel %vm7970, %v7968, %v7965
        %v7972 = vadd.f32 %v6856, 1.0
        %v7973 = vlog2.pop %v7972
        %v7974 = vmul.f32 %v7973, 0.6931472
        %v7975 = vmul.f32 -0.5, %v6856
        %v7976 = vadd.f32 %v7975, 1.0
        %v7977 = vmul.f32 %v7976, %v6856
        %v7978 = vand.u32 2147483647, %v6856
        %vm7979 = vcmp.lt.f32.partialorder %v7978, 0.0004427343
        %v7980 = vsel %vm7979, %v7977, %v7974
        %v7981 = vadd.f32 %v6858, 1.0
        %v7982 = vlog2.pop %v7981
        %v7983 = vmul.f32 %v7982, 0.6931472
        %v7984 = vmul.f32 -0.5, %v6858
        %v7985 = vadd.f32 %v7984, 1.0
        %v7986 = vmul.f32 %v7985, %v6858
        %v7987 = vand.u32 2147483647, %v6858
        %vm7988 = vcmp.lt.f32.partialorder %v7987, 0.0004427343
        %v7989 = vsel %vm7988, %v7986, %v7983
        %v7990 = vadd.f32 %v6860, 1.0
        %v7991 = vlog2.pop %v7990
        %v7992 = vmul.f32 %v7991, 0.6931472
        %v7993 = vmul.f32 -0.5, %v6860
        %v7994 = vadd.f32 %v7993, 1.0
        %v7995 = vmul.f32 %v7994, %v6860
        %v7996 = vand.u32 2147483647, %v6860
        %vm7997 = vcmp.lt.f32.partialorder %v7996, 0.0004427343
        %v7998 = vsel %vm7997, %v7995, %v7992
        %v7999 = vadd.f32 %v6862, 1.0
        %v8000 = vlog2.pop %v7999
        %v8001 = vmul.f32 %v8000, 0.6931472
        %v8002 = vmul.f32 -0.5, %v6862
        %v8003 = vadd.f32 %v8002, 1.0
        %v8004 = vmul.f32 %v8003, %v6862
        %v8005 = vand.u32 2147483647, %v6862
        %vm8006 = vcmp.lt.f32.partialorder %v8005, 0.0004427343
        %v8007 = vsel %vm8006, %v8004, %v8001
        %v8008 = vadd.f32 %v6864, 1.0
        %v8009 = vlog2.pop %v8008
        %v8010 = vmul.f32 %v8009, 0.6931472
        %v8011 = vmul.f32 -0.5, %v6864
        %v8012 = vadd.f32 %v8011, 1.0
        %v8013 = vmul.f32 %v8012, %v6864
        %v8014 = vand.u32 2147483647, %v6864
        %vm8015 = vcmp.lt.f32.partialorder %v8014, 0.0004427343
        %v8016 = vsel %vm8015, %v8013, %v8010
        %v8017 = vadd.f32 %v6225, %v6873
        %v8018 = vadd.f32 %v6226, %v6882
        %v8019 = vadd.f32 %v6227, %v6891
        %v8020 = vadd.f32 %v6228, %v6900
        %v8021 = vadd.f32 %v6229, %v6909
        %v8022 = vadd.f32 %v6230, %v6918
        %v8023 = vadd.f32 %v6231, %v6927
        %v8024 = vadd.f32 %v6232, %v6936
        %v8025 = vadd.f32 %v6233, %v6945
        %v8026 = vadd.f32 %v6234, %v6954
        %v8027 = vadd.f32 %v6235, %v6963
        %v8028 = vadd.f32 %v6236, %v6972
        %v8029 = vadd.f32 %v6237, %v6981
        %v8030 = vadd.f32 %v6238, %v6990
        %v8031 = vadd.f32 %v6239, %v6999
        %v8032 = vadd.f32 %v6240, %v7008
        %v8033 = vadd.f32 %v6241, %v7017
        %v8034 = vadd.f32 %v6242, %v7026
        %v8035 = vadd.f32 %v6243, %v7035
        %v8036 = vadd.f32 %v6244, %v7044
        %v8037 = vadd.f32 %v6245, %v7053
        %v8038 = vadd.f32 %v6246, %v7062
        %v8039 = vadd.f32 %v6247, %v7071
        %v8040 = vadd.f32 %v6248, %v7080
        %v8041 = vadd.f32 %v6249, %v7089
        %v8042 = vadd.f32 %v6250, %v7098
        %v8043 = vadd.f32 %v6251, %v7107
        %v8044 = vadd.f32 %v6252, %v7116
        %v8045 = vadd.f32 %v6253, %v7125
        %v8046 = vadd.f32 %v6254, %v7134
        %v8047 = vadd.f32 %v6255, %v7143
        %v8048 = vadd.f32 %v6256, %v7152
        %v8049 = vadd.f32 %v6257, %v7161
        %v8050 = vadd.f32 %v6258, %v7170
        %v8051 = vadd.f32 %v6259, %v7179
        %v8052 = vadd.f32 %v6260, %v7188
        %v8053 = vadd.f32 %v6261, %v7197
        %v8054 = vadd.f32 %v6262, %v7206
        %v8055 = vadd.f32 %v6263, %v7215
        %v8056 = vadd.f32 %v6264, %v7224
        %v8057 = vadd.f32 %v6265, %v7233
        %v8058 = vadd.f32 %v6266, %v7242
        %v8059 = vadd.f32 %v6267, %v7251
        %v8060 = vadd.f32 %v6268, %v7260
        %v8061 = vadd.f32 %v6269, %v7269
        %v8062 = vadd.f32 %v6270, %v7278
        %v8063 = vadd.f32 %v6271, %v7287
        %v8064 = vadd.f32 %v6272, %v7296
        %v8065 = vadd.f32 %v6273, %v7305
        %v8066 = vadd.f32 %v6274, %v7314
        %v8067 = vadd.f32 %v6275, %v7323
        %v8068 = vadd.f32 %v6276, %v7332
        %v8069 = vadd.f32 %v6277, %v7341
        %v8070 = vadd.f32 %v6278, %v7350
        %v8071 = vadd.f32 %v6279, %v7359
        %v8072 = vadd.f32 %v6280, %v7368
        %v8073 = vadd.f32 %v6281, %v7377
        %v8074 = vadd.f32 %v6282, %v7386
        %v8075 = vadd.f32 %v6283, %v7395
        %v8076 = vadd.f32 %v6284, %v7404
        %v8077 = vadd.f32 %v6285, %v7413
        %v8078 = vadd.f32 %v6286, %v7422
        %v8079 = vadd.f32 %v6287, %v7431
        %v8080 = vadd.f32 %v6288, %v7440
        %v8081 = vadd.f32 %v6289, %v7449
        %v8082 = vadd.f32 %v6290, %v7458
        %v8083 = vadd.f32 %v6291, %v7467
        %v8084 = vadd.f32 %v6292, %v7476
        %v8085 = vadd.f32 %v6293, %v7485
        %v8086 = vadd.f32 %v6294, %v7494
        %v8087 = vadd.f32 %v6295, %v7503
        %v8088 = vadd.f32 %v6296, %v7512
        %v8089 = vadd.f32 %v6297, %v7521
        %v8090 = vadd.f32 %v6298, %v7530
        %v8091 = vadd.f32 %v6299, %v7539
        %v8092 = vadd.f32 %v6300, %v7548
        %v8093 = vadd.f32 %v6301, %v7557
        %v8094 = vadd.f32 %v6302, %v7566
        %v8095 = vadd.f32 %v6303, %v7575
        %v8096 = vadd.f32 %v6304, %v7584
        %v8097 = vadd.f32 %v6305, %v7593
        %v8098 = vadd.f32 %v6306, %v7602
        %v8099 = vadd.f32 %v6307, %v7611
        %v8100 = vadd.f32 %v6308, %v7620
        %v8101 = vadd.f32 %v6309, %v7629
        %v8102 = vadd.f32 %v6310, %v7638
        %v8103 = vadd.f32 %v6311, %v7647
        %v8104 = vadd.f32 %v6312, %v7656
        %v8105 = vadd.f32 %v6313, %v7665
        %v8106 = vadd.f32 %v6314, %v7674
        %v8107 = vadd.f32 %v6315, %v7683
        %v8108 = vadd.f32 %v6316, %v7692
        %v8109 = vadd.f32 %v6317, %v7701
        %v8110 = vadd.f32 %v6318, %v7710
        %v8111 = vadd.f32 %v6319, %v7719
        %v8112 = vadd.f32 %v6320, %v7728
        %v8113 = vadd.f32 %v6321, %v7737
        %v8114 = vadd.f32 %v6322, %v7746
        %v8115 = vadd.f32 %v6323, %v7755
        %v8116 = vadd.f32 %v6324, %v7764
        %v8117 = vadd.f32 %v6325, %v7773
        %v8118 = vadd.f32 %v6326, %v7782
        %v8119 = vadd.f32 %v6327, %v7791
        %v8120 = vadd.f32 %v6328, %v7800
        %v8121 = vadd.f32 %v6329, %v7809
        %v8122 = vadd.f32 %v6330, %v7818
        %v8123 = vadd.f32 %v6331, %v7827
        %v8124 = vadd.f32 %v6332, %v7836
        %v8125 = vadd.f32 %v6333, %v7845
        %v8126 = vadd.f32 %v6334, %v7854
        %v8127 = vadd.f32 %v6335, %v7863
        %v8128 = vadd.f32 %v6336, %v7872
        %v8129 = vadd.f32 %v6337, %v7881
        %v8130 = vadd.f32 %v6338, %v7890
        %v8131 = vadd.f32 %v6339, %v7899
        %v8132 = vadd.f32 %v6340, %v7908
        %v8133 = vadd.f32 %v6341, %v7917
        %v8134 = vadd.f32 %v6342, %v7926
        %v8135 = vadd.f32 %v6343, %v7935
        %v8136 = vadd.f32 %v6344, %v7944
        %v8137 = vadd.f32 %v6345, %v7953
        %v8138 = vadd.f32 %v6346, %v7962
        %v8139 = vadd.f32 %v6347, %v7971
        %v8140 = vadd.f32 %v6348, %v7980
        %v8141 = vadd.f32 %v6349, %v7989
        %v8142 = vadd.f32 %v6350, %v7998
        %v8143 = vadd.f32 %v6351, %v8007
        %v8144 = vadd.f32 %v6352, %v8016
        %v8273 = vrot.slane %v8018, 7
        %v8274 = vsel %vm817, %v8273, %v8017
        %v8275 = vrot.slane %v8019, 6
        %v8276 = vsel %vm821, %v8275, %v8274
        %v8277 = vrot.slane %v8020, 5
        %v8278 = vsel %vm825, %v8277, %v8276
        %v8279 = vrot.slane %v8021, 4
        %vm8280 = vcmask 1044484
        %v8281 = vsel %vm8280, %v8279, %v8278
        %v8282 = vrot.slane %v8022, 3
        %vm8283 = vcmask 1045509
        %v8284 = vsel %vm8283, %v8282, %v8281
        %v8285 = vrot.slane %v8023, 2
        %vm8286 = vcmask 1046534
        %v8287 = vsel %vm8286, %v8285, %v8284
        %v8288 = vrot.slane %v8024, 1
        %vm8289 = vcmask 1047559
        %v8290 = vsel %vm8289, %v8288, %v8287
        %v8291 = vrot.slane %v8026, 7
        %v8292 = vsel %vm817, %v8291, %v8025
        %v8293 = vrot.slane %v8027, 6
        %v8294 = vsel %vm821, %v8293, %v8292
        %v8295 = vrot.slane %v8028, 5
        %v8296 = vsel %vm825, %v8295, %v8294
        %v8297 = vrot.slane %v8029, 4
        %v8298 = vsel %vm8280, %v8297, %v8296
        %v8299 = vrot.slane %v8030, 3
        %v8300 = vsel %vm8283, %v8299, %v8298
        %v8301 = vrot.slane %v8031, 2
        %v8302 = vsel %vm8286, %v8301, %v8300
        %v8303 = vrot.slane %v8032, 1
        %v8304 = vsel %vm8289, %v8303, %v8302
        %v8305 = vrot.slane %v8034, 7
        %v8306 = vsel %vm817, %v8305, %v8033
        %v8307 = vrot.slane %v8035, 6
        %v8308 = vsel %vm821, %v8307, %v8306
        %v8309 = vrot.slane %v8036, 5
        %v8310 = vsel %vm825, %v8309, %v8308
        %v8311 = vrot.slane %v8037, 4
        %v8312 = vsel %vm8280, %v8311, %v8310
        %v8313 = vrot.slane %v8038, 3
        %v8314 = vsel %vm8283, %v8313, %v8312
        %v8315 = vrot.slane %v8039, 2
        %v8316 = vsel %vm8286, %v8315, %v8314
        %v8317 = vrot.slane %v8040, 1
        %v8318 = vsel %vm8289, %v8317, %v8316
        %v8319 = vrot.slane %v8042, 7
        %v8320 = vsel %vm817, %v8319, %v8041
        %v8321 = vrot.slane %v8043, 6
        %v8322 = vsel %vm821, %v8321, %v8320
        %v8323 = vrot.slane %v8044, 5
        %v8324 = vsel %vm825, %v8323, %v8322
        %v8325 = vrot.slane %v8045, 4
        %v8326 = vsel %vm8280, %v8325, %v8324
        %v8327 = vrot.slane %v8046, 3
        %v8328 = vsel %vm8283, %v8327, %v8326
        %v8329 = vrot.slane %v8047, 2
        %v8330 = vsel %vm8286, %v8329, %v8328
        %v8331 = vrot.slane %v8048, 1
        %v8332 = vsel %vm8289, %v8331, %v8330
        %v8333 = vrot.slane %v8050, 7
        %v8334 = vsel %vm817, %v8333, %v8049
        %v8335 = vrot.slane %v8051, 6
        %v8336 = vsel %vm821, %v8335, %v8334
        %v8337 = vrot.slane %v8052, 5
        %v8338 = vsel %vm825, %v8337, %v8336
        %v8339 = vrot.slane %v8053, 4
        %v8340 = vsel %vm8280, %v8339, %v8338
        %v8341 = vrot.slane %v8054, 3
        %v8342 = vsel %vm8283, %v8341, %v8340
        %v8343 = vrot.slane %v8055, 2
        %v8344 = vsel %vm8286, %v8343, %v8342
        %v8345 = vrot.slane %v8056, 1
        %v8346 = vsel %vm8289, %v8345, %v8344
        %v8347 = vrot.slane %v8058, 7
        %v8348 = vsel %vm817, %v8347, %v8057
        %v8349 = vrot.slane %v8059, 6
        %v8350 = vsel %vm821, %v8349, %v8348
        %v8351 = vrot.slane %v8060, 5
        %v8352 = vsel %vm825, %v8351, %v8350
        %v8353 = vrot.slane %v8061, 4
        %v8354 = vsel %vm8280, %v8353, %v8352
        %v8355 = vrot.slane %v8062, 3
        %v8356 = vsel %vm8283, %v8355, %v8354
        %v8357 = vrot.slane %v8063, 2
        %v8358 = vsel %vm8286, %v8357, %v8356
        %v8359 = vrot.slane %v8064, 1
        %v8360 = vsel %vm8289, %v8359, %v8358
        %v8361 = vrot.slane %v8066, 7
        %v8362 = vsel %vm817, %v8361, %v8065
        %v8363 = vrot.slane %v8067, 6
        %v8364 = vsel %vm821, %v8363, %v8362
        %v8365 = vrot.slane %v8068, 5
        %v8366 = vsel %vm825, %v8365, %v8364
        %v8367 = vrot.slane %v8069, 4
        %v8368 = vsel %vm8280, %v8367, %v8366
        %v8369 = vrot.slane %v8070, 3
        %v8370 = vsel %vm8283, %v8369, %v8368
        %v8371 = vrot.slane %v8071, 2
        %v8372 = vsel %vm8286, %v8371, %v8370
        %v8373 = vrot.slane %v8072, 1
        %v8374 = vsel %vm8289, %v8373, %v8372
        %v8375 = vrot.slane %v8074, 7
        %v8376 = vsel %vm817, %v8375, %v8073
        %v8377 = vrot.slane %v8075, 6
        %v8378 = vsel %vm821, %v8377, %v8376
        %v8379 = vrot.slane %v8076, 5
        %v8380 = vsel %vm825, %v8379, %v8378
        %v8381 = vrot.slane %v8077, 4
        %v8382 = vsel %vm8280, %v8381, %v8380
        %v8383 = vrot.slane %v8078, 3
        %v8384 = vsel %vm8283, %v8383, %v8382
        %v8385 = vrot.slane %v8079, 2
        %v8386 = vsel %vm8286, %v8385, %v8384
        %v8387 = vrot.slane %v8080, 1
        %v8388 = vsel %vm8289, %v8387, %v8386
        %v8389 = vrot.slane %v8082, 7
        %v8390 = vsel %vm817, %v8389, %v8081
        %v8391 = vrot.slane %v8083, 6
        %v8392 = vsel %vm821, %v8391, %v8390
        %v8393 = vrot.slane %v8084, 5
        %v8394 = vsel %vm825, %v8393, %v8392
        %v8395 = vrot.slane %v8085, 4
        %v8396 = vsel %vm8280, %v8395, %v8394
        %v8397 = vrot.slane %v8086, 3
        %v8398 = vsel %vm8283, %v8397, %v8396
        %v8399 = vrot.slane %v8087, 2
        %v8400 = vsel %vm8286, %v8399, %v8398
        %v8401 = vrot.slane %v8088, 1
        %v8402 = vsel %vm8289, %v8401, %v8400
        %v8403 = vrot.slane %v8090, 7
        %v8404 = vsel %vm817, %v8403, %v8089
        %v8405 = vrot.slane %v8091, 6
        %v8406 = vsel %vm821, %v8405, %v8404
        %v8407 = vrot.slane %v8092, 5
        %v8408 = vsel %vm825, %v8407, %v8406
        %v8409 = vrot.slane %v8093, 4
        %v8410 = vsel %vm8280, %v8409, %v8408
        %v8411 = vrot.slane %v8094, 3
        %v8412 = vsel %vm8283, %v8411, %v8410
        %v8413 = vrot.slane %v8095, 2
        %v8414 = vsel %vm8286, %v8413, %v8412
        %v8415 = vrot.slane %v8096, 1
        %v8416 = vsel %vm8289, %v8415, %v8414
        %v8417 = vrot.slane %v8098, 7
        %v8418 = vsel %vm817, %v8417, %v8097
        %v8419 = vrot.slane %v8099, 6
        %v8420 = vsel %vm821, %v8419, %v8418
        %v8421 = vrot.slane %v8100, 5
        %v8422 = vsel %vm825, %v8421, %v8420
        %v8423 = vrot.slane %v8101, 4
        %v8424 = vsel %vm8280, %v8423, %v8422
        %v8425 = vrot.slane %v8102, 3
        %v8426 = vsel %vm8283, %v8425, %v8424
        %v8427 = vrot.slane %v8103, 2
        %v8428 = vsel %vm8286, %v8427, %v8426
        %v8429 = vrot.slane %v8104, 1
        %v8430 = vsel %vm8289, %v8429, %v8428
        %v8431 = vrot.slane %v8106, 7
        %v8432 = vsel %vm817, %v8431, %v8105
        %v8433 = vrot.slane %v8107, 6
        %v8434 = vsel %vm821, %v8433, %v8432
        %v8435 = vrot.slane %v8108, 5
        %v8436 = vsel %vm825, %v8435, %v8434
        %v8437 = vrot.slane %v8109, 4
        %v8438 = vsel %vm8280, %v8437, %v8436
        %v8439 = vrot.slane %v8110, 3
        %v8440 = vsel %vm8283, %v8439, %v8438
        %v8441 = vrot.slane %v8111, 2
        %v8442 = vsel %vm8286, %v8441, %v8440
        %v8443 = vrot.slane %v8112, 1
        %v8444 = vsel %vm8289, %v8443, %v8442
        %v8445 = vrot.slane %v8114, 7
        %v8446 = vsel %vm817, %v8445, %v8113
        %v8447 = vrot.slane %v8115, 6
        %v8448 = vsel %vm821, %v8447, %v8446
        %v8449 = vrot.slane %v8116, 5
        %v8450 = vsel %vm825, %v8449, %v8448
        %v8451 = vrot.slane %v8117, 4
        %v8452 = vsel %vm8280, %v8451, %v8450
        %v8453 = vrot.slane %v8118, 3
        %v8454 = vsel %vm8283, %v8453, %v8452
        %v8455 = vrot.slane %v8119, 2
        %v8456 = vsel %vm8286, %v8455, %v8454
        %v8457 = vrot.slane %v8120, 1
        %v8458 = vsel %vm8289, %v8457, %v8456
        %v8459 = vrot.slane %v8122, 7
        %v8460 = vsel %vm817, %v8459, %v8121
        %v8461 = vrot.slane %v8123, 6
        %v8462 = vsel %vm821, %v8461, %v8460
        %v8463 = vrot.slane %v8124, 5
        %v8464 = vsel %vm825, %v8463, %v8462
        %v8465 = vrot.slane %v8125, 4
        %v8466 = vsel %vm8280, %v8465, %v8464
        %v8467 = vrot.slane %v8126, 3
        %v8468 = vsel %vm8283, %v8467, %v8466
        %v8469 = vrot.slane %v8127, 2
        %v8470 = vsel %vm8286, %v8469, %v8468
        %v8471 = vrot.slane %v8128, 1
        %v8472 = vsel %vm8289, %v8471, %v8470
        %v8473 = vrot.slane %v8130, 7
        %v8474 = vsel %vm817, %v8473, %v8129
        %v8475 = vrot.slane %v8131, 6
        %v8476 = vsel %vm821, %v8475, %v8474
        %v8477 = vrot.slane %v8132, 5
        %v8478 = vsel %vm825, %v8477, %v8476
        %v8479 = vrot.slane %v8133, 4
        %v8480 = vsel %vm8280, %v8479, %v8478
        %v8481 = vrot.slane %v8134, 3
        %v8482 = vsel %vm8283, %v8481, %v8480
        %v8483 = vrot.slane %v8135, 2
        %v8484 = vsel %vm8286, %v8483, %v8482
        %v8485 = vrot.slane %v8136, 1
        %v8486 = vsel %vm8289, %v8485, %v8484
        %v8487 = vrot.slane %v8138, 7
        %v8488 = vsel %vm817, %v8487, %v8137
        %v8489 = vrot.slane %v8139, 6
        %v8490 = vsel %vm821, %v8489, %v8488
        %v8491 = vrot.slane %v8140, 5
        %v8492 = vsel %vm825, %v8491, %v8490
        %v8493 = vrot.slane %v8141, 4
        %v8494 = vsel %vm8280, %v8493, %v8492
        %v8495 = vrot.slane %v8142, 3
        %v8496 = vsel %vm8283, %v8495, %v8494
        %v8497 = vrot.slane %v8143, 2
        %v8498 = vsel %vm8286, %v8497, %v8496
        %v8499 = vrot.slane %v8144, 1
        %v8500 = vsel %vm8289, %v8499, %v8498
        %v8517 = vmul.f32 %v667, %v8290
        %v8518 = vmul.f32 %v668, %v8304
        %v8519 = vmul.f32 %v669, %v8318
        %v8520 = vmul.f32 %v670, %v8332
        %v8521 = vmul.f32 %v671, %v8346
        %v8522 = vmul.f32 %v672, %v8360
        %v8523 = vmul.f32 %v673, %v8374
        %v8524 = vmul.f32 %v674, %v8388
        %v8525 = vmul.f32 %v675, %v8402
        %v8526 = vmul.f32 %v676, %v8416
        %v8527 = vmul.f32 %v677, %v8430
        %v8528 = vmul.f32 %v678, %v8444
        %v8529 = vmul.f32 %v679, %v8458
        %v8530 = vmul.f32 %v680, %v8472
        %v8531 = vmul.f32 %v681, %v8486
        %v8532 = vmul.f32 %v682, %v8500
        %vm8533 = vcmask 31744
        %v8534 = vsel %vm8533, %v8517, 0.0
        %8535 = vadd.xlane.f32.xlu0 %v8534
        %v8536 = vpop.xlane.xlu0 %8535
        %v8537 = vsel %vm8533, %v8518, 0.0
        %8538 = vadd.xlane.f32.xlu0 %v8537
        %v8539 = vpop.xlane.xlu0 %8538
        %v8540 = vsel %vm8533, %v8519, 0.0
        %8541 = vadd.xlane.f32.xlu0 %v8540
        %v8542 = vpop.xlane.xlu0 %8541
        %v8543 = vsel %vm8533, %v8520, 0.0
        %8544 = vadd.xlane.f32.xlu0 %v8543
        %v8545 = vpop.xlane.xlu0 %8544
        %v8546 = vsel %vm8533, %v8521, 0.0
        %8547 = vadd.xlane.f32.xlu0 %v8546
        %v8548 = vpop.xlane.xlu0 %8547
        %v8549 = vsel %vm8533, %v8522, 0.0
        %8550 = vadd.xlane.f32.xlu0 %v8549
        %v8551 = vpop.xlane.xlu0 %8550
        %v8552 = vsel %vm8533, %v8523, 0.0
        %8553 = vadd.xlane.f32.xlu0 %v8552
        %v8554 = vpop.xlane.xlu0 %8553
        %v8555 = vsel %vm8533, %v8524, 0.0
        %8556 = vadd.xlane.f32.xlu0 %v8555
        %v8557 = vpop.xlane.xlu0 %8556
        %v8558 = vsel %vm8533, %v8525, 0.0
        %8559 = vadd.xlane.f32.xlu0 %v8558
        %v8560 = vpop.xlane.xlu0 %8559
        %v8561 = vsel %vm8533, %v8526, 0.0
        %8562 = vadd.xlane.f32.xlu0 %v8561
        %v8563 = vpop.xlane.xlu0 %8562
        %v8564 = vsel %vm8533, %v8527, 0.0
        %8565 = vadd.xlane.f32.xlu0 %v8564
        %v8566 = vpop.xlane.xlu0 %8565
        %v8567 = vsel %vm8533, %v8528, 0.0
        %8568 = vadd.xlane.f32.xlu0 %v8567
        %v8569 = vpop.xlane.xlu0 %8568
        %v8570 = vsel %vm8533, %v8529, 0.0
        %8571 = vadd.xlane.f32.xlu0 %v8570
        %v8572 = vpop.xlane.xlu0 %8571
        %v8573 = vsel %vm8533, %v8530, 0.0
        %8574 = vadd.xlane.f32.xlu0 %v8573
        %v8575 = vpop.xlane.xlu0 %8574
        %v8576 = vsel %vm8533, %v8531, 0.0
        %8577 = vadd.xlane.f32.xlu0 %v8576
        %v8578 = vpop.xlane.xlu0 %8577
        %v8579 = vsel %vm8533, %v8532, 0.0
        %8580 = vadd.xlane.f32.xlu0 %v8579
        %v8581 = vpop.xlane.xlu0 %8580
        %v8582 = vrcp.pop 4.0
        %v8583 = vmul.f32 4.0, %v8582
        %v8584 = vsub.f32 1.0, %v8583
        %v8585 = vmul.f32 %v8582, %v8584
        %v8586 = vadd.f32 %v8582, %v8585
        %vm8587 = vweird.f32 %v8582
        %v8588 = vsel %vm8587, %v8582, %v8586
        %v8589 = vmul.f32 %v8536, %v8588
        %v8590 = vmul.f32 %v8539, %v8588
        %v8591 = vmul.f32 %v8542, %v8588
        %v8592 = vmul.f32 %v8545, %v8588
        %v8593 = vmul.f32 %v8548, %v8588
        %v8594 = vmul.f32 %v8551, %v8588
        %v8595 = vmul.f32 %v8554, %v8588
        %v8596 = vmul.f32 %v8557, %v8588
        %v8597 = vmul.f32 %v8560, %v8588
        %v8598 = vmul.f32 %v8563, %v8588
        %v8599 = vmul.f32 %v8566, %v8588
        %v8600 = vmul.f32 %v8569, %v8588
        %v8601 = vmul.f32 %v8572, %v8588
        %v8602 = vmul.f32 %v8575, %v8588
        %v8603 = vmul.f32 %v8578, %v8588
        %v8604 = vmul.f32 %v8581, %v8588
        %v8621 = vperm.slane %v8589, %v6161
        %v8622 = vperm.slane %v8590, %v6163
        %v8623 = vsel %vm6165, %v8622, %v8621
        %v8624 = vperm.slane %v8591, %v6167
        %v8625 = vsel %vm6169, %v8624, %v8623
        %v8626 = vperm.slane %v8592, %v6171
        %v8627 = vsel %vm6173, %v8626, %v8625
        %v8628 = vperm.slane %v8593, %v6175
        %v8629 = vsel %vm6177, %v8628, %v8627
        %v8630 = vperm.slane %v8594, %v6179
        %v8631 = vsel %vm6181, %v8630, %v8629
        %v8632 = vperm.slane %v8595, %v6183
        %v8633 = vsel %vm6185, %v8632, %v8631
        %v8634 = vperm.slane %v8596, %v6187
        %v8635 = vsel %vm6189, %v8634, %v8633
        %v8636 = vperm.slane %v8597, %v6191
        %v8637 = vsel %vm6193, %v8636, %v8635
        %v8638 = vperm.slane %v8598, %v6195
        %v8639 = vsel %vm6197, %v8638, %v8637
        %v8640 = vperm.slane %v8599, %v6199
        %v8641 = vsel %vm6201, %v8640, %v8639
        %v8642 = vperm.slane %v8600, %v6203
        %v8643 = vsel %vm6205, %v8642, %v8641
        %v8644 = vperm.slane %v8601, %v6207
        %v8645 = vsel %vm6209, %v8644, %v8643
        %v8646 = vperm.slane %v8602, %v6211
        %v8647 = vsel %vm6213, %v8646, %v8645
        %v8648 = vperm.slane %v8603, %v6215
        %v8649 = vsel %vm6217, %v8648, %v8647
        %v8650 = vperm.slane %v8604, %v6219
        %v8651 = vsel %vm6221, %v8650, %v8649
        %8653 = vst [vmem:[%s325 + $0x1] sm:$0x1] %v8651
        %v8654 = vsub.f32 0.0, %v3853
        %v8655 = vsub.f32 0.0, %v3869
        %v8656 = vsub.f32 0.0, %v3885
        %v8657 = vsub.f32 0.0, %v3901
        %v8658 = vsub.f32 0.0, %v3917
        %v8659 = vsub.f32 0.0, %v3933
        %v8660 = vsub.f32 0.0, %v3949
        %v8661 = vsub.f32 0.0, %v3965
        %v8662 = vsub.f32 0.0, %v3981
        %v8663 = vsub.f32 0.0, %v3997
        %v8664 = vsub.f32 0.0, %v4013
        %v8665 = vsub.f32 0.0, %v4029
        %v8666 = vsub.f32 0.0, %v4045
        %v8667 = vsub.f32 0.0, %v4061
        %v8668 = vsub.f32 0.0, %v4077
        %v8669 = vsub.f32 0.0, %v4093
        %v8670 = vsub.f32 0.0, %v4109
        %v8671 = vsub.f32 0.0, %v4125
        %v8672 = vsub.f32 0.0, %v4141
        %v8673 = vsub.f32 0.0, %v4157
        %v8674 = vsub.f32 0.0, %v4173
        %v8675 = vsub.f32 0.0, %v4189
        %v8676 = vsub.f32 0.0, %v4205
        %v8677 = vsub.f32 0.0, %v4221
        %v8678 = vsub.f32 0.0, %v4237
        %v8679 = vsub.f32 0.0, %v4253
        %v8680 = vsub.f32 0.0, %v4269
        %v8681 = vsub.f32 0.0, %v4285
        %v8682 = vsub.f32 0.0, %v4301
        %v8683 = vsub.f32 0.0, %v4317
        %v8684 = vsub.f32 0.0, %v4333
        %v8685 = vsub.f32 0.0, %v4349
        %v8686 = vsub.f32 0.0, %v4365
        %v8687 = vsub.f32 0.0, %v4381
        %v8688 = vsub.f32 0.0, %v4397
        %v8689 = vsub.f32 0.0, %v4413
        %v8690 = vsub.f32 0.0, %v4429
        %v8691 = vsub.f32 0.0, %v4445
        %v8692 = vsub.f32 0.0, %v4461
        %v8693 = vsub.f32 0.0, %v4477
        %v8694 = vsub.f32 0.0, %v4493
        %v8695 = vsub.f32 0.0, %v4509
        %v8696 = vsub.f32 0.0, %v4525
        %v8697 = vsub.f32 0.0, %v4541
        %v8698 = vsub.f32 0.0, %v4557
        %v8699 = vsub.f32 0.0, %v4573
        %v8700 = vsub.f32 0.0, %v4589
        %v8701 = vsub.f32 0.0, %v4605
        %v8702 = vsub.f32 0.0, %v4621
        %v8703 = vsub.f32 0.0, %v4637
        %v8704 = vsub.f32 0.0, %v4653
        %v8705 = vsub.f32 0.0, %v4669
        %v8706 = vsub.f32 0.0, %v4685
        %v8707 = vsub.f32 0.0, %v4701
        %v8708 = vsub.f32 0.0, %v4717
        %v8709 = vsub.f32 0.0, %v4733
        %v8710 = vsub.f32 0.0, %v4749
        %v8711 = vsub.f32 0.0, %v4765
        %v8712 = vsub.f32 0.0, %v4781
        %v8713 = vsub.f32 0.0, %v4797
        %v8714 = vsub.f32 0.0, %v4813
        %v8715 = vsub.f32 0.0, %v4829
        %v8716 = vsub.f32 0.0, %v4845
        %v8717 = vsub.f32 0.0, %v4861
        %v8718 = vsub.f32 0.0, %v4877
        %v8719 = vsub.f32 0.0, %v4893
        %v8720 = vsub.f32 0.0, %v4909
        %v8721 = vsub.f32 0.0, %v4925
        %v8722 = vsub.f32 0.0, %v4941
        %v8723 = vsub.f32 0.0, %v4957
        %v8724 = vsub.f32 0.0, %v4973
        %v8725 = vsub.f32 0.0, %v4989
        %v8726 = vsub.f32 0.0, %v5005
        %v8727 = vsub.f32 0.0, %v5021
        %v8728 = vsub.f32 0.0, %v5037
        %v8729 = vsub.f32 0.0, %v5053
        %v8730 = vsub.f32 0.0, %v5069
        %v8731 = vsub.f32 0.0, %v5085
        %v8732 = vsub.f32 0.0, %v5101
        %v8733 = vsub.f32 0.0, %v5117
        %v8734 = vsub.f32 0.0, %v5133
        %v8735 = vsub.f32 0.0, %v5149
        %v8736 = vsub.f32 0.0, %v5165
        %v8737 = vsub.f32 0.0, %v5181
        %v8738 = vsub.f32 0.0, %v5197
        %v8739 = vsub.f32 0.0, %v5213
        %v8740 = vsub.f32 0.0, %v5229
        %v8741 = vsub.f32 0.0, %v5245
        %v8742 = vsub.f32 0.0, %v5261
        %v8743 = vsub.f32 0.0, %v5277
        %v8744 = vsub.f32 0.0, %v5293
        %v8745 = vsub.f32 0.0, %v5309
        %v8746 = vsub.f32 0.0, %v5325
        %v8747 = vsub.f32 0.0, %v5341
        %v8748 = vsub.f32 0.0, %v5357
        %v8749 = vsub.f32 0.0, %v5373
        %v8750 = vsub.f32 0.0, %v5389
        %v8751 = vsub.f32 0.0, %v5405
        %v8752 = vsub.f32 0.0, %v5421
        %v8753 = vsub.f32 0.0, %v5437
        %v8754 = vsub.f32 0.0, %v5453
        %v8755 = vsub.f32 0.0, %v5469
        %v8756 = vsub.f32 0.0, %v5485
        %v8757 = vsub.f32 0.0, %v5501
        %v8758 = vsub.f32 0.0, %v5517
        %v8759 = vsub.f32 0.0, %v5533
        %v8760 = vsub.f32 0.0, %v5549
        %v8761 = vsub.f32 0.0, %v5565
        %v8762 = vsub.f32 0.0, %v5581
        %v8763 = vsub.f32 0.0, %v5597
        %v8764 = vsub.f32 0.0, %v5613
        %v8765 = vsub.f32 0.0, %v5629
        %v8766 = vsub.f32 0.0, %v5645
        %v8767 = vsub.f32 0.0, %v5661
        %v8768 = vsub.f32 0.0, %v5677
        %v8769 = vsub.f32 0.0, %v5693
        %v8770 = vsub.f32 0.0, %v5709
        %v8771 = vsub.f32 0.0, %v5725
        %v8772 = vsub.f32 0.0, %v5741
        %v8773 = vsub.f32 0.0, %v5757
        %v8774 = vsub.f32 0.0, %v5773
        %v8775 = vsub.f32 0.0, %v5789
        %v8776 = vsub.f32 0.0, %v5805
        %v8777 = vsub.f32 0.0, %v5821
        %v8778 = vsub.f32 0.0, %v5837
        %v8779 = vsub.f32 0.0, %v5853
        %v8780 = vsub.f32 0.0, %v5869
        %v8781 = vsub.f32 0.0, %v5885
        %v8782 = vmax.f32 %v8654, 0.0
        %v8783 = vmax.f32 %v8655, 0.0
        %v8784 = vmax.f32 %v8656, 0.0
        %v8785 = vmax.f32 %v8657, 0.0
        %v8786 = vmax.f32 %v8658, 0.0
        %v8787 = vmax.f32 %v8659, 0.0
        %v8788 = vmax.f32 %v8660, 0.0
        %v8789 = vmax.f32 %v8661, 0.0
        %v8790 = vmax.f32 %v8662, 0.0
        %v8791 = vmax.f32 %v8663, 0.0
        %v8792 = vmax.f32 %v8664, 0.0
        %v8793 = vmax.f32 %v8665, 0.0
        %v8794 = vmax.f32 %v8666, 0.0
        %v8795 = vmax.f32 %v8667, 0.0
        %v8796 = vmax.f32 %v8668, 0.0
        %v8797 = vmax.f32 %v8669, 0.0
        %v8798 = vmax.f32 %v8670, 0.0
        %v8799 = vmax.f32 %v8671, 0.0
        %v8800 = vmax.f32 %v8672, 0.0
        %v8801 = vmax.f32 %v8673, 0.0
        %v8802 = vmax.f32 %v8674, 0.0
        %v8803 = vmax.f32 %v8675, 0.0
        %v8804 = vmax.f32 %v8676, 0.0
        %v8805 = vmax.f32 %v8677, 0.0
        %v8806 = vmax.f32 %v8678, 0.0
        %v8807 = vmax.f32 %v8679, 0.0
        %v8808 = vmax.f32 %v8680, 0.0
        %v8809 = vmax.f32 %v8681, 0.0
        %v8810 = vmax.f32 %v8682, 0.0
        %v8811 = vmax.f32 %v8683, 0.0
        %v8812 = vmax.f32 %v8684, 0.0
        %v8813 = vmax.f32 %v8685, 0.0
        %v8814 = vmax.f32 %v8686, 0.0
        %v8815 = vmax.f32 %v8687, 0.0
        %v8816 = vmax.f32 %v8688, 0.0
        %v8817 = vmax.f32 %v8689, 0.0
        %v8818 = vmax.f32 %v8690, 0.0
        %v8819 = vmax.f32 %v8691, 0.0
        %v8820 = vmax.f32 %v8692, 0.0
        %v8821 = vmax.f32 %v8693, 0.0
        %v8822 = vmax.f32 %v8694, 0.0
        %v8823 = vmax.f32 %v8695, 0.0
        %v8824 = vmax.f32 %v8696, 0.0
        %v8825 = vmax.f32 %v8697, 0.0
        %v8826 = vmax.f32 %v8698, 0.0
        %v8827 = vmax.f32 %v8699, 0.0
        %v8828 = vmax.f32 %v8700, 0.0
        %v8829 = vmax.f32 %v8701, 0.0
        %v8830 = vmax.f32 %v8702, 0.0
        %v8831 = vmax.f32 %v8703, 0.0
        %v8832 = vmax.f32 %v8704, 0.0
        %v8833 = vmax.f32 %v8705, 0.0
        %v8834 = vmax.f32 %v8706, 0.0
        %v8835 = vmax.f32 %v8707, 0.0
        %v8836 = vmax.f32 %v8708, 0.0
        %v8837 = vmax.f32 %v8709, 0.0
        %v8838 = vmax.f32 %v8710, 0.0
        %v8839 = vmax.f32 %v8711, 0.0
        %v8840 = vmax.f32 %v8712, 0.0
        %v8841 = vmax.f32 %v8713, 0.0
        %v8842 = vmax.f32 %v8714, 0.0
        %v8843 = vmax.f32 %v8715, 0.0
        %v8844 = vmax.f32 %v8716, 0.0
        %v8845 = vmax.f32 %v8717, 0.0
        %v8846 = vmax.f32 %v8718, 0.0
        %v8847 = vmax.f32 %v8719, 0.0
        %v8848 = vmax.f32 %v8720, 0.0
        %v8849 = vmax.f32 %v8721, 0.0
        %v8850 = vmax.f32 %v8722, 0.0
        %v8851 = vmax.f32 %v8723, 0.0
        %v8852 = vmax.f32 %v8724, 0.0
        %v8853 = vmax.f32 %v8725, 0.0
        %v8854 = vmax.f32 %v8726, 0.0
        %v8855 = vmax.f32 %v8727, 0.0
        %v8856 = vmax.f32 %v8728, 0.0
        %v8857 = vmax.f32 %v8729, 0.0
        %v8858 = vmax.f32 %v8730, 0.0
        %v8859 = vmax.f32 %v8731, 0.0
        %v8860 = vmax.f32 %v8732, 0.0
        %v8861 = vmax.f32 %v8733, 0.0
        %v8862 = vmax.f32 %v8734, 0.0
        %v8863 = vmax.f32 %v8735, 0.0
        %v8864 = vmax.f32 %v8736, 0.0
        %v8865 = vmax.f32 %v8737, 0.0
        %v8866 = vmax.f32 %v8738, 0.0
        %v8867 = vmax.f32 %v8739, 0.0
        %v8868 = vmax.f32 %v8740, 0.0
        %v8869 = vmax.f32 %v8741, 0.0
        %v8870 = vmax.f32 %v8742, 0.0
        %v8871 = vmax.f32 %v8743, 0.0
        %v8872 = vmax.f32 %v8744, 0.0
        %v8873 = vmax.f32 %v8745, 0.0
        %v8874 = vmax.f32 %v8746, 0.0
        %v8875 = vmax.f32 %v8747, 0.0
        %v8876 = vmax.f32 %v8748, 0.0
        %v8877 = vmax.f32 %v8749, 0.0
        %v8878 = vmax.f32 %v8750, 0.0
        %v8879 = vmax.f32 %v8751, 0.0
        %v8880 = vmax.f32 %v8752, 0.0
        %v8881 = vmax.f32 %v8753, 0.0
        %v8882 = vmax.f32 %v8754, 0.0
        %v8883 = vmax.f32 %v8755, 0.0
        %v8884 = vmax.f32 %v8756, 0.0
        %v8885 = vmax.f32 %v8757, 0.0
        %v8886 = vmax.f32 %v8758, 0.0
        %v8887 = vmax.f32 %v8759, 0.0
        %v8888 = vmax.f32 %v8760, 0.0
        %v8889 = vmax.f32 %v8761, 0.0
        %v8890 = vmax.f32 %v8762, 0.0
        %v8891 = vmax.f32 %v8763, 0.0
        %v8892 = vmax.f32 %v8764, 0.0
        %v8893 = vmax.f32 %v8765, 0.0
        %v8894 = vmax.f32 %v8766, 0.0
        %v8895 = vmax.f32 %v8767, 0.0
        %v8896 = vmax.f32 %v8768, 0.0
        %v8897 = vmax.f32 %v8769, 0.0
        %v8898 = vmax.f32 %v8770, 0.0
        %v8899 = vmax.f32 %v8771, 0.0
        %v8900 = vmax.f32 %v8772, 0.0
        %v8901 = vmax.f32 %v8773, 0.0
        %v8902 = vmax.f32 %v8774, 0.0
        %v8903 = vmax.f32 %v8775, 0.0
        %v8904 = vmax.f32 %v8776, 0.0
        %v8905 = vmax.f32 %v8777, 0.0
        %v8906 = vmax.f32 %v8778, 0.0
        %v8907 = vmax.f32 %v8779, 0.0
        %v8908 = vmax.f32 %v8780, 0.0
        %v8909 = vmax.f32 %v8781, 0.0
        %v8910 = vand.u32 2147483647, %v8654
        %v8911 = vand.u32 2147483647, %v8655
        %v8912 = vand.u32 2147483647, %v8656
        %v8913 = vand.u32 2147483647, %v8657
        %v8914 = vand.u32 2147483647, %v8658
        %v8915 = vand.u32 2147483647, %v8659
        %v8916 = vand.u32 2147483647, %v8660
        %v8917 = vand.u32 2147483647, %v8661
        %v8918 = vand.u32 2147483647, %v8662
        %v8919 = vand.u32 2147483647, %v8663
        %v8920 = vand.u32 2147483647, %v8664
        %v8921 = vand.u32 2147483647, %v8665
        %v8922 = vand.u32 2147483647, %v8666
        %v8923 = vand.u32 2147483647, %v8667
        %v8924 = vand.u32 2147483647, %v8668
        %v8925 = vand.u32 2147483647, %v8669
        %v8926 = vand.u32 2147483647, %v8670
        %v8927 = vand.u32 2147483647, %v8671
        %v8928 = vand.u32 2147483647, %v8672
        %v8929 = vand.u32 2147483647, %v8673
        %v8930 = vand.u32 2147483647, %v8674
        %v8931 = vand.u32 2147483647, %v8675
        %v8932 = vand.u32 2147483647, %v8676
        %v8933 = vand.u32 2147483647, %v8677
        %v8934 = vand.u32 2147483647, %v8678
        %v8935 = vand.u32 2147483647, %v8679
        %v8936 = vand.u32 2147483647, %v8680
        %v8937 = vand.u32 2147483647, %v8681
        %v8938 = vand.u32 2147483647, %v8682
        %v8939 = vand.u32 2147483647, %v8683
        %v8940 = vand.u32 2147483647, %v8684
        %v8941 = vand.u32 2147483647, %v8685
        %v8942 = vand.u32 2147483647, %v8686
        %v8943 = vand.u32 2147483647, %v8687
        %v8944 = vand.u32 2147483647, %v8688
        %v8945 = vand.u32 2147483647, %v8689
        %v8946 = vand.u32 2147483647, %v8690
        %v8947 = vand.u32 2147483647, %v8691
        %v8948 = vand.u32 2147483647, %v8692
        %v8949 = vand.u32 2147483647, %v8693
        %v8950 = vand.u32 2147483647, %v8694
        %v8951 = vand.u32 2147483647, %v8695
        %v8952 = vand.u32 2147483647, %v8696
        %v8953 = vand.u32 2147483647, %v8697
        %v8954 = vand.u32 2147483647, %v8698
        %v8955 = vand.u32 2147483647, %v8699
        %v8956 = vand.u32 2147483647, %v8700
        %v8957 = vand.u32 2147483647, %v8701
        %v8958 = vand.u32 2147483647, %v8702
        %v8959 = vand.u32 2147483647, %v8703
        %v8960 = vand.u32 2147483647, %v8704
        %v8961 = vand.u32 2147483647, %v8705
        %v8962 = vand.u32 2147483647, %v8706
        %v8963 = vand.u32 2147483647, %v8707
        %v8964 = vand.u32 2147483647, %v8708
        %v8965 = vand.u32 2147483647, %v8709
        %v8966 = vand.u32 2147483647, %v8710
        %v8967 = vand.u32 2147483647, %v8711
        %v8968 = vand.u32 2147483647, %v8712
        %v8969 = vand.u32 2147483647, %v8713
        %v8970 = vand.u32 2147483647, %v8714
        %v8971 = vand.u32 2147483647, %v8715
        %v8972 = vand.u32 2147483647, %v8716
        %v8973 = vand.u32 2147483647, %v8717
        %v8974 = vand.u32 2147483647, %v8718
        %v8975 = vand.u32 2147483647, %v8719
        %v8976 = vand.u32 2147483647, %v8720
        %v8977 = vand.u32 2147483647, %v8721
        %v8978 = vand.u32 2147483647, %v8722
        %v8979 = vand.u32 2147483647, %v8723
        %v8980 = vand.u32 2147483647, %v8724
        %v8981 = vand.u32 2147483647, %v8725
        %v8982 = vand.u32 2147483647, %v8726
        %v8983 = vand.u32 2147483647, %v8727
        %v8984 = vand.u32 2147483647, %v8728
        %v8985 = vand.u32 2147483647, %v8729
        %v8986 = vand.u32 2147483647, %v8730
        %v8987 = vand.u32 2147483647, %v8731
        %v8988 = vand.u32 2147483647, %v8732
        %v8989 = vand.u32 2147483647, %v8733
        %v8990 = vand.u32 2147483647, %v8734
        %v8991 = vand.u32 2147483647, %v8735
        %v8992 = vand.u32 2147483647, %v8736
        %v8993 = vand.u32 2147483647, %v8737
        %v8994 = vand.u32 2147483647, %v8738
        %v8995 = vand.u32 2147483647, %v8739
        %v8996 = vand.u32 2147483647, %v8740
        %v8997 = vand.u32 2147483647, %v8741
        %v8998 = vand.u32 2147483647, %v8742
        %v8999 = vand.u32 2147483647, %v8743
        %v9000 = vand.u32 2147483647, %v8744
        %v9001 = vand.u32 2147483647, %v8745
        %v9002 = vand.u32 2147483647, %v8746
        %v9003 = vand.u32 2147483647, %v8747
        %v9004 = vand.u32 2147483647, %v8748
        %v9005 = vand.u32 2147483647, %v8749
        %v9006 = vand.u32 2147483647, %v8750
        %v9007 = vand.u32 2147483647, %v8751
        %v9008 = vand.u32 2147483647, %v8752
        %v9009 = vand.u32 2147483647, %v8753
        %v9010 = vand.u32 2147483647, %v8754
        %v9011 = vand.u32 2147483647, %v8755
        %v9012 = vand.u32 2147483647, %v8756
        %v9013 = vand.u32 2147483647, %v8757
        %v9014 = vand.u32 2147483647, %v8758
        %v9015 = vand.u32 2147483647, %v8759
        %v9016 = vand.u32 2147483647, %v8760
        %v9017 = vand.u32 2147483647, %v8761
        %v9018 = vand.u32 2147483647, %v8762
        %v9019 = vand.u32 2147483647, %v8763
        %v9020 = vand.u32 2147483647, %v8764
        %v9021 = vand.u32 2147483647, %v8765
        %v9022 = vand.u32 2147483647, %v8766
        %v9023 = vand.u32 2147483647, %v8767
        %v9024 = vand.u32 2147483647, %v8768
        %v9025 = vand.u32 2147483647, %v8769
        %v9026 = vand.u32 2147483647, %v8770
        %v9027 = vand.u32 2147483647, %v8771
        %v9028 = vand.u32 2147483647, %v8772
        %v9029 = vand.u32 2147483647, %v8773
        %v9030 = vand.u32 2147483647, %v8774
        %v9031 = vand.u32 2147483647, %v8775
        %v9032 = vand.u32 2147483647, %v8776
        %v9033 = vand.u32 2147483647, %v8777
        %v9034 = vand.u32 2147483647, %v8778
        %v9035 = vand.u32 2147483647, %v8779
        %v9036 = vand.u32 2147483647, %v8780
        %v9037 = vand.u32 2147483647, %v8781
        %v9038 = vsub.f32 0.0, %v8910
        %v9039 = vsub.f32 0.0, %v8911
        %v9040 = vsub.f32 0.0, %v8912
        %v9041 = vsub.f32 0.0, %v8913
        %v9042 = vsub.f32 0.0, %v8914
        %v9043 = vsub.f32 0.0, %v8915
        %v9044 = vsub.f32 0.0, %v8916
        %v9045 = vsub.f32 0.0, %v8917
        %v9046 = vsub.f32 0.0, %v8918
        %v9047 = vsub.f32 0.0, %v8919
        %v9048 = vsub.f32 0.0, %v8920
        %v9049 = vsub.f32 0.0, %v8921
        %v9050 = vsub.f32 0.0, %v8922
        %v9051 = vsub.f32 0.0, %v8923
        %v9052 = vsub.f32 0.0, %v8924
        %v9053 = vsub.f32 0.0, %v8925
        %v9054 = vsub.f32 0.0, %v8926
        %v9055 = vsub.f32 0.0, %v8927
        %v9056 = vsub.f32 0.0, %v8928
        %v9057 = vsub.f32 0.0, %v8929
        %v9058 = vsub.f32 0.0, %v8930
        %v9059 = vsub.f32 0.0, %v8931
        %v9060 = vsub.f32 0.0, %v8932
        %v9061 = vsub.f32 0.0, %v8933
        %v9062 = vsub.f32 0.0, %v8934
        %v9063 = vsub.f32 0.0, %v8935
        %v9064 = vsub.f32 0.0, %v8936
        %v9065 = vsub.f32 0.0, %v8937
        %v9066 = vsub.f32 0.0, %v8938
        %v9067 = vsub.f32 0.0, %v8939
        %v9068 = vsub.f32 0.0, %v8940
        %v9069 = vsub.f32 0.0, %v8941
        %v9070 = vsub.f32 0.0, %v8942
        %v9071 = vsub.f32 0.0, %v8943
        %v9072 = vsub.f32 0.0, %v8944
        %v9073 = vsub.f32 0.0, %v8945
        %v9074 = vsub.f32 0.0, %v8946
        %v9075 = vsub.f32 0.0, %v8947
        %v9076 = vsub.f32 0.0, %v8948
        %v9077 = vsub.f32 0.0, %v8949
        %v9078 = vsub.f32 0.0, %v8950
        %v9079 = vsub.f32 0.0, %v8951
        %v9080 = vsub.f32 0.0, %v8952
        %v9081 = vsub.f32 0.0, %v8953
        %v9082 = vsub.f32 0.0, %v8954
        %v9083 = vsub.f32 0.0, %v8955
        %v9084 = vsub.f32 0.0, %v8956
        %v9085 = vsub.f32 0.0, %v8957
        %v9086 = vsub.f32 0.0, %v8958
        %v9087 = vsub.f32 0.0, %v8959
        %v9088 = vsub.f32 0.0, %v8960
        %v9089 = vsub.f32 0.0, %v8961
        %v9090 = vsub.f32 0.0, %v8962
        %v9091 = vsub.f32 0.0, %v8963
        %v9092 = vsub.f32 0.0, %v8964
        %v9093 = vsub.f32 0.0, %v8965
        %v9094 = vsub.f32 0.0, %v8966
        %v9095 = vsub.f32 0.0, %v8967
        %v9096 = vsub.f32 0.0, %v8968
        %v9097 = vsub.f32 0.0, %v8969
        %v9098 = vsub.f32 0.0, %v8970
        %v9099 = vsub.f32 0.0, %v8971
        %v9100 = vsub.f32 0.0, %v8972
        %v9101 = vsub.f32 0.0, %v8973
        %v9102 = vsub.f32 0.0, %v8974
        %v9103 = vsub.f32 0.0, %v8975
        %v9104 = vsub.f32 0.0, %v8976
        %v9105 = vsub.f32 0.0, %v8977
        %v9106 = vsub.f32 0.0, %v8978
        %v9107 = vsub.f32 0.0, %v8979
        %v9108 = vsub.f32 0.0, %v8980
        %v9109 = vsub.f32 0.0, %v8981
        %v9110 = vsub.f32 0.0, %v8982
        %v9111 = vsub.f32 0.0, %v8983
        %v9112 = vsub.f32 0.0, %v8984
        %v9113 = vsub.f32 0.0, %v8985
        %v9114 = vsub.f32 0.0, %v8986
        %v9115 = vsub.f32 0.0, %v8987
        %v9116 = vsub.f32 0.0, %v8988
        %v9117 = vsub.f32 0.0, %v8989
        %v9118 = vsub.f32 0.0, %v8990
        %v9119 = vsub.f32 0.0, %v8991
        %v9120 = vsub.f32 0.0, %v8992
        %v9121 = vsub.f32 0.0, %v8993
        %v9122 = vsub.f32 0.0, %v8994
        %v9123 = vsub.f32 0.0, %v8995
        %v9124 = vsub.f32 0.0, %v8996
        %v9125 = vsub.f32 0.0, %v8997
        %v9126 = vsub.f32 0.0, %v8998
        %v9127 = vsub.f32 0.0, %v8999
        %v9128 = vsub.f32 0.0, %v9000
        %v9129 = vsub.f32 0.0, %v9001
        %v9130 = vsub.f32 0.0, %v9002
        %v9131 = vsub.f32 0.0, %v9003
        %v9132 = vsub.f32 0.0, %v9004
        %v9133 = vsub.f32 0.0, %v9005
        %v9134 = vsub.f32 0.0, %v9006
        %v9135 = vsub.f32 0.0, %v9007
        %v9136 = vsub.f32 0.0, %v9008
        %v9137 = vsub.f32 0.0, %v9009
        %v9138 = vsub.f32 0.0, %v9010
        %v9139 = vsub.f32 0.0, %v9011
        %v9140 = vsub.f32 0.0, %v9012
        %v9141 = vsub.f32 0.0, %v9013
        %v9142 = vsub.f32 0.0, %v9014
        %v9143 = vsub.f32 0.0, %v9015
        %v9144 = vsub.f32 0.0, %v9016
        %v9145 = vsub.f32 0.0, %v9017
        %v9146 = vsub.f32 0.0, %v9018
        %v9147 = vsub.f32 0.0, %v9019
        %v9148 = vsub.f32 0.0, %v9020
        %v9149 = vsub.f32 0.0, %v9021
        %v9150 = vsub.f32 0.0, %v9022
        %v9151 = vsub.f32 0.0, %v9023
        %v9152 = vsub.f32 0.0, %v9024
        %v9153 = vsub.f32 0.0, %v9025
        %v9154 = vsub.f32 0.0, %v9026
        %v9155 = vsub.f32 0.0, %v9027
        %v9156 = vsub.f32 0.0, %v9028
        %v9157 = vsub.f32 0.0, %v9029
        %v9158 = vsub.f32 0.0, %v9030
        %v9159 = vsub.f32 0.0, %v9031
        %v9160 = vsub.f32 0.0, %v9032
        %v9161 = vsub.f32 0.0, %v9033
        %v9162 = vsub.f32 0.0, %v9034
        %v9163 = vsub.f32 0.0, %v9035
        %v9164 = vsub.f32 0.0, %v9036
        %v9165 = vsub.f32 0.0, %v9037
        %v9166 = vmul.f32 %v9038, 1.442695
        %v9167 = vpow.pop %v9166
        %v9168 = vmul.f32 %v9039, 1.442695
        %v9169 = vpow.pop %v9168
        %v9170 = vmul.f32 %v9040, 1.442695
        %v9171 = vpow.pop %v9170
        %v9172 = vmul.f32 %v9041, 1.442695
        %v9173 = vpow.pop %v9172
        %v9174 = vmul.f32 %v9042, 1.442695
        %v9175 = vpow.pop %v9174
        %v9176 = vmul.f32 %v9043, 1.442695
        %v9177 = vpow.pop %v9176
        %v9178 = vmul.f32 %v9044, 1.442695
        %v9179 = vpow.pop %v9178
        %v9180 = vmul.f32 %v9045, 1.442695
        %v9181 = vpow.pop %v9180
        %v9182 = vmul.f32 %v9046, 1.442695
        %v9183 = vpow.pop %v9182
        %v9184 = vmul.f32 %v9047, 1.442695
        %v9185 = vpow.pop %v9184
        %v9186 = vmul.f32 %v9048, 1.442695
        %v9187 = vpow.pop %v9186
        %v9188 = vmul.f32 %v9049, 1.442695
        %v9189 = vpow.pop %v9188
        %v9190 = vmul.f32 %v9050, 1.442695
        %v9191 = vpow.pop %v9190
        %v9192 = vmul.f32 %v9051, 1.442695
        %v9193 = vpow.pop %v9192
        %v9194 = vmul.f32 %v9052, 1.442695
        %v9195 = vpow.pop %v9194
        %v9196 = vmul.f32 %v9053, 1.442695
        %v9197 = vpow.pop %v9196
        %v9198 = vmul.f32 %v9054, 1.442695
        %v9199 = vpow.pop %v9198
        %v9200 = vmul.f32 %v9055, 1.442695
        %v9201 = vpow.pop %v9200
        %v9202 = vmul.f32 %v9056, 1.442695
        %v9203 = vpow.pop %v9202
        %v9204 = vmul.f32 %v9057, 1.442695
        %v9205 = vpow.pop %v9204
        %v9206 = vmul.f32 %v9058, 1.442695
        %v9207 = vpow.pop %v9206
        %v9208 = vmul.f32 %v9059, 1.442695
        %v9209 = vpow.pop %v9208
        %v9210 = vmul.f32 %v9060, 1.442695
        %v9211 = vpow.pop %v9210
        %v9212 = vmul.f32 %v9061, 1.442695
        %v9213 = vpow.pop %v9212
        %v9214 = vmul.f32 %v9062, 1.442695
        %v9215 = vpow.pop %v9214
        %v9216 = vmul.f32 %v9063, 1.442695
        %v9217 = vpow.pop %v9216
        %v9218 = vmul.f32 %v9064, 1.442695
        %v9219 = vpow.pop %v9218
        %v9220 = vmul.f32 %v9065, 1.442695
        %v9221 = vpow.pop %v9220
        %v9222 = vmul.f32 %v9066, 1.442695
        %v9223 = vpow.pop %v9222
        %v9224 = vmul.f32 %v9067, 1.442695
        %v9225 = vpow.pop %v9224
        %v9226 = vmul.f32 %v9068, 1.442695
        %v9227 = vpow.pop %v9226
        %v9228 = vmul.f32 %v9069, 1.442695
        %v9229 = vpow.pop %v9228
        %v9230 = vmul.f32 %v9070, 1.442695
        %v9231 = vpow.pop %v9230
        %v9232 = vmul.f32 %v9071, 1.442695
        %v9233 = vpow.pop %v9232
        %v9234 = vmul.f32 %v9072, 1.442695
        %v9235 = vpow.pop %v9234
        %v9236 = vmul.f32 %v9073, 1.442695
        %v9237 = vpow.pop %v9236
        %v9238 = vmul.f32 %v9074, 1.442695
        %v9239 = vpow.pop %v9238
        %v9240 = vmul.f32 %v9075, 1.442695
        %v9241 = vpow.pop %v9240
        %v9242 = vmul.f32 %v9076, 1.442695
        %v9243 = vpow.pop %v9242
        %v9244 = vmul.f32 %v9077, 1.442695
        %v9245 = vpow.pop %v9244
        %v9246 = vmul.f32 %v9078, 1.442695
        %v9247 = vpow.pop %v9246
        %v9248 = vmul.f32 %v9079, 1.442695
        %v9249 = vpow.pop %v9248
        %v9250 = vmul.f32 %v9080, 1.442695
        %v9251 = vpow.pop %v9250
        %v9252 = vmul.f32 %v9081, 1.442695
        %v9253 = vpow.pop %v9252
        %v9254 = vmul.f32 %v9082, 1.442695
        %v9255 = vpow.pop %v9254
        %v9256 = vmul.f32 %v9083, 1.442695
        %v9257 = vpow.pop %v9256
        %v9258 = vmul.f32 %v9084, 1.442695
        %v9259 = vpow.pop %v9258
        %v9260 = vmul.f32 %v9085, 1.442695
        %v9261 = vpow.pop %v9260
        %v9262 = vmul.f32 %v9086, 1.442695
        %v9263 = vpow.pop %v9262
        %v9264 = vmul.f32 %v9087, 1.442695
        %v9265 = vpow.pop %v9264
        %v9266 = vmul.f32 %v9088, 1.442695
        %v9267 = vpow.pop %v9266
        %v9268 = vmul.f32 %v9089, 1.442695
        %v9269 = vpow.pop %v9268
        %v9270 = vmul.f32 %v9090, 1.442695
        %v9271 = vpow.pop %v9270
        %v9272 = vmul.f32 %v9091, 1.442695
        %v9273 = vpow.pop %v9272
        %v9274 = vmul.f32 %v9092, 1.442695
        %v9275 = vpow.pop %v9274
        %v9276 = vmul.f32 %v9093, 1.442695
        %v9277 = vpow.pop %v9276
        %v9278 = vmul.f32 %v9094, 1.442695
        %v9279 = vpow.pop %v9278
        %v9280 = vmul.f32 %v9095, 1.442695
        %v9281 = vpow.pop %v9280
        %v9282 = vmul.f32 %v9096, 1.442695
        %v9283 = vpow.pop %v9282
        %v9284 = vmul.f32 %v9097, 1.442695
        %v9285 = vpow.pop %v9284
        %v9286 = vmul.f32 %v9098, 1.442695
        %v9287 = vpow.pop %v9286
        %v9288 = vmul.f32 %v9099, 1.442695
        %v9289 = vpow.pop %v9288
        %v9290 = vmul.f32 %v9100, 1.442695
        %v9291 = vpow.pop %v9290
        %v9292 = vmul.f32 %v9101, 1.442695
        %v9293 = vpow.pop %v9292
        %v9294 = vmul.f32 %v9102, 1.442695
        %v9295 = vpow.pop %v9294
        %v9296 = vmul.f32 %v9103, 1.442695
        %v9297 = vpow.pop %v9296
        %v9298 = vmul.f32 %v9104, 1.442695
        %v9299 = vpow.pop %v9298
        %v9300 = vmul.f32 %v9105, 1.442695
        %v9301 = vpow.pop %v9300
        %v9302 = vmul.f32 %v9106, 1.442695
        %v9303 = vpow.pop %v9302
        %v9304 = vmul.f32 %v9107, 1.442695
        %v9305 = vpow.pop %v9304
        %v9306 = vmul.f32 %v9108, 1.442695
        %v9307 = vpow.pop %v9306
        %v9308 = vmul.f32 %v9109, 1.442695
        %v9309 = vpow.pop %v9308
        %v9310 = vmul.f32 %v9110, 1.442695
        %v9311 = vpow.pop %v9310
        %v9312 = vmul.f32 %v9111, 1.442695
        %v9313 = vpow.pop %v9312
        %v9314 = vmul.f32 %v9112, 1.442695
        %v9315 = vpow.pop %v9314
        %v9316 = vmul.f32 %v9113, 1.442695
        %v9317 = vpow.pop %v9316
        %v9318 = vmul.f32 %v9114, 1.442695
        %v9319 = vpow.pop %v9318
        %v9320 = vmul.f32 %v9115, 1.442695
        %v9321 = vpow.pop %v9320
        %v9322 = vmul.f32 %v9116, 1.442695
        %v9323 = vpow.pop %v9322
        %v9324 = vmul.f32 %v9117, 1.442695
        %v9325 = vpow.pop %v9324
        %v9326 = vmul.f32 %v9118, 1.442695
        %v9327 = vpow.pop %v9326
        %v9328 = vmul.f32 %v9119, 1.442695
        %v9329 = vpow.pop %v9328
        %v9330 = vmul.f32 %v9120, 1.442695
        %v9331 = vpow.pop %v9330
        %v9332 = vmul.f32 %v9121, 1.442695
        %v9333 = vpow.pop %v9332
        %v9334 = vmul.f32 %v9122, 1.442695
        %v9335 = vpow.pop %v9334
        %v9336 = vmul.f32 %v9123, 1.442695
        %v9337 = vpow.pop %v9336
        %v9338 = vmul.f32 %v9124, 1.442695
        %v9339 = vpow.pop %v9338
        %v9340 = vmul.f32 %v9125, 1.442695
        %v9341 = vpow.pop %v9340
        %v9342 = vmul.f32 %v9126, 1.442695
        %v9343 = vpow.pop %v9342
        %v9344 = vmul.f32 %v9127, 1.442695
        %v9345 = vpow.pop %v9344
        %v9346 = vmul.f32 %v9128, 1.442695
        %v9347 = vpow.pop %v9346
        %v9348 = vmul.f32 %v9129, 1.442695
        %v9349 = vpow.pop %v9348
        %v9350 = vmul.f32 %v9130, 1.442695
        %v9351 = vpow.pop %v9350
        %v9352 = vmul.f32 %v9131, 1.442695
        %v9353 = vpow.pop %v9352
        %v9354 = vmul.f32 %v9132, 1.442695
        %v9355 = vpow.pop %v9354
        %v9356 = vmul.f32 %v9133, 1.442695
        %v9357 = vpow.pop %v9356
        %v9358 = vmul.f32 %v9134, 1.442695
        %v9359 = vpow.pop %v9358
        %v9360 = vmul.f32 %v9135, 1.442695
        %v9361 = vpow.pop %v9360
        %v9362 = vmul.f32 %v9136, 1.442695
        %v9363 = vpow.pop %v9362
        %v9364 = vmul.f32 %v9137, 1.442695
        %v9365 = vpow.pop %v9364
        %v9366 = vmul.f32 %v9138, 1.442695
        %v9367 = vpow.pop %v9366
        %v9368 = vmul.f32 %v9139, 1.442695
        %v9369 = vpow.pop %v9368
        %v9370 = vmul.f32 %v9140, 1.442695
        %v9371 = vpow.pop %v9370
        %v9372 = vmul.f32 %v9141, 1.442695
        %v9373 = vpow.pop %v9372
        %v9374 = vmul.f32 %v9142, 1.442695
        %v9375 = vpow.pop %v9374
        %v9376 = vmul.f32 %v9143, 1.442695
        %v9377 = vpow.pop %v9376
        %v9378 = vmul.f32 %v9144, 1.442695
        %v9379 = vpow.pop %v9378
        %v9380 = vmul.f32 %v9145, 1.442695
        %v9381 = vpow.pop %v9380
        %v9382 = vmul.f32 %v9146, 1.442695
        %v9383 = vpow.pop %v9382
        %v9384 = vmul.f32 %v9147, 1.442695
        %v9385 = vpow.pop %v9384
        %v9386 = vmul.f32 %v9148, 1.442695
        %v9387 = vpow.pop %v9386
        %v9388 = vmul.f32 %v9149, 1.442695
        %v9389 = vpow.pop %v9388
        %v9390 = vmul.f32 %v9150, 1.442695
        %v9391 = vpow.pop %v9390
        %v9392 = vmul.f32 %v9151, 1.442695
        %v9393 = vpow.pop %v9392
        %v9394 = vmul.f32 %v9152, 1.442695
        %v9395 = vpow.pop %v9394
        %v9396 = vmul.f32 %v9153, 1.442695
        %v9397 = vpow.pop %v9396
        %v9398 = vmul.f32 %v9154, 1.442695
        %v9399 = vpow.pop %v9398
        %v9400 = vmul.f32 %v9155, 1.442695
        %v9401 = vpow.pop %v9400
        %v9402 = vmul.f32 %v9156, 1.442695
        %v9403 = vpow.pop %v9402
        %v9404 = vmul.f32 %v9157, 1.442695
        %v9405 = vpow.pop %v9404
        %v9406 = vmul.f32 %v9158, 1.442695
        %v9407 = vpow.pop %v9406
        %v9408 = vmul.f32 %v9159, 1.442695
        %v9409 = vpow.pop %v9408
        %v9410 = vmul.f32 %v9160, 1.442695
        %v9411 = vpow.pop %v9410
        %v9412 = vmul.f32 %v9161, 1.442695
        %v9413 = vpow.pop %v9412
        %v9414 = vmul.f32 %v9162, 1.442695
        %v9415 = vpow.pop %v9414
        %v9416 = vmul.f32 %v9163, 1.442695
        %v9417 = vpow.pop %v9416
        %v9418 = vmul.f32 %v9164, 1.442695
        %v9419 = vpow.pop %v9418
        %v9420 = vmul.f32 %v9165, 1.442695
        %v9421 = vpow.pop %v9420
        %v9422 = vadd.f32 %v9167, 1.0
        %v9423 = vlog2.pop %v9422
        %v9424 = vmul.f32 %v9423, 0.6931472
        %v9425 = vmul.f32 -0.5, %v9167
        %v9426 = vadd.f32 %v9425, 1.0
        %v9427 = vmul.f32 %v9426, %v9167
        %v9428 = vand.u32 2147483647, %v9167
        %vm9429 = vcmp.lt.f32.partialorder %v9428, 0.0004427343
        %v9430 = vsel %vm9429, %v9427, %v9424
        %v9431 = vadd.f32 %v9169, 1.0
        %v9432 = vlog2.pop %v9431
        %v9433 = vmul.f32 %v9432, 0.6931472
        %v9434 = vmul.f32 -0.5, %v9169
        %v9435 = vadd.f32 %v9434, 1.0
        %v9436 = vmul.f32 %v9435, %v9169
        %v9437 = vand.u32 2147483647, %v9169
        %vm9438 = vcmp.lt.f32.partialorder %v9437, 0.0004427343
        %v9439 = vsel %vm9438, %v9436, %v9433
        %v9440 = vadd.f32 %v9171, 1.0
        %v9441 = vlog2.pop %v9440
        %v9442 = vmul.f32 %v9441, 0.6931472
        %v9443 = vmul.f32 -0.5, %v9171
        %v9444 = vadd.f32 %v9443, 1.0
        %v9445 = vmul.f32 %v9444, %v9171
        %v9446 = vand.u32 2147483647, %v9171
        %vm9447 = vcmp.lt.f32.partialorder %v9446, 0.0004427343
        %v9448 = vsel %vm9447, %v9445, %v9442
        %v9449 = vadd.f32 %v9173, 1.0
        %v9450 = vlog2.pop %v9449
        %v9451 = vmul.f32 %v9450, 0.6931472
        %v9452 = vmul.f32 -0.5, %v9173
        %v9453 = vadd.f32 %v9452, 1.0
        %v9454 = vmul.f32 %v9453, %v9173
        %v9455 = vand.u32 2147483647, %v9173
        %vm9456 = vcmp.lt.f32.partialorder %v9455, 0.0004427343
        %v9457 = vsel %vm9456, %v9454, %v9451
        %v9458 = vadd.f32 %v9175, 1.0
        %v9459 = vlog2.pop %v9458
        %v9460 = vmul.f32 %v9459, 0.6931472
        %v9461 = vmul.f32 -0.5, %v9175
        %v9462 = vadd.f32 %v9461, 1.0
        %v9463 = vmul.f32 %v9462, %v9175
        %v9464 = vand.u32 2147483647, %v9175
        %vm9465 = vcmp.lt.f32.partialorder %v9464, 0.0004427343
        %v9466 = vsel %vm9465, %v9463, %v9460
        %v9467 = vadd.f32 %v9177, 1.0
        %v9468 = vlog2.pop %v9467
        %v9469 = vmul.f32 %v9468, 0.6931472
        %v9470 = vmul.f32 -0.5, %v9177
        %v9471 = vadd.f32 %v9470, 1.0
        %v9472 = vmul.f32 %v9471, %v9177
        %v9473 = vand.u32 2147483647, %v9177
        %vm9474 = vcmp.lt.f32.partialorder %v9473, 0.0004427343
        %v9475 = vsel %vm9474, %v9472, %v9469
        %v9476 = vadd.f32 %v9179, 1.0
        %v9477 = vlog2.pop %v9476
        %v9478 = vmul.f32 %v9477, 0.6931472
        %v9479 = vmul.f32 -0.5, %v9179
        %v9480 = vadd.f32 %v9479, 1.0
        %v9481 = vmul.f32 %v9480, %v9179
        %v9482 = vand.u32 2147483647, %v9179
        %vm9483 = vcmp.lt.f32.partialorder %v9482, 0.0004427343
        %v9484 = vsel %vm9483, %v9481, %v9478
        %v9485 = vadd.f32 %v9181, 1.0
        %v9486 = vlog2.pop %v9485
        %v9487 = vmul.f32 %v9486, 0.6931472
        %v9488 = vmul.f32 -0.5, %v9181
        %v9489 = vadd.f32 %v9488, 1.0
        %v9490 = vmul.f32 %v9489, %v9181
        %v9491 = vand.u32 2147483647, %v9181
        %vm9492 = vcmp.lt.f32.partialorder %v9491, 0.0004427343
        %v9493 = vsel %vm9492, %v9490, %v9487
        %v9494 = vadd.f32 %v9183, 1.0
        %v9495 = vlog2.pop %v9494
        %v9496 = vmul.f32 %v9495, 0.6931472
        %v9497 = vmul.f32 -0.5, %v9183
        %v9498 = vadd.f32 %v9497, 1.0
        %v9499 = vmul.f32 %v9498, %v9183
        %v9500 = vand.u32 2147483647, %v9183
        %vm9501 = vcmp.lt.f32.partialorder %v9500, 0.0004427343
        %v9502 = vsel %vm9501, %v9499, %v9496
        %v9503 = vadd.f32 %v9185, 1.0
        %v9504 = vlog2.pop %v9503
        %v9505 = vmul.f32 %v9504, 0.6931472
        %v9506 = vmul.f32 -0.5, %v9185
        %v9507 = vadd.f32 %v9506, 1.0
        %v9508 = vmul.f32 %v9507, %v9185
        %v9509 = vand.u32 2147483647, %v9185
        %vm9510 = vcmp.lt.f32.partialorder %v9509, 0.0004427343
        %v9511 = vsel %vm9510, %v9508, %v9505
        %v9512 = vadd.f32 %v9187, 1.0
        %v9513 = vlog2.pop %v9512
        %v9514 = vmul.f32 %v9513, 0.6931472
        %v9515 = vmul.f32 -0.5, %v9187
        %v9516 = vadd.f32 %v9515, 1.0
        %v9517 = vmul.f32 %v9516, %v9187
        %v9518 = vand.u32 2147483647, %v9187
        %vm9519 = vcmp.lt.f32.partialorder %v9518, 0.0004427343
        %v9520 = vsel %vm9519, %v9517, %v9514
        %v9521 = vadd.f32 %v9189, 1.0
        %v9522 = vlog2.pop %v9521
        %v9523 = vmul.f32 %v9522, 0.6931472
        %v9524 = vmul.f32 -0.5, %v9189
        %v9525 = vadd.f32 %v9524, 1.0
        %v9526 = vmul.f32 %v9525, %v9189
        %v9527 = vand.u32 2147483647, %v9189
        %vm9528 = vcmp.lt.f32.partialorder %v9527, 0.0004427343
        %v9529 = vsel %vm9528, %v9526, %v9523
        %v9530 = vadd.f32 %v9191, 1.0
        %v9531 = vlog2.pop %v9530
        %v9532 = vmul.f32 %v9531, 0.6931472
        %v9533 = vmul.f32 -0.5, %v9191
        %v9534 = vadd.f32 %v9533, 1.0
        %v9535 = vmul.f32 %v9534, %v9191
        %v9536 = vand.u32 2147483647, %v9191
        %vm9537 = vcmp.lt.f32.partialorder %v9536, 0.0004427343
        %v9538 = vsel %vm9537, %v9535, %v9532
        %v9539 = vadd.f32 %v9193, 1.0
        %v9540 = vlog2.pop %v9539
        %v9541 = vmul.f32 %v9540, 0.6931472
        %v9542 = vmul.f32 -0.5, %v9193
        %v9543 = vadd.f32 %v9542, 1.0
        %v9544 = vmul.f32 %v9543, %v9193
        %v9545 = vand.u32 2147483647, %v9193
        %vm9546 = vcmp.lt.f32.partialorder %v9545, 0.0004427343
        %v9547 = vsel %vm9546, %v9544, %v9541
        %v9548 = vadd.f32 %v9195, 1.0
        %v9549 = vlog2.pop %v9548
        %v9550 = vmul.f32 %v9549, 0.6931472
        %v9551 = vmul.f32 -0.5, %v9195
        %v9552 = vadd.f32 %v9551, 1.0
        %v9553 = vmul.f32 %v9552, %v9195
        %v9554 = vand.u32 2147483647, %v9195
        %vm9555 = vcmp.lt.f32.partialorder %v9554, 0.0004427343
        %v9556 = vsel %vm9555, %v9553, %v9550
        %v9557 = vadd.f32 %v9197, 1.0
        %v9558 = vlog2.pop %v9557
        %v9559 = vmul.f32 %v9558, 0.6931472
        %v9560 = vmul.f32 -0.5, %v9197
        %v9561 = vadd.f32 %v9560, 1.0
        %v9562 = vmul.f32 %v9561, %v9197
        %v9563 = vand.u32 2147483647, %v9197
        %vm9564 = vcmp.lt.f32.partialorder %v9563, 0.0004427343
        %v9565 = vsel %vm9564, %v9562, %v9559
        %v9566 = vadd.f32 %v9199, 1.0
        %v9567 = vlog2.pop %v9566
        %v9568 = vmul.f32 %v9567, 0.6931472
        %v9569 = vmul.f32 -0.5, %v9199
        %v9570 = vadd.f32 %v9569, 1.0
        %v9571 = vmul.f32 %v9570, %v9199
        %v9572 = vand.u32 2147483647, %v9199
        %vm9573 = vcmp.lt.f32.partialorder %v9572, 0.0004427343
        %v9574 = vsel %vm9573, %v9571, %v9568
        %v9575 = vadd.f32 %v9201, 1.0
        %v9576 = vlog2.pop %v9575
        %v9577 = vmul.f32 %v9576, 0.6931472
        %v9578 = vmul.f32 -0.5, %v9201
        %v9579 = vadd.f32 %v9578, 1.0
        %v9580 = vmul.f32 %v9579, %v9201
        %v9581 = vand.u32 2147483647, %v9201
        %vm9582 = vcmp.lt.f32.partialorder %v9581, 0.0004427343
        %v9583 = vsel %vm9582, %v9580, %v9577
        %v9584 = vadd.f32 %v9203, 1.0
        %v9585 = vlog2.pop %v9584
        %v9586 = vmul.f32 %v9585, 0.6931472
        %v9587 = vmul.f32 -0.5, %v9203
        %v9588 = vadd.f32 %v9587, 1.0
        %v9589 = vmul.f32 %v9588, %v9203
        %v9590 = vand.u32 2147483647, %v9203
        %vm9591 = vcmp.lt.f32.partialorder %v9590, 0.0004427343
        %v9592 = vsel %vm9591, %v9589, %v9586
        %v9593 = vadd.f32 %v9205, 1.0
        %v9594 = vlog2.pop %v9593
        %v9595 = vmul.f32 %v9594, 0.6931472
        %v9596 = vmul.f32 -0.5, %v9205
        %v9597 = vadd.f32 %v9596, 1.0
        %v9598 = vmul.f32 %v9597, %v9205
        %v9599 = vand.u32 2147483647, %v9205
        %vm9600 = vcmp.lt.f32.partialorder %v9599, 0.0004427343
        %v9601 = vsel %vm9600, %v9598, %v9595
        %v9602 = vadd.f32 %v9207, 1.0
        %v9603 = vlog2.pop %v9602
        %v9604 = vmul.f32 %v9603, 0.6931472
        %v9605 = vmul.f32 -0.5, %v9207
        %v9606 = vadd.f32 %v9605, 1.0
        %v9607 = vmul.f32 %v9606, %v9207
        %v9608 = vand.u32 2147483647, %v9207
        %vm9609 = vcmp.lt.f32.partialorder %v9608, 0.0004427343
        %v9610 = vsel %vm9609, %v9607, %v9604
        %v9611 = vadd.f32 %v9209, 1.0
        %v9612 = vlog2.pop %v9611
        %v9613 = vmul.f32 %v9612, 0.6931472
        %v9614 = vmul.f32 -0.5, %v9209
        %v9615 = vadd.f32 %v9614, 1.0
        %v9616 = vmul.f32 %v9615, %v9209
        %v9617 = vand.u32 2147483647, %v9209
        %vm9618 = vcmp.lt.f32.partialorder %v9617, 0.0004427343
        %v9619 = vsel %vm9618, %v9616, %v9613
        %v9620 = vadd.f32 %v9211, 1.0
        %v9621 = vlog2.pop %v9620
        %v9622 = vmul.f32 %v9621, 0.6931472
        %v9623 = vmul.f32 -0.5, %v9211
        %v9624 = vadd.f32 %v9623, 1.0
        %v9625 = vmul.f32 %v9624, %v9211
        %v9626 = vand.u32 2147483647, %v9211
        %vm9627 = vcmp.lt.f32.partialorder %v9626, 0.0004427343
        %v9628 = vsel %vm9627, %v9625, %v9622
        %v9629 = vadd.f32 %v9213, 1.0
        %v9630 = vlog2.pop %v9629
        %v9631 = vmul.f32 %v9630, 0.6931472
        %v9632 = vmul.f32 -0.5, %v9213
        %v9633 = vadd.f32 %v9632, 1.0
        %v9634 = vmul.f32 %v9633, %v9213
        %v9635 = vand.u32 2147483647, %v9213
        %vm9636 = vcmp.lt.f32.partialorder %v9635, 0.0004427343
        %v9637 = vsel %vm9636, %v9634, %v9631
        %v9638 = vadd.f32 %v9215, 1.0
        %v9639 = vlog2.pop %v9638
        %v9640 = vmul.f32 %v9639, 0.6931472
        %v9641 = vmul.f32 -0.5, %v9215
        %v9642 = vadd.f32 %v9641, 1.0
        %v9643 = vmul.f32 %v9642, %v9215
        %v9644 = vand.u32 2147483647, %v9215
        %vm9645 = vcmp.lt.f32.partialorder %v9644, 0.0004427343
        %v9646 = vsel %vm9645, %v9643, %v9640
        %v9647 = vadd.f32 %v9217, 1.0
        %v9648 = vlog2.pop %v9647
        %v9649 = vmul.f32 %v9648, 0.6931472
        %v9650 = vmul.f32 -0.5, %v9217
        %v9651 = vadd.f32 %v9650, 1.0
        %v9652 = vmul.f32 %v9651, %v9217
        %v9653 = vand.u32 2147483647, %v9217
        %vm9654 = vcmp.lt.f32.partialorder %v9653, 0.0004427343
        %v9655 = vsel %vm9654, %v9652, %v9649
        %v9656 = vadd.f32 %v9219, 1.0
        %v9657 = vlog2.pop %v9656
        %v9658 = vmul.f32 %v9657, 0.6931472
        %v9659 = vmul.f32 -0.5, %v9219
        %v9660 = vadd.f32 %v9659, 1.0
        %v9661 = vmul.f32 %v9660, %v9219
        %v9662 = vand.u32 2147483647, %v9219
        %vm9663 = vcmp.lt.f32.partialorder %v9662, 0.0004427343
        %v9664 = vsel %vm9663, %v9661, %v9658
        %v9665 = vadd.f32 %v9221, 1.0
        %v9666 = vlog2.pop %v9665
        %v9667 = vmul.f32 %v9666, 0.6931472
        %v9668 = vmul.f32 -0.5, %v9221
        %v9669 = vadd.f32 %v9668, 1.0
        %v9670 = vmul.f32 %v9669, %v9221
        %v9671 = vand.u32 2147483647, %v9221
        %vm9672 = vcmp.lt.f32.partialorder %v9671, 0.0004427343
        %v9673 = vsel %vm9672, %v9670, %v9667
        %v9674 = vadd.f32 %v9223, 1.0
        %v9675 = vlog2.pop %v9674
        %v9676 = vmul.f32 %v9675, 0.6931472
        %v9677 = vmul.f32 -0.5, %v9223
        %v9678 = vadd.f32 %v9677, 1.0
        %v9679 = vmul.f32 %v9678, %v9223
        %v9680 = vand.u32 2147483647, %v9223
        %vm9681 = vcmp.lt.f32.partialorder %v9680, 0.0004427343
        %v9682 = vsel %vm9681, %v9679, %v9676
        %v9683 = vadd.f32 %v9225, 1.0
        %v9684 = vlog2.pop %v9683
        %v9685 = vmul.f32 %v9684, 0.6931472
        %v9686 = vmul.f32 -0.5, %v9225
        %v9687 = vadd.f32 %v9686, 1.0
        %v9688 = vmul.f32 %v9687, %v9225
        %v9689 = vand.u32 2147483647, %v9225
        %vm9690 = vcmp.lt.f32.partialorder %v9689, 0.0004427343
        %v9691 = vsel %vm9690, %v9688, %v9685
        %v9692 = vadd.f32 %v9227, 1.0
        %v9693 = vlog2.pop %v9692
        %v9694 = vmul.f32 %v9693, 0.6931472
        %v9695 = vmul.f32 -0.5, %v9227
        %v9696 = vadd.f32 %v9695, 1.0
        %v9697 = vmul.f32 %v9696, %v9227
        %v9698 = vand.u32 2147483647, %v9227
        %vm9699 = vcmp.lt.f32.partialorder %v9698, 0.0004427343
        %v9700 = vsel %vm9699, %v9697, %v9694
        %v9701 = vadd.f32 %v9229, 1.0
        %v9702 = vlog2.pop %v9701
        %v9703 = vmul.f32 %v9702, 0.6931472
        %v9704 = vmul.f32 -0.5, %v9229
        %v9705 = vadd.f32 %v9704, 1.0
        %v9706 = vmul.f32 %v9705, %v9229
        %v9707 = vand.u32 2147483647, %v9229
        %vm9708 = vcmp.lt.f32.partialorder %v9707, 0.0004427343
        %v9709 = vsel %vm9708, %v9706, %v9703
        %v9710 = vadd.f32 %v9231, 1.0
        %v9711 = vlog2.pop %v9710
        %v9712 = vmul.f32 %v9711, 0.6931472
        %v9713 = vmul.f32 -0.5, %v9231
        %v9714 = vadd.f32 %v9713, 1.0
        %v9715 = vmul.f32 %v9714, %v9231
        %v9716 = vand.u32 2147483647, %v9231
        %vm9717 = vcmp.lt.f32.partialorder %v9716, 0.0004427343
        %v9718 = vsel %vm9717, %v9715, %v9712
        %v9719 = vadd.f32 %v9233, 1.0
        %v9720 = vlog2.pop %v9719
        %v9721 = vmul.f32 %v9720, 0.6931472
        %v9722 = vmul.f32 -0.5, %v9233
        %v9723 = vadd.f32 %v9722, 1.0
        %v9724 = vmul.f32 %v9723, %v9233
        %v9725 = vand.u32 2147483647, %v9233
        %vm9726 = vcmp.lt.f32.partialorder %v9725, 0.0004427343
        %v9727 = vsel %vm9726, %v9724, %v9721
        %v9728 = vadd.f32 %v9235, 1.0
        %v9729 = vlog2.pop %v9728
        %v9730 = vmul.f32 %v9729, 0.6931472
        %v9731 = vmul.f32 -0.5, %v9235
        %v9732 = vadd.f32 %v9731, 1.0
        %v9733 = vmul.f32 %v9732, %v9235
        %v9734 = vand.u32 2147483647, %v9235
        %vm9735 = vcmp.lt.f32.partialorder %v9734, 0.0004427343
        %v9736 = vsel %vm9735, %v9733, %v9730
        %v9737 = vadd.f32 %v9237, 1.0
        %v9738 = vlog2.pop %v9737
        %v9739 = vmul.f32 %v9738, 0.6931472
        %v9740 = vmul.f32 -0.5, %v9237
        %v9741 = vadd.f32 %v9740, 1.0
        %v9742 = vmul.f32 %v9741, %v9237
        %v9743 = vand.u32 2147483647, %v9237
        %vm9744 = vcmp.lt.f32.partialorder %v9743, 0.0004427343
        %v9745 = vsel %vm9744, %v9742, %v9739
        %v9746 = vadd.f32 %v9239, 1.0
        %v9747 = vlog2.pop %v9746
        %v9748 = vmul.f32 %v9747, 0.6931472
        %v9749 = vmul.f32 -0.5, %v9239
        %v9750 = vadd.f32 %v9749, 1.0
        %v9751 = vmul.f32 %v9750, %v9239
        %v9752 = vand.u32 2147483647, %v9239
        %vm9753 = vcmp.lt.f32.partialorder %v9752, 0.0004427343
        %v9754 = vsel %vm9753, %v9751, %v9748
        %v9755 = vadd.f32 %v9241, 1.0
        %v9756 = vlog2.pop %v9755
        %v9757 = vmul.f32 %v9756, 0.6931472
        %v9758 = vmul.f32 -0.5, %v9241
        %v9759 = vadd.f32 %v9758, 1.0
        %v9760 = vmul.f32 %v9759, %v9241
        %v9761 = vand.u32 2147483647, %v9241
        %vm9762 = vcmp.lt.f32.partialorder %v9761, 0.0004427343
        %v9763 = vsel %vm9762, %v9760, %v9757
        %v9764 = vadd.f32 %v9243, 1.0
        %v9765 = vlog2.pop %v9764
        %v9766 = vmul.f32 %v9765, 0.6931472
        %v9767 = vmul.f32 -0.5, %v9243
        %v9768 = vadd.f32 %v9767, 1.0
        %v9769 = vmul.f32 %v9768, %v9243
        %v9770 = vand.u32 2147483647, %v9243
        %vm9771 = vcmp.lt.f32.partialorder %v9770, 0.0004427343
        %v9772 = vsel %vm9771, %v9769, %v9766
        %v9773 = vadd.f32 %v9245, 1.0
        %v9774 = vlog2.pop %v9773
        %v9775 = vmul.f32 %v9774, 0.6931472
        %v9776 = vmul.f32 -0.5, %v9245
        %v9777 = vadd.f32 %v9776, 1.0
        %v9778 = vmul.f32 %v9777, %v9245
        %v9779 = vand.u32 2147483647, %v9245
        %vm9780 = vcmp.lt.f32.partialorder %v9779, 0.0004427343
        %v9781 = vsel %vm9780, %v9778, %v9775
        %v9782 = vadd.f32 %v9247, 1.0
        %v9783 = vlog2.pop %v9782
        %v9784 = vmul.f32 %v9783, 0.6931472
        %v9785 = vmul.f32 -0.5, %v9247
        %v9786 = vadd.f32 %v9785, 1.0
        %v9787 = vmul.f32 %v9786, %v9247
        %v9788 = vand.u32 2147483647, %v9247
        %vm9789 = vcmp.lt.f32.partialorder %v9788, 0.0004427343
        %v9790 = vsel %vm9789, %v9787, %v9784
        %v9791 = vadd.f32 %v9249, 1.0
        %v9792 = vlog2.pop %v9791
        %v9793 = vmul.f32 %v9792, 0.6931472
        %v9794 = vmul.f32 -0.5, %v9249
        %v9795 = vadd.f32 %v9794, 1.0
        %v9796 = vmul.f32 %v9795, %v9249
        %v9797 = vand.u32 2147483647, %v9249
        %vm9798 = vcmp.lt.f32.partialorder %v9797, 0.0004427343
        %v9799 = vsel %vm9798, %v9796, %v9793
        %v9800 = vadd.f32 %v9251, 1.0
        %v9801 = vlog2.pop %v9800
        %v9802 = vmul.f32 %v9801, 0.6931472
        %v9803 = vmul.f32 -0.5, %v9251
        %v9804 = vadd.f32 %v9803, 1.0
        %v9805 = vmul.f32 %v9804, %v9251
        %v9806 = vand.u32 2147483647, %v9251
        %vm9807 = vcmp.lt.f32.partialorder %v9806, 0.0004427343
        %v9808 = vsel %vm9807, %v9805, %v9802
        %v9809 = vadd.f32 %v9253, 1.0
        %v9810 = vlog2.pop %v9809
        %v9811 = vmul.f32 %v9810, 0.6931472
        %v9812 = vmul.f32 -0.5, %v9253
        %v9813 = vadd.f32 %v9812, 1.0
        %v9814 = vmul.f32 %v9813, %v9253
        %v9815 = vand.u32 2147483647, %v9253
        %vm9816 = vcmp.lt.f32.partialorder %v9815, 0.0004427343
        %v9817 = vsel %vm9816, %v9814, %v9811
        %v9818 = vadd.f32 %v9255, 1.0
        %v9819 = vlog2.pop %v9818
        %v9820 = vmul.f32 %v9819, 0.6931472
        %v9821 = vmul.f32 -0.5, %v9255
        %v9822 = vadd.f32 %v9821, 1.0
        %v9823 = vmul.f32 %v9822, %v9255
        %v9824 = vand.u32 2147483647, %v9255
        %vm9825 = vcmp.lt.f32.partialorder %v9824, 0.0004427343
        %v9826 = vsel %vm9825, %v9823, %v9820
        %v9827 = vadd.f32 %v9257, 1.0
        %v9828 = vlog2.pop %v9827
        %v9829 = vmul.f32 %v9828, 0.6931472
        %v9830 = vmul.f32 -0.5, %v9257
        %v9831 = vadd.f32 %v9830, 1.0
        %v9832 = vmul.f32 %v9831, %v9257
        %v9833 = vand.u32 2147483647, %v9257
        %vm9834 = vcmp.lt.f32.partialorder %v9833, 0.0004427343
        %v9835 = vsel %vm9834, %v9832, %v9829
        %v9836 = vadd.f32 %v9259, 1.0
        %v9837 = vlog2.pop %v9836
        %v9838 = vmul.f32 %v9837, 0.6931472
        %v9839 = vmul.f32 -0.5, %v9259
        %v9840 = vadd.f32 %v9839, 1.0
        %v9841 = vmul.f32 %v9840, %v9259
        %v9842 = vand.u32 2147483647, %v9259
        %vm9843 = vcmp.lt.f32.partialorder %v9842, 0.0004427343
        %v9844 = vsel %vm9843, %v9841, %v9838
        %v9845 = vadd.f32 %v9261, 1.0
        %v9846 = vlog2.pop %v9845
        %v9847 = vmul.f32 %v9846, 0.6931472
        %v9848 = vmul.f32 -0.5, %v9261
        %v9849 = vadd.f32 %v9848, 1.0
        %v9850 = vmul.f32 %v9849, %v9261
        %v9851 = vand.u32 2147483647, %v9261
        %vm9852 = vcmp.lt.f32.partialorder %v9851, 0.0004427343
        %v9853 = vsel %vm9852, %v9850, %v9847
        %v9854 = vadd.f32 %v9263, 1.0
        %v9855 = vlog2.pop %v9854
        %v9856 = vmul.f32 %v9855, 0.6931472
        %v9857 = vmul.f32 -0.5, %v9263
        %v9858 = vadd.f32 %v9857, 1.0
        %v9859 = vmul.f32 %v9858, %v9263
        %v9860 = vand.u32 2147483647, %v9263
        %vm9861 = vcmp.lt.f32.partialorder %v9860, 0.0004427343
        %v9862 = vsel %vm9861, %v9859, %v9856
        %v9863 = vadd.f32 %v9265, 1.0
        %v9864 = vlog2.pop %v9863
        %v9865 = vmul.f32 %v9864, 0.6931472
        %v9866 = vmul.f32 -0.5, %v9265
        %v9867 = vadd.f32 %v9866, 1.0
        %v9868 = vmul.f32 %v9867, %v9265
        %v9869 = vand.u32 2147483647, %v9265
        %vm9870 = vcmp.lt.f32.partialorder %v9869, 0.0004427343
        %v9871 = vsel %vm9870, %v9868, %v9865
        %v9872 = vadd.f32 %v9267, 1.0
        %v9873 = vlog2.pop %v9872
        %v9874 = vmul.f32 %v9873, 0.6931472
        %v9875 = vmul.f32 -0.5, %v9267
        %v9876 = vadd.f32 %v9875, 1.0
        %v9877 = vmul.f32 %v9876, %v9267
        %v9878 = vand.u32 2147483647, %v9267
        %vm9879 = vcmp.lt.f32.partialorder %v9878, 0.0004427343
        %v9880 = vsel %vm9879, %v9877, %v9874
        %v9881 = vadd.f32 %v9269, 1.0
        %v9882 = vlog2.pop %v9881
        %v9883 = vmul.f32 %v9882, 0.6931472
        %v9884 = vmul.f32 -0.5, %v9269
        %v9885 = vadd.f32 %v9884, 1.0
        %v9886 = vmul.f32 %v9885, %v9269
        %v9887 = vand.u32 2147483647, %v9269
        %vm9888 = vcmp.lt.f32.partialorder %v9887, 0.0004427343
        %v9889 = vsel %vm9888, %v9886, %v9883
        %v9890 = vadd.f32 %v9271, 1.0
        %v9891 = vlog2.pop %v9890
        %v9892 = vmul.f32 %v9891, 0.6931472
        %v9893 = vmul.f32 -0.5, %v9271
        %v9894 = vadd.f32 %v9893, 1.0
        %v9895 = vmul.f32 %v9894, %v9271
        %v9896 = vand.u32 2147483647, %v9271
        %vm9897 = vcmp.lt.f32.partialorder %v9896, 0.0004427343
        %v9898 = vsel %vm9897, %v9895, %v9892
        %v9899 = vadd.f32 %v9273, 1.0
        %v9900 = vlog2.pop %v9899
        %v9901 = vmul.f32 %v9900, 0.6931472
        %v9902 = vmul.f32 -0.5, %v9273
        %v9903 = vadd.f32 %v9902, 1.0
        %v9904 = vmul.f32 %v9903, %v9273
        %v9905 = vand.u32 2147483647, %v9273
        %vm9906 = vcmp.lt.f32.partialorder %v9905, 0.0004427343
        %v9907 = vsel %vm9906, %v9904, %v9901
        %v9908 = vadd.f32 %v9275, 1.0
        %v9909 = vlog2.pop %v9908
        %v9910 = vmul.f32 %v9909, 0.6931472
        %v9911 = vmul.f32 -0.5, %v9275
        %v9912 = vadd.f32 %v9911, 1.0
        %v9913 = vmul.f32 %v9912, %v9275
        %v9914 = vand.u32 2147483647, %v9275
        %vm9915 = vcmp.lt.f32.partialorder %v9914, 0.0004427343
        %v9916 = vsel %vm9915, %v9913, %v9910
        %v9917 = vadd.f32 %v9277, 1.0
        %v9918 = vlog2.pop %v9917
        %v9919 = vmul.f32 %v9918, 0.6931472
        %v9920 = vmul.f32 -0.5, %v9277
        %v9921 = vadd.f32 %v9920, 1.0
        %v9922 = vmul.f32 %v9921, %v9277
        %v9923 = vand.u32 2147483647, %v9277
        %vm9924 = vcmp.lt.f32.partialorder %v9923, 0.0004427343
        %v9925 = vsel %vm9924, %v9922, %v9919
        %v9926 = vadd.f32 %v9279, 1.0
        %v9927 = vlog2.pop %v9926
        %v9928 = vmul.f32 %v9927, 0.6931472
        %v9929 = vmul.f32 -0.5, %v9279
        %v9930 = vadd.f32 %v9929, 1.0
        %v9931 = vmul.f32 %v9930, %v9279
        %v9932 = vand.u32 2147483647, %v9279
        %vm9933 = vcmp.lt.f32.partialorder %v9932, 0.0004427343
        %v9934 = vsel %vm9933, %v9931, %v9928
        %v9935 = vadd.f32 %v9281, 1.0
        %v9936 = vlog2.pop %v9935
        %v9937 = vmul.f32 %v9936, 0.6931472
        %v9938 = vmul.f32 -0.5, %v9281
        %v9939 = vadd.f32 %v9938, 1.0
        %v9940 = vmul.f32 %v9939, %v9281
        %v9941 = vand.u32 2147483647, %v9281
        %vm9942 = vcmp.lt.f32.partialorder %v9941, 0.0004427343
        %v9943 = vsel %vm9942, %v9940, %v9937
        %v9944 = vadd.f32 %v9283, 1.0
        %v9945 = vlog2.pop %v9944
        %v9946 = vmul.f32 %v9945, 0.6931472
        %v9947 = vmul.f32 -0.5, %v9283
        %v9948 = vadd.f32 %v9947, 1.0
        %v9949 = vmul.f32 %v9948, %v9283
        %v9950 = vand.u32 2147483647, %v9283
        %vm9951 = vcmp.lt.f32.partialorder %v9950, 0.0004427343
        %v9952 = vsel %vm9951, %v9949, %v9946
        %v9953 = vadd.f32 %v9285, 1.0
        %v9954 = vlog2.pop %v9953
        %v9955 = vmul.f32 %v9954, 0.6931472
        %v9956 = vmul.f32 -0.5, %v9285
        %v9957 = vadd.f32 %v9956, 1.0
        %v9958 = vmul.f32 %v9957, %v9285
        %v9959 = vand.u32 2147483647, %v9285
        %vm9960 = vcmp.lt.f32.partialorder %v9959, 0.0004427343
        %v9961 = vsel %vm9960, %v9958, %v9955
        %v9962 = vadd.f32 %v9287, 1.0
        %v9963 = vlog2.pop %v9962
        %v9964 = vmul.f32 %v9963, 0.6931472
        %v9965 = vmul.f32 -0.5, %v9287
        %v9966 = vadd.f32 %v9965, 1.0
        %v9967 = vmul.f32 %v9966, %v9287
        %v9968 = vand.u32 2147483647, %v9287
        %vm9969 = vcmp.lt.f32.partialorder %v9968, 0.0004427343
        %v9970 = vsel %vm9969, %v9967, %v9964
        %v9971 = vadd.f32 %v9289, 1.0
        %v9972 = vlog2.pop %v9971
        %v9973 = vmul.f32 %v9972, 0.6931472
        %v9974 = vmul.f32 -0.5, %v9289
        %v9975 = vadd.f32 %v9974, 1.0
        %v9976 = vmul.f32 %v9975, %v9289
        %v9977 = vand.u32 2147483647, %v9289
        %vm9978 = vcmp.lt.f32.partialorder %v9977, 0.0004427343
        %v9979 = vsel %vm9978, %v9976, %v9973
        %v9980 = vadd.f32 %v9291, 1.0
        %v9981 = vlog2.pop %v9980
        %v9982 = vmul.f32 %v9981, 0.6931472
        %v9983 = vmul.f32 -0.5, %v9291
        %v9984 = vadd.f32 %v9983, 1.0
        %v9985 = vmul.f32 %v9984, %v9291
        %v9986 = vand.u32 2147483647, %v9291
        %vm9987 = vcmp.lt.f32.partialorder %v9986, 0.0004427343
        %v9988 = vsel %vm9987, %v9985, %v9982
        %v9989 = vadd.f32 %v9293, 1.0
        %v9990 = vlog2.pop %v9989
        %v9991 = vmul.f32 %v9990, 0.6931472
        %v9992 = vmul.f32 -0.5, %v9293
        %v9993 = vadd.f32 %v9992, 1.0
        %v9994 = vmul.f32 %v9993, %v9293
        %v9995 = vand.u32 2147483647, %v9293
        %vm9996 = vcmp.lt.f32.partialorder %v9995, 0.0004427343
        %v9997 = vsel %vm9996, %v9994, %v9991
        %v9998 = vadd.f32 %v9295, 1.0
        %v9999 = vlog2.pop %v9998
        %v10000 = vmul.f32 %v9999, 0.6931472
        %v10001 = vmul.f32 -0.5, %v9295
        %v10002 = vadd.f32 %v10001, 1.0
        %v10003 = vmul.f32 %v10002, %v9295
        %v10004 = vand.u32 2147483647, %v9295
        %vm10005 = vcmp.lt.f32.partialorder %v10004, 0.0004427343
        %v10006 = vsel %vm10005, %v10003, %v10000
        %v10007 = vadd.f32 %v9297, 1.0
        %v10008 = vlog2.pop %v10007
        %v10009 = vmul.f32 %v10008, 0.6931472
        %v10010 = vmul.f32 -0.5, %v9297
        %v10011 = vadd.f32 %v10010, 1.0
        %v10012 = vmul.f32 %v10011, %v9297
        %v10013 = vand.u32 2147483647, %v9297
        %vm10014 = vcmp.lt.f32.partialorder %v10013, 0.0004427343
        %v10015 = vsel %vm10014, %v10012, %v10009
        %v10016 = vadd.f32 %v9299, 1.0
        %v10017 = vlog2.pop %v10016
        %v10018 = vmul.f32 %v10017, 0.6931472
        %v10019 = vmul.f32 -0.5, %v9299
        %v10020 = vadd.f32 %v10019, 1.0
        %v10021 = vmul.f32 %v10020, %v9299
        %v10022 = vand.u32 2147483647, %v9299
        %vm10023 = vcmp.lt.f32.partialorder %v10022, 0.0004427343
        %v10024 = vsel %vm10023, %v10021, %v10018
        %v10025 = vadd.f32 %v9301, 1.0
        %v10026 = vlog2.pop %v10025
        %v10027 = vmul.f32 %v10026, 0.6931472
        %v10028 = vmul.f32 -0.5, %v9301
        %v10029 = vadd.f32 %v10028, 1.0
        %v10030 = vmul.f32 %v10029, %v9301
        %v10031 = vand.u32 2147483647, %v9301
        %vm10032 = vcmp.lt.f32.partialorder %v10031, 0.0004427343
        %v10033 = vsel %vm10032, %v10030, %v10027
        %v10034 = vadd.f32 %v9303, 1.0
        %v10035 = vlog2.pop %v10034
        %v10036 = vmul.f32 %v10035, 0.6931472
        %v10037 = vmul.f32 -0.5, %v9303
        %v10038 = vadd.f32 %v10037, 1.0
        %v10039 = vmul.f32 %v10038, %v9303
        %v10040 = vand.u32 2147483647, %v9303
        %vm10041 = vcmp.lt.f32.partialorder %v10040, 0.0004427343
        %v10042 = vsel %vm10041, %v10039, %v10036
        %v10043 = vadd.f32 %v9305, 1.0
        %v10044 = vlog2.pop %v10043
        %v10045 = vmul.f32 %v10044, 0.6931472
        %v10046 = vmul.f32 -0.5, %v9305
        %v10047 = vadd.f32 %v10046, 1.0
        %v10048 = vmul.f32 %v10047, %v9305
        %v10049 = vand.u32 2147483647, %v9305
        %vm10050 = vcmp.lt.f32.partialorder %v10049, 0.0004427343
        %v10051 = vsel %vm10050, %v10048, %v10045
        %v10052 = vadd.f32 %v9307, 1.0
        %v10053 = vlog2.pop %v10052
        %v10054 = vmul.f32 %v10053, 0.6931472
        %v10055 = vmul.f32 -0.5, %v9307
        %v10056 = vadd.f32 %v10055, 1.0
        %v10057 = vmul.f32 %v10056, %v9307
        %v10058 = vand.u32 2147483647, %v9307
        %vm10059 = vcmp.lt.f32.partialorder %v10058, 0.0004427343
        %v10060 = vsel %vm10059, %v10057, %v10054
        %v10061 = vadd.f32 %v9309, 1.0
        %v10062 = vlog2.pop %v10061
        %v10063 = vmul.f32 %v10062, 0.6931472
        %v10064 = vmul.f32 -0.5, %v9309
        %v10065 = vadd.f32 %v10064, 1.0
        %v10066 = vmul.f32 %v10065, %v9309
        %v10067 = vand.u32 2147483647, %v9309
        %vm10068 = vcmp.lt.f32.partialorder %v10067, 0.0004427343
        %v10069 = vsel %vm10068, %v10066, %v10063
        %v10070 = vadd.f32 %v9311, 1.0
        %v10071 = vlog2.pop %v10070
        %v10072 = vmul.f32 %v10071, 0.6931472
        %v10073 = vmul.f32 -0.5, %v9311
        %v10074 = vadd.f32 %v10073, 1.0
        %v10075 = vmul.f32 %v10074, %v9311
        %v10076 = vand.u32 2147483647, %v9311
        %vm10077 = vcmp.lt.f32.partialorder %v10076, 0.0004427343
        %v10078 = vsel %vm10077, %v10075, %v10072
        %v10079 = vadd.f32 %v9313, 1.0
        %v10080 = vlog2.pop %v10079
        %v10081 = vmul.f32 %v10080, 0.6931472
        %v10082 = vmul.f32 -0.5, %v9313
        %v10083 = vadd.f32 %v10082, 1.0
        %v10084 = vmul.f32 %v10083, %v9313
        %v10085 = vand.u32 2147483647, %v9313
        %vm10086 = vcmp.lt.f32.partialorder %v10085, 0.0004427343
        %v10087 = vsel %vm10086, %v10084, %v10081
        %v10088 = vadd.f32 %v9315, 1.0
        %v10089 = vlog2.pop %v10088
        %v10090 = vmul.f32 %v10089, 0.6931472
        %v10091 = vmul.f32 -0.5, %v9315
        %v10092 = vadd.f32 %v10091, 1.0
        %v10093 = vmul.f32 %v10092, %v9315
        %v10094 = vand.u32 2147483647, %v9315
        %vm10095 = vcmp.lt.f32.partialorder %v10094, 0.0004427343
        %v10096 = vsel %vm10095, %v10093, %v10090
        %v10097 = vadd.f32 %v9317, 1.0
        %v10098 = vlog2.pop %v10097
        %v10099 = vmul.f32 %v10098, 0.6931472
        %v10100 = vmul.f32 -0.5, %v9317
        %v10101 = vadd.f32 %v10100, 1.0
        %v10102 = vmul.f32 %v10101, %v9317
        %v10103 = vand.u32 2147483647, %v9317
        %vm10104 = vcmp.lt.f32.partialorder %v10103, 0.0004427343
        %v10105 = vsel %vm10104, %v10102, %v10099
        %v10106 = vadd.f32 %v9319, 1.0
        %v10107 = vlog2.pop %v10106
        %v10108 = vmul.f32 %v10107, 0.6931472
        %v10109 = vmul.f32 -0.5, %v9319
        %v10110 = vadd.f32 %v10109, 1.0
        %v10111 = vmul.f32 %v10110, %v9319
        %v10112 = vand.u32 2147483647, %v9319
        %vm10113 = vcmp.lt.f32.partialorder %v10112, 0.0004427343
        %v10114 = vsel %vm10113, %v10111, %v10108
        %v10115 = vadd.f32 %v9321, 1.0
        %v10116 = vlog2.pop %v10115
        %v10117 = vmul.f32 %v10116, 0.6931472
        %v10118 = vmul.f32 -0.5, %v9321
        %v10119 = vadd.f32 %v10118, 1.0
        %v10120 = vmul.f32 %v10119, %v9321
        %v10121 = vand.u32 2147483647, %v9321
        %vm10122 = vcmp.lt.f32.partialorder %v10121, 0.0004427343
        %v10123 = vsel %vm10122, %v10120, %v10117
        %v10124 = vadd.f32 %v9323, 1.0
        %v10125 = vlog2.pop %v10124
        %v10126 = vmul.f32 %v10125, 0.6931472
        %v10127 = vmul.f32 -0.5, %v9323
        %v10128 = vadd.f32 %v10127, 1.0
        %v10129 = vmul.f32 %v10128, %v9323
        %v10130 = vand.u32 2147483647, %v9323
        %vm10131 = vcmp.lt.f32.partialorder %v10130, 0.0004427343
        %v10132 = vsel %vm10131, %v10129, %v10126
        %v10133 = vadd.f32 %v9325, 1.0
        %v10134 = vlog2.pop %v10133
        %v10135 = vmul.f32 %v10134, 0.6931472
        %v10136 = vmul.f32 -0.5, %v9325
        %v10137 = vadd.f32 %v10136, 1.0
        %v10138 = vmul.f32 %v10137, %v9325
        %v10139 = vand.u32 2147483647, %v9325
        %vm10140 = vcmp.lt.f32.partialorder %v10139, 0.0004427343
        %v10141 = vsel %vm10140, %v10138, %v10135
        %v10142 = vadd.f32 %v9327, 1.0
        %v10143 = vlog2.pop %v10142
        %v10144 = vmul.f32 %v10143, 0.6931472
        %v10145 = vmul.f32 -0.5, %v9327
        %v10146 = vadd.f32 %v10145, 1.0
        %v10147 = vmul.f32 %v10146, %v9327
        %v10148 = vand.u32 2147483647, %v9327
        %vm10149 = vcmp.lt.f32.partialorder %v10148, 0.0004427343
        %v10150 = vsel %vm10149, %v10147, %v10144
        %v10151 = vadd.f32 %v9329, 1.0
        %v10152 = vlog2.pop %v10151
        %v10153 = vmul.f32 %v10152, 0.6931472
        %v10154 = vmul.f32 -0.5, %v9329
        %v10155 = vadd.f32 %v10154, 1.0
        %v10156 = vmul.f32 %v10155, %v9329
        %v10157 = vand.u32 2147483647, %v9329
        %vm10158 = vcmp.lt.f32.partialorder %v10157, 0.0004427343
        %v10159 = vsel %vm10158, %v10156, %v10153
        %v10160 = vadd.f32 %v9331, 1.0
        %v10161 = vlog2.pop %v10160
        %v10162 = vmul.f32 %v10161, 0.6931472
        %v10163 = vmul.f32 -0.5, %v9331
        %v10164 = vadd.f32 %v10163, 1.0
        %v10165 = vmul.f32 %v10164, %v9331
        %v10166 = vand.u32 2147483647, %v9331
        %vm10167 = vcmp.lt.f32.partialorder %v10166, 0.0004427343
        %v10168 = vsel %vm10167, %v10165, %v10162
        %v10169 = vadd.f32 %v9333, 1.0
        %v10170 = vlog2.pop %v10169
        %v10171 = vmul.f32 %v10170, 0.6931472
        %v10172 = vmul.f32 -0.5, %v9333
        %v10173 = vadd.f32 %v10172, 1.0
        %v10174 = vmul.f32 %v10173, %v9333
        %v10175 = vand.u32 2147483647, %v9333
        %vm10176 = vcmp.lt.f32.partialorder %v10175, 0.0004427343
        %v10177 = vsel %vm10176, %v10174, %v10171
        %v10178 = vadd.f32 %v9335, 1.0
        %v10179 = vlog2.pop %v10178
        %v10180 = vmul.f32 %v10179, 0.6931472
        %v10181 = vmul.f32 -0.5, %v9335
        %v10182 = vadd.f32 %v10181, 1.0
        %v10183 = vmul.f32 %v10182, %v9335
        %v10184 = vand.u32 2147483647, %v9335
        %vm10185 = vcmp.lt.f32.partialorder %v10184, 0.0004427343
        %v10186 = vsel %vm10185, %v10183, %v10180
        %v10187 = vadd.f32 %v9337, 1.0
        %v10188 = vlog2.pop %v10187
        %v10189 = vmul.f32 %v10188, 0.6931472
        %v10190 = vmul.f32 -0.5, %v9337
        %v10191 = vadd.f32 %v10190, 1.0
        %v10192 = vmul.f32 %v10191, %v9337
        %v10193 = vand.u32 2147483647, %v9337
        %vm10194 = vcmp.lt.f32.partialorder %v10193, 0.0004427343
        %v10195 = vsel %vm10194, %v10192, %v10189
        %v10196 = vadd.f32 %v9339, 1.0
        %v10197 = vlog2.pop %v10196
        %v10198 = vmul.f32 %v10197, 0.6931472
        %v10199 = vmul.f32 -0.5, %v9339
        %v10200 = vadd.f32 %v10199, 1.0
        %v10201 = vmul.f32 %v10200, %v9339
        %v10202 = vand.u32 2147483647, %v9339
        %vm10203 = vcmp.lt.f32.partialorder %v10202, 0.0004427343
        %v10204 = vsel %vm10203, %v10201, %v10198
        %v10205 = vadd.f32 %v9341, 1.0
        %v10206 = vlog2.pop %v10205
        %v10207 = vmul.f32 %v10206, 0.6931472
        %v10208 = vmul.f32 -0.5, %v9341
        %v10209 = vadd.f32 %v10208, 1.0
        %v10210 = vmul.f32 %v10209, %v9341
        %v10211 = vand.u32 2147483647, %v9341
        %vm10212 = vcmp.lt.f32.partialorder %v10211, 0.0004427343
        %v10213 = vsel %vm10212, %v10210, %v10207
        %v10214 = vadd.f32 %v9343, 1.0
        %v10215 = vlog2.pop %v10214
        %v10216 = vmul.f32 %v10215, 0.6931472
        %v10217 = vmul.f32 -0.5, %v9343
        %v10218 = vadd.f32 %v10217, 1.0
        %v10219 = vmul.f32 %v10218, %v9343
        %v10220 = vand.u32 2147483647, %v9343
        %vm10221 = vcmp.lt.f32.partialorder %v10220, 0.0004427343
        %v10222 = vsel %vm10221, %v10219, %v10216
        %v10223 = vadd.f32 %v9345, 1.0
        %v10224 = vlog2.pop %v10223
        %v10225 = vmul.f32 %v10224, 0.6931472
        %v10226 = vmul.f32 -0.5, %v9345
        %v10227 = vadd.f32 %v10226, 1.0
        %v10228 = vmul.f32 %v10227, %v9345
        %v10229 = vand.u32 2147483647, %v9345
        %vm10230 = vcmp.lt.f32.partialorder %v10229, 0.0004427343
        %v10231 = vsel %vm10230, %v10228, %v10225
        %v10232 = vadd.f32 %v9347, 1.0
        %v10233 = vlog2.pop %v10232
        %v10234 = vmul.f32 %v10233, 0.6931472
        %v10235 = vmul.f32 -0.5, %v9347
        %v10236 = vadd.f32 %v10235, 1.0
        %v10237 = vmul.f32 %v10236, %v9347
        %v10238 = vand.u32 2147483647, %v9347
        %vm10239 = vcmp.lt.f32.partialorder %v10238, 0.0004427343
        %v10240 = vsel %vm10239, %v10237, %v10234
        %v10241 = vadd.f32 %v9349, 1.0
        %v10242 = vlog2.pop %v10241
        %v10243 = vmul.f32 %v10242, 0.6931472
        %v10244 = vmul.f32 -0.5, %v9349
        %v10245 = vadd.f32 %v10244, 1.0
        %v10246 = vmul.f32 %v10245, %v9349
        %v10247 = vand.u32 2147483647, %v9349
        %vm10248 = vcmp.lt.f32.partialorder %v10247, 0.0004427343
        %v10249 = vsel %vm10248, %v10246, %v10243
        %v10250 = vadd.f32 %v9351, 1.0
        %v10251 = vlog2.pop %v10250
        %v10252 = vmul.f32 %v10251, 0.6931472
        %v10253 = vmul.f32 -0.5, %v9351
        %v10254 = vadd.f32 %v10253, 1.0
        %v10255 = vmul.f32 %v10254, %v9351
        %v10256 = vand.u32 2147483647, %v9351
        %vm10257 = vcmp.lt.f32.partialorder %v10256, 0.0004427343
        %v10258 = vsel %vm10257, %v10255, %v10252
        %v10259 = vadd.f32 %v9353, 1.0
        %v10260 = vlog2.pop %v10259
        %v10261 = vmul.f32 %v10260, 0.6931472
        %v10262 = vmul.f32 -0.5, %v9353
        %v10263 = vadd.f32 %v10262, 1.0
        %v10264 = vmul.f32 %v10263, %v9353
        %v10265 = vand.u32 2147483647, %v9353
        %vm10266 = vcmp.lt.f32.partialorder %v10265, 0.0004427343
        %v10267 = vsel %vm10266, %v10264, %v10261
        %v10268 = vadd.f32 %v9355, 1.0
        %v10269 = vlog2.pop %v10268
        %v10270 = vmul.f32 %v10269, 0.6931472
        %v10271 = vmul.f32 -0.5, %v9355
        %v10272 = vadd.f32 %v10271, 1.0
        %v10273 = vmul.f32 %v10272, %v9355
        %v10274 = vand.u32 2147483647, %v9355
        %vm10275 = vcmp.lt.f32.partialorder %v10274, 0.0004427343
        %v10276 = vsel %vm10275, %v10273, %v10270
        %v10277 = vadd.f32 %v9357, 1.0
        %v10278 = vlog2.pop %v10277
        %v10279 = vmul.f32 %v10278, 0.6931472
        %v10280 = vmul.f32 -0.5, %v9357
        %v10281 = vadd.f32 %v10280, 1.0
        %v10282 = vmul.f32 %v10281, %v9357
        %v10283 = vand.u32 2147483647, %v9357
        %vm10284 = vcmp.lt.f32.partialorder %v10283, 0.0004427343
        %v10285 = vsel %vm10284, %v10282, %v10279
        %v10286 = vadd.f32 %v9359, 1.0
        %v10287 = vlog2.pop %v10286
        %v10288 = vmul.f32 %v10287, 0.6931472
        %v10289 = vmul.f32 -0.5, %v9359
        %v10290 = vadd.f32 %v10289, 1.0
        %v10291 = vmul.f32 %v10290, %v9359
        %v10292 = vand.u32 2147483647, %v9359
        %vm10293 = vcmp.lt.f32.partialorder %v10292, 0.0004427343
        %v10294 = vsel %vm10293, %v10291, %v10288
        %v10295 = vadd.f32 %v9361, 1.0
        %v10296 = vlog2.pop %v10295
        %v10297 = vmul.f32 %v10296, 0.6931472
        %v10298 = vmul.f32 -0.5, %v9361
        %v10299 = vadd.f32 %v10298, 1.0
        %v10300 = vmul.f32 %v10299, %v9361
        %v10301 = vand.u32 2147483647, %v9361
        %vm10302 = vcmp.lt.f32.partialorder %v10301, 0.0004427343
        %v10303 = vsel %vm10302, %v10300, %v10297
        %v10304 = vadd.f32 %v9363, 1.0
        %v10305 = vlog2.pop %v10304
        %v10306 = vmul.f32 %v10305, 0.6931472
        %v10307 = vmul.f32 -0.5, %v9363
        %v10308 = vadd.f32 %v10307, 1.0
        %v10309 = vmul.f32 %v10308, %v9363
        %v10310 = vand.u32 2147483647, %v9363
        %vm10311 = vcmp.lt.f32.partialorder %v10310, 0.0004427343
        %v10312 = vsel %vm10311, %v10309, %v10306
        %v10313 = vadd.f32 %v9365, 1.0
        %v10314 = vlog2.pop %v10313
        %v10315 = vmul.f32 %v10314, 0.6931472
        %v10316 = vmul.f32 -0.5, %v9365
        %v10317 = vadd.f32 %v10316, 1.0
        %v10318 = vmul.f32 %v10317, %v9365
        %v10319 = vand.u32 2147483647, %v9365
        %vm10320 = vcmp.lt.f32.partialorder %v10319, 0.0004427343
        %v10321 = vsel %vm10320, %v10318, %v10315
        %v10322 = vadd.f32 %v9367, 1.0
        %v10323 = vlog2.pop %v10322
        %v10324 = vmul.f32 %v10323, 0.6931472
        %v10325 = vmul.f32 -0.5, %v9367
        %v10326 = vadd.f32 %v10325, 1.0
        %v10327 = vmul.f32 %v10326, %v9367
        %v10328 = vand.u32 2147483647, %v9367
        %vm10329 = vcmp.lt.f32.partialorder %v10328, 0.0004427343
        %v10330 = vsel %vm10329, %v10327, %v10324
        %v10331 = vadd.f32 %v9369, 1.0
        %v10332 = vlog2.pop %v10331
        %v10333 = vmul.f32 %v10332, 0.6931472
        %v10334 = vmul.f32 -0.5, %v9369
        %v10335 = vadd.f32 %v10334, 1.0
        %v10336 = vmul.f32 %v10335, %v9369
        %v10337 = vand.u32 2147483647, %v9369
        %vm10338 = vcmp.lt.f32.partialorder %v10337, 0.0004427343
        %v10339 = vsel %vm10338, %v10336, %v10333
        %v10340 = vadd.f32 %v9371, 1.0
        %v10341 = vlog2.pop %v10340
        %v10342 = vmul.f32 %v10341, 0.6931472
        %v10343 = vmul.f32 -0.5, %v9371
        %v10344 = vadd.f32 %v10343, 1.0
        %v10345 = vmul.f32 %v10344, %v9371
        %v10346 = vand.u32 2147483647, %v9371
        %vm10347 = vcmp.lt.f32.partialorder %v10346, 0.0004427343
        %v10348 = vsel %vm10347, %v10345, %v10342
        %v10349 = vadd.f32 %v9373, 1.0
        %v10350 = vlog2.pop %v10349
        %v10351 = vmul.f32 %v10350, 0.6931472
        %v10352 = vmul.f32 -0.5, %v9373
        %v10353 = vadd.f32 %v10352, 1.0
        %v10354 = vmul.f32 %v10353, %v9373
        %v10355 = vand.u32 2147483647, %v9373
        %vm10356 = vcmp.lt.f32.partialorder %v10355, 0.0004427343
        %v10357 = vsel %vm10356, %v10354, %v10351
        %v10358 = vadd.f32 %v9375, 1.0
        %v10359 = vlog2.pop %v10358
        %v10360 = vmul.f32 %v10359, 0.6931472
        %v10361 = vmul.f32 -0.5, %v9375
        %v10362 = vadd.f32 %v10361, 1.0
        %v10363 = vmul.f32 %v10362, %v9375
        %v10364 = vand.u32 2147483647, %v9375
        %vm10365 = vcmp.lt.f32.partialorder %v10364, 0.0004427343
        %v10366 = vsel %vm10365, %v10363, %v10360
        %v10367 = vadd.f32 %v9377, 1.0
        %v10368 = vlog2.pop %v10367
        %v10369 = vmul.f32 %v10368, 0.6931472
        %v10370 = vmul.f32 -0.5, %v9377
        %v10371 = vadd.f32 %v10370, 1.0
        %v10372 = vmul.f32 %v10371, %v9377
        %v10373 = vand.u32 2147483647, %v9377
        %vm10374 = vcmp.lt.f32.partialorder %v10373, 0.0004427343
        %v10375 = vsel %vm10374, %v10372, %v10369
        %v10376 = vadd.f32 %v9379, 1.0
        %v10377 = vlog2.pop %v10376
        %v10378 = vmul.f32 %v10377, 0.6931472
        %v10379 = vmul.f32 -0.5, %v9379
        %v10380 = vadd.f32 %v10379, 1.0
        %v10381 = vmul.f32 %v10380, %v9379
        %v10382 = vand.u32 2147483647, %v9379
        %vm10383 = vcmp.lt.f32.partialorder %v10382, 0.0004427343
        %v10384 = vsel %vm10383, %v10381, %v10378
        %v10385 = vadd.f32 %v9381, 1.0
        %v10386 = vlog2.pop %v10385
        %v10387 = vmul.f32 %v10386, 0.6931472
        %v10388 = vmul.f32 -0.5, %v9381
        %v10389 = vadd.f32 %v10388, 1.0
        %v10390 = vmul.f32 %v10389, %v9381
        %v10391 = vand.u32 2147483647, %v9381
        %vm10392 = vcmp.lt.f32.partialorder %v10391, 0.0004427343
        %v10393 = vsel %vm10392, %v10390, %v10387
        %v10394 = vadd.f32 %v9383, 1.0
        %v10395 = vlog2.pop %v10394
        %v10396 = vmul.f32 %v10395, 0.6931472
        %v10397 = vmul.f32 -0.5, %v9383
        %v10398 = vadd.f32 %v10397, 1.0
        %v10399 = vmul.f32 %v10398, %v9383
        %v10400 = vand.u32 2147483647, %v9383
        %vm10401 = vcmp.lt.f32.partialorder %v10400, 0.0004427343
        %v10402 = vsel %vm10401, %v10399, %v10396
        %v10403 = vadd.f32 %v9385, 1.0
        %v10404 = vlog2.pop %v10403
        %v10405 = vmul.f32 %v10404, 0.6931472
        %v10406 = vmul.f32 -0.5, %v9385
        %v10407 = vadd.f32 %v10406, 1.0
        %v10408 = vmul.f32 %v10407, %v9385
        %v10409 = vand.u32 2147483647, %v9385
        %vm10410 = vcmp.lt.f32.partialorder %v10409, 0.0004427343
        %v10411 = vsel %vm10410, %v10408, %v10405
        %v10412 = vadd.f32 %v9387, 1.0
        %v10413 = vlog2.pop %v10412
        %v10414 = vmul.f32 %v10413, 0.6931472
        %v10415 = vmul.f32 -0.5, %v9387
        %v10416 = vadd.f32 %v10415, 1.0
        %v10417 = vmul.f32 %v10416, %v9387
        %v10418 = vand.u32 2147483647, %v9387
        %vm10419 = vcmp.lt.f32.partialorder %v10418, 0.0004427343
        %v10420 = vsel %vm10419, %v10417, %v10414
        %v10421 = vadd.f32 %v9389, 1.0
        %v10422 = vlog2.pop %v10421
        %v10423 = vmul.f32 %v10422, 0.6931472
        %v10424 = vmul.f32 -0.5, %v9389
        %v10425 = vadd.f32 %v10424, 1.0
        %v10426 = vmul.f32 %v10425, %v9389
        %v10427 = vand.u32 2147483647, %v9389
        %vm10428 = vcmp.lt.f32.partialorder %v10427, 0.0004427343
        %v10429 = vsel %vm10428, %v10426, %v10423
        %v10430 = vadd.f32 %v9391, 1.0
        %v10431 = vlog2.pop %v10430
        %v10432 = vmul.f32 %v10431, 0.6931472
        %v10433 = vmul.f32 -0.5, %v9391
        %v10434 = vadd.f32 %v10433, 1.0
        %v10435 = vmul.f32 %v10434, %v9391
        %v10436 = vand.u32 2147483647, %v9391
        %vm10437 = vcmp.lt.f32.partialorder %v10436, 0.0004427343
        %v10438 = vsel %vm10437, %v10435, %v10432
        %v10439 = vadd.f32 %v9393, 1.0
        %v10440 = vlog2.pop %v10439
        %v10441 = vmul.f32 %v10440, 0.6931472
        %v10442 = vmul.f32 -0.5, %v9393
        %v10443 = vadd.f32 %v10442, 1.0
        %v10444 = vmul.f32 %v10443, %v9393
        %v10445 = vand.u32 2147483647, %v9393
        %vm10446 = vcmp.lt.f32.partialorder %v10445, 0.0004427343
        %v10447 = vsel %vm10446, %v10444, %v10441
        %v10448 = vadd.f32 %v9395, 1.0
        %v10449 = vlog2.pop %v10448
        %v10450 = vmul.f32 %v10449, 0.6931472
        %v10451 = vmul.f32 -0.5, %v9395
        %v10452 = vadd.f32 %v10451, 1.0
        %v10453 = vmul.f32 %v10452, %v9395
        %v10454 = vand.u32 2147483647, %v9395
        %vm10455 = vcmp.lt.f32.partialorder %v10454, 0.0004427343
        %v10456 = vsel %vm10455, %v10453, %v10450
        %v10457 = vadd.f32 %v9397, 1.0
        %v10458 = vlog2.pop %v10457
        %v10459 = vmul.f32 %v10458, 0.6931472
        %v10460 = vmul.f32 -0.5, %v9397
        %v10461 = vadd.f32 %v10460, 1.0
        %v10462 = vmul.f32 %v10461, %v9397
        %v10463 = vand.u32 2147483647, %v9397
        %vm10464 = vcmp.lt.f32.partialorder %v10463, 0.0004427343
        %v10465 = vsel %vm10464, %v10462, %v10459
        %v10466 = vadd.f32 %v9399, 1.0
        %v10467 = vlog2.pop %v10466
        %v10468 = vmul.f32 %v10467, 0.6931472
        %v10469 = vmul.f32 -0.5, %v9399
        %v10470 = vadd.f32 %v10469, 1.0
        %v10471 = vmul.f32 %v10470, %v9399
        %v10472 = vand.u32 2147483647, %v9399
        %vm10473 = vcmp.lt.f32.partialorder %v10472, 0.0004427343
        %v10474 = vsel %vm10473, %v10471, %v10468
        %v10475 = vadd.f32 %v9401, 1.0
        %v10476 = vlog2.pop %v10475
        %v10477 = vmul.f32 %v10476, 0.6931472
        %v10478 = vmul.f32 -0.5, %v9401
        %v10479 = vadd.f32 %v10478, 1.0
        %v10480 = vmul.f32 %v10479, %v9401
        %v10481 = vand.u32 2147483647, %v9401
        %vm10482 = vcmp.lt.f32.partialorder %v10481, 0.0004427343
        %v10483 = vsel %vm10482, %v10480, %v10477
        %v10484 = vadd.f32 %v9403, 1.0
        %v10485 = vlog2.pop %v10484
        %v10486 = vmul.f32 %v10485, 0.6931472
        %v10487 = vmul.f32 -0.5, %v9403
        %v10488 = vadd.f32 %v10487, 1.0
        %v10489 = vmul.f32 %v10488, %v9403
        %v10490 = vand.u32 2147483647, %v9403
        %vm10491 = vcmp.lt.f32.partialorder %v10490, 0.0004427343
        %v10492 = vsel %vm10491, %v10489, %v10486
        %v10493 = vadd.f32 %v9405, 1.0
        %v10494 = vlog2.pop %v10493
        %v10495 = vmul.f32 %v10494, 0.6931472
        %v10496 = vmul.f32 -0.5, %v9405
        %v10497 = vadd.f32 %v10496, 1.0
        %v10498 = vmul.f32 %v10497, %v9405
        %v10499 = vand.u32 2147483647, %v9405
        %vm10500 = vcmp.lt.f32.partialorder %v10499, 0.0004427343
        %v10501 = vsel %vm10500, %v10498, %v10495
        %v10502 = vadd.f32 %v9407, 1.0
        %v10503 = vlog2.pop %v10502
        %v10504 = vmul.f32 %v10503, 0.6931472
        %v10505 = vmul.f32 -0.5, %v9407
        %v10506 = vadd.f32 %v10505, 1.0
        %v10507 = vmul.f32 %v10506, %v9407
        %v10508 = vand.u32 2147483647, %v9407
        %vm10509 = vcmp.lt.f32.partialorder %v10508, 0.0004427343
        %v10510 = vsel %vm10509, %v10507, %v10504
        %v10511 = vadd.f32 %v9409, 1.0
        %v10512 = vlog2.pop %v10511
        %v10513 = vmul.f32 %v10512, 0.6931472
        %v10514 = vmul.f32 -0.5, %v9409
        %v10515 = vadd.f32 %v10514, 1.0
        %v10516 = vmul.f32 %v10515, %v9409
        %v10517 = vand.u32 2147483647, %v9409
        %vm10518 = vcmp.lt.f32.partialorder %v10517, 0.0004427343
        %v10519 = vsel %vm10518, %v10516, %v10513
        %v10520 = vadd.f32 %v9411, 1.0
        %v10521 = vlog2.pop %v10520
        %v10522 = vmul.f32 %v10521, 0.6931472
        %v10523 = vmul.f32 -0.5, %v9411
        %v10524 = vadd.f32 %v10523, 1.0
        %v10525 = vmul.f32 %v10524, %v9411
        %v10526 = vand.u32 2147483647, %v9411
        %vm10527 = vcmp.lt.f32.partialorder %v10526, 0.0004427343
        %v10528 = vsel %vm10527, %v10525, %v10522
        %v10529 = vadd.f32 %v9413, 1.0
        %v10530 = vlog2.pop %v10529
        %v10531 = vmul.f32 %v10530, 0.6931472
        %v10532 = vmul.f32 -0.5, %v9413
        %v10533 = vadd.f32 %v10532, 1.0
        %v10534 = vmul.f32 %v10533, %v9413
        %v10535 = vand.u32 2147483647, %v9413
        %vm10536 = vcmp.lt.f32.partialorder %v10535, 0.0004427343
        %v10537 = vsel %vm10536, %v10534, %v10531
        %v10538 = vadd.f32 %v9415, 1.0
        %v10539 = vlog2.pop %v10538
        %v10540 = vmul.f32 %v10539, 0.6931472
        %v10541 = vmul.f32 -0.5, %v9415
        %v10542 = vadd.f32 %v10541, 1.0
        %v10543 = vmul.f32 %v10542, %v9415
        %v10544 = vand.u32 2147483647, %v9415
        %vm10545 = vcmp.lt.f32.partialorder %v10544, 0.0004427343
        %v10546 = vsel %vm10545, %v10543, %v10540
        %v10547 = vadd.f32 %v9417, 1.0
        %v10548 = vlog2.pop %v10547
        %v10549 = vmul.f32 %v10548, 0.6931472
        %v10550 = vmul.f32 -0.5, %v9417
        %v10551 = vadd.f32 %v10550, 1.0
        %v10552 = vmul.f32 %v10551, %v9417
        %v10553 = vand.u32 2147483647, %v9417
        %vm10554 = vcmp.lt.f32.partialorder %v10553, 0.0004427343
        %v10555 = vsel %vm10554, %v10552, %v10549
        %v10556 = vadd.f32 %v9419, 1.0
        %v10557 = vlog2.pop %v10556
        %v10558 = vmul.f32 %v10557, 0.6931472
        %v10559 = vmul.f32 -0.5, %v9419
        %v10560 = vadd.f32 %v10559, 1.0
        %v10561 = vmul.f32 %v10560, %v9419
        %v10562 = vand.u32 2147483647, %v9419
        %vm10563 = vcmp.lt.f32.partialorder %v10562, 0.0004427343
        %v10564 = vsel %vm10563, %v10561, %v10558
        %v10565 = vadd.f32 %v9421, 1.0
        %v10566 = vlog2.pop %v10565
        %v10567 = vmul.f32 %v10566, 0.6931472
        %v10568 = vmul.f32 -0.5, %v9421
        %v10569 = vadd.f32 %v10568, 1.0
        %v10570 = vmul.f32 %v10569, %v9421
        %v10571 = vand.u32 2147483647, %v9421
        %vm10572 = vcmp.lt.f32.partialorder %v10571, 0.0004427343
        %v10573 = vsel %vm10572, %v10570, %v10567
        %v10574 = vadd.f32 %v8782, %v9430
        %v10575 = vadd.f32 %v8783, %v9439
        %v10576 = vadd.f32 %v8784, %v9448
        %v10577 = vadd.f32 %v8785, %v9457
        %v10578 = vadd.f32 %v8786, %v9466
        %v10579 = vadd.f32 %v8787, %v9475
        %v10580 = vadd.f32 %v8788, %v9484
        %v10581 = vadd.f32 %v8789, %v9493
        %v10582 = vadd.f32 %v8790, %v9502
        %v10583 = vadd.f32 %v8791, %v9511
        %v10584 = vadd.f32 %v8792, %v9520
        %v10585 = vadd.f32 %v8793, %v9529
        %v10586 = vadd.f32 %v8794, %v9538
        %v10587 = vadd.f32 %v8795, %v9547
        %v10588 = vadd.f32 %v8796, %v9556
        %v10589 = vadd.f32 %v8797, %v9565
        %v10590 = vadd.f32 %v8798, %v9574
        %v10591 = vadd.f32 %v8799, %v9583
        %v10592 = vadd.f32 %v8800, %v9592
        %v10593 = vadd.f32 %v8801, %v9601
        %v10594 = vadd.f32 %v8802, %v9610
        %v10595 = vadd.f32 %v8803, %v9619
        %v10596 = vadd.f32 %v8804, %v9628
        %v10597 = vadd.f32 %v8805, %v9637
        %v10598 = vadd.f32 %v8806, %v9646
        %v10599 = vadd.f32 %v8807, %v9655
        %v10600 = vadd.f32 %v8808, %v9664
        %v10601 = vadd.f32 %v8809, %v9673
        %v10602 = vadd.f32 %v8810, %v9682
        %v10603 = vadd.f32 %v8811, %v9691
        %v10604 = vadd.f32 %v8812, %v9700
        %v10605 = vadd.f32 %v8813, %v9709
        %v10606 = vadd.f32 %v8814, %v9718
        %v10607 = vadd.f32 %v8815, %v9727
        %v10608 = vadd.f32 %v8816, %v9736
        %v10609 = vadd.f32 %v8817, %v9745
        %v10610 = vadd.f32 %v8818, %v9754
        %v10611 = vadd.f32 %v8819, %v9763
        %v10612 = vadd.f32 %v8820, %v9772
        %v10613 = vadd.f32 %v8821, %v9781
        %v10614 = vadd.f32 %v8822, %v9790
        %v10615 = vadd.f32 %v8823, %v9799
        %v10616 = vadd.f32 %v8824, %v9808
        %v10617 = vadd.f32 %v8825, %v9817
        %v10618 = vadd.f32 %v8826, %v9826
        %v10619 = vadd.f32 %v8827, %v9835
        %v10620 = vadd.f32 %v8828, %v9844
        %v10621 = vadd.f32 %v8829, %v9853
        %v10622 = vadd.f32 %v8830, %v9862
        %v10623 = vadd.f32 %v8831, %v9871
        %v10624 = vadd.f32 %v8832, %v9880
        %v10625 = vadd.f32 %v8833, %v9889
        %v10626 = vadd.f32 %v8834, %v9898
        %v10627 = vadd.f32 %v8835, %v9907
        %v10628 = vadd.f32 %v8836, %v9916
        %v10629 = vadd.f32 %v8837, %v9925
        %v10630 = vadd.f32 %v8838, %v9934
        %v10631 = vadd.f32 %v8839, %v9943
        %v10632 = vadd.f32 %v8840, %v9952
        %v10633 = vadd.f32 %v8841, %v9961
        %v10634 = vadd.f32 %v8842, %v9970
        %v10635 = vadd.f32 %v8843, %v9979
        %v10636 = vadd.f32 %v8844, %v9988
        %v10637 = vadd.f32 %v8845, %v9997
        %v10638 = vadd.f32 %v8846, %v10006
        %v10639 = vadd.f32 %v8847, %v10015
        %v10640 = vadd.f32 %v8848, %v10024
        %v10641 = vadd.f32 %v8849, %v10033
        %v10642 = vadd.f32 %v8850, %v10042
        %v10643 = vadd.f32 %v8851, %v10051
        %v10644 = vadd.f32 %v8852, %v10060
        %v10645 = vadd.f32 %v8853, %v10069
        %v10646 = vadd.f32 %v8854, %v10078
        %v10647 = vadd.f32 %v8855, %v10087
        %v10648 = vadd.f32 %v8856, %v10096
        %v10649 = vadd.f32 %v8857, %v10105
        %v10650 = vadd.f32 %v8858, %v10114
        %v10651 = vadd.f32 %v8859, %v10123
        %v10652 = vadd.f32 %v8860, %v10132
        %v10653 = vadd.f32 %v8861, %v10141
        %v10654 = vadd.f32 %v8862, %v10150
        %v10655 = vadd.f32 %v8863, %v10159
        %v10656 = vadd.f32 %v8864, %v10168
        %v10657 = vadd.f32 %v8865, %v10177
        %v10658 = vadd.f32 %v8866, %v10186
        %v10659 = vadd.f32 %v8867, %v10195
        %v10660 = vadd.f32 %v8868, %v10204
        %v10661 = vadd.f32 %v8869, %v10213
        %v10662 = vadd.f32 %v8870, %v10222
        %v10663 = vadd.f32 %v8871, %v10231
        %v10664 = vadd.f32 %v8872, %v10240
        %v10665 = vadd.f32 %v8873, %v10249
        %v10666 = vadd.f32 %v8874, %v10258
        %v10667 = vadd.f32 %v8875, %v10267
        %v10668 = vadd.f32 %v8876, %v10276
        %v10669 = vadd.f32 %v8877, %v10285
        %v10670 = vadd.f32 %v8878, %v10294
        %v10671 = vadd.f32 %v8879, %v10303
        %v10672 = vadd.f32 %v8880, %v10312
        %v10673 = vadd.f32 %v8881, %v10321
        %v10674 = vadd.f32 %v8882, %v10330
        %v10675 = vadd.f32 %v8883, %v10339
        %v10676 = vadd.f32 %v8884, %v10348
        %v10677 = vadd.f32 %v8885, %v10357
        %v10678 = vadd.f32 %v8886, %v10366
        %v10679 = vadd.f32 %v8887, %v10375
        %v10680 = vadd.f32 %v8888, %v10384
        %v10681 = vadd.f32 %v8889, %v10393
        %v10682 = vadd.f32 %v8890, %v10402
        %v10683 = vadd.f32 %v8891, %v10411
        %v10684 = vadd.f32 %v8892, %v10420
        %v10685 = vadd.f32 %v8893, %v10429
        %v10686 = vadd.f32 %v8894, %v10438
        %v10687 = vadd.f32 %v8895, %v10447
        %v10688 = vadd.f32 %v8896, %v10456
        %v10689 = vadd.f32 %v8897, %v10465
        %v10690 = vadd.f32 %v8898, %v10474
        %v10691 = vadd.f32 %v8899, %v10483
        %v10692 = vadd.f32 %v8900, %v10492
        %v10693 = vadd.f32 %v8901, %v10501
        %v10694 = vadd.f32 %v8902, %v10510
        %v10695 = vadd.f32 %v8903, %v10519
        %v10696 = vadd.f32 %v8904, %v10528
        %v10697 = vadd.f32 %v8905, %v10537
        %v10698 = vadd.f32 %v8906, %v10546
        %v10699 = vadd.f32 %v8907, %v10555
        %v10700 = vadd.f32 %v8908, %v10564
        %v10701 = vadd.f32 %v8909, %v10573
        %v10830 = vrot.slane %v10575, 7
        %v10831 = vsel %vm817, %v10830, %v10574
        %v10832 = vrot.slane %v10576, 6
        %v10833 = vsel %vm821, %v10832, %v10831
        %v10834 = vrot.slane %v10577, 5
        %v10835 = vsel %vm825, %v10834, %v10833
        %v10836 = vrot.slane %v10578, 4
        %v10837 = vsel %vm8280, %v10836, %v10835
        %v10838 = vrot.slane %v10579, 3
        %v10839 = vsel %vm8283, %v10838, %v10837
        %v10840 = vrot.slane %v10580, 2
        %v10841 = vsel %vm8286, %v10840, %v10839
        %v10842 = vrot.slane %v10581, 1
        %v10843 = vsel %vm8289, %v10842, %v10841
        %v10844 = vrot.slane %v10583, 7
        %v10845 = vsel %vm817, %v10844, %v10582
        %v10846 = vrot.slane %v10584, 6
        %v10847 = vsel %vm821, %v10846, %v10845
        %v10848 = vrot.slane %v10585, 5
        %v10849 = vsel %vm825, %v10848, %v10847
        %v10850 = vrot.slane %v10586, 4
        %v10851 = vsel %vm8280, %v10850, %v10849
        %v10852 = vrot.slane %v10587, 3
        %v10853 = vsel %vm8283, %v10852, %v10851
        %v10854 = vrot.slane %v10588, 2
        %v10855 = vsel %vm8286, %v10854, %v10853
        %v10856 = vrot.slane %v10589, 1
        %v10857 = vsel %vm8289, %v10856, %v10855
        %v10858 = vrot.slane %v10591, 7
        %v10859 = vsel %vm817, %v10858, %v10590
        %v10860 = vrot.slane %v10592, 6
        %v10861 = vsel %vm821, %v10860, %v10859
        %v10862 = vrot.slane %v10593, 5
        %v10863 = vsel %vm825, %v10862, %v10861
        %v10864 = vrot.slane %v10594, 4
        %v10865 = vsel %vm8280, %v10864, %v10863
        %v10866 = vrot.slane %v10595, 3
        %v10867 = vsel %vm8283, %v10866, %v10865
        %v10868 = vrot.slane %v10596, 2
        %v10869 = vsel %vm8286, %v10868, %v10867
        %v10870 = vrot.slane %v10597, 1
        %v10871 = vsel %vm8289, %v10870, %v10869
        %v10872 = vrot.slane %v10599, 7
        %v10873 = vsel %vm817, %v10872, %v10598
        %v10874 = vrot.slane %v10600, 6
        %v10875 = vsel %vm821, %v10874, %v10873
        %v10876 = vrot.slane %v10601, 5
        %v10877 = vsel %vm825, %v10876, %v10875
        %v10878 = vrot.slane %v10602, 4
        %v10879 = vsel %vm8280, %v10878, %v10877
        %v10880 = vrot.slane %v10603, 3
        %v10881 = vsel %vm8283, %v10880, %v10879
        %v10882 = vrot.slane %v10604, 2
        %v10883 = vsel %vm8286, %v10882, %v10881
        %v10884 = vrot.slane %v10605, 1
        %v10885 = vsel %vm8289, %v10884, %v10883
        %v10886 = vrot.slane %v10607, 7
        %v10887 = vsel %vm817, %v10886, %v10606
        %v10888 = vrot.slane %v10608, 6
        %v10889 = vsel %vm821, %v10888, %v10887
        %v10890 = vrot.slane %v10609, 5
        %v10891 = vsel %vm825, %v10890, %v10889
        %v10892 = vrot.slane %v10610, 4
        %v10893 = vsel %vm8280, %v10892, %v10891
        %v10894 = vrot.slane %v10611, 3
        %v10895 = vsel %vm8283, %v10894, %v10893
        %v10896 = vrot.slane %v10612, 2
        %v10897 = vsel %vm8286, %v10896, %v10895
        %v10898 = vrot.slane %v10613, 1
        %v10899 = vsel %vm8289, %v10898, %v10897
        %v10900 = vrot.slane %v10615, 7
        %v10901 = vsel %vm817, %v10900, %v10614
        %v10902 = vrot.slane %v10616, 6
        %v10903 = vsel %vm821, %v10902, %v10901
        %v10904 = vrot.slane %v10617, 5
        %v10905 = vsel %vm825, %v10904, %v10903
        %v10906 = vrot.slane %v10618, 4
        %v10907 = vsel %vm8280, %v10906, %v10905
        %v10908 = vrot.slane %v10619, 3
        %v10909 = vsel %vm8283, %v10908, %v10907
        %v10910 = vrot.slane %v10620, 2
        %v10911 = vsel %vm8286, %v10910, %v10909
        %v10912 = vrot.slane %v10621, 1
        %v10913 = vsel %vm8289, %v10912, %v10911
        %v10914 = vrot.slane %v10623, 7
        %v10915 = vsel %vm817, %v10914, %v10622
        %v10916 = vrot.slane %v10624, 6
        %v10917 = vsel %vm821, %v10916, %v10915
        %v10918 = vrot.slane %v10625, 5
        %v10919 = vsel %vm825, %v10918, %v10917
        %v10920 = vrot.slane %v10626, 4
        %v10921 = vsel %vm8280, %v10920, %v10919
        %v10922 = vrot.slane %v10627, 3
        %v10923 = vsel %vm8283, %v10922, %v10921
        %v10924 = vrot.slane %v10628, 2
        %v10925 = vsel %vm8286, %v10924, %v10923
        %v10926 = vrot.slane %v10629, 1
        %v10927 = vsel %vm8289, %v10926, %v10925
        %v10928 = vrot.slane %v10631, 7
        %v10929 = vsel %vm817, %v10928, %v10630
        %v10930 = vrot.slane %v10632, 6
        %v10931 = vsel %vm821, %v10930, %v10929
        %v10932 = vrot.slane %v10633, 5
        %v10933 = vsel %vm825, %v10932, %v10931
        %v10934 = vrot.slane %v10634, 4
        %v10935 = vsel %vm8280, %v10934, %v10933
        %v10936 = vrot.slane %v10635, 3
        %v10937 = vsel %vm8283, %v10936, %v10935
        %v10938 = vrot.slane %v10636, 2
        %v10939 = vsel %vm8286, %v10938, %v10937
        %v10940 = vrot.slane %v10637, 1
        %v10941 = vsel %vm8289, %v10940, %v10939
        %v10942 = vrot.slane %v10639, 7
        %v10943 = vsel %vm817, %v10942, %v10638
        %v10944 = vrot.slane %v10640, 6
        %v10945 = vsel %vm821, %v10944, %v10943
        %v10946 = vrot.slane %v10641, 5
        %v10947 = vsel %vm825, %v10946, %v10945
        %v10948 = vrot.slane %v10642, 4
        %v10949 = vsel %vm8280, %v10948, %v10947
        %v10950 = vrot.slane %v10643, 3
        %v10951 = vsel %vm8283, %v10950, %v10949
        %v10952 = vrot.slane %v10644, 2
        %v10953 = vsel %vm8286, %v10952, %v10951
        %v10954 = vrot.slane %v10645, 1
        %v10955 = vsel %vm8289, %v10954, %v10953
        %v10956 = vrot.slane %v10647, 7
        %v10957 = vsel %vm817, %v10956, %v10646
        %v10958 = vrot.slane %v10648, 6
        %v10959 = vsel %vm821, %v10958, %v10957
        %v10960 = vrot.slane %v10649, 5
        %v10961 = vsel %vm825, %v10960, %v10959
        %v10962 = vrot.slane %v10650, 4
        %v10963 = vsel %vm8280, %v10962, %v10961
        %v10964 = vrot.slane %v10651, 3
        %v10965 = vsel %vm8283, %v10964, %v10963
        %v10966 = vrot.slane %v10652, 2
        %v10967 = vsel %vm8286, %v10966, %v10965
        %v10968 = vrot.slane %v10653, 1
        %v10969 = vsel %vm8289, %v10968, %v10967
        %v10970 = vrot.slane %v10655, 7
        %v10971 = vsel %vm817, %v10970, %v10654
        %v10972 = vrot.slane %v10656, 6
        %v10973 = vsel %vm821, %v10972, %v10971
        %v10974 = vrot.slane %v10657, 5
        %v10975 = vsel %vm825, %v10974, %v10973
        %v10976 = vrot.slane %v10658, 4
        %v10977 = vsel %vm8280, %v10976, %v10975
        %v10978 = vrot.slane %v10659, 3
        %v10979 = vsel %vm8283, %v10978, %v10977
        %v10980 = vrot.slane %v10660, 2
        %v10981 = vsel %vm8286, %v10980, %v10979
        %v10982 = vrot.slane %v10661, 1
        %v10983 = vsel %vm8289, %v10982, %v10981
        %v10984 = vrot.slane %v10663, 7
        %v10985 = vsel %vm817, %v10984, %v10662
        %v10986 = vrot.slane %v10664, 6
        %v10987 = vsel %vm821, %v10986, %v10985
        %v10988 = vrot.slane %v10665, 5
        %v10989 = vsel %vm825, %v10988, %v10987
        %v10990 = vrot.slane %v10666, 4
        %v10991 = vsel %vm8280, %v10990, %v10989
        %v10992 = vrot.slane %v10667, 3
        %v10993 = vsel %vm8283, %v10992, %v10991
        %v10994 = vrot.slane %v10668, 2
        %v10995 = vsel %vm8286, %v10994, %v10993
        %v10996 = vrot.slane %v10669, 1
        %v10997 = vsel %vm8289, %v10996, %v10995
        %v10998 = vrot.slane %v10671, 7
        %v10999 = vsel %vm817, %v10998, %v10670
        %v11000 = vrot.slane %v10672, 6
        %v11001 = vsel %vm821, %v11000, %v10999
        %v11002 = vrot.slane %v10673, 5
        %v11003 = vsel %vm825, %v11002, %v11001
        %v11004 = vrot.slane %v10674, 4
        %v11005 = vsel %vm8280, %v11004, %v11003
        %v11006 = vrot.slane %v10675, 3
        %v11007 = vsel %vm8283, %v11006, %v11005
        %v11008 = vrot.slane %v10676, 2
        %v11009 = vsel %vm8286, %v11008, %v11007
        %v11010 = vrot.slane %v10677, 1
        %v11011 = vsel %vm8289, %v11010, %v11009
        %v11012 = vrot.slane %v10679, 7
        %v11013 = vsel %vm817, %v11012, %v10678
        %v11014 = vrot.slane %v10680, 6
        %v11015 = vsel %vm821, %v11014, %v11013
        %v11016 = vrot.slane %v10681, 5
        %v11017 = vsel %vm825, %v11016, %v11015
        %v11018 = vrot.slane %v10682, 4
        %v11019 = vsel %vm8280, %v11018, %v11017
        %v11020 = vrot.slane %v10683, 3
        %v11021 = vsel %vm8283, %v11020, %v11019
        %v11022 = vrot.slane %v10684, 2
        %v11023 = vsel %vm8286, %v11022, %v11021
        %v11024 = vrot.slane %v10685, 1
        %v11025 = vsel %vm8289, %v11024, %v11023
        %v11026 = vrot.slane %v10687, 7
        %v11027 = vsel %vm817, %v11026, %v10686
        %v11028 = vrot.slane %v10688, 6
        %v11029 = vsel %vm821, %v11028, %v11027
        %v11030 = vrot.slane %v10689, 5
        %v11031 = vsel %vm825, %v11030, %v11029
        %v11032 = vrot.slane %v10690, 4
        %v11033 = vsel %vm8280, %v11032, %v11031
        %v11034 = vrot.slane %v10691, 3
        %v11035 = vsel %vm8283, %v11034, %v11033
        %v11036 = vrot.slane %v10692, 2
        %v11037 = vsel %vm8286, %v11036, %v11035
        %v11038 = vrot.slane %v10693, 1
        %v11039 = vsel %vm8289, %v11038, %v11037
        %v11040 = vrot.slane %v10695, 7
        %v11041 = vsel %vm817, %v11040, %v10694
        %v11042 = vrot.slane %v10696, 6
        %v11043 = vsel %vm821, %v11042, %v11041
        %v11044 = vrot.slane %v10697, 5
        %v11045 = vsel %vm825, %v11044, %v11043
        %v11046 = vrot.slane %v10698, 4
        %v11047 = vsel %vm8280, %v11046, %v11045
        %v11048 = vrot.slane %v10699, 3
        %v11049 = vsel %vm8283, %v11048, %v11047
        %v11050 = vrot.slane %v10700, 2
        %v11051 = vsel %vm8286, %v11050, %v11049
        %v11052 = vrot.slane %v10701, 1
        %v11053 = vsel %vm8289, %v11052, %v11051
        %v11070 = vmul.f32 %v651, %v10843
        %v11071 = vmul.f32 %v652, %v10857
        %v11072 = vmul.f32 %v653, %v10871
        %v11073 = vmul.f32 %v654, %v10885
        %v11074 = vmul.f32 %v655, %v10899
        %v11075 = vmul.f32 %v656, %v10913
        %v11076 = vmul.f32 %v657, %v10927
        %v11077 = vmul.f32 %v658, %v10941
        %v11078 = vmul.f32 %v659, %v10955
        %v11079 = vmul.f32 %v660, %v10969
        %v11080 = vmul.f32 %v661, %v10983
        %v11081 = vmul.f32 %v662, %v10997
        %v11082 = vmul.f32 %v663, %v11011
        %v11083 = vmul.f32 %v664, %v11025
        %v11084 = vmul.f32 %v665, %v11039
        %v11085 = vmul.f32 %v666, %v11053
        %vm11086 = vcmask 64512
        %v11087 = vsel %vm11086, %v11070, 0.0
        %11088 = vadd.xlane.f32.xlu0 %v11087
        %v11089 = vpop.xlane.xlu0 %11088
        %v11090 = vsel %vm11086, %v11071, 0.0
        %11091 = vadd.xlane.f32.xlu0 %v11090
        %v11092 = vpop.xlane.xlu0 %11091
        %v11093 = vsel %vm11086, %v11072, 0.0
        %11094 = vadd.xlane.f32.xlu0 %v11093
        %v11095 = vpop.xlane.xlu0 %11094
        %v11096 = vsel %vm11086, %v11073, 0.0
        %11097 = vadd.xlane.f32.xlu0 %v11096
        %v11098 = vpop.xlane.xlu0 %11097
        %v11099 = vsel %vm11086, %v11074, 0.0
        %11100 = vadd.xlane.f32.xlu0 %v11099
        %v11101 = vpop.xlane.xlu0 %11100
        %v11102 = vsel %vm11086, %v11075, 0.0
        %11103 = vadd.xlane.f32.xlu0 %v11102
        %v11104 = vpop.xlane.xlu0 %11103
        %v11105 = vsel %vm11086, %v11076, 0.0
        %11106 = vadd.xlane.f32.xlu0 %v11105
        %v11107 = vpop.xlane.xlu0 %11106
        %v11108 = vsel %vm11086, %v11077, 0.0
        %11109 = vadd.xlane.f32.xlu0 %v11108
        %v11110 = vpop.xlane.xlu0 %11109
        %v11111 = vsel %vm11086, %v11078, 0.0
        %11112 = vadd.xlane.f32.xlu0 %v11111
        %v11113 = vpop.xlane.xlu0 %11112
        %v11114 = vsel %vm11086, %v11079, 0.0
        %11115 = vadd.xlane.f32.xlu0 %v11114
        %v11116 = vpop.xlane.xlu0 %11115
        %v11117 = vsel %vm11086, %v11080, 0.0
        %11118 = vadd.xlane.f32.xlu0 %v11117
        %v11119 = vpop.xlane.xlu0 %11118
        %v11120 = vsel %vm11086, %v11081, 0.0
        %11121 = vadd.xlane.f32.xlu0 %v11120
        %v11122 = vpop.xlane.xlu0 %11121
        %v11123 = vsel %vm11086, %v11082, 0.0
        %11124 = vadd.xlane.f32.xlu0 %v11123
        %v11125 = vpop.xlane.xlu0 %11124
        %v11126 = vsel %vm11086, %v11083, 0.0
        %11127 = vadd.xlane.f32.xlu0 %v11126
        %v11128 = vpop.xlane.xlu0 %11127
        %v11129 = vsel %vm11086, %v11084, 0.0
        %11130 = vadd.xlane.f32.xlu0 %v11129
        %v11131 = vpop.xlane.xlu0 %11130
        %v11132 = vsel %vm11086, %v11085, 0.0
        %11133 = vadd.xlane.f32.xlu0 %v11132
        %v11134 = vpop.xlane.xlu0 %11133
        %v11151 = vperm.slane %v11089, %v6161
        %v11152 = vperm.slane %v11092, %v6163
        %v11153 = vsel %vm6165, %v11152, %v11151
        %v11154 = vperm.slane %v11095, %v6167
        %v11155 = vsel %vm6169, %v11154, %v11153
        %v11156 = vperm.slane %v11098, %v6171
        %v11157 = vsel %vm6173, %v11156, %v11155
        %v11158 = vperm.slane %v11101, %v6175
        %v11159 = vsel %vm6177, %v11158, %v11157
        %v11160 = vperm.slane %v11104, %v6179
        %v11161 = vsel %vm6181, %v11160, %v11159
        %v11162 = vperm.slane %v11107, %v6183
        %v11163 = vsel %vm6185, %v11162, %v11161
        %v11164 = vperm.slane %v11110, %v6187
        %v11165 = vsel %vm6189, %v11164, %v11163
        %v11166 = vperm.slane %v11113, %v6191
        %v11167 = vsel %vm6193, %v11166, %v11165
        %v11168 = vperm.slane %v11116, %v6195
        %v11169 = vsel %vm6197, %v11168, %v11167
        %v11170 = vperm.slane %v11119, %v6199
        %v11171 = vsel %vm6201, %v11170, %v11169
        %v11172 = vperm.slane %v11122, %v6203
        %v11173 = vsel %vm6205, %v11172, %v11171
        %v11174 = vperm.slane %v11125, %v6207
        %v11175 = vsel %vm6209, %v11174, %v11173
        %v11176 = vperm.slane %v11128, %v6211
        %v11177 = vsel %vm6213, %v11176, %v11175
        %v11178 = vperm.slane %v11131, %v6215
        %v11179 = vsel %vm6217, %v11178, %v11177
        %v11180 = vperm.slane %v11134, %v6219
        %v11181 = vsel %vm6221, %v11180, %v11179
        %11183 = vst [vmem:[%s325 + $0x2] sm:$0x1] %v11181
        %v11200 = vperm.slane %v734, 0
        %v11201 = vperm.slane %v734, 1
        %v11202 = vperm.slane %v734, 2
        %v11203 = vperm.slane %v734, 3
        %v11204 = vperm.slane %v734, 4
        %v11205 = vperm.slane %v734, 5
        %v11206 = vperm.slane %v734, 6
        %v11207 = vperm.slane %v734, 7
        %v11208 = vperm.slane %v737, 0
        %v11209 = vperm.slane %v737, 1
        %v11210 = vperm.slane %v737, 2
        %v11211 = vperm.slane %v737, 3
        %v11212 = vperm.slane %v737, 4
        %v11213 = vperm.slane %v737, 5
        %v11214 = vperm.slane %v737, 6
        %v11215 = vperm.slane %v737, 7
        %v11216 = vperm.slane %v740, 0
        %v11217 = vperm.slane %v740, 1
        %v11218 = vperm.slane %v740, 2
        %v11219 = vperm.slane %v740, 3
        %v11220 = vperm.slane %v740, 4
        %v11221 = vperm.slane %v740, 5
        %v11222 = vperm.slane %v740, 6
        %v11223 = vperm.slane %v740, 7
        %v11224 = vperm.slane %v743, 0
        %v11225 = vperm.slane %v743, 1
        %v11226 = vperm.slane %v743, 2
        %v11227 = vperm.slane %v743, 3
        %v11228 = vperm.slane %v743, 4
        %v11229 = vperm.slane %v743, 5
        %v11230 = vperm.slane %v743, 6
        %v11231 = vperm.slane %v743, 7
        %v11232 = vperm.slane %v746, 0
        %v11233 = vperm.slane %v746, 1
        %v11234 = vperm.slane %v746, 2
        %v11235 = vperm.slane %v746, 3
        %v11236 = vperm.slane %v746, 4
        %v11237 = vperm.slane %v746, 5
        %v11238 = vperm.slane %v746, 6
        %v11239 = vperm.slane %v746, 7
        %v11240 = vperm.slane %v749, 0
        %v11241 = vperm.slane %v749, 1
        %v11242 = vperm.slane %v749, 2
        %v11243 = vperm.slane %v749, 3
        %v11244 = vperm.slane %v749, 4
        %v11245 = vperm.slane %v749, 5
        %v11246 = vperm.slane %v749, 6
        %v11247 = vperm.slane %v749, 7
        %v11248 = vperm.slane %v752, 0
        %v11249 = vperm.slane %v752, 1
        %v11250 = vperm.slane %v752, 2
        %v11251 = vperm.slane %v752, 3
        %v11252 = vperm.slane %v752, 4
        %v11253 = vperm.slane %v752, 5
        %v11254 = vperm.slane %v752, 6
        %v11255 = vperm.slane %v752, 7
        %v11256 = vperm.slane %v755, 0
        %v11257 = vperm.slane %v755, 1
        %v11258 = vperm.slane %v755, 2
        %v11259 = vperm.slane %v755, 3
        %v11260 = vperm.slane %v755, 4
        %v11261 = vperm.slane %v755, 5
        %v11262 = vperm.slane %v755, 6
        %v11263 = vperm.slane %v755, 7
        %v11264 = vperm.slane %v758, 0
        %v11265 = vperm.slane %v758, 1
        %v11266 = vperm.slane %v758, 2
        %v11267 = vperm.slane %v758, 3
        %v11268 = vperm.slane %v758, 4
        %v11269 = vperm.slane %v758, 5
        %v11270 = vperm.slane %v758, 6
        %v11271 = vperm.slane %v758, 7
        %v11272 = vperm.slane %v761, 0
        %v11273 = vperm.slane %v761, 1
        %v11274 = vperm.slane %v761, 2
        %v11275 = vperm.slane %v761, 3
        %v11276 = vperm.slane %v761, 4
        %v11277 = vperm.slane %v761, 5
        %v11278 = vperm.slane %v761, 6
        %v11279 = vperm.slane %v761, 7
        %v11280 = vperm.slane %v764, 0
        %v11281 = vperm.slane %v764, 1
        %v11282 = vperm.slane %v764, 2
        %v11283 = vperm.slane %v764, 3
        %v11284 = vperm.slane %v764, 4
        %v11285 = vperm.slane %v764, 5
        %v11286 = vperm.slane %v764, 6
        %v11287 = vperm.slane %v764, 7
        %v11288 = vperm.slane %v767, 0
        %v11289 = vperm.slane %v767, 1
        %v11290 = vperm.slane %v767, 2
        %v11291 = vperm.slane %v767, 3
        %v11292 = vperm.slane %v767, 4
        %v11293 = vperm.slane %v767, 5
        %v11294 = vperm.slane %v767, 6
        %v11295 = vperm.slane %v767, 7
        %v11296 = vperm.slane %v770, 0
        %v11297 = vperm.slane %v770, 1
        %v11298 = vperm.slane %v770, 2
        %v11299 = vperm.slane %v770, 3
        %v11300 = vperm.slane %v770, 4
        %v11301 = vperm.slane %v770, 5
        %v11302 = vperm.slane %v770, 6
        %v11303 = vperm.slane %v770, 7
        %v11304 = vperm.slane %v773, 0
        %v11305 = vperm.slane %v773, 1
        %v11306 = vperm.slane %v773, 2
        %v11307 = vperm.slane %v773, 3
        %v11308 = vperm.slane %v773, 4
        %v11309 = vperm.slane %v773, 5
        %v11310 = vperm.slane %v773, 6
        %v11311 = vperm.slane %v773, 7
        %v11312 = vperm.slane %v776, 0
        %v11313 = vperm.slane %v776, 1
        %v11314 = vperm.slane %v776, 2
        %v11315 = vperm.slane %v776, 3
        %v11316 = vperm.slane %v776, 4
        %v11317 = vperm.slane %v776, 5
        %v11318 = vperm.slane %v776, 6
        %v11319 = vperm.slane %v776, 7
        %v11320 = vperm.slane %v779, 0
        %v11321 = vperm.slane %v779, 1
        %v11322 = vperm.slane %v779, 2
        %v11323 = vperm.slane %v779, 3
        %v11324 = vperm.slane %v779, 4
        %v11325 = vperm.slane %v779, 5
        %v11326 = vperm.slane %v779, 6
        %v11327 = vperm.slane %v779, 7
        %v11456 = vsub.f32 %v1170, %v11200
        %v11457 = vsub.f32 %v1191, %v11201
        %v11458 = vsub.f32 %v1212, %v11202
        %v11459 = vsub.f32 %v1233, %v11203
        %v11460 = vsub.f32 %v1254, %v11204
        %v11461 = vsub.f32 %v1275, %v11205
        %v11462 = vsub.f32 %v1296, %v11206
        %v11463 = vsub.f32 %v1317, %v11207
        %v11464 = vsub.f32 %v1338, %v11208
        %v11465 = vsub.f32 %v1359, %v11209
        %v11466 = vsub.f32 %v1380, %v11210
        %v11467 = vsub.f32 %v1401, %v11211
        %v11468 = vsub.f32 %v1422, %v11212
        %v11469 = vsub.f32 %v1443, %v11213
        %v11470 = vsub.f32 %v1464, %v11214
        %v11471 = vsub.f32 %v1485, %v11215
        %v11472 = vsub.f32 %v1506, %v11216
        %v11473 = vsub.f32 %v1527, %v11217
        %v11474 = vsub.f32 %v1548, %v11218
        %v11475 = vsub.f32 %v1569, %v11219
        %v11476 = vsub.f32 %v1590, %v11220
        %v11477 = vsub.f32 %v1611, %v11221
        %v11478 = vsub.f32 %v1632, %v11222
        %v11479 = vsub.f32 %v1653, %v11223
        %v11480 = vsub.f32 %v1674, %v11224
        %v11481 = vsub.f32 %v1695, %v11225
        %v11482 = vsub.f32 %v1716, %v11226
        %v11483 = vsub.f32 %v1737, %v11227
        %v11484 = vsub.f32 %v1758, %v11228
        %v11485 = vsub.f32 %v1779, %v11229
        %v11486 = vsub.f32 %v1800, %v11230
        %v11487 = vsub.f32 %v1821, %v11231
        %v11488 = vsub.f32 %v1842, %v11232
        %v11489 = vsub.f32 %v1863, %v11233
        %v11490 = vsub.f32 %v1884, %v11234
        %v11491 = vsub.f32 %v1905, %v11235
        %v11492 = vsub.f32 %v1926, %v11236
        %v11493 = vsub.f32 %v1947, %v11237
        %v11494 = vsub.f32 %v1968, %v11238
        %v11495 = vsub.f32 %v1989, %v11239
        %v11496 = vsub.f32 %v2010, %v11240
        %v11497 = vsub.f32 %v2031, %v11241
        %v11498 = vsub.f32 %v2052, %v11242
        %v11499 = vsub.f32 %v2073, %v11243
        %v11500 = vsub.f32 %v2094, %v11244
        %v11501 = vsub.f32 %v2115, %v11245
        %v11502 = vsub.f32 %v2136, %v11246
        %v11503 = vsub.f32 %v2157, %v11247
        %v11504 = vsub.f32 %v2178, %v11248
        %v11505 = vsub.f32 %v2199, %v11249
        %v11506 = vsub.f32 %v2220, %v11250
        %v11507 = vsub.f32 %v2241, %v11251
        %v11508 = vsub.f32 %v2262, %v11252
        %v11509 = vsub.f32 %v2283, %v11253
        %v11510 = vsub.f32 %v2304, %v11254
        %v11511 = vsub.f32 %v2325, %v11255
        %v11512 = vsub.f32 %v2346, %v11256
        %v11513 = vsub.f32 %v2367, %v11257
        %v11514 = vsub.f32 %v2388, %v11258
        %v11515 = vsub.f32 %v2409, %v11259
        %v11516 = vsub.f32 %v2430, %v11260
        %v11517 = vsub.f32 %v2451, %v11261
        %v11518 = vsub.f32 %v2472, %v11262
        %v11519 = vsub.f32 %v2493, %v11263
        %v11520 = vsub.f32 %v2514, %v11264
        %v11521 = vsub.f32 %v2535, %v11265
        %v11522 = vsub.f32 %v2556, %v11266
        %v11523 = vsub.f32 %v2577, %v11267
        %v11524 = vsub.f32 %v2598, %v11268
        %v11525 = vsub.f32 %v2619, %v11269
        %v11526 = vsub.f32 %v2640, %v11270
        %v11527 = vsub.f32 %v2661, %v11271
        %v11528 = vsub.f32 %v2682, %v11272
        %v11529 = vsub.f32 %v2703, %v11273
        %v11530 = vsub.f32 %v2724, %v11274
        %v11531 = vsub.f32 %v2745, %v11275
        %v11532 = vsub.f32 %v2766, %v11276
        %v11533 = vsub.f32 %v2787, %v11277
        %v11534 = vsub.f32 %v2808, %v11278
        %v11535 = vsub.f32 %v2829, %v11279
        %v11536 = vsub.f32 %v2850, %v11280
        %v11537 = vsub.f32 %v2871, %v11281
        %v11538 = vsub.f32 %v2892, %v11282
        %v11539 = vsub.f32 %v2913, %v11283
        %v11540 = vsub.f32 %v2934, %v11284
        %v11541 = vsub.f32 %v2955, %v11285
        %v11542 = vsub.f32 %v2976, %v11286
        %v11543 = vsub.f32 %v2997, %v11287
        %v11544 = vsub.f32 %v3018, %v11288
        %v11545 = vsub.f32 %v3039, %v11289
        %v11546 = vsub.f32 %v3060, %v11290
        %v11547 = vsub.f32 %v3081, %v11291
        %v11548 = vsub.f32 %v3102, %v11292
        %v11549 = vsub.f32 %v3123, %v11293
        %v11550 = vsub.f32 %v3144, %v11294
        %v11551 = vsub.f32 %v3165, %v11295
        %v11552 = vsub.f32 %v3186, %v11296
        %v11553 = vsub.f32 %v3207, %v11297
        %v11554 = vsub.f32 %v3228, %v11298
        %v11555 = vsub.f32 %v3249, %v11299
        %v11556 = vsub.f32 %v3270, %v11300
        %v11557 = vsub.f32 %v3291, %v11301
        %v11558 = vsub.f32 %v3312, %v11302
        %v11559 = vsub.f32 %v3333, %v11303
        %v11560 = vsub.f32 %v3354, %v11304
        %v11561 = vsub.f32 %v3375, %v11305
        %v11562 = vsub.f32 %v3396, %v11306
        %v11563 = vsub.f32 %v3417, %v11307
        %v11564 = vsub.f32 %v3438, %v11308
        %v11565 = vsub.f32 %v3459, %v11309
        %v11566 = vsub.f32 %v3480, %v11310
        %v11567 = vsub.f32 %v3501, %v11311
        %v11568 = vsub.f32 %v3522, %v11312
        %v11569 = vsub.f32 %v3543, %v11313
        %v11570 = vsub.f32 %v3564, %v11314
        %v11571 = vsub.f32 %v3585, %v11315
        %v11572 = vsub.f32 %v3606, %v11316
        %v11573 = vsub.f32 %v3627, %v11317
        %v11574 = vsub.f32 %v3648, %v11318
        %v11575 = vsub.f32 %v3669, %v11319
        %v11576 = vsub.f32 %v3690, %v11320
        %v11577 = vsub.f32 %v3711, %v11321
        %v11578 = vsub.f32 %v3732, %v11322
        %v11579 = vsub.f32 %v3753, %v11323
        %v11580 = vsub.f32 %v3774, %v11324
        %v11581 = vsub.f32 %v3795, %v11325
        %v11582 = vsub.f32 %v3816, %v11326
        %v11583 = vsub.f32 %v3837, %v11327
        %v11712 = vrot.slane %v11457, 7
        %v11713 = vsel %vm817, %v11712, %v11456
        %v11714 = vrot.slane %v11458, 6
        %v11715 = vsel %vm821, %v11714, %v11713
        %v11716 = vrot.slane %v11459, 5
        %v11717 = vsel %vm825, %v11716, %v11715
        %v11718 = vrot.slane %v11460, 4
        %v11719 = vsel %vm8280, %v11718, %v11717
        %v11720 = vrot.slane %v11461, 3
        %v11721 = vsel %vm8283, %v11720, %v11719
        %v11722 = vrot.slane %v11462, 2
        %v11723 = vsel %vm8286, %v11722, %v11721
        %v11724 = vrot.slane %v11463, 1
        %v11725 = vsel %vm8289, %v11724, %v11723
        %v11726 = vrot.slane %v11465, 7
        %v11727 = vsel %vm817, %v11726, %v11464
        %v11728 = vrot.slane %v11466, 6
        %v11729 = vsel %vm821, %v11728, %v11727
        %v11730 = vrot.slane %v11467, 5
        %v11731 = vsel %vm825, %v11730, %v11729
        %v11732 = vrot.slane %v11468, 4
        %v11733 = vsel %vm8280, %v11732, %v11731
        %v11734 = vrot.slane %v11469, 3
        %v11735 = vsel %vm8283, %v11734, %v11733
        %v11736 = vrot.slane %v11470, 2
        %v11737 = vsel %vm8286, %v11736, %v11735
        %v11738 = vrot.slane %v11471, 1
        %v11739 = vsel %vm8289, %v11738, %v11737
        %v11740 = vrot.slane %v11473, 7
        %v11741 = vsel %vm817, %v11740, %v11472
        %v11742 = vrot.slane %v11474, 6
        %v11743 = vsel %vm821, %v11742, %v11741
        %v11744 = vrot.slane %v11475, 5
        %v11745 = vsel %vm825, %v11744, %v11743
        %v11746 = vrot.slane %v11476, 4
        %v11747 = vsel %vm8280, %v11746, %v11745
        %v11748 = vrot.slane %v11477, 3
        %v11749 = vsel %vm8283, %v11748, %v11747
        %v11750 = vrot.slane %v11478, 2
        %v11751 = vsel %vm8286, %v11750, %v11749
        %v11752 = vrot.slane %v11479, 1
        %v11753 = vsel %vm8289, %v11752, %v11751
        %v11754 = vrot.slane %v11481, 7
        %v11755 = vsel %vm817, %v11754, %v11480
        %v11756 = vrot.slane %v11482, 6
        %v11757 = vsel %vm821, %v11756, %v11755
        %v11758 = vrot.slane %v11483, 5
        %v11759 = vsel %vm825, %v11758, %v11757
        %v11760 = vrot.slane %v11484, 4
        %v11761 = vsel %vm8280, %v11760, %v11759
        %v11762 = vrot.slane %v11485, 3
        %v11763 = vsel %vm8283, %v11762, %v11761
        %v11764 = vrot.slane %v11486, 2
        %v11765 = vsel %vm8286, %v11764, %v11763
        %v11766 = vrot.slane %v11487, 1
        %v11767 = vsel %vm8289, %v11766, %v11765
        %v11768 = vrot.slane %v11489, 7
        %v11769 = vsel %vm817, %v11768, %v11488
        %v11770 = vrot.slane %v11490, 6
        %v11771 = vsel %vm821, %v11770, %v11769
        %v11772 = vrot.slane %v11491, 5
        %v11773 = vsel %vm825, %v11772, %v11771
        %v11774 = vrot.slane %v11492, 4
        %v11775 = vsel %vm8280, %v11774, %v11773
        %v11776 = vrot.slane %v11493, 3
        %v11777 = vsel %vm8283, %v11776, %v11775
        %v11778 = vrot.slane %v11494, 2
        %v11779 = vsel %vm8286, %v11778, %v11777
        %v11780 = vrot.slane %v11495, 1
        %v11781 = vsel %vm8289, %v11780, %v11779
        %v11782 = vrot.slane %v11497, 7
        %v11783 = vsel %vm817, %v11782, %v11496
        %v11784 = vrot.slane %v11498, 6
        %v11785 = vsel %vm821, %v11784, %v11783
        %v11786 = vrot.slane %v11499, 5
        %v11787 = vsel %vm825, %v11786, %v11785
        %v11788 = vrot.slane %v11500, 4
        %v11789 = vsel %vm8280, %v11788, %v11787
        %v11790 = vrot.slane %v11501, 3
        %v11791 = vsel %vm8283, %v11790, %v11789
        %v11792 = vrot.slane %v11502, 2
        %v11793 = vsel %vm8286, %v11792, %v11791
        %v11794 = vrot.slane %v11503, 1
        %v11795 = vsel %vm8289, %v11794, %v11793
        %v11796 = vrot.slane %v11505, 7
        %v11797 = vsel %vm817, %v11796, %v11504
        %v11798 = vrot.slane %v11506, 6
        %v11799 = vsel %vm821, %v11798, %v11797
        %v11800 = vrot.slane %v11507, 5
        %v11801 = vsel %vm825, %v11800, %v11799
        %v11802 = vrot.slane %v11508, 4
        %v11803 = vsel %vm8280, %v11802, %v11801
        %v11804 = vrot.slane %v11509, 3
        %v11805 = vsel %vm8283, %v11804, %v11803
        %v11806 = vrot.slane %v11510, 2
        %v11807 = vsel %vm8286, %v11806, %v11805
        %v11808 = vrot.slane %v11511, 1
        %v11809 = vsel %vm8289, %v11808, %v11807
        %v11810 = vrot.slane %v11513, 7
        %v11811 = vsel %vm817, %v11810, %v11512
        %v11812 = vrot.slane %v11514, 6
        %v11813 = vsel %vm821, %v11812, %v11811
        %v11814 = vrot.slane %v11515, 5
        %v11815 = vsel %vm825, %v11814, %v11813
        %v11816 = vrot.slane %v11516, 4
        %v11817 = vsel %vm8280, %v11816, %v11815
        %v11818 = vrot.slane %v11517, 3
        %v11819 = vsel %vm8283, %v11818, %v11817
        %v11820 = vrot.slane %v11518, 2
        %v11821 = vsel %vm8286, %v11820, %v11819
        %v11822 = vrot.slane %v11519, 1
        %v11823 = vsel %vm8289, %v11822, %v11821
        %v11824 = vrot.slane %v11521, 7
        %v11825 = vsel %vm817, %v11824, %v11520
        %v11826 = vrot.slane %v11522, 6
        %v11827 = vsel %vm821, %v11826, %v11825
        %v11828 = vrot.slane %v11523, 5
        %v11829 = vsel %vm825, %v11828, %v11827
        %v11830 = vrot.slane %v11524, 4
        %v11831 = vsel %vm8280, %v11830, %v11829
        %v11832 = vrot.slane %v11525, 3
        %v11833 = vsel %vm8283, %v11832, %v11831
        %v11834 = vrot.slane %v11526, 2
        %v11835 = vsel %vm8286, %v11834, %v11833
        %v11836 = vrot.slane %v11527, 1
        %v11837 = vsel %vm8289, %v11836, %v11835
        %v11838 = vrot.slane %v11529, 7
        %v11839 = vsel %vm817, %v11838, %v11528
        %v11840 = vrot.slane %v11530, 6
        %v11841 = vsel %vm821, %v11840, %v11839
        %v11842 = vrot.slane %v11531, 5
        %v11843 = vsel %vm825, %v11842, %v11841
        %v11844 = vrot.slane %v11532, 4
        %v11845 = vsel %vm8280, %v11844, %v11843
        %v11846 = vrot.slane %v11533, 3
        %v11847 = vsel %vm8283, %v11846, %v11845
        %v11848 = vrot.slane %v11534, 2
        %v11849 = vsel %vm8286, %v11848, %v11847
        %v11850 = vrot.slane %v11535, 1
        %v11851 = vsel %vm8289, %v11850, %v11849
        %v11852 = vrot.slane %v11537, 7
        %v11853 = vsel %vm817, %v11852, %v11536
        %v11854 = vrot.slane %v11538, 6
        %v11855 = vsel %vm821, %v11854, %v11853
        %v11856 = vrot.slane %v11539, 5
        %v11857 = vsel %vm825, %v11856, %v11855
        %v11858 = vrot.slane %v11540, 4
        %v11859 = vsel %vm8280, %v11858, %v11857
        %v11860 = vrot.slane %v11541, 3
        %v11861 = vsel %vm8283, %v11860, %v11859
        %v11862 = vrot.slane %v11542, 2
        %v11863 = vsel %vm8286, %v11862, %v11861
        %v11864 = vrot.slane %v11543, 1
        %v11865 = vsel %vm8289, %v11864, %v11863
        %v11866 = vrot.slane %v11545, 7
        %v11867 = vsel %vm817, %v11866, %v11544
        %v11868 = vrot.slane %v11546, 6
        %v11869 = vsel %vm821, %v11868, %v11867
        %v11870 = vrot.slane %v11547, 5
        %v11871 = vsel %vm825, %v11870, %v11869
        %v11872 = vrot.slane %v11548, 4
        %v11873 = vsel %vm8280, %v11872, %v11871
        %v11874 = vrot.slane %v11549, 3
        %v11875 = vsel %vm8283, %v11874, %v11873
        %v11876 = vrot.slane %v11550, 2
        %v11877 = vsel %vm8286, %v11876, %v11875
        %v11878 = vrot.slane %v11551, 1
        %v11879 = vsel %vm8289, %v11878, %v11877
        %v11880 = vrot.slane %v11553, 7
        %v11881 = vsel %vm817, %v11880, %v11552
        %v11882 = vrot.slane %v11554, 6
        %v11883 = vsel %vm821, %v11882, %v11881
        %v11884 = vrot.slane %v11555, 5
        %v11885 = vsel %vm825, %v11884, %v11883
        %v11886 = vrot.slane %v11556, 4
        %v11887 = vsel %vm8280, %v11886, %v11885
        %v11888 = vrot.slane %v11557, 3
        %v11889 = vsel %vm8283, %v11888, %v11887
        %v11890 = vrot.slane %v11558, 2
        %v11891 = vsel %vm8286, %v11890, %v11889
        %v11892 = vrot.slane %v11559, 1
        %v11893 = vsel %vm8289, %v11892, %v11891
        %v11894 = vrot.slane %v11561, 7
        %v11895 = vsel %vm817, %v11894, %v11560
        %v11896 = vrot.slane %v11562, 6
        %v11897 = vsel %vm821, %v11896, %v11895
        %v11898 = vrot.slane %v11563, 5
        %v11899 = vsel %vm825, %v11898, %v11897
        %v11900 = vrot.slane %v11564, 4
        %v11901 = vsel %vm8280, %v11900, %v11899
        %v11902 = vrot.slane %v11565, 3
        %v11903 = vsel %vm8283, %v11902, %v11901
        %v11904 = vrot.slane %v11566, 2
        %v11905 = vsel %vm8286, %v11904, %v11903
        %v11906 = vrot.slane %v11567, 1
        %v11907 = vsel %vm8289, %v11906, %v11905
        %v11908 = vrot.slane %v11569, 7
        %v11909 = vsel %vm817, %v11908, %v11568
        %v11910 = vrot.slane %v11570, 6
        %v11911 = vsel %vm821, %v11910, %v11909
        %v11912 = vrot.slane %v11571, 5
        %v11913 = vsel %vm825, %v11912, %v11911
        %v11914 = vrot.slane %v11572, 4
        %v11915 = vsel %vm8280, %v11914, %v11913
        %v11916 = vrot.slane %v11573, 3
        %v11917 = vsel %vm8283, %v11916, %v11915
        %v11918 = vrot.slane %v11574, 2
        %v11919 = vsel %vm8286, %v11918, %v11917
        %v11920 = vrot.slane %v11575, 1
        %v11921 = vsel %vm8289, %v11920, %v11919
        %v11922 = vrot.slane %v11577, 7
        %v11923 = vsel %vm817, %v11922, %v11576
        %v11924 = vrot.slane %v11578, 6
        %v11925 = vsel %vm821, %v11924, %v11923
        %v11926 = vrot.slane %v11579, 5
        %v11927 = vsel %vm825, %v11926, %v11925
        %v11928 = vrot.slane %v11580, 4
        %v11929 = vsel %vm8280, %v11928, %v11927
        %v11930 = vrot.slane %v11581, 3
        %v11931 = vsel %vm8283, %v11930, %v11929
        %v11932 = vrot.slane %v11582, 2
        %v11933 = vsel %vm8286, %v11932, %v11931
        %v11934 = vrot.slane %v11583, 1
        %v11935 = vsel %vm8289, %v11934, %v11933
        %11936 = vset.pattern.permute.xlu0 0
        %11937 = vperm.xlu0 %11936, %v11725
        %v11938 = vpop.permute.xlu0 %11937
        %11939 = vset.pattern.permute.xlu0 0
        %11940 = vperm.xlu0 %11939, %v11739
        %v11941 = vpop.permute.xlu0 %11940
        %11942 = vset.pattern.permute.xlu0 0
        %11943 = vperm.xlu0 %11942, %v11753
        %v11944 = vpop.permute.xlu0 %11943
        %11945 = vset.pattern.permute.xlu0 0
        %11946 = vperm.xlu0 %11945, %v11767
        %v11947 = vpop.permute.xlu0 %11946
        %11948 = vset.pattern.permute.xlu0 0
        %11949 = vperm.xlu0 %11948, %v11781
        %v11950 = vpop.permute.xlu0 %11949
        %11951 = vset.pattern.permute.xlu0 0
        %11952 = vperm.xlu0 %11951, %v11795
        %v11953 = vpop.permute.xlu0 %11952
        %11954 = vset.pattern.permute.xlu0 0
        %11955 = vperm.xlu0 %11954, %v11809
        %v11956 = vpop.permute.xlu0 %11955
        %11957 = vset.pattern.permute.xlu0 0
        %11958 = vperm.xlu0 %11957, %v11823
        %v11959 = vpop.permute.xlu0 %11958
        %11960 = vset.pattern.permute.xlu0 0
        %11961 = vperm.xlu0 %11960, %v11837
        %v11962 = vpop.permute.xlu0 %11961
        %11963 = vset.pattern.permute.xlu0 0
        %11964 = vperm.xlu0 %11963, %v11851
        %v11965 = vpop.permute.xlu0 %11964
        %11966 = vset.pattern.permute.xlu0 0
        %11967 = vperm.xlu0 %11966, %v11865
        %v11968 = vpop.permute.xlu0 %11967
        %11969 = vset.pattern.permute.xlu0 0
        %11970 = vperm.xlu0 %11969, %v11879
        %v11971 = vpop.permute.xlu0 %11970
        %11972 = vset.pattern.permute.xlu0 0
        %11973 = vperm.xlu0 %11972, %v11893
        %v11974 = vpop.permute.xlu0 %11973
        %11975 = vset.pattern.permute.xlu0 0
        %11976 = vperm.xlu0 %11975, %v11907
        %v11977 = vpop.permute.xlu0 %11976
        %11978 = vset.pattern.permute.xlu0 0
        %11979 = vperm.xlu0 %11978, %v11921
        %v11980 = vpop.permute.xlu0 %11979
        %11981 = vset.pattern.permute.xlu0 0
        %11982 = vperm.xlu0 %11981, %v11935
        %v11983 = vpop.permute.xlu0 %11982
        %v11984 = vperm.slane %v11938, %v6161
        %v11985 = vperm.slane %v11941, %v6163
        %v11986 = vsel %vm6165, %v11985, %v11984
        %v11987 = vperm.slane %v11944, %v6167
        %v11988 = vsel %vm6169, %v11987, %v11986
        %v11989 = vperm.slane %v11947, %v6171
        %v11990 = vsel %vm6173, %v11989, %v11988
        %v11991 = vperm.slane %v11950, %v6175
        %v11992 = vsel %vm6177, %v11991, %v11990
        %v11993 = vperm.slane %v11953, %v6179
        %v11994 = vsel %vm6181, %v11993, %v11992
        %v11995 = vperm.slane %v11956, %v6183
        %v11996 = vsel %vm6185, %v11995, %v11994
        %v11997 = vperm.slane %v11959, %v6187
        %v11998 = vsel %vm6189, %v11997, %v11996
        %v11999 = vperm.slane %v11962, %v6191
        %v12000 = vsel %vm6193, %v11999, %v11998
        %v12001 = vperm.slane %v11965, %v6195
        %v12002 = vsel %vm6197, %v12001, %v12000
        %v12003 = vperm.slane %v11968, %v6199
        %v12004 = vsel %vm6201, %v12003, %v12002
        %v12005 = vperm.slane %v11971, %v6203
        %v12006 = vsel %vm6205, %v12005, %v12004
        %v12007 = vperm.slane %v11974, %v6207
        %v12008 = vsel %vm6209, %v12007, %v12006
        %v12009 = vperm.slane %v11977, %v6211
        %v12010 = vsel %vm6213, %v12009, %v12008
        %v12011 = vperm.slane %v11980, %v6215
        %v12012 = vsel %vm6217, %v12011, %v12010
        %v12013 = vperm.slane %v11983, %v6219
        %v12014 = vsel %vm6221, %v12013, %v12012
        %12016 = vst [vmem:[%s325 + $0x3] sm:$0x1] %v12014
        %s12017 = sand.u32 %s184, 1
        %s12018 = scalar_lea.sflag [#allocation3], %s12017
        %s12019 = sand.u32 %s184, 1
        %s12020 = smul.addr %s12019, 4
        %s12021 = scalar_lea.vmem [#allocation2], %s12020
        // Predicated region
        $region45: #{tpu_custom_call.1} parent=43 // pred_check
          %p12022 = pneg %p194
        $region46: #{tpu_custom_call.1} parent=43 // pred_check_branch
          %12024 = sbr.rel (%p12022) target = $region48
        $region47: #{tpu_custom_call.1} parent=43 // pred_region
          %12026 = vsyncadd %s12018, 0
          %s12027 = smul.addr %s20, 4
          %s12028 = scalar_lea.hbm %s6, %s12027
          %s12030 = sshll.u32 %s12021, 4
          %s12031 = int_to_ptr.vmem [resolvable:$true] %s12030
          %s12032 = sshll.u32 %s12028, 4
          %s12033 = int_to_ptr.hbm [resolvable:$true] %s12032
          %12035 = dma.vmem_to_hbm [thread:$0]  %s12031, 64, %s12033, %s12018
        $region48: #{tpu_custom_call.1} parent=43 // pred_fallthru
          _
      $region44: #{tpu_custom_call.1} parent=5 // pred_fallthru
        _
      %p12036 = scmp.le.s32.totalorder 2, %s15
      // Predicated region
      $region49: #{tpu_custom_call.1} parent=5 // pred_check
        %p12037 = pneg %p12036
      $region50: #{tpu_custom_call.1} parent=5 // pred_check_branch
        %12039 = sbr.rel (%p12037) target = $region52
      $region51: #{tpu_custom_call.1} parent=5 // pred_region
        %s12040 = ssub.s32 %s15, 2
        // Predicated region
        $region53: #{tpu_custom_call.1} parent=51 // pred_check
          %p12041 = pneg %p200
        $region54: #{tpu_custom_call.1} parent=51 // pred_check_branch
          %12043 = sbr.rel (%p12041) target = $region56
        $region55: #{tpu_custom_call.1} parent=51 // pred_region
          %s12044 = sand.u32 %s185, 1
          %s12045 = scalar_lea.sflag [#allocation3], %s12044
          %s12046 = sand.u32 %s185, 1
          %s12047 = smul.addr %s12046, 4
          %s12048 = scalar_lea.vmem [#allocation2], %s12047
          %12050 = dma.done %s12045, 64
        $region56: #{tpu_custom_call.1} parent=51 // pred_fallthru
          _
      $region52: #{tpu_custom_call.1} parent=5 // pred_fallthru
        _
    $region6: #{tpu_custom_call.1} parent=1 // loop_footer
      %s19 = sadd.s32 1, %s15
    $region7: #{tpu_custom_call.1} parent=1 // loop_footer_branch
      %14 = sbr.rel target = $region3
    $region8: #{tpu_custom_call.1} parent=1 // loop_exit
      _
    %12051 = vsyncpa [#allocation3], 1
    %s12052 = scalar_lea.sflag [#allocation3], 1
    %12053 = vsyncpa %s12052, 1

</llo_original>
